<compile_context>
chip_gen: v7x
topology: tpu7x:2x2x1
jax: 0.10.0
libtpu: 0.0.40
codegen_flags: <defaults>
</compile_context>

<pallas_src>
import jax
import jax.numpy as jnp
from jax.experimental import pallas as pl
from jax.experimental.pallas import tpu as pltpu

# ----------------------------------------------------------------------------
# Tiny, deterministic DenseNet configuration (same topology as torchvision
# DenseNet: conv0/norm0/relu0, pool0, 4 dense blocks, 3 transitions, norm5).
# ----------------------------------------------------------------------------
GROWTH = 8
BN_SIZE = 2
INIT_FEATURES = 16
BLOCK_CONFIG = (2, 2, 2, 2)
BN_EPS = 1e-5


# ----------------------------------------------------------------------------
# Small helpers
# ----------------------------------------------------------------------------
def _vmem_specs(k):
    return [pl.BlockSpec(memory_space=pltpu.MemorySpace.VMEM) for _ in range(k)]


def _sigmoid(x):
    # numerically-stable sigmoid that lowers to the EUP tanh unit
    return 0.5 * (jnp.tanh(0.5 * x) + 1.0)


# ----------------------------------------------------------------------------
# Pallas kernels
# ----------------------------------------------------------------------------
def _matmul_bias_relu_kernel(a_ref, w_ref, b_ref, o_ref):
    # (bf16 A) @ (bf16 W) -> f32 acc, + bias, ReLU.  Used for the folded stem
    # conv0+norm0+relu0 GEMM.
    acc = jnp.dot(a_ref[...], w_ref[...], preferred_element_type=jnp.float32)
    o_ref[...] = jnp.maximum(acc + b_ref[...], 0.0).astype(o_ref.dtype)


def _matmul_kernel(a_ref, w_ref, o_ref):
    # plain GEMM (no bias) -- dense-layer 3x3 conv over im2col'd bf16 bottleneck
    o_ref[...] = jnp.dot(
        a_ref[...], w_ref[...], preferred_element_type=jnp.float32
    ).astype(o_ref.dtype)


def _bn_relu_mm_bias_relu_kernel(x_ref, s_ref, t_ref, w_ref, b_ref, o_ref):
    # Fused dense-layer head:  relu( relu(x*s1 + t1) @ W1'  + t2 )
    # where W1' already contains norm2's scale and t2 is norm2's shift.
    h = jnp.maximum(x_ref[...] * s_ref[...] + t_ref[...], 0.0)
    acc = jnp.dot(h.astype(jnp.bfloat16), w_ref[...],
                  preferred_element_type=jnp.float32) + b_ref[...]
    o_ref[...] = jnp.maximum(acc, 0.0).astype(o_ref.dtype)


def _transition_kernel(x_ref, s_ref, t_ref, w_ref, skip_ref, conv_ref):
    # encoder._transition head: skip = relu(bn(x)) (captured output), and the
    # 1x1 channel-halving conv on the same value -- one call, two outputs, no
    # HBM round-trip of the BN result.
    skip = jnp.maximum(x_ref[...] * s_ref[...] + t_ref[...], 0.0)
    skip_ref[...] = skip
    conv_ref[...] = jnp.dot(skip.astype(jnp.bfloat16), w_ref[...],
                            preferred_element_type=jnp.float32)


def _window_max_kernel(x_ref, o_ref):
    # (9, M/8, 8*C) stacked maxpool windows -> max over windows (lane-dense)
    o_ref[...] = jnp.max(x_ref[...], axis=0)


def _scse_2d(x, w1, b1, w2, b2, ws, bs):
    # SCse on one batch element; x: (HW, C) f32.
    hw = x.shape[0]
    # cSE: global avg pool -> 1x1 -> ReLU -> 1x1 -> sigmoid -> channel scale
    pooled = jnp.sum(x, axis=0, keepdims=True) * (1.0 / hw)          # (1, C)
    z = jnp.maximum(jnp.dot(pooled, w1, preferred_element_type=jnp.float32) + b1, 0.0)
    g = _sigmoid(jnp.dot(z, w2, preferred_element_type=jnp.float32) + b2)  # (1, C)
    # sSE: per-pixel channel reduction done on the VPU (no 1-lane matmul)
    s = _sigmoid(jnp.sum(x * ws, axis=1, keepdims=True) + bs)        # (HW, 1)
    return x * s + x * g


def _avgpool_scse_pair_kernel(win_ref, skip_ref,
                              a_w1, a_b1, a_w2, a_b2, a_ws, a_bs,
                              b_w1, b_b1, b_w2, b_b2, b_ws, b_bs,
                              o1_ref, o2_ref):
    # Fused: avgpool(2x2) of the transition conv output + SCse on the pooled
    # branch + SCse on the skip branch -- one call per transition stage.
    # win_ref: (4, N, HWo, Cp) pooling windows ; skip_ref: (N, HW, C)
    xp = (win_ref[0] + win_ref[1] + win_ref[2] + win_ref[3]) * 0.25
    nb = o1_ref.shape[0]
    for i in range(nb):                                   # N == 2, unrolled
        o1_ref[i] = _scse_2d(xp[i], a_w1[...], a_b1[...], a_w2[...],
                             a_b2[...], a_ws[...], a_bs[...])
        o2_ref[i] = _scse_2d(skip_ref[i], b_w1[...], b_b1[...], b_w2[...],
                             b_b2[...], b_ws[...], b_bs[...])


def _bn_scse_kernel(x_ref, s_ref, t_ref, w1, b1, w2, b2, ws, bs, o_ref):
    # encode5 tail: norm5 (no ReLU) fused with SCse, whole batch in one block.
    x = x_ref[...] * s_ref[...] + t_ref[...]
    nb = o_ref.shape[0]
    for i in range(nb):
        o_ref[i] = _scse_2d(x[i], w1[...], b1[...], w2[...], b2[...],
                            ws[...], bs[...])


# ----------------------------------------------------------------------------
# pallas_call wrappers
# ----------------------------------------------------------------------------
def matmul_bias_relu(a, w, b, *, block_m=256):
    # Stem GEMM.  When M is large enough, tile M with a "parallel" grid axis so
    # v7x's second TensorCore gets work and the pattern scales with resolution.
    m, k = a.shape
    n = w.shape[1]
    if m % block_m == 0 and m // block_m >= 2:
        return pl.pallas_call(
            _matmul_bias_relu_kernel,
            grid=(m // block_m,),
            in_specs=[pl.BlockSpec((block_m, k), lambda i: (i, 0)),
                      pl.BlockSpec((k, n), lambda i: (0, 0)),
                      pl.BlockSpec((1, n), lambda i: (0, 0))],
            out_specs=pl.BlockSpec((block_m, n), lambda i: (i, 0)),
            out_shape=jax.ShapeDtypeStruct((m, n), jnp.float32),
            compiler_params=pltpu.CompilerParams(
                dimension_semantics=("parallel",),
                vmem_limit_bytes=64 * 1024 * 1024),
        )(a, w, b)
    return pl.pallas_call(
        _matmul_bias_relu_kernel,
        out_shape=jax.ShapeDtypeStruct((m, n), jnp.float32),
        in_specs=_vmem_specs(3),
        out_specs=pl.BlockSpec(memory_space=pltpu.MemorySpace.VMEM),
    )(a, w, b)


def bn_relu_conv1x1(x, s1, t1, w, b):
    # Dense-layer head: bn1+relu -> 1x1 conv -> (+bn2 shift) -> relu, bf16 out.
    m = x.shape[0]
    n = w.shape[1]
    return pl.pallas_call(
        _bn_relu_mm_bias_relu_kernel,
        out_shape=jax.ShapeDtypeStruct((m, n), jnp.bfloat16),
        in_specs=_vmem_specs(5),
        out_specs=pl.BlockSpec(memory_space=pltpu.MemorySpace.VMEM),
    )(x, s1, t1, w, b)


def matmul_nobias(a, w):
    m = a.shape[0]
    n = w.shape[1]
    return pl.pallas_call(
        _matmul_kernel,
        out_shape=jax.ShapeDtypeStruct((m, n), jnp.float32),
        in_specs=_vmem_specs(2),
        out_specs=pl.BlockSpec(memory_space=pltpu.MemorySpace.VMEM),
    )(a, w)


def transition_call(x, s, t, w):
    m, c = x.shape
    cp = w.shape[1]
    return pl.pallas_call(
        _transition_kernel,
        out_shape=(jax.ShapeDtypeStruct((m, c), jnp.float32),
                   jax.ShapeDtypeStruct((m, cp), jnp.float32)),
        in_specs=_vmem_specs(4),
        out_specs=(pl.BlockSpec(memory_space=pltpu.MemorySpace.VMEM),
                   pl.BlockSpec(memory_space=pltpu.MemorySpace.VMEM)),
    )(x, s, t, w)


def maxpool3x3s2(x):
    # MaxPool2d(kernel=3, stride=2, padding=1).  Window gather is JAX glue; the
    # 9-way reduction runs in one lane-dense Pallas call (last dim = 8*C = 128
    # -> unmasked vector stores).
    n, h, w, c = x.shape
    ho, wo = h // 2, w // 2
    xp = jnp.pad(x, ((0, 0), (1, 1), (1, 1), (0, 0)), constant_values=-jnp.inf)
    wins = [xp[:, dy:dy + 2 * (ho - 1) + 1:2, dx:dx + 2 * (wo - 1) + 1:2, :]
            for dy in range(3) for dx in range(3)]
    stacked = jnp.stack(wins, axis=0).reshape(9, n * ho * wo, c)
    m = n * ho * wo
    if m % 8 == 0 and (8 * c) % 128 == 0:
        rows, cols = m // 8, 8 * c          # lane-dense layout
    else:
        rows, cols = m, c
    out = pl.pallas_call(
        _window_max_kernel,
        out_shape=jax.ShapeDtypeStruct((rows, cols), jnp.float32),
        in_specs=_vmem_specs(1),
        out_specs=pl.BlockSpec(memory_space=pltpu.MemorySpace.VMEM),
    )(stacked.reshape(9, rows, cols))
    return out.reshape(n, ho, wo, c)


def avgpool_scse_pair(conv_sp, skip_sp, se_pool, se_skip):
    # Fused AvgPool2d(2) + SCse(pooled) + SCse(skip) for one transition stage.
    n, h, w, cp = conv_sp.shape
    c = skip_sp.shape[-1]
    ho, wo = h // 2, w // 2
    wins = jnp.stack([conv_sp[:, dy::2, dx::2, :]
                      for dy in range(2) for dx in range(2)],
                     axis=0).reshape(4, n, ho * wo, cp)
    skip3 = skip_sp.reshape(n, h * w, c)
    o1, o2 = pl.pallas_call(
        _avgpool_scse_pair_kernel,
        out_shape=(jax.ShapeDtypeStruct((n, ho * wo, cp), jnp.float32),
                   jax.ShapeDtypeStruct((n, h * w, c), jnp.float32)),
        in_specs=_vmem_specs(14),
        out_specs=(pl.BlockSpec(memory_space=pltpu.MemorySpace.VMEM),
                   pl.BlockSpec(memory_space=pltpu.MemorySpace.VMEM)),
    )(wins, skip3,
      se_pool["w1"], se_pool["b1"], se_pool["w2"], se_pool["b2"],
      se_pool["ws"], se_pool["bs"],
      se_skip["w1"], se_skip["b1"], se_skip["w2"], se_skip["b2"],
      se_skip["ws"], se_skip["bs"])
    return o1.reshape(n, ho, wo, cp), o2.reshape(n, h, w, c)


def bn_scse(x_sp, s, t, se):
    # norm5 (no ReLU) + SCse, whole batch in one block.
    n, h, w, c = x_sp.shape
    x3 = x_sp.reshape(n, h * w, c)
    out = pl.pallas_call(
        _bn_scse_kernel,
        out_shape=jax.ShapeDtypeStruct((n, h * w, c), jnp.float32),
        in_specs=_vmem_specs(9),
        out_specs=pl.BlockSpec(memory_space=pltpu.MemorySpace.VMEM),
    )(x3, s, t, se["w1"], se["b1"], se["w2"], se["b2"], se["ws"], se["bs"])
    return out.reshape(n, h, w, c)


# ----------------------------------------------------------------------------
# JAX glue: im2col (only applied to the 3-channel input and the 16-channel
# bf16 bottlenecks, so the duplication is a few 10s of KB at these shapes)
# ----------------------------------------------------------------------------
def im2col(x, kh, kw, stride, pad):
    n, h, w, c = x.shape
    xp = jnp.pad(x, ((0, 0), (pad, pad), (pad, pad), (0, 0)))
    ho = (h + 2 * pad - kh) // stride + 1
    wo = (w + 2 * pad - kw) // stride + 1
    cols = [xp[:, dy:dy + stride * (ho - 1) + 1:stride,
                  dx:dx + stride * (wo - 1) + 1:stride, :]
            for dy in range(kh) for dx in range(kw)]
    patches = jnp.concatenate(cols, axis=-1)
    return patches.reshape(n * ho * wo, kh * kw * c), ho, wo


# ----------------------------------------------------------------------------
# Model composition
# ----------------------------------------------------------------------------
def dense_block(feats, n, h, w, layers):
    # feats: (n*h*w, C) f32 running feature map
    for lp in layers:
        bneck = bn_relu_conv1x1(feats, lp["s1"], lp["t1"], lp["w1"], lp["b1"])
        patches, _, _ = im2col(bneck.reshape(n, h, w, -1), 3, 3, 1, 1)  # bf16
        y = matmul_nobias(patches, lp["w2"])                            # (M, GROWTH)
        # TODO(synk): replace concat growth with in-place channel-slice writes
        # (input_output_aliases); at C<=32 / M<=128 the copy is negligible.
        feats = jnp.concatenate([feats, y], axis=-1)
    return feats


def densenet_se_forward(params, x_nchw):
    x = jnp.transpose(x_nchw, (0, 2, 3, 1)).astype(jnp.float32)  # NCHW -> NHWC
    n = x.shape[0]

    # encode1 = conv0(7x7/2) + norm0 + relu0 ; BN folded into the GEMM weights
    patches, h, w = im2col(x, 7, 7, 2, 3)
    x0_2d = matmul_bias_relu(patches.astype(jnp.bfloat16),
                             params["conv0_w"], params["conv0_b"])
    x0 = x0_2d.reshape(n, h, w, INIT_FEATURES)

    # encode2 = pool0 + denseblock1
    xsp = maxpool3x3s2(x0)
    h, w = h // 2, w // 2
    feats = dense_block(xsp.reshape(n * h * w, INIT_FEATURES), n, h, w,
                        params["block1"])

    skips = []
    for bi in (1, 2, 3):
        tp = params[f"trans{bi}"]
        skip2d, conv2d_ = transition_call(feats, tp["s"], tp["t"], tp["w"])
        c_full = skip2d.shape[-1]
        cp = conv2d_.shape[-1]
        x_att, skip_att = avgpool_scse_pair(conv2d_.reshape(n, h, w, cp),
                                            skip2d.reshape(n, h, w, c_full),
                                            params[f"se{bi + 1}_1"],
                                            params[f"se{bi + 1}_2"])
        skips.append(skip_att)
        h, w = h // 2, w // 2
        feats = dense_block(x_att.reshape(n * h * w, cp), n, h, w,
                            params[f"block{bi + 1}"])

    # encode5 tail = norm5 + SCse (no ReLU after norm5)
    c5 = feats.shape[-1]
    x4 = bn_scse(feats.reshape(n, h, w, c5), params["norm5_s"],
                 params["norm5_t"], params["se5"])

    x1, x2, x3 = skips
    outs = [x4, x3, x2, x1, x0]
    return [jnp.transpose(o, (0, 3, 1, 2)) for o in outs]   # back to NCHW


# ----------------------------------------------------------------------------
# Deterministic parameter construction + kernel-ready folding
# ----------------------------------------------------------------------------
def build_params():
    root = jax.random.PRNGKey(0)
    ctr = [0]

    def nk():
        ctr[0] += 1
        return jax.random.fold_in(root, ctr[0])

    def winit(shape, fan_in):
        return jax.random.normal(nk(), shape, jnp.float32) / jnp.sqrt(float(fan_in))

    def bn_init(c):
        return dict(
            gamma=1.0 + 0.05 * jax.random.normal(nk(), (c,), jnp.float32),
            beta=0.05 * jax.random.normal(nk(), (c,), jnp.float32),
            mean=0.1 * jax.random.normal(nk(), (c,), jnp.float32),
            var=1.0 + 0.1 * jax.random.uniform(nk(), (c,), jnp.float32),
        )

    def scse_init(c):
        return dict(
            w1=winit((c, c // 2), c),
            b1=0.01 * jax.random.normal(nk(), (1, c // 2), jnp.float32),
            w2=winit((c // 2, c), c // 2),
            b2=0.01 * jax.random.normal(nk(), (1, c), jnp.float32),
            ws=winit((c, 1), c),
            bs=0.01 * jax.random.normal(nk(), (1, 1), jnp.float32),
        )

    params = {}
    params["conv0_w"] = winit((7, 7, 3, INIT_FEATURES), 7 * 7 * 3)
    params["norm0"] = bn_init(INIT_FEATURES)

    c = INIT_FEATURES
    block_out = []
    for bi, nlayers in enumerate(BLOCK_CONFIG, start=1):
        layers = []
        for _ in range(nlayers):
            bneck = BN_SIZE * GROWTH
            layers.append(dict(
                norm1=bn_init(c),
                conv1_w=winit((1, 1, c, bneck), c),
                norm2=bn_init(bneck),
                conv2_w=winit((3, 3, bneck, GROWTH), 9 * bneck),
            ))
            c += GROWTH
        params[f"block{bi}"] = layers
        block_out.append(c)
        if bi < 4:
            params[f"trans{bi}"] = dict(norm=bn_init(c),
                                        conv_w=winit((1, 1, c, c // 2), c))
            c = c // 2
    params["norm5"] = bn_init(c)

    params["se2_1"] = scse_init(block_out[0] // 2)
    params["se2_2"] = scse_init(block_out[0])
    params["se3_1"] = scse_init(block_out[1] // 2)
    params["se3_2"] = scse_init(block_out[1])
    params["se4_1"] = scse_init(block_out[2] // 2)
    params["se4_2"] = scse_init(block_out[2])
    params["se5"] = scse_init(c)
    return params


def _bn_fold(bn):
    s = bn["gamma"] * jax.lax.rsqrt(bn["var"] + BN_EPS)
    t = bn["beta"] - bn["mean"] * s
    return s, t


def _scse_prep(p):
    # sSE 1x1-conv-to-1-channel weight becomes a (1, C) row for a VPU reduction
    return dict(w1=p["w1"], b1=p["b1"], w2=p["w2"], b2=p["b2"],
                ws=p["ws"].reshape(1, -1), bs=p["bs"])


def prepare_params(raw):
    prep = {}
    # stem: conv0 -> norm0 -> relu0 ; no nonlinearity between conv and BN, so
    # fold the BN scale into the conv weights and keep the shift as the bias.
    s0, t0 = _bn_fold(raw["norm0"])
    w0 = raw["conv0_w"].reshape(7 * 7 * 3, INIT_FEATURES) * s0[None, :]
    prep["conv0_w"] = w0.astype(jnp.bfloat16)
    prep["conv0_b"] = t0.reshape(1, -1)

    for bi in (1, 2, 3, 4):
        layers = []
        for lp in raw[f"block{bi}"]:
            s1, t1 = _bn_fold(lp["norm1"])
            s2, t2 = _bn_fold(lp["norm2"])
            cin = lp["conv1_w"].shape[2]
            bneck = lp["conv1_w"].shape[3]
            w1 = lp["conv1_w"].reshape(cin, bneck) * s2[None, :]  # fold norm2 scale
            layers.append(dict(
                s1=s1.reshape(1, -1), t1=t1.reshape(1, -1),
                w1=w1.astype(jnp.bfloat16), b1=t2.reshape(1, -1),
                w2=lp["conv2_w"].reshape(9 * bneck, GROWTH).astype(jnp.bfloat16),
            ))
        prep[f"block{bi}"] = layers
        if bi < 4:
            tp = raw[f"trans{bi}"]
            s, t = _bn_fold(tp["norm"])
            cin = tp["conv_w"].shape[2]
            prep[f"trans{bi}"] = dict(
                s=s.reshape(1, -1), t=t.reshape(1, -1),
                w=tp["conv_w"].reshape(cin, cin // 2).astype(jnp.bfloat16))

    s5, t5 = _bn_fold(raw["norm5"])
    prep["norm5_s"] = s5.reshape(1, 1, -1)
    prep["norm5_t"] = t5.reshape(1, 1, -1)
    for k in ("se2_1", "se2_2", "se3_1", "se3_2", "se4_1", "se4_2", "se5"):
        prep[k] = _scse_prep(raw[k])
    return prep


if __name__ == "__main__":
    raw_params = build_params()
    params = prepare_params(raw_params)

    # Small input consistent with the module: NCHW (2, 3, 32, 32)
    x = jax.random.normal(jax.random.PRNGKey(0), (2, 3, 32, 32), jnp.float32)

    fwd = jax.jit(densenet_se_forward)
    outs = fwd(params, x)
    outs = jax.block_until_ready(outs)

    expected = [(2, 32, 1, 1), (2, 32, 2, 2), (2, 32, 4, 4),
                (2, 32, 8, 8), (2, 16, 16, 16)]
    assert [tuple(o.shape) for o in outs] == expected, \
        [tuple(o.shape) for o in outs]
    assert all(bool(jnp.all(jnp.isfinite(o))) for o in outs)
    print("KERNEL_OK")
</pallas_src>

<mosaic_0001>
module attributes {stable_mosaic.version = 11 : i64} {
  func.func @_matmul_bias_relu_kernel(%arg0: i32, %arg1: memref<256x147xbf16, #tpu.memory_space<vmem>>, %arg2: memref<147x16xbf16, #tpu.memory_space<vmem>>, %arg3: memref<1x16xf32, #tpu.memory_space<vmem>>, %arg4: memref<256x16xf32, #tpu.memory_space<vmem>>) attributes {dimension_semantics = [#tpu.dimension_semantics<parallel>], iteration_bounds = array<i64: 2>, scalar_prefetch = 0 : i64, scratch_operands = 0 : i64, tpu.core_type = #tpu.core_type<tc>, window_params = [{transform_indices = @transform_0, window_bounds = array<i64: 256, 147>}, {pipeline_mode = #tpu.pipeline_mode<synchronous>, transform_indices = @transform_1, window_bounds = array<i64: 147, 16>}, {pipeline_mode = #tpu.pipeline_mode<synchronous>, transform_indices = @transform_2, window_bounds = array<i64: 1, 16>}, {transform_indices = @transform_3, window_bounds = array<i64: 256, 16>}]} {
    %c0 = arith.constant 0 : index
    %c0_0 = arith.constant 0 : index
    %0 = vector.load %arg1[%c0, %c0_0] : memref<256x147xbf16, #tpu.memory_space<vmem>>, vector<256x147xbf16>
    %c0_1 = arith.constant 0 : index
    %c0_2 = arith.constant 0 : index
    %1 = vector.load %arg2[%c0_1, %c0_2] : memref<147x16xbf16, #tpu.memory_space<vmem>>, vector<147x16xbf16>
    %cst = arith.constant dense<0.000000e+00> : vector<256x16xf32>
    %2 = tpu.matmul %0, %1, %cst {dimension_numbers = #tpu.dot_dimension_numbers<[1], [0], [0], [1], [0, 0, 1, 1], [], []>} : vector<256x147xbf16>, vector<147x16xbf16>, vector<256x16xf32> -> vector<256x16xf32>
    %c0_3 = arith.constant 0 : index
    %c0_4 = arith.constant 0 : index
    %3 = vector.load %arg3[%c0_3, %c0_4] : memref<1x16xf32, #tpu.memory_space<vmem>>, vector<1x16xf32>
    %4 = vector.broadcast %3 : vector<1x16xf32> to vector<256x16xf32>
    %5 = arith.addf %2, %4 : vector<256x16xf32>
    %cst_5 = arith.constant 0.000000e+00 : f32
    %6 = vector.broadcast %cst_5 : f32 to vector<256x16xf32>
    %7 = arith.maximumf %5, %6 : vector<256x16xf32>
    %c0_6 = arith.constant 0 : index
    %c0_7 = arith.constant 0 : index
    %8 = vector.load %arg4[%c0_6, %c0_7] : memref<256x16xf32, #tpu.memory_space<vmem>>, vector<256x16xf32>
    tpu.vector_store %arg4[%c0_6, %c0_7], %7 {strides = array<i32>} : memref<256x16xf32, #tpu.memory_space<vmem>>, vector<256x16xf32>,
    return
  }
  func.func @transform_0(%arg0: i32) -> (i32, i32) {
    %c0_i32 = arith.constant 0 : i32
    %c0_i32_0 = arith.constant 0 : i32
    return %arg0, %c0_i32 : i32, i32
  }
  func.func @transform_1(%arg0: i32) -> (i32, i32) {
    %c0_i32 = arith.constant 0 : i32
    %c0_i32_0 = arith.constant 0 : i32
    %c0_i32_1 = arith.constant 0 : i32
    return %c0_i32, %c0_i32_0 : i32, i32
  }
  func.func @transform_2(%arg0: i32) -> (i32, i32) {
    %c0_i32 = arith.constant 0 : i32
    %c0_i32_0 = arith.constant 0 : i32
    %c0_i32_1 = arith.constant 0 : i32
    return %c0_i32, %c0_i32_0 : i32, i32
  }
  func.func @transform_3(%arg0: i32) -> (i32, i32) {
    %c0_i32 = arith.constant 0 : i32
    %c0_i32_0 = arith.constant 0 : i32
    return %arg0, %c0_i32 : i32, i32
  }
}

module attributes {stable_mosaic.version = 11 : i64} {
  func.func @_window_max_kernel(%arg0: memref<9x16x128xf32, #tpu.memory_space<vmem>>, %arg1: memref<16x128xf32, #tpu.memory_space<vmem>>) attributes {dimension_semantics = [], scalar_prefetch = 0 : i64, scratch_operands = 0 : i64, tpu.core_type = #tpu.core_type<tc>} {
    %c0 = arith.constant 0 : index
    %c0_0 = arith.constant 0 : index
    %c0_1 = arith.constant 0 : index
    %0 = vector.load %arg0[%c0, %c0_0, %c0_1] : memref<9x16x128xf32, #tpu.memory_space<vmem>>, vector<9x16x128xf32>
    %cst = arith.constant dense<0xFF800000> : vector<16x128xf32>
    %1 = vector.multi_reduction <maximumf>, %0, %cst [0] : vector<9x16x128xf32> to vector<16x128xf32>
    %c0_2 = arith.constant 0 : index
    %c0_3 = arith.constant 0 : index
    %2 = vector.load %arg1[%c0_2, %c0_3] : memref<16x128xf32, #tpu.memory_space<vmem>>, vector<16x128xf32>
    tpu.vector_store %arg1[%c0_2, %c0_3], %1 {strides = array<i32>} : memref<16x128xf32, #tpu.memory_space<vmem>>, vector<16x128xf32>,
    return
  }
}

module attributes {stable_mosaic.version = 11 : i64} {
  func.func @_bn_relu_mm_bias_relu_kernel(%arg0: memref<128x16xf32, #tpu.memory_space<vmem>>, %arg1: memref<1x16xf32, #tpu.memory_space<vmem>>, %arg2: memref<1x16xf32, #tpu.memory_space<vmem>>, %arg3: memref<16x16xbf16, #tpu.memory_space<vmem>>, %arg4: memref<1x16xf32, #tpu.memory_space<vmem>>, %arg5: memref<128x16xbf16, #tpu.memory_space<vmem>>) attributes {dimension_semantics = [], scalar_prefetch = 0 : i64, scratch_operands = 0 : i64, tpu.core_type = #tpu.core_type<tc>} {
    %c0 = arith.constant 0 : index
    %c0_0 = arith.constant 0 : index
    %0 = vector.load %arg0[%c0, %c0_0] : memref<128x16xf32, #tpu.memory_space<vmem>>, vector<128x16xf32>
    %c0_1 = arith.constant 0 : index
    %c0_2 = arith.constant 0 : index
    %1 = vector.load %arg1[%c0_1, %c0_2] : memref<1x16xf32, #tpu.memory_space<vmem>>, vector<1x16xf32>
    %2 = vector.broadcast %1 : vector<1x16xf32> to vector<128x16xf32>
    %3 = arith.mulf %0, %2 : vector<128x16xf32>
    %c0_3 = arith.constant 0 : index
    %c0_4 = arith.constant 0 : index
    %4 = vector.load %arg2[%c0_3, %c0_4] : memref<1x16xf32, #tpu.memory_space<vmem>>, vector<1x16xf32>
    %5 = vector.broadcast %4 : vector<1x16xf32> to vector<128x16xf32>
    %6 = arith.addf %3, %5 : vector<128x16xf32>
    %cst = arith.constant 0.000000e+00 : f32
    %7 = vector.broadcast %cst : f32 to vector<128x16xf32>
    %8 = arith.maximumf %6, %7 : vector<128x16xf32>
    %9 = arith.truncf %8 : vector<128x16xf32> to vector<128x16xbf16>
    %c0_5 = arith.constant 0 : index
    %c0_6 = arith.constant 0 : index
    %10 = vector.load %arg3[%c0_5, %c0_6] : memref<16x16xbf16, #tpu.memory_space<vmem>>, vector<16x16xbf16>
    %cst_7 = arith.constant dense<0.000000e+00> : vector<128x16xf32>
    %11 = tpu.matmul %9, %10, %cst_7 {dimension_numbers = #tpu.dot_dimension_numbers<[1], [0], [0], [1], [0, 0, 1, 1], [], []>} : vector<128x16xbf16>, vector<16x16xbf16>, vector<128x16xf32> -> vector<128x16xf32>
    %c0_8 = arith.constant 0 : index
    %c0_9 = arith.constant 0 : index
    %12 = vector.load %arg4[%c0_8, %c0_9] : memref<1x16xf32, #tpu.memory_space<vmem>>, vector<1x16xf32>
    %13 = vector.broadcast %12 : vector<1x16xf32> to vector<128x16xf32>
    %14 = arith.addf %11, %13 : vector<128x16xf32>
    %cst_10 = arith.constant 0.000000e+00 : f32
    %15 = vector.broadcast %cst_10 : f32 to vector<128x16xf32>
    %16 = arith.maximumf %14, %15 : vector<128x16xf32>
    %17 = arith.truncf %16 : vector<128x16xf32> to vector<128x16xbf16>
    %c0_11 = arith.constant 0 : index
    %c0_12 = arith.constant 0 : index
    %18 = vector.load %arg5[%c0_11, %c0_12] : memref<128x16xbf16, #tpu.memory_space<vmem>>, vector<128x16xbf16>
    tpu.vector_store %arg5[%c0_11, %c0_12], %17 {strides = array<i32>} : memref<128x16xbf16, #tpu.memory_space<vmem>>, vector<128x16xbf16>,
    return
  }
}

module attributes {stable_mosaic.version = 11 : i64} {
  func.func @_matmul_kernel(%arg0: memref<128x144xbf16, #tpu.memory_space<vmem>>, %arg1: memref<144x8xbf16, #tpu.memory_space<vmem>>, %arg2: memref<128x8xf32, #tpu.memory_space<vmem>>) attributes {dimension_semantics = [], scalar_prefetch = 0 : i64, scratch_operands = 0 : i64, tpu.core_type = #tpu.core_type<tc>} {
    %c0 = arith.constant 0 : index
    %c0_0 = arith.constant 0 : index
    %0 = vector.load %arg0[%c0, %c0_0] : memref<128x144xbf16, #tpu.memory_space<vmem>>, vector<128x144xbf16>
    %c0_1 = arith.constant 0 : index
    %c0_2 = arith.constant 0 : index
    %1 = vector.load %arg1[%c0_1, %c0_2] : memref<144x8xbf16, #tpu.memory_space<vmem>>, vector<144x8xbf16>
    %cst = arith.constant dense<0.000000e+00> : vector<128x8xf32>
    %2 = tpu.matmul %0, %1, %cst {dimension_numbers = #tpu.dot_dimension_numbers<[1], [0], [0], [1], [0, 0, 1, 1], [], []>} : vector<128x144xbf16>, vector<144x8xbf16>, vector<128x8xf32> -> vector<128x8xf32>
    %c0_3 = arith.constant 0 : index
    %c0_4 = arith.constant 0 : index
    %3 = vector.load %arg2[%c0_3, %c0_4] : memref<128x8xf32, #tpu.memory_space<vmem>>, vector<128x8xf32>
    tpu.vector_store %arg2[%c0_3, %c0_4], %2 {strides = array<i32>} : memref<128x8xf32, #tpu.memory_space<vmem>>, vector<128x8xf32>,
    return
  }
}

module attributes {stable_mosaic.version = 11 : i64} {
  func.func @_bn_relu_mm_bias_relu_kernel(%arg0: memref<128x24xf32, #tpu.memory_space<vmem>>, %arg1: memref<1x24xf32, #tpu.memory_space<vmem>>, %arg2: memref<1x24xf32, #tpu.memory_space<vmem>>, %arg3: memref<24x16xbf16, #tpu.memory_space<vmem>>, %arg4: memref<1x16xf32, #tpu.memory_space<vmem>>, %arg5: memref<128x16xbf16, #tpu.memory_space<vmem>>) attributes {dimension_semantics = [], scalar_prefetch = 0 : i64, scratch_operands = 0 : i64, tpu.core_type = #tpu.core_type<tc>} {
    %c0 = arith.constant 0 : index
    %c0_0 = arith.constant 0 : index
    %0 = vector.load %arg0[%c0, %c0_0] : memref<128x24xf32, #tpu.memory_space<vmem>>, vector<128x24xf32>
    %c0_1 = arith.constant 0 : index
    %c0_2 = arith.constant 0 : index
    %1 = vector.load %arg1[%c0_1, %c0_2] : memref<1x24xf32, #tpu.memory_space<vmem>>, vector<1x24xf32>
    %2 = vector.broadcast %1 : vector<1x24xf32> to vector<128x24xf32>
    %3 = arith.mulf %0, %2 : vector<128x24xf32>
    %c0_3 = arith.constant 0 : index
    %c0_4 = arith.constant 0 : index
    %4 = vector.load %arg2[%c0_3, %c0_4] : memref<1x24xf32, #tpu.memory_space<vmem>>, vector<1x24xf32>
    %5 = vector.broadcast %4 : vector<1x24xf32> to vector<128x24xf32>
    %6 = arith.addf %3, %5 : vector<128x24xf32>
    %cst = arith.constant 0.000000e+00 : f32
    %7 = vector.broadcast %cst : f32 to vector<128x24xf32>
    %8 = arith.maximumf %6, %7 : vector<128x24xf32>
    %9 = arith.truncf %8 : vector<128x24xf32> to vector<128x24xbf16>
    %c0_5 = arith.constant 0 : index
    %c0_6 = arith.constant 0 : index
    %10 = vector.load %arg3[%c0_5, %c0_6] : memref<24x16xbf16, #tpu.memory_space<vmem>>, vector<24x16xbf16>
    %cst_7 = arith.constant dense<0.000000e+00> : vector<128x16xf32>
    %11 = tpu.matmul %9, %10, %cst_7 {dimension_numbers = #tpu.dot_dimension_numbers<[1], [0], [0], [1], [0, 0, 1, 1], [], []>} : vector<128x24xbf16>, vector<24x16xbf16>, vector<128x16xf32> -> vector<128x16xf32>
    %c0_8 = arith.constant 0 : index
    %c0_9 = arith.constant 0 : index
    %12 = vector.load %arg4[%c0_8, %c0_9] : memref<1x16xf32, #tpu.memory_space<vmem>>, vector<1x16xf32>
    %13 = vector.broadcast %12 : vector<1x16xf32> to vector<128x16xf32>
    %14 = arith.addf %11, %13 : vector<128x16xf32>
    %cst_10 = arith.constant 0.000000e+00 : f32
    %15 = vector.broadcast %cst_10 : f32 to vector<128x16xf32>
    %16 = arith.maximumf %14, %15 : vector<128x16xf32>
    %17 = arith.truncf %16 : vector<128x16xf32> to vector<128x16xbf16>
    %c0_11 = arith.constant 0 : index
    %c0_12 = arith.constant 0 : index
    %18 = vector.load %arg5[%c0_11, %c0_12] : memref<128x16xbf16, #tpu.memory_space<vmem>>, vector<128x16xbf16>
    tpu.vector_store %arg5[%c0_11, %c0_12], %17 {strides = array<i32>} : memref<128x16xbf16, #tpu.memory_space<vmem>>, vector<128x16xbf16>,
    return
  }
}

module attributes {stable_mosaic.version = 11 : i64} {
  func.func @_transition_kernel(%arg0: memref<128x32xf32, #tpu.memory_space<vmem>>, %arg1: memref<1x32xf32, #tpu.memory_space<vmem>>, %arg2: memref<1x32xf32, #tpu.memory_space<vmem>>, %arg3: memref<32x16xbf16, #tpu.memory_space<vmem>>, %arg4: memref<128x32xf32, #tpu.memory_space<vmem>>, %arg5: memref<128x16xf32, #tpu.memory_space<vmem>>) attributes {dimension_semantics = [], scalar_prefetch = 0 : i64, scratch_operands = 0 : i64, tpu.core_type = #tpu.core_type<tc>} {
    %c0 = arith.constant 0 : index
    %c0_0 = arith.constant 0 : index
    %0 = vector.load %arg0[%c0, %c0_0] : memref<128x32xf32, #tpu.memory_space<vmem>>, vector<128x32xf32>
    %c0_1 = arith.constant 0 : index
    %c0_2 = arith.constant 0 : index
    %1 = vector.load %arg1[%c0_1, %c0_2] : memref<1x32xf32, #tpu.memory_space<vmem>>, vector<1x32xf32>
    %2 = vector.broadcast %1 : vector<1x32xf32> to vector<128x32xf32>
    %3 = arith.mulf %0, %2 : vector<128x32xf32>
    %c0_3 = arith.constant 0 : index
    %c0_4 = arith.constant 0 : index
    %4 = vector.load %arg2[%c0_3, %c0_4] : memref<1x32xf32, #tpu.memory_space<vmem>>, vector<1x32xf32>
    %5 = vector.broadcast %4 : vector<1x32xf32> to vector<128x32xf32>
    %6 = arith.addf %3, %5 : vector<128x32xf32>
    %cst = arith.constant 0.000000e+00 : f32
    %7 = vector.broadcast %cst : f32 to vector<128x32xf32>
    %8 = arith.maximumf %6, %7 : vector<128x32xf32>
    %c0_5 = arith.constant 0 : index
    %c0_6 = arith.constant 0 : index
    %9 = vector.load %arg4[%c0_5, %c0_6] : memref<128x32xf32, #tpu.memory_space<vmem>>, vector<128x32xf32>
    tpu.vector_store %arg4[%c0_5, %c0_6], %8 {strides = array<i32>} : memref<128x32xf32, #tpu.memory_space<vmem>>, vector<128x32xf32>,
    %10 = arith.truncf %8 : vector<128x32xf32> to vector<128x32xbf16>
    %c0_7 = arith.constant 0 : index
    %c0_8 = arith.constant 0 : index
    %11 = vector.load %arg3[%c0_7, %c0_8] : memref<32x16xbf16, #tpu.memory_space<vmem>>, vector<32x16xbf16>
    %cst_9 = arith.constant dense<0.000000e+00> : vector<128x16xf32>
    %12 = tpu.matmul %10, %11, %cst_9 {dimension_numbers = #tpu.dot_dimension_numbers<[1], [0], [0], [1], [0, 0, 1, 1], [], []>} : vector<128x32xbf16>, vector<32x16xbf16>, vector<128x16xf32> -> vector<128x16xf32>
    %c0_10 = arith.constant 0 : index
    %c0_11 = arith.constant 0 : index
    %13 = vector.load %arg5[%c0_10, %c0_11] : memref<128x16xf32, #tpu.memory_space<vmem>>, vector<128x16xf32>
    tpu.vector_store %arg5[%c0_10, %c0_11], %12 {strides = array<i32>} : memref<128x16xf32, #tpu.memory_space<vmem>>, vector<128x16xf32>,
    return
  }
}

module attributes {stable_mosaic.version = 11 : i64} {
  func.func @_bn_relu_mm_bias_relu_kernel(%arg0: memref<32x16xf32, #tpu.memory_space<vmem>>, %arg1: memref<1x16xf32, #tpu.memory_space<vmem>>, %arg2: memref<1x16xf32, #tpu.memory_space<vmem>>, %arg3: memref<16x16xbf16, #tpu.memory_space<vmem>>, %arg4: memref<1x16xf32, #tpu.memory_space<vmem>>, %arg5: memref<32x16xbf16, #tpu.memory_space<vmem>>) attributes {dimension_semantics = [], scalar_prefetch = 0 : i64, scratch_operands = 0 : i64, tpu.core_type = #tpu.core_type<tc>} {
    %c0 = arith.constant 0 : index
    %c0_0 = arith.constant 0 : index
    %0 = vector.load %arg0[%c0, %c0_0] : memref<32x16xf32, #tpu.memory_space<vmem>>, vector<32x16xf32>
    %c0_1 = arith.constant 0 : index
    %c0_2 = arith.constant 0 : index
    %1 = vector.load %arg1[%c0_1, %c0_2] : memref<1x16xf32, #tpu.memory_space<vmem>>, vector<1x16xf32>
    %2 = vector.broadcast %1 : vector<1x16xf32> to vector<32x16xf32>
    %3 = arith.mulf %0, %2 : vector<32x16xf32>
    %c0_3 = arith.constant 0 : index
    %c0_4 = arith.constant 0 : index
    %4 = vector.load %arg2[%c0_3, %c0_4] : memref<1x16xf32, #tpu.memory_space<vmem>>, vector<1x16xf32>
    %5 = vector.broadcast %4 : vector<1x16xf32> to vector<32x16xf32>
    %6 = arith.addf %3, %5 : vector<32x16xf32>
    %cst = arith.constant 0.000000e+00 : f32
    %7 = vector.broadcast %cst : f32 to vector<32x16xf32>
    %8 = arith.maximumf %6, %7 : vector<32x16xf32>
    %9 = arith.truncf %8 : vector<32x16xf32> to vector<32x16xbf16>
    %c0_5 = arith.constant 0 : index
    %c0_6 = arith.constant 0 : index
    %10 = vector.load %arg3[%c0_5, %c0_6] : memref<16x16xbf16, #tpu.memory_space<vmem>>, vector<16x16xbf16>
    %cst_7 = arith.constant dense<0.000000e+00> : vector<32x16xf32>
    %11 = tpu.matmul %9, %10, %cst_7 {dimension_numbers = #tpu.dot_dimension_numbers<[1], [0], [0], [1], [0, 0, 1, 1], [], []>} : vector<32x16xbf16>, vector<16x16xbf16>, vector<32x16xf32> -> vector<32x16xf32>
    %c0_8 = arith.constant 0 : index
    %c0_9 = arith.constant 0 : index
    %12 = vector.load %arg4[%c0_8, %c0_9] : memref<1x16xf32, #tpu.memory_space<vmem>>, vector<1x16xf32>
    %13 = vector.broadcast %12 : vector<1x16xf32> to vector<32x16xf32>
    %14 = arith.addf %11, %13 : vector<32x16xf32>
    %cst_10 = arith.constant 0.000000e+00 : f32
    %15 = vector.broadcast %cst_10 : f32 to vector<32x16xf32>
    %16 = arith.maximumf %14, %15 : vector<32x16xf32>
    %17 = arith.truncf %16 : vector<32x16xf32> to vector<32x16xbf16>
    %c0_11 = arith.constant 0 : index
    %c0_12 = arith.constant 0 : index
    %18 = vector.load %arg5[%c0_11, %c0_12] : memref<32x16xbf16, #tpu.memory_space<vmem>>, vector<32x16xbf16>
    tpu.vector_store %arg5[%c0_11, %c0_12], %17 {strides = array<i32>} : memref<32x16xbf16, #tpu.memory_space<vmem>>, vector<32x16xbf16>,
    return
  }
}

module attributes {stable_mosaic.version = 11 : i64} {
  func.func @_avgpool_scse_pair_kernel(%arg0: memref<4x2x16x16xf32, #tpu.memory_space<vmem>>, %arg1: memref<2x64x32xf32, #tpu.memory_space<vmem>>, %arg2: memref<16x8xf32, #tpu.memory_space<vmem>>, %arg3: memref<1x8xf32, #tpu.memory_space<vmem>>, %arg4: memref<8x16xf32, #tpu.memory_space<vmem>>, %arg5: memref<1x16xf32, #tpu.memory_space<vmem>>, %arg6: memref<1x16xf32, #tpu.memory_space<vmem>>, %arg7: memref<1x1xf32, #tpu.memory_space<vmem>>, %arg8: memref<32x16xf32, #tpu.memory_space<vmem>>, %arg9: memref<1x16xf32, #tpu.memory_space<vmem>>, %arg10: memref<16x32xf32, #tpu.memory_space<vmem>>, %arg11: memref<1x32xf32, #tpu.memory_space<vmem>>, %arg12: memref<1x32xf32, #tpu.memory_space<vmem>>, %arg13: memref<1x1xf32, #tpu.memory_space<vmem>>, %arg14: memref<2x16x16xf32, #tpu.memory_space<vmem>>, %arg15: memref<2x64x32xf32, #tpu.memory_space<vmem>>) attributes {dimension_semantics = [], scalar_prefetch = 0 : i64, scratch_operands = 0 : i64, tpu.core_type = #tpu.core_type<tc>} {
    %c0 = arith.constant 0 : index
    %c0_0 = arith.constant 0 : index
    %c0_1 = arith.constant 0 : index
    %c0_2 = arith.constant 0 : index
    %0 = vector.load %arg0[%c0, %c0_0, %c0_1, %c0_2] : memref<4x2x16x16xf32, #tpu.memory_space<vmem>>, vector<1x2x16x16xf32>
    %1 = vector.shape_cast %0 : vector<1x2x16x16xf32> to vector<2x16x16xf32>
    %c1 = arith.constant 1 : index
    %c0_3 = arith.constant 0 : index
    %c0_4 = arith.constant 0 : index
    %c0_5 = arith.constant 0 : index
    %2 = vector.load %arg0[%c1, %c0_3, %c0_4, %c0_5] : memref<4x2x16x16xf32, #tpu.memory_space<vmem>>, vector<1x2x16x16xf32>
    %3 = vector.shape_cast %2 : vector<1x2x16x16xf32> to vector<2x16x16xf32>
    %4 = arith.addf %1, %3 : vector<2x16x16xf32>
    %c2 = arith.constant 2 : index
    %c0_6 = arith.constant 0 : index
    %c0_7 = arith.constant 0 : index
    %c0_8 = arith.constant 0 : index
    %5 = vector.load %arg0[%c2, %c0_6, %c0_7, %c0_8] : memref<4x2x16x16xf32, #tpu.memory_space<vmem>>, vector<1x2x16x16xf32>
    %6 = vector.shape_cast %5 : vector<1x2x16x16xf32> to vector<2x16x16xf32>
    %7 = arith.addf %4, %6 : vector<2x16x16xf32>
    %c3 = arith.constant 3 : index
    %c0_9 = arith.constant 0 : index
    %c0_10 = arith.constant 0 : index
    %c0_11 = arith.constant 0 : index
    %8 = vector.load %arg0[%c3, %c0_9, %c0_10, %c0_11] : memref<4x2x16x16xf32, #tpu.memory_space<vmem>>, vector<1x2x16x16xf32>
    %9 = vector.shape_cast %8 : vector<1x2x16x16xf32> to vector<2x16x16xf32>
    %10 = arith.addf %7, %9 : vector<2x16x16xf32>
    %cst = arith.constant 2.500000e-01 : f32
    %11 = vector.broadcast %cst : f32 to vector<2x16x16xf32>
    %12 = arith.mulf %10, %11 : vector<2x16x16xf32>
    %13 = vector.extract_strided_slice %12 {offsets = [0, 0, 0], sizes = [1, 16, 16], strides = [1, 1, 1]} : vector<2x16x16xf32> to vector<1x16x16xf32>
    %14 = vector.shape_cast %13 : vector<1x16x16xf32> to vector<16x16xf32>
    %c0_12 = arith.constant 0 : index
    %c0_13 = arith.constant 0 : index
    %15 = vector.load %arg2[%c0_12, %c0_13] : memref<16x8xf32, #tpu.memory_space<vmem>>, vector<16x8xf32>
    %c0_14 = arith.constant 0 : index
    %c0_15 = arith.constant 0 : index
    %16 = vector.load %arg3[%c0_14, %c0_15] : memref<1x8xf32, #tpu.memory_space<vmem>>, vector<1x8xf32>
    %c0_16 = arith.constant 0 : index
    %c0_17 = arith.constant 0 : index
    %17 = vector.load %arg4[%c0_16, %c0_17] : memref<8x16xf32, #tpu.memory_space<vmem>>, vector<8x16xf32>
    %c0_18 = arith.constant 0 : index
    %c0_19 = arith.constant 0 : index
    %18 = vector.load %arg5[%c0_18, %c0_19] : memref<1x16xf32, #tpu.memory_space<vmem>>, vector<1x16xf32>
    %c0_20 = arith.constant 0 : index
    %c0_21 = arith.constant 0 : index
    %19 = vector.load %arg6[%c0_20, %c0_21] : memref<1x16xf32, #tpu.memory_space<vmem>>, vector<1x16xf32>
    %c0_22 = arith.constant 0 : index
    %c0_23 = arith.constant 0 : index
    %20 = vector.load %arg7[%c0_22, %c0_23] : memref<1x1xf32, #tpu.memory_space<vmem>>, vector<1x1xf32>
    %cst_24 = arith.constant dense<0.000000e+00> : vector<16xf32>
    %21 = vector.multi_reduction <add>, %14, %cst_24 [0] : vector<16x16xf32> to vector<16xf32>
    %22 = vector.shape_cast %21 : vector<16xf32> to vector<1x16xf32>
    %cst_25 = arith.constant 6.250000e-02 : f32
    %23 = vector.broadcast %cst_25 : f32 to vector<1x16xf32>
    %24 = arith.mulf %22, %23 : vector<1x16xf32>
    %cst_26 = arith.constant dense<0.000000e+00> : vector<1x8xf32>
    %25 = tpu.matmul %24, %15, %cst_26 {dimension_numbers = #tpu.dot_dimension_numbers<[1], [0], [0], [1], [0, 0, 1, 1], [], []>} : vector<1x16xf32>, vector<16x8xf32>, vector<1x8xf32> -> vector<1x8xf32>
    %26 = arith.addf %25, %16 : vector<1x8xf32>
    %cst_27 = arith.constant 0.000000e+00 : f32
    %27 = vector.broadcast %cst_27 : f32 to vector<1x8xf32>
    %28 = arith.maximumf %26, %27 : vector<1x8xf32>
    %cst_28 = arith.constant dense<0.000000e+00> : vector<1x16xf32>
    %29 = tpu.matmul %28, %17, %cst_28 {dimension_numbers = #tpu.dot_dimension_numbers<[1], [0], [0], [1], [0, 0, 1, 1], [], []>} : vector<1x8xf32>, vector<8x16xf32>, vector<1x16xf32> -> vector<1x16xf32>
    %30 = arith.addf %29, %18 : vector<1x16xf32>
    %cst_29 = arith.constant 5.000000e-01 : f32
    %31 = vector.broadcast %cst_29 : f32 to vector<1x16xf32>
    %32 = arith.mulf %31, %30 : vector<1x16xf32>
    %33 = math.tanh %32 : vector<1x16xf32>
    %cst_30 = arith.constant 1.000000e+00 : f32
    %34 = vector.broadcast %cst_30 : f32 to vector<1x16xf32>
    %35 = arith.addf %33, %34 : vector<1x16xf32>
    %cst_31 = arith.constant 5.000000e-01 : f32
    %36 = vector.broadcast %cst_31 : f32 to vector<1x16xf32>
    %37 = arith.mulf %36, %35 : vector<1x16xf32>
    %38 = vector.broadcast %19 : vector<1x16xf32> to vector<16x16xf32>
    %39 = arith.mulf %14, %38 : vector<16x16xf32>
    %cst_32 = arith.constant dense<0.000000e+00> : vector<16xf32>
    %40 = vector.multi_reduction <add>, %39, %cst_32 [1] : vector<16x16xf32> to vector<16xf32>
    %41 = vector.shape_cast %40 : vector<16xf32> to vector<16x1xf32>
    %42 = vector.broadcast %20 : vector<1x1xf32> to vector<16x1xf32>
    %43 = arith.addf %41, %42 : vector<16x1xf32>
    %cst_33 = arith.constant 5.000000e-01 : f32
    %44 = vector.broadcast %cst_33 : f32 to vector<16x1xf32>
    %45 = arith.mulf %44, %43 : vector<16x1xf32>
    %46 = math.tanh %45 : vector<16x1xf32>
    %cst_34 = arith.constant 1.000000e+00 : f32
    %47 = vector.broadcast %cst_34 : f32 to vector<16x1xf32>
    %48 = arith.addf %46, %47 : vector<16x1xf32>
    %cst_35 = arith.constant 5.000000e-01 : f32
    %49 = vector.broadcast %cst_35 : f32 to vector<16x1xf32>
    %50 = arith.mulf %49, %48 : vector<16x1xf32>
    %51 = vector.broadcast %50 : vector<16x1xf32> to vector<16x16xf32>
    %52 = arith.mulf %14, %51 : vector<16x16xf32>
    %53 = vector.broadcast %37 : vector<1x16xf32> to vector<16x16xf32>
    %54 = arith.mulf %14, %53 : vector<16x16xf32>
    %55 = arith.addf %52, %54 : vector<16x16xf32>
    %c0_36 = arith.constant 0 : index
    %c0_37 = arith.constant 0 : index
    %c0_38 = arith.constant 0 : index
    %56 = vector.load %arg14[%c0_36, %c0_37, %c0_38] : memref<2x16x16xf32, #tpu.memory_space<vmem>>, vector<1x16x16xf32>
    %57 = vector.shape_cast %56 : vector<1x16x16xf32> to vector<16x16xf32>
    %58 = vector.shape_cast %55 : vector<16x16xf32> to vector<1x16x16xf32>
    tpu.vector_store %arg14[%c0_36, %c0_37, %c0_38], %58 {strides = array<i32>} : memref<2x16x16xf32, #tpu.memory_space<vmem>>, vector<1x16x16xf32>,
    %c0_39 = arith.constant 0 : index
    %c0_40 = arith.constant 0 : index
    %c0_41 = arith.constant 0 : index
    %59 = vector.load %arg1[%c0_39, %c0_40, %c0_41] : memref<2x64x32xf32, #tpu.memory_space<vmem>>, vector<1x64x32xf32>
    %60 = vector.shape_cast %59 : vector<1x64x32xf32> to vector<64x32xf32>
    %c0_42 = arith.constant 0 : index
    %c0_43 = arith.constant 0 : index
    %61 = vector.load %arg8[%c0_42, %c0_43] : memref<32x16xf32, #tpu.memory_space<vmem>>, vector<32x16xf32>
    %c0_44 = arith.constant 0 : index
    %c0_45 = arith.constant 0 : index
    %62 = vector.load %arg9[%c0_44, %c0_45] : memref<1x16xf32, #tpu.memory_space<vmem>>, vector<1x16xf32>
    %c0_46 = arith.constant 0 : index
    %c0_47 = arith.constant 0 : index
    %63 = vector.load %arg10[%c0_46, %c0_47] : memref<16x32xf32, #tpu.memory_space<vmem>>, vector<16x32xf32>
    %c0_48 = arith.constant 0 : index
    %c0_49 = arith.constant 0 : index
    %64 = vector.load %arg11[%c0_48, %c0_49] : memref<1x32xf32, #tpu.memory_space<vmem>>, vector<1x32xf32>
    %c0_50 = arith.constant 0 : index
    %c0_51 = arith.constant 0 : index
    %65 = vector.load %arg12[%c0_50, %c0_51] : memref<1x32xf32, #tpu.memory_space<vmem>>, vector<1x32xf32>
    %c0_52 = arith.constant 0 : index
    %c0_53 = arith.constant 0 : index
    %66 = vector.load %arg13[%c0_52, %c0_53] : memref<1x1xf32, #tpu.memory_space<vmem>>, vector<1x1xf32>
    %cst_54 = arith.constant dense<0.000000e+00> : vector<32xf32>
    %67 = vector.multi_reduction <add>, %60, %cst_54 [0] : vector<64x32xf32> to vector<32xf32>
    %68 = vector.shape_cast %67 : vector<32xf32> to vector<1x32xf32>
    %cst_55 = arith.constant 1.562500e-02 : f32
    %69 = vector.broadcast %cst_55 : f32 to vector<1x32xf32>
    %70 = arith.mulf %68, %69 : vector<1x32xf32>
    %cst_56 = arith.constant dense<0.000000e+00> : vector<1x16xf32>
    %71 = tpu.matmul %70, %61, %cst_56 {dimension_numbers = #tpu.dot_dimension_numbers<[1], [0], [0], [1], [0, 0, 1, 1], [], []>} : vector<1x32xf32>, vector<32x16xf32>, vector<1x16xf32> -> vector<1x16xf32>
    %72 = arith.addf %71, %62 : vector<1x16xf32>
    %cst_57 = arith.constant 0.000000e+00 : f32
    %73 = vector.broadcast %cst_57 : f32 to vector<1x16xf32>
    %74 = arith.maximumf %72, %73 : vector<1x16xf32>
    %cst_58 = arith.constant dense<0.000000e+00> : vector<1x32xf32>
    %75 = tpu.matmul %74, %63, %cst_58 {dimension_numbers = #tpu.dot_dimension_numbers<[1], [0], [0], [1], [0, 0, 1, 1], [], []>} : vector<1x16xf32>, vector<16x32xf32>, vector<1x32xf32> -> vector<1x32xf32>
    %76 = arith.addf %75, %64 : vector<1x32xf32>
    %cst_59 = arith.constant 5.000000e-01 : f32
    %77 = vector.broadcast %cst_59 : f32 to vector<1x32xf32>
    %78 = arith.mulf %77, %76 : vector<1x32xf32>
    %79 = math.tanh %78 : vector<1x32xf32>
    %cst_60 = arith.constant 1.000000e+00 : f32
    %80 = vector.broadcast %cst_60 : f32 to vector<1x32xf32>
    %81 = arith.addf %79, %80 : vector<1x32xf32>
    %cst_61 = arith.constant 5.000000e-01 : f32
    %82 = vector.broadcast %cst_61 : f32 to vector<1x32xf32>
    %83 = arith.mulf %82, %81 : vector<1x32xf32>
    %84 = vector.broadcast %65 : vector<1x32xf32> to vector<64x32xf32>
    %85 = arith.mulf %60, %84 : vector<64x32xf32>
    %cst_62 = arith.constant dense<0.000000e+00> : vector<64xf32>
    %86 = vector.multi_reduction <add>, %85, %cst_62 [1] : vector<64x32xf32> to vector<64xf32>
    %87 = vector.shape_cast %86 : vector<64xf32> to vector<64x1xf32>
    %88 = vector.broadcast %66 : vector<1x1xf32> to vector<64x1xf32>
    %89 = arith.addf %87, %88 : vector<64x1xf32>
    %cst_63 = arith.constant 5.000000e-01 : f32
    %90 = vector.broadcast %cst_63 : f32 to vector<64x1xf32>
    %91 = arith.mulf %90, %89 : vector<64x1xf32>
    %92 = math.tanh %91 : vector<64x1xf32>
    %cst_64 = arith.constant 1.000000e+00 : f32
    %93 = vector.broadcast %cst_64 : f32 to vector<64x1xf32>
    %94 = arith.addf %92, %93 : vector<64x1xf32>
    %cst_65 = arith.constant 5.000000e-01 : f32
    %95 = vector.broadcast %cst_65 : f32 to vector<64x1xf32>
    %96 = arith.mulf %95, %94 : vector<64x1xf32>
    %97 = vector.broadcast %96 : vector<64x1xf32> to vector<64x32xf32>
    %98 = arith.mulf %60, %97 : vector<64x32xf32>
    %99 = vector.broadcast %83 : vector<1x32xf32> to vector<64x32xf32>
    %100 = arith.mulf %60, %99 : vector<64x32xf32>
    %101 = arith.addf %98, %100 : vector<64x32xf32>
    %c0_66 = arith.constant 0 : index
    %c0_67 = arith.constant 0 : index
    %c0_68 = arith.constant 0 : index
    %102 = vector.load %arg15[%c0_66, %c0_67, %c0_68] : memref<2x64x32xf32, #tpu.memory_space<vmem>>, vector<1x64x32xf32>
    %103 = vector.shape_cast %102 : vector<1x64x32xf32> to vector<64x32xf32>
    %104 = vector.shape_cast %101 : vector<64x32xf32> to vector<1x64x32xf32>
    tpu.vector_store %arg15[%c0_66, %c0_67, %c0_68], %104 {strides = array<i32>} : memref<2x64x32xf32, #tpu.memory_space<vmem>>, vector<1x64x32xf32>,
    %105 = vector.extract_strided_slice %12 {offsets = [1, 0, 0], sizes = [1, 16, 16], strides = [1, 1, 1]} : vector<2x16x16xf32> to vector<1x16x16xf32>
    %106 = vector.shape_cast %105 : vector<1x16x16xf32> to vector<16x16xf32>
    %c0_69 = arith.constant 0 : index
    %c0_70 = arith.constant 0 : index
    %107 = vector.load %arg2[%c0_69, %c0_70] : memref<16x8xf32, #tpu.memory_space<vmem>>, vector<16x8xf32>
    %c0_71 = arith.constant 0 : index
    %c0_72 = arith.constant 0 : index
    %108 = vector.load %arg3[%c0_71, %c0_72] : memref<1x8xf32, #tpu.memory_space<vmem>>, vector<1x8xf32>
    %c0_73 = arith.constant 0 : index
    %c0_74 = arith.constant 0 : index
    %109 = vector.load %arg4[%c0_73, %c0_74] : memref<8x16xf32, #tpu.memory_space<vmem>>, vector<8x16xf32>
    %c0_75 = arith.constant 0 : index
    %c0_76 = arith.constant 0 : index
    %110 = vector.load %arg5[%c0_75, %c0_76] : memref<1x16xf32, #tpu.memory_space<vmem>>, vector<1x16xf32>
    %c0_77 = arith.constant 0 : index
    %c0_78 = arith.constant 0 : index
    %111 = vector.load %arg6[%c0_77, %c0_78] : memref<1x16xf32, #tpu.memory_space<vmem>>, vector<1x16xf32>
    %c0_79 = arith.constant 0 : index
    %c0_80 = arith.constant 0 : index
    %112 = vector.load %arg7[%c0_79, %c0_80] : memref<1x1xf32, #tpu.memory_space<vmem>>, vector<1x1xf32>
    %cst_81 = arith.constant dense<0.000000e+00> : vector<16xf32>
    %113 = vector.multi_reduction <add>, %106, %cst_81 [0] : vector<16x16xf32> to vector<16xf32>
    %114 = vector.shape_cast %113 : vector<16xf32> to vector<1x16xf32>
    %cst_82 = arith.constant 6.250000e-02 : f32
    %115 = vector.broadcast %cst_82 : f32 to vector<1x16xf32>
    %116 = arith.mulf %114, %115 : vector<1x16xf32>
    %cst_83 = arith.constant dense<0.000000e+00> : vector<1x8xf32>
    %117 = tpu.matmul %116, %107, %cst_83 {dimension_numbers = #tpu.dot_dimension_numbers<[1], [0], [0], [1], [0, 0, 1, 1], [], []>} : vector<1x16xf32>, vector<16x8xf32>, vector<1x8xf32> -> vector<1x8xf32>
    %118 = arith.addf %117, %108 : vector<1x8xf32>
    %cst_84 = arith.constant 0.000000e+00 : f32
    %119 = vector.broadcast %cst_84 : f32 to vector<1x8xf32>
    %120 = arith.maximumf %118, %119 : vector<1x8xf32>
    %cst_85 = arith.constant dense<0.000000e+00> : vector<1x16xf32>
    %121 = tpu.matmul %120, %109, %cst_85 {dimension_numbers = #tpu.dot_dimension_numbers<[1], [0], [0], [1], [0, 0, 1, 1], [], []>} : vector<1x8xf32>, vector<8x16xf32>, vector<1x16xf32> -> vector<1x16xf32>
    %122 = arith.addf %121, %110 : vector<1x16xf32>
    %cst_86 = arith.constant 5.000000e-01 : f32
    %123 = vector.broadcast %cst_86 : f32 to vector<1x16xf32>
    %124 = arith.mulf %123, %122 : vector<1x16xf32>
    %125 = math.tanh %124 : vector<1x16xf32>
    %cst_87 = arith.constant 1.000000e+00 : f32
    %126 = vector.broadcast %cst_87 : f32 to vector<1x16xf32>
    %127 = arith.addf %125, %126 : vector<1x16xf32>
    %cst_88 = arith.constant 5.000000e-01 : f32
    %128 = vector.broadcast %cst_88 : f32 to vector<1x16xf32>
    %129 = arith.mulf %128, %127 : vector<1x16xf32>
    %130 = vector.broadcast %111 : vector<1x16xf32> to vector<16x16xf32>
    %131 = arith.mulf %106, %130 : vector<16x16xf32>
    %cst_89 = arith.constant dense<0.000000e+00> : vector<16xf32>
    %132 = vector.multi_reduction <add>, %131, %cst_89 [1] : vector<16x16xf32> to vector<16xf32>
    %133 = vector.shape_cast %132 : vector<16xf32> to vector<16x1xf32>
    %134 = vector.broadcast %112 : vector<1x1xf32> to vector<16x1xf32>
    %135 = arith.addf %133, %134 : vector<16x1xf32>
    %cst_90 = arith.constant 5.000000e-01 : f32
    %136 = vector.broadcast %cst_90 : f32 to vector<16x1xf32>
    %137 = arith.mulf %136, %135 : vector<16x1xf32>
    %138 = math.tanh %137 : vector<16x1xf32>
    %cst_91 = arith.constant 1.000000e+00 : f32
    %139 = vector.broadcast %cst_91 : f32 to vector<16x1xf32>
    %140 = arith.addf %138, %139 : vector<16x1xf32>
    %cst_92 = arith.constant 5.000000e-01 : f32
    %141 = vector.broadcast %cst_92 : f32 to vector<16x1xf32>
    %142 = arith.mulf %141, %140 : vector<16x1xf32>
    %143 = vector.broadcast %142 : vector<16x1xf32> to vector<16x16xf32>
    %144 = arith.mulf %106, %143 : vector<16x16xf32>
    %145 = vector.broadcast %129 : vector<1x16xf32> to vector<16x16xf32>
    %146 = arith.mulf %106, %145 : vector<16x16xf32>
    %147 = arith.addf %144, %146 : vector<16x16xf32>
    %c1_93 = arith.constant 1 : index
    %c0_94 = arith.constant 0 : index
    %c0_95 = arith.constant 0 : index
    %148 = vector.load %arg14[%c1_93, %c0_94, %c0_95] : memref<2x16x16xf32, #tpu.memory_space<vmem>>, vector<1x16x16xf32>
    %149 = vector.shape_cast %148 : vector<1x16x16xf32> to vector<16x16xf32>
    %150 = vector.shape_cast %147 : vector<16x16xf32> to vector<1x16x16xf32>
    tpu.vector_store %arg14[%c1_93, %c0_94, %c0_95], %150 {strides = array<i32>} : memref<2x16x16xf32, #tpu.memory_space<vmem>>, vector<1x16x16xf32>,
    %c1_96 = arith.constant 1 : index
    %c0_97 = arith.constant 0 : index
    %c0_98 = arith.constant 0 : index
    %151 = vector.load %arg1[%c1_96, %c0_97, %c0_98] : memref<2x64x32xf32, #tpu.memory_space<vmem>>, vector<1x64x32xf32>
    %152 = vector.shape_cast %151 : vector<1x64x32xf32> to vector<64x32xf32>
    %c0_99 = arith.constant 0 : index
    %c0_100 = arith.constant 0 : index
    %153 = vector.load %arg8[%c0_99, %c0_100] : memref<32x16xf32, #tpu.memory_space<vmem>>, vector<32x16xf32>
    %c0_101 = arith.constant 0 : index
    %c0_102 = arith.constant 0 : index
    %154 = vector.load %arg9[%c0_101, %c0_102] : memref<1x16xf32, #tpu.memory_space<vmem>>, vector<1x16xf32>
    %c0_103 = arith.constant 0 : index
    %c0_104 = arith.constant 0 : index
    %155 = vector.load %arg10[%c0_103, %c0_104] : memref<16x32xf32, #tpu.memory_space<vmem>>, vector<16x32xf32>
    %c0_105 = arith.constant 0 : index
    %c0_106 = arith.constant 0 : index
    %156 = vector.load %arg11[%c0_105, %c0_106] : memref<1x32xf32, #tpu.memory_space<vmem>>, vector<1x32xf32>
    %c0_107 = arith.constant 0 : index
    %c0_108 = arith.constant 0 : index
    %157 = vector.load %arg12[%c0_107, %c0_108] : memref<1x32xf32, #tpu.memory_space<vmem>>, vector<1x32xf32>
    %c0_109 = arith.constant 0 : index
    %c0_110 = arith.constant 0 : index
    %158 = vector.load %arg13[%c0_109, %c0_110] : memref<1x1xf32, #tpu.memory_space<vmem>>, vector<1x1xf32>
    %cst_111 = arith.constant dense<0.000000e+00> : vector<32xf32>
    %159 = vector.multi_reduction <add>, %152, %cst_111 [0] : vector<64x32xf32> to vector<32xf32>
    %160 = vector.shape_cast %159 : vector<32xf32> to vector<1x32xf32>
    %cst_112 = arith.constant 1.562500e-02 : f32
    %161 = vector.broadcast %cst_112 : f32 to vector<1x32xf32>
    %162 = arith.mulf %160, %161 : vector<1x32xf32>
    %cst_113 = arith.constant dense<0.000000e+00> : vector<1x16xf32>
    %163 = tpu.matmul %162, %153, %cst_113 {dimension_numbers = #tpu.dot_dimension_numbers<[1], [0], [0], [1], [0, 0, 1, 1], [], []>} : vector<1x32xf32>, vector<32x16xf32>, vector<1x16xf32> -> vector<1x16xf32>
    %164 = arith.addf %163, %154 : vector<1x16xf32>
    %cst_114 = arith.constant 0.000000e+00 : f32
    %165 = vector.broadcast %cst_114 : f32 to vector<1x16xf32>
    %166 = arith.maximumf %164, %165 : vector<1x16xf32>
    %cst_115 = arith.constant dense<0.000000e+00> : vector<1x32xf32>
    %167 = tpu.matmul %166, %155, %cst_115 {dimension_numbers = #tpu.dot_dimension_numbers<[1], [0], [0], [1], [0, 0, 1, 1], [], []>} : vector<1x16xf32>, vector<16x32xf32>, vector<1x32xf32> -> vector<1x32xf32>
    %168 = arith.addf %167, %156 : vector<1x32xf32>
    %cst_116 = arith.constant 5.000000e-01 : f32
    %169 = vector.broadcast %cst_116 : f32 to vector<1x32xf32>
    %170 = arith.mulf %169, %168 : vector<1x32xf32>
    %171 = math.tanh %170 : vector<1x32xf32>
    %cst_117 = arith.constant 1.000000e+00 : f32
    %172 = vector.broadcast %cst_117 : f32 to vector<1x32xf32>
    %173 = arith.addf %171, %172 : vector<1x32xf32>
    %cst_118 = arith.constant 5.000000e-01 : f32
    %174 = vector.broadcast %cst_118 : f32 to vector<1x32xf32>
    %175 = arith.mulf %174, %173 : vector<1x32xf32>
    %176 = vector.broadcast %157 : vector<1x32xf32> to vector<64x32xf32>
    %177 = arith.mulf %152, %176 : vector<64x32xf32>
    %cst_119 = arith.constant dense<0.000000e+00> : vector<64xf32>
    %178 = vector.multi_reduction <add>, %177, %cst_119 [1] : vector<64x32xf32> to vector<64xf32>
    %179 = vector.shape_cast %178 : vector<64xf32> to vector<64x1xf32>
    %180 = vector.broadcast %158 : vector<1x1xf32> to vector<64x1xf32>
    %181 = arith.addf %179, %180 : vector<64x1xf32>
    %cst_120 = arith.constant 5.000000e-01 : f32
    %182 = vector.broadcast %cst_120 : f32 to vector<64x1xf32>
    %183 = arith.mulf %182, %181 : vector<64x1xf32>
    %184 = math.tanh %183 : vector<64x1xf32>
    %cst_121 = arith.constant 1.000000e+00 : f32
    %185 = vector.broadcast %cst_121 : f32 to vector<64x1xf32>
    %186 = arith.addf %184, %185 : vector<64x1xf32>
    %cst_122 = arith.constant 5.000000e-01 : f32
    %187 = vector.broadcast %cst_122 : f32 to vector<64x1xf32>
    %188 = arith.mulf %187, %186 : vector<64x1xf32>
    %189 = vector.broadcast %188 : vector<64x1xf32> to vector<64x32xf32>
    %190 = arith.mulf %152, %189 : vector<64x32xf32>
    %191 = vector.broadcast %175 : vector<1x32xf32> to vector<64x32xf32>
    %192 = arith.mulf %152, %191 : vector<64x32xf32>
    %193 = arith.addf %190, %192 : vector<64x32xf32>
    %c1_123 = arith.constant 1 : index
    %c0_124 = arith.constant 0 : index
    %c0_125 = arith.constant 0 : index
    %194 = vector.load %arg15[%c1_123, %c0_124, %c0_125] : memref<2x64x32xf32, #tpu.memory_space<vmem>>, vector<1x64x32xf32>
    %195 = vector.shape_cast %194 : vector<1x64x32xf32> to vector<64x32xf32>
    %196 = vector.shape_cast %193 : vector<64x32xf32> to vector<1x64x32xf32>
    tpu.vector_store %arg15[%c1_123, %c0_124, %c0_125], %196 {strides = array<i32>} : memref<2x64x32xf32, #tpu.memory_space<vmem>>, vector<1x64x32xf32>,
    return
  }
}

module attributes {stable_mosaic.version = 11 : i64} {
  func.func @_bn_relu_mm_bias_relu_kernel(%arg0: memref<32x24xf32, #tpu.memory_space<vmem>>, %arg1: memref<1x24xf32, #tpu.memory_space<vmem>>, %arg2: memref<1x24xf32, #tpu.memory_space<vmem>>, %arg3: memref<24x16xbf16, #tpu.memory_space<vmem>>, %arg4: memref<1x16xf32, #tpu.memory_space<vmem>>, %arg5: memref<32x16xbf16, #tpu.memory_space<vmem>>) attributes {dimension_semantics = [], scalar_prefetch = 0 : i64, scratch_operands = 0 : i64, tpu.core_type = #tpu.core_type<tc>} {
    %c0 = arith.constant 0 : index
    %c0_0 = arith.constant 0 : index
    %0 = vector.load %arg0[%c0, %c0_0] : memref<32x24xf32, #tpu.memory_space<vmem>>, vector<32x24xf32>
    %c0_1 = arith.constant 0 : index
    %c0_2 = arith.constant 0 : index
    %1 = vector.load %arg1[%c0_1, %c0_2] : memref<1x24xf32, #tpu.memory_space<vmem>>, vector<1x24xf32>
    %2 = vector.broadcast %1 : vector<1x24xf32> to vector<32x24xf32>
    %3 = arith.mulf %0, %2 : vector<32x24xf32>
    %c0_3 = arith.constant 0 : index
    %c0_4 = arith.constant 0 : index
    %4 = vector.load %arg2[%c0_3, %c0_4] : memref<1x24xf32, #tpu.memory_space<vmem>>, vector<1x24xf32>
    %5 = vector.broadcast %4 : vector<1x24xf32> to vector<32x24xf32>
    %6 = arith.addf %3, %5 : vector<32x24xf32>
    %cst = arith.constant 0.000000e+00 : f32
    %7 = vector.broadcast %cst : f32 to vector<32x24xf32>
    %8 = arith.maximumf %6, %7 : vector<32x24xf32>
    %9 = arith.truncf %8 : vector<32x24xf32> to vector<32x24xbf16>
    %c0_5 = arith.constant 0 : index
    %c0_6 = arith.constant 0 : index
    %10 = vector.load %arg3[%c0_5, %c0_6] : memref<24x16xbf16, #tpu.memory_space<vmem>>, vector<24x16xbf16>
    %cst_7 = arith.constant dense<0.000000e+00> : vector<32x16xf32>
    %11 = tpu.matmul %9, %10, %cst_7 {dimension_numbers = #tpu.dot_dimension_numbers<[1], [0], [0], [1], [0, 0, 1, 1], [], []>} : vector<32x24xbf16>, vector<24x16xbf16>, vector<32x16xf32> -> vector<32x16xf32>
    %c0_8 = arith.constant 0 : index
    %c0_9 = arith.constant 0 : index
    %12 = vector.load %arg4[%c0_8, %c0_9] : memref<1x16xf32, #tpu.memory_space<vmem>>, vector<1x16xf32>
    %13 = vector.broadcast %12 : vector<1x16xf32> to vector<32x16xf32>
    %14 = arith.addf %11, %13 : vector<32x16xf32>
    %cst_10 = arith.constant 0.000000e+00 : f32
    %15 = vector.broadcast %cst_10 : f32 to vector<32x16xf32>
    %16 = arith.maximumf %14, %15 : vector<32x16xf32>
    %17 = arith.truncf %16 : vector<32x16xf32> to vector<32x16xbf16>
    %c0_11 = arith.constant 0 : index
    %c0_12 = arith.constant 0 : index
    %18 = vector.load %arg5[%c0_11, %c0_12] : memref<32x16xbf16, #tpu.memory_space<vmem>>, vector<32x16xbf16>
    tpu.vector_store %arg5[%c0_11, %c0_12], %17 {strides = array<i32>} : memref<32x16xbf16, #tpu.memory_space<vmem>>, vector<32x16xbf16>,
    return
  }
}

module attributes {stable_mosaic.version = 11 : i64} {
  func.func @_matmul_kernel(%arg0: memref<32x144xbf16, #tpu.memory_space<vmem>>, %arg1: memref<144x8xbf16, #tpu.memory_space<vmem>>, %arg2: memref<32x8xf32, #tpu.memory_space<vmem>>) attributes {dimension_semantics = [], scalar_prefetch = 0 : i64, scratch_operands = 0 : i64, tpu.core_type = #tpu.core_type<tc>} {
    %c0 = arith.constant 0 : index
    %c0_0 = arith.constant 0 : index
    %0 = vector.load %arg0[%c0, %c0_0] : memref<32x144xbf16, #tpu.memory_space<vmem>>, vector<32x144xbf16>
    %c0_1 = arith.constant 0 : index
    %c0_2 = arith.constant 0 : index
    %1 = vector.load %arg1[%c0_1, %c0_2] : memref<144x8xbf16, #tpu.memory_space<vmem>>, vector<144x8xbf16>
    %cst = arith.constant dense<0.000000e+00> : vector<32x8xf32>
    %2 = tpu.matmul %0, %1, %cst {dimension_numbers = #tpu.dot_dimension_numbers<[1], [0], [0], [1], [0, 0, 1, 1], [], []>} : vector<32x144xbf16>, vector<144x8xbf16>, vector<32x8xf32> -> vector<32x8xf32>
    %c0_3 = arith.constant 0 : index
    %c0_4 = arith.constant 0 : index
    %3 = vector.load %arg2[%c0_3, %c0_4] : memref<32x8xf32, #tpu.memory_space<vmem>>, vector<32x8xf32>
    tpu.vector_store %arg2[%c0_3, %c0_4], %2 {strides = array<i32>} : memref<32x8xf32, #tpu.memory_space<vmem>>, vector<32x8xf32>,
    return
  }
}

module attributes {stable_mosaic.version = 11 : i64} {
  func.func @_transition_kernel(%arg0: memref<32x32xf32, #tpu.memory_space<vmem>>, %arg1: memref<1x32xf32, #tpu.memory_space<vmem>>, %arg2: memref<1x32xf32, #tpu.memory_space<vmem>>, %arg3: memref<32x16xbf16, #tpu.memory_space<vmem>>, %arg4: memref<32x32xf32, #tpu.memory_space<vmem>>, %arg5: memref<32x16xf32, #tpu.memory_space<vmem>>) attributes {dimension_semantics = [], scalar_prefetch = 0 : i64, scratch_operands = 0 : i64, tpu.core_type = #tpu.core_type<tc>} {
    %c0 = arith.constant 0 : index
    %c0_0 = arith.constant 0 : index
    %0 = vector.load %arg0[%c0, %c0_0] : memref<32x32xf32, #tpu.memory_space<vmem>>, vector<32x32xf32>
    %c0_1 = arith.constant 0 : index
    %c0_2 = arith.constant 0 : index
    %1 = vector.load %arg1[%c0_1, %c0_2] : memref<1x32xf32, #tpu.memory_space<vmem>>, vector<1x32xf32>
    %2 = vector.broadcast %1 : vector<1x32xf32> to vector<32x32xf32>
    %3 = arith.mulf %0, %2 : vector<32x32xf32>
    %c0_3 = arith.constant 0 : index
    %c0_4 = arith.constant 0 : index
    %4 = vector.load %arg2[%c0_3, %c0_4] : memref<1x32xf32, #tpu.memory_space<vmem>>, vector<1x32xf32>
    %5 = vector.broadcast %4 : vector<1x32xf32> to vector<32x32xf32>
    %6 = arith.addf %3, %5 : vector<32x32xf32>
    %cst = arith.constant 0.000000e+00 : f32
    %7 = vector.broadcast %cst : f32 to vector<32x32xf32>
    %8 = arith.maximumf %6, %7 : vector<32x32xf32>
    %c0_5 = arith.constant 0 : index
    %c0_6 = arith.constant 0 : index
    %9 = vector.load %arg4[%c0_5, %c0_6] : memref<32x32xf32, #tpu.memory_space<vmem>>, vector<32x32xf32>
    tpu.vector_store %arg4[%c0_5, %c0_6], %8 {strides = array<i32>} : memref<32x32xf32, #tpu.memory_space<vmem>>, vector<32x32xf32>,
    %10 = arith.truncf %8 : vector<32x32xf32> to vector<32x32xbf16>
    %c0_7 = arith.constant 0 : index
    %c0_8 = arith.constant 0 : index
    %11 = vector.load %arg3[%c0_7, %c0_8] : memref<32x16xbf16, #tpu.memory_space<vmem>>, vector<32x16xbf16>
    %cst_9 = arith.constant dense<0.000000e+00> : vector<32x16xf32>
    %12 = tpu.matmul %10, %11, %cst_9 {dimension_numbers = #tpu.dot_dimension_numbers<[1], [0], [0], [1], [0, 0, 1, 1], [], []>} : vector<32x32xbf16>, vector<32x16xbf16>, vector<32x16xf32> -> vector<32x16xf32>
    %c0_10 = arith.constant 0 : index
    %c0_11 = arith.constant 0 : index
    %13 = vector.load %arg5[%c0_10, %c0_11] : memref<32x16xf32, #tpu.memory_space<vmem>>, vector<32x16xf32>
    tpu.vector_store %arg5[%c0_10, %c0_11], %12 {strides = array<i32>} : memref<32x16xf32, #tpu.memory_space<vmem>>, vector<32x16xf32>,
    return
  }
}

module attributes {stable_mosaic.version = 11 : i64} {
  func.func @_bn_relu_mm_bias_relu_kernel(%arg0: memref<8x16xf32, #tpu.memory_space<vmem>>, %arg1: memref<1x16xf32, #tpu.memory_space<vmem>>, %arg2: memref<1x16xf32, #tpu.memory_space<vmem>>, %arg3: memref<16x16xbf16, #tpu.memory_space<vmem>>, %arg4: memref<1x16xf32, #tpu.memory_space<vmem>>, %arg5: memref<8x16xbf16, #tpu.memory_space<vmem>>) attributes {dimension_semantics = [], scalar_prefetch = 0 : i64, scratch_operands = 0 : i64, tpu.core_type = #tpu.core_type<tc>} {
    %c0 = arith.constant 0 : index
    %c0_0 = arith.constant 0 : index
    %0 = vector.load %arg0[%c0, %c0_0] : memref<8x16xf32, #tpu.memory_space<vmem>>, vector<8x16xf32>
    %c0_1 = arith.constant 0 : index
    %c0_2 = arith.constant 0 : index
    %1 = vector.load %arg1[%c0_1, %c0_2] : memref<1x16xf32, #tpu.memory_space<vmem>>, vector<1x16xf32>
    %2 = vector.broadcast %1 : vector<1x16xf32> to vector<8x16xf32>
    %3 = arith.mulf %0, %2 : vector<8x16xf32>
    %c0_3 = arith.constant 0 : index
    %c0_4 = arith.constant 0 : index
    %4 = vector.load %arg2[%c0_3, %c0_4] : memref<1x16xf32, #tpu.memory_space<vmem>>, vector<1x16xf32>
    %5 = vector.broadcast %4 : vector<1x16xf32> to vector<8x16xf32>
    %6 = arith.addf %3, %5 : vector<8x16xf32>
    %cst = arith.constant 0.000000e+00 : f32
    %7 = vector.broadcast %cst : f32 to vector<8x16xf32>
    %8 = arith.maximumf %6, %7 : vector<8x16xf32>
    %9 = arith.truncf %8 : vector<8x16xf32> to vector<8x16xbf16>
    %c0_5 = arith.constant 0 : index
    %c0_6 = arith.constant 0 : index
    %10 = vector.load %arg3[%c0_5, %c0_6] : memref<16x16xbf16, #tpu.memory_space<vmem>>, vector<16x16xbf16>
    %cst_7 = arith.constant dense<0.000000e+00> : vector<8x16xf32>
    %11 = tpu.matmul %9, %10, %cst_7 {dimension_numbers = #tpu.dot_dimension_numbers<[1], [0], [0], [1], [0, 0, 1, 1], [], []>} : vector<8x16xbf16>, vector<16x16xbf16>, vector<8x16xf32> -> vector<8x16xf32>
    %c0_8 = arith.constant 0 : index
    %c0_9 = arith.constant 0 : index
    %12 = vector.load %arg4[%c0_8, %c0_9] : memref<1x16xf32, #tpu.memory_space<vmem>>, vector<1x16xf32>
    %13 = vector.broadcast %12 : vector<1x16xf32> to vector<8x16xf32>
    %14 = arith.addf %11, %13 : vector<8x16xf32>
    %cst_10 = arith.constant 0.000000e+00 : f32
    %15 = vector.broadcast %cst_10 : f32 to vector<8x16xf32>
    %16 = arith.maximumf %14, %15 : vector<8x16xf32>
    %17 = arith.truncf %16 : vector<8x16xf32> to vector<8x16xbf16>
    %c0_11 = arith.constant 0 : index
    %c0_12 = arith.constant 0 : index
    %18 = vector.load %arg5[%c0_11, %c0_12] : memref<8x16xbf16, #tpu.memory_space<vmem>>, vector<8x16xbf16>
    tpu.vector_store %arg5[%c0_11, %c0_12], %17 {strides = array<i32>} : memref<8x16xbf16, #tpu.memory_space<vmem>>, vector<8x16xbf16>,
    return
  }
}

module attributes {stable_mosaic.version = 11 : i64} {
  func.func @_avgpool_scse_pair_kernel(%arg0: memref<4x2x4x16xf32, #tpu.memory_space<vmem>>, %arg1: memref<2x16x32xf32, #tpu.memory_space<vmem>>, %arg2: memref<16x8xf32, #tpu.memory_space<vmem>>, %arg3: memref<1x8xf32, #tpu.memory_space<vmem>>, %arg4: memref<8x16xf32, #tpu.memory_space<vmem>>, %arg5: memref<1x16xf32, #tpu.memory_space<vmem>>, %arg6: memref<1x16xf32, #tpu.memory_space<vmem>>, %arg7: memref<1x1xf32, #tpu.memory_space<vmem>>, %arg8: memref<32x16xf32, #tpu.memory_space<vmem>>, %arg9: memref<1x16xf32, #tpu.memory_space<vmem>>, %arg10: memref<16x32xf32, #tpu.memory_space<vmem>>, %arg11: memref<1x32xf32, #tpu.memory_space<vmem>>, %arg12: memref<1x32xf32, #tpu.memory_space<vmem>>, %arg13: memref<1x1xf32, #tpu.memory_space<vmem>>, %arg14: memref<2x4x16xf32, #tpu.memory_space<vmem>>, %arg15: memref<2x16x32xf32, #tpu.memory_space<vmem>>) attributes {dimension_semantics = [], scalar_prefetch = 0 : i64, scratch_operands = 0 : i64, tpu.core_type = #tpu.core_type<tc>} {
    %c0 = arith.constant 0 : index
    %c0_0 = arith.constant 0 : index
    %c0_1 = arith.constant 0 : index
    %c0_2 = arith.constant 0 : index
    %0 = vector.load %arg0[%c0, %c0_0, %c0_1, %c0_2] : memref<4x2x4x16xf32, #tpu.memory_space<vmem>>, vector<1x2x4x16xf32>
    %1 = vector.shape_cast %0 : vector<1x2x4x16xf32> to vector<2x4x16xf32>
    %c1 = arith.constant 1 : index
    %c0_3 = arith.constant 0 : index
    %c0_4 = arith.constant 0 : index
    %c0_5 = arith.constant 0 : index
    %2 = vector.load %arg0[%c1, %c0_3, %c0_4, %c0_5] : memref<4x2x4x16xf32, #tpu.memory_space<vmem>>, vector<1x2x4x16xf32>
    %3 = vector.shape_cast %2 : vector<1x2x4x16xf32> to vector<2x4x16xf32>
    %4 = arith.addf %1, %3 : vector<2x4x16xf32>
    %c2 = arith.constant 2 : index
    %c0_6 = arith.constant 0 : index
    %c0_7 = arith.constant 0 : index
    %c0_8 = arith.constant 0 : index
    %5 = vector.load %arg0[%c2, %c0_6, %c0_7, %c0_8] : memref<4x2x4x16xf32, #tpu.memory_space<vmem>>, vector<1x2x4x16xf32>
    %6 = vector.shape_cast %5 : vector<1x2x4x16xf32> to vector<2x4x16xf32>
    %7 = arith.addf %4, %6 : vector<2x4x16xf32>
    %c3 = arith.constant 3 : index
    %c0_9 = arith.constant 0 : index
    %c0_10 = arith.constant 0 : index
    %c0_11 = arith.constant 0 : index
    %8 = vector.load %arg0[%c3, %c0_9, %c0_10, %c0_11] : memref<4x2x4x16xf32, #tpu.memory_space<vmem>>, vector<1x2x4x16xf32>
    %9 = vector.shape_cast %8 : vector<1x2x4x16xf32> to vector<2x4x16xf32>
    %10 = arith.addf %7, %9 : vector<2x4x16xf32>
    %cst = arith.constant 2.500000e-01 : f32
    %11 = vector.broadcast %cst : f32 to vector<2x4x16xf32>
    %12 = arith.mulf %10, %11 : vector<2x4x16xf32>
    %13 = vector.extract_strided_slice %12 {offsets = [0, 0, 0], sizes = [1, 4, 16], strides = [1, 1, 1]} : vector<2x4x16xf32> to vector<1x4x16xf32>
    %14 = vector.shape_cast %13 : vector<1x4x16xf32> to vector<4x16xf32>
    %c0_12 = arith.constant 0 : index
    %c0_13 = arith.constant 0 : index
    %15 = vector.load %arg2[%c0_12, %c0_13] : memref<16x8xf32, #tpu.memory_space<vmem>>, vector<16x8xf32>
    %c0_14 = arith.constant 0 : index
    %c0_15 = arith.constant 0 : index
    %16 = vector.load %arg3[%c0_14, %c0_15] : memref<1x8xf32, #tpu.memory_space<vmem>>, vector<1x8xf32>
    %c0_16 = arith.constant 0 : index
    %c0_17 = arith.constant 0 : index
    %17 = vector.load %arg4[%c0_16, %c0_17] : memref<8x16xf32, #tpu.memory_space<vmem>>, vector<8x16xf32>
    %c0_18 = arith.constant 0 : index
    %c0_19 = arith.constant 0 : index
    %18 = vector.load %arg5[%c0_18, %c0_19] : memref<1x16xf32, #tpu.memory_space<vmem>>, vector<1x16xf32>
    %c0_20 = arith.constant 0 : index
    %c0_21 = arith.constant 0 : index
    %19 = vector.load %arg6[%c0_20, %c0_21] : memref<1x16xf32, #tpu.memory_space<vmem>>, vector<1x16xf32>
    %c0_22 = arith.constant 0 : index
    %c0_23 = arith.constant 0 : index
    %20 = vector.load %arg7[%c0_22, %c0_23] : memref<1x1xf32, #tpu.memory_space<vmem>>, vector<1x1xf32>
    %cst_24 = arith.constant dense<0.000000e+00> : vector<16xf32>
    %21 = vector.multi_reduction <add>, %14, %cst_24 [0] : vector<4x16xf32> to vector<16xf32>
    %22 = vector.shape_cast %21 : vector<16xf32> to vector<1x16xf32>
    %cst_25 = arith.constant 2.500000e-01 : f32
    %23 = vector.broadcast %cst_25 : f32 to vector<1x16xf32>
    %24 = arith.mulf %22, %23 : vector<1x16xf32>
    %cst_26 = arith.constant dense<0.000000e+00> : vector<1x8xf32>
    %25 = tpu.matmul %24, %15, %cst_26 {dimension_numbers = #tpu.dot_dimension_numbers<[1], [0], [0], [1], [0, 0, 1, 1], [], []>} : vector<1x16xf32>, vector<16x8xf32>, vector<1x8xf32> -> vector<1x8xf32>
    %26 = arith.addf %25, %16 : vector<1x8xf32>
    %cst_27 = arith.constant 0.000000e+00 : f32
    %27 = vector.broadcast %cst_27 : f32 to vector<1x8xf32>
    %28 = arith.maximumf %26, %27 : vector<1x8xf32>
    %cst_28 = arith.constant dense<0.000000e+00> : vector<1x16xf32>
    %29 = tpu.matmul %28, %17, %cst_28 {dimension_numbers = #tpu.dot_dimension_numbers<[1], [0], [0], [1], [0, 0, 1, 1], [], []>} : vector<1x8xf32>, vector<8x16xf32>, vector<1x16xf32> -> vector<1x16xf32>
    %30 = arith.addf %29, %18 : vector<1x16xf32>
    %cst_29 = arith.constant 5.000000e-01 : f32
    %31 = vector.broadcast %cst_29 : f32 to vector<1x16xf32>
    %32 = arith.mulf %31, %30 : vector<1x16xf32>
    %33 = math.tanh %32 : vector<1x16xf32>
    %cst_30 = arith.constant 1.000000e+00 : f32
    %34 = vector.broadcast %cst_30 : f32 to vector<1x16xf32>
    %35 = arith.addf %33, %34 : vector<1x16xf32>
    %cst_31 = arith.constant 5.000000e-01 : f32
    %36 = vector.broadcast %cst_31 : f32 to vector<1x16xf32>
    %37 = arith.mulf %36, %35 : vector<1x16xf32>
    %38 = vector.broadcast %19 : vector<1x16xf32> to vector<4x16xf32>
    %39 = arith.mulf %14, %38 : vector<4x16xf32>
    %cst_32 = arith.constant dense<0.000000e+00> : vector<4xf32>
    %40 = vector.multi_reduction <add>, %39, %cst_32 [1] : vector<4x16xf32> to vector<4xf32>
    %41 = vector.shape_cast %40 : vector<4xf32> to vector<4x1xf32>
    %42 = vector.broadcast %20 : vector<1x1xf32> to vector<4x1xf32>
    %43 = arith.addf %41, %42 : vector<4x1xf32>
    %cst_33 = arith.constant 5.000000e-01 : f32
    %44 = vector.broadcast %cst_33 : f32 to vector<4x1xf32>
    %45 = arith.mulf %44, %43 : vector<4x1xf32>
    %46 = math.tanh %45 : vector<4x1xf32>
    %cst_34 = arith.constant 1.000000e+00 : f32
    %47 = vector.broadcast %cst_34 : f32 to vector<4x1xf32>
    %48 = arith.addf %46, %47 : vector<4x1xf32>
    %cst_35 = arith.constant 5.000000e-01 : f32
    %49 = vector.broadcast %cst_35 : f32 to vector<4x1xf32>
    %50 = arith.mulf %49, %48 : vector<4x1xf32>
    %51 = vector.broadcast %50 : vector<4x1xf32> to vector<4x16xf32>
    %52 = arith.mulf %14, %51 : vector<4x16xf32>
    %53 = vector.broadcast %37 : vector<1x16xf32> to vector<4x16xf32>
    %54 = arith.mulf %14, %53 : vector<4x16xf32>
    %55 = arith.addf %52, %54 : vector<4x16xf32>
    %c0_36 = arith.constant 0 : index
    %c0_37 = arith.constant 0 : index
    %c0_38 = arith.constant 0 : index
    %56 = vector.load %arg14[%c0_36, %c0_37, %c0_38] : memref<2x4x16xf32, #tpu.memory_space<vmem>>, vector<1x4x16xf32>
    %57 = vector.shape_cast %56 : vector<1x4x16xf32> to vector<4x16xf32>
    %58 = vector.shape_cast %55 : vector<4x16xf32> to vector<1x4x16xf32>
    tpu.vector_store %arg14[%c0_36, %c0_37, %c0_38], %58 {strides = array<i32>} : memref<2x4x16xf32, #tpu.memory_space<vmem>>, vector<1x4x16xf32>,
    %c0_39 = arith.constant 0 : index
    %c0_40 = arith.constant 0 : index
    %c0_41 = arith.constant 0 : index
    %59 = vector.load %arg1[%c0_39, %c0_40, %c0_41] : memref<2x16x32xf32, #tpu.memory_space<vmem>>, vector<1x16x32xf32>
    %60 = vector.shape_cast %59 : vector<1x16x32xf32> to vector<16x32xf32>
    %c0_42 = arith.constant 0 : index
    %c0_43 = arith.constant 0 : index
    %61 = vector.load %arg8[%c0_42, %c0_43] : memref<32x16xf32, #tpu.memory_space<vmem>>, vector<32x16xf32>
    %c0_44 = arith.constant 0 : index
    %c0_45 = arith.constant 0 : index
    %62 = vector.load %arg9[%c0_44, %c0_45] : memref<1x16xf32, #tpu.memory_space<vmem>>, vector<1x16xf32>
    %c0_46 = arith.constant 0 : index
    %c0_47 = arith.constant 0 : index
    %63 = vector.load %arg10[%c0_46, %c0_47] : memref<16x32xf32, #tpu.memory_space<vmem>>, vector<16x32xf32>
    %c0_48 = arith.constant 0 : index
    %c0_49 = arith.constant 0 : index
    %64 = vector.load %arg11[%c0_48, %c0_49] : memref<1x32xf32, #tpu.memory_space<vmem>>, vector<1x32xf32>
    %c0_50 = arith.constant 0 : index
    %c0_51 = arith.constant 0 : index
    %65 = vector.load %arg12[%c0_50, %c0_51] : memref<1x32xf32, #tpu.memory_space<vmem>>, vector<1x32xf32>
    %c0_52 = arith.constant 0 : index
    %c0_53 = arith.constant 0 : index
    %66 = vector.load %arg13[%c0_52, %c0_53] : memref<1x1xf32, #tpu.memory_space<vmem>>, vector<1x1xf32>
    %cst_54 = arith.constant dense<0.000000e+00> : vector<32xf32>
    %67 = vector.multi_reduction <add>, %60, %cst_54 [0] : vector<16x32xf32> to vector<32xf32>
    %68 = vector.shape_cast %67 : vector<32xf32> to vector<1x32xf32>
    %cst_55 = arith.constant 6.250000e-02 : f32
    %69 = vector.broadcast %cst_55 : f32 to vector<1x32xf32>
    %70 = arith.mulf %68, %69 : vector<1x32xf32>
    %cst_56 = arith.constant dense<0.000000e+00> : vector<1x16xf32>
    %71 = tpu.matmul %70, %61, %cst_56 {dimension_numbers = #tpu.dot_dimension_numbers<[1], [0], [0], [1], [0, 0, 1, 1], [], []>} : vector<1x32xf32>, vector<32x16xf32>, vector<1x16xf32> -> vector<1x16xf32>
    %72 = arith.addf %71, %62 : vector<1x16xf32>
    %cst_57 = arith.constant 0.000000e+00 : f32
    %73 = vector.broadcast %cst_57 : f32 to vector<1x16xf32>
    %74 = arith.maximumf %72, %73 : vector<1x16xf32>
    %cst_58 = arith.constant dense<0.000000e+00> : vector<1x32xf32>
    %75 = tpu.matmul %74, %63, %cst_58 {dimension_numbers = #tpu.dot_dimension_numbers<[1], [0], [0], [1], [0, 0, 1, 1], [], []>} : vector<1x16xf32>, vector<16x32xf32>, vector<1x32xf32> -> vector<1x32xf32>
    %76 = arith.addf %75, %64 : vector<1x32xf32>
    %cst_59 = arith.constant 5.000000e-01 : f32
    %77 = vector.broadcast %cst_59 : f32 to vector<1x32xf32>
    %78 = arith.mulf %77, %76 : vector<1x32xf32>
    %79 = math.tanh %78 : vector<1x32xf32>
    %cst_60 = arith.constant 1.000000e+00 : f32
    %80 = vector.broadcast %cst_60 : f32 to vector<1x32xf32>
    %81 = arith.addf %79, %80 : vector<1x32xf32>
    %cst_61 = arith.constant 5.000000e-01 : f32
    %82 = vector.broadcast %cst_61 : f32 to vector<1x32xf32>
    %83 = arith.mulf %82, %81 : vector<1x32xf32>
    %84 = vector.broadcast %65 : vector<1x32xf32> to vector<16x32xf32>
    %85 = arith.mulf %60, %84 : vector<16x32xf32>
    %cst_62 = arith.constant dense<0.000000e+00> : vector<16xf32>
    %86 = vector.multi_reduction <add>, %85, %cst_62 [1] : vector<16x32xf32> to vector<16xf32>
    %87 = vector.shape_cast %86 : vector<16xf32> to vector<16x1xf32>
    %88 = vector.broadcast %66 : vector<1x1xf32> to vector<16x1xf32>
    %89 = arith.addf %87, %88 : vector<16x1xf32>
    %cst_63 = arith.constant 5.000000e-01 : f32
    %90 = vector.broadcast %cst_63 : f32 to vector<16x1xf32>
    %91 = arith.mulf %90, %89 : vector<16x1xf32>
    %92 = math.tanh %91 : vector<16x1xf32>
    %cst_64 = arith.constant 1.000000e+00 : f32
    %93 = vector.broadcast %cst_64 : f32 to vector<16x1xf32>
    %94 = arith.addf %92, %93 : vector<16x1xf32>
    %cst_65 = arith.constant 5.000000e-01 : f32
    %95 = vector.broadcast %cst_65 : f32 to vector<16x1xf32>
    %96 = arith.mulf %95, %94 : vector<16x1xf32>
    %97 = vector.broadcast %96 : vector<16x1xf32> to vector<16x32xf32>
    %98 = arith.mulf %60, %97 : vector<16x32xf32>
    %99 = vector.broadcast %83 : vector<1x32xf32> to vector<16x32xf32>
    %100 = arith.mulf %60, %99 : vector<16x32xf32>
    %101 = arith.addf %98, %100 : vector<16x32xf32>
    %c0_66 = arith.constant 0 : index
    %c0_67 = arith.constant 0 : index
    %c0_68 = arith.constant 0 : index
    %102 = vector.load %arg15[%c0_66, %c0_67, %c0_68] : memref<2x16x32xf32, #tpu.memory_space<vmem>>, vector<1x16x32xf32>
    %103 = vector.shape_cast %102 : vector<1x16x32xf32> to vector<16x32xf32>
    %104 = vector.shape_cast %101 : vector<16x32xf32> to vector<1x16x32xf32>
    tpu.vector_store %arg15[%c0_66, %c0_67, %c0_68], %104 {strides = array<i32>} : memref<2x16x32xf32, #tpu.memory_space<vmem>>, vector<1x16x32xf32>,
    %105 = vector.extract_strided_slice %12 {offsets = [1, 0, 0], sizes = [1, 4, 16], strides = [1, 1, 1]} : vector<2x4x16xf32> to vector<1x4x16xf32>
    %106 = vector.shape_cast %105 : vector<1x4x16xf32> to vector<4x16xf32>
    %c0_69 = arith.constant 0 : index
    %c0_70 = arith.constant 0 : index
    %107 = vector.load %arg2[%c0_69, %c0_70] : memref<16x8xf32, #tpu.memory_space<vmem>>, vector<16x8xf32>
    %c0_71 = arith.constant 0 : index
    %c0_72 = arith.constant 0 : index
    %108 = vector.load %arg3[%c0_71, %c0_72] : memref<1x8xf32, #tpu.memory_space<vmem>>, vector<1x8xf32>
    %c0_73 = arith.constant 0 : index
    %c0_74 = arith.constant 0 : index
    %109 = vector.load %arg4[%c0_73, %c0_74] : memref<8x16xf32, #tpu.memory_space<vmem>>, vector<8x16xf32>
    %c0_75 = arith.constant 0 : index
    %c0_76 = arith.constant 0 : index
    %110 = vector.load %arg5[%c0_75, %c0_76] : memref<1x16xf32, #tpu.memory_space<vmem>>, vector<1x16xf32>
    %c0_77 = arith.constant 0 : index
    %c0_78 = arith.constant 0 : index
    %111 = vector.load %arg6[%c0_77, %c0_78] : memref<1x16xf32, #tpu.memory_space<vmem>>, vector<1x16xf32>
    %c0_79 = arith.constant 0 : index
    %c0_80 = arith.constant 0 : index
    %112 = vector.load %arg7[%c0_79, %c0_80] : memref<1x1xf32, #tpu.memory_space<vmem>>, vector<1x1xf32>
    %cst_81 = arith.constant dense<0.000000e+00> : vector<16xf32>
    %113 = vector.multi_reduction <add>, %106, %cst_81 [0] : vector<4x16xf32> to vector<16xf32>
    %114 = vector.shape_cast %113 : vector<16xf32> to vector<1x16xf32>
    %cst_82 = arith.constant 2.500000e-01 : f32
    %115 = vector.broadcast %cst_82 : f32 to vector<1x16xf32>
    %116 = arith.mulf %114, %115 : vector<1x16xf32>
    %cst_83 = arith.constant dense<0.000000e+00> : vector<1x8xf32>
    %117 = tpu.matmul %116, %107, %cst_83 {dimension_numbers = #tpu.dot_dimension_numbers<[1], [0], [0], [1], [0, 0, 1, 1], [], []>} : vector<1x16xf32>, vector<16x8xf32>, vector<1x8xf32> -> vector<1x8xf32>
    %118 = arith.addf %117, %108 : vector<1x8xf32>
    %cst_84 = arith.constant 0.000000e+00 : f32
    %119 = vector.broadcast %cst_84 : f32 to vector<1x8xf32>
    %120 = arith.maximumf %118, %119 : vector<1x8xf32>
    %cst_85 = arith.constant dense<0.000000e+00> : vector<1x16xf32>
    %121 = tpu.matmul %120, %109, %cst_85 {dimension_numbers = #tpu.dot_dimension_numbers<[1], [0], [0], [1], [0, 0, 1, 1], [], []>} : vector<1x8xf32>, vector<8x16xf32>, vector<1x16xf32> -> vector<1x16xf32>
    %122 = arith.addf %121, %110 : vector<1x16xf32>
    %cst_86 = arith.constant 5.000000e-01 : f32
    %123 = vector.broadcast %cst_86 : f32 to vector<1x16xf32>
    %124 = arith.mulf %123, %122 : vector<1x16xf32>
    %125 = math.tanh %124 : vector<1x16xf32>
    %cst_87 = arith.constant 1.000000e+00 : f32
    %126 = vector.broadcast %cst_87 : f32 to vector<1x16xf32>
    %127 = arith.addf %125, %126 : vector<1x16xf32>
    %cst_88 = arith.constant 5.000000e-01 : f32
    %128 = vector.broadcast %cst_88 : f32 to vector<1x16xf32>
    %129 = arith.mulf %128, %127 : vector<1x16xf32>
    %130 = vector.broadcast %111 : vector<1x16xf32> to vector<4x16xf32>
    %131 = arith.mulf %106, %130 : vector<4x16xf32>
    %cst_89 = arith.constant dense<0.000000e+00> : vector<4xf32>
    %132 = vector.multi_reduction <add>, %131, %cst_89 [1] : vector<4x16xf32> to vector<4xf32>
    %133 = vector.shape_cast %132 : vector<4xf32> to vector<4x1xf32>
    %134 = vector.broadcast %112 : vector<1x1xf32> to vector<4x1xf32>
    %135 = arith.addf %133, %134 : vector<4x1xf32>
    %cst_90 = arith.constant 5.000000e-01 : f32
    %136 = vector.broadcast %cst_90 : f32 to vector<4x1xf32>
    %137 = arith.mulf %136, %135 : vector<4x1xf32>
    %138 = math.tanh %137 : vector<4x1xf32>
    %cst_91 = arith.constant 1.000000e+00 : f32
    %139 = vector.broadcast %cst_91 : f32 to vector<4x1xf32>
    %140 = arith.addf %138, %139 : vector<4x1xf32>
    %cst_92 = arith.constant 5.000000e-01 : f32
    %141 = vector.broadcast %cst_92 : f32 to vector<4x1xf32>
    %142 = arith.mulf %141, %140 : vector<4x1xf32>
    %143 = vector.broadcast %142 : vector<4x1xf32> to vector<4x16xf32>
    %144 = arith.mulf %106, %143 : vector<4x16xf32>
    %145 = vector.broadcast %129 : vector<1x16xf32> to vector<4x16xf32>
    %146 = arith.mulf %106, %145 : vector<4x16xf32>
    %147 = arith.addf %144, %146 : vector<4x16xf32>
    %c1_93 = arith.constant 1 : index
    %c0_94 = arith.constant 0 : index
    %c0_95 = arith.constant 0 : index
    %148 = vector.load %arg14[%c1_93, %c0_94, %c0_95] : memref<2x4x16xf32, #tpu.memory_space<vmem>>, vector<1x4x16xf32>
    %149 = vector.shape_cast %148 : vector<1x4x16xf32> to vector<4x16xf32>
    %150 = vector.shape_cast %147 : vector<4x16xf32> to vector<1x4x16xf32>
    tpu.vector_store %arg14[%c1_93, %c0_94, %c0_95], %150 {strides = array<i32>} : memref<2x4x16xf32, #tpu.memory_space<vmem>>, vector<1x4x16xf32>,
    %c1_96 = arith.constant 1 : index
    %c0_97 = arith.constant 0 : index
    %c0_98 = arith.constant 0 : index
    %151 = vector.load %arg1[%c1_96, %c0_97, %c0_98] : memref<2x16x32xf32, #tpu.memory_space<vmem>>, vector<1x16x32xf32>
    %152 = vector.shape_cast %151 : vector<1x16x32xf32> to vector<16x32xf32>
    %c0_99 = arith.constant 0 : index
    %c0_100 = arith.constant 0 : index
    %153 = vector.load %arg8[%c0_99, %c0_100] : memref<32x16xf32, #tpu.memory_space<vmem>>, vector<32x16xf32>
    %c0_101 = arith.constant 0 : index
    %c0_102 = arith.constant 0 : index
    %154 = vector.load %arg9[%c0_101, %c0_102] : memref<1x16xf32, #tpu.memory_space<vmem>>, vector<1x16xf32>
    %c0_103 = arith.constant 0 : index
    %c0_104 = arith.constant 0 : index
    %155 = vector.load %arg10[%c0_103, %c0_104] : memref<16x32xf32, #tpu.memory_space<vmem>>, vector<16x32xf32>
    %c0_105 = arith.constant 0 : index
    %c0_106 = arith.constant 0 : index
    %156 = vector.load %arg11[%c0_105, %c0_106] : memref<1x32xf32, #tpu.memory_space<vmem>>, vector<1x32xf32>
    %c0_107 = arith.constant 0 : index
    %c0_108 = arith.constant 0 : index
    %157 = vector.load %arg12[%c0_107, %c0_108] : memref<1x32xf32, #tpu.memory_space<vmem>>, vector<1x32xf32>
    %c0_109 = arith.constant 0 : index
    %c0_110 = arith.constant 0 : index
    %158 = vector.load %arg13[%c0_109, %c0_110] : memref<1x1xf32, #tpu.memory_space<vmem>>, vector<1x1xf32>
    %cst_111 = arith.constant dense<0.000000e+00> : vector<32xf32>
    %159 = vector.multi_reduction <add>, %152, %cst_111 [0] : vector<16x32xf32> to vector<32xf32>
    %160 = vector.shape_cast %159 : vector<32xf32> to vector<1x32xf32>
    %cst_112 = arith.constant 6.250000e-02 : f32
    %161 = vector.broadcast %cst_112 : f32 to vector<1x32xf32>
    %162 = arith.mulf %160, %161 : vector<1x32xf32>
    %cst_113 = arith.constant dense<0.000000e+00> : vector<1x16xf32>
    %163 = tpu.matmul %162, %153, %cst_113 {dimension_numbers = #tpu.dot_dimension_numbers<[1], [0], [0], [1], [0, 0, 1, 1], [], []>} : vector<1x32xf32>, vector<32x16xf32>, vector<1x16xf32> -> vector<1x16xf32>
    %164 = arith.addf %163, %154 : vector<1x16xf32>
    %cst_114 = arith.constant 0.000000e+00 : f32
    %165 = vector.broadcast %cst_114 : f32 to vector<1x16xf32>
    %166 = arith.maximumf %164, %165 : vector<1x16xf32>
    %cst_115 = arith.constant dense<0.000000e+00> : vector<1x32xf32>
    %167 = tpu.matmul %166, %155, %cst_115 {dimension_numbers = #tpu.dot_dimension_numbers<[1], [0], [0], [1], [0, 0, 1, 1], [], []>} : vector<1x16xf32>, vector<16x32xf32>, vector<1x32xf32> -> vector<1x32xf32>
    %168 = arith.addf %167, %156 : vector<1x32xf32>
    %cst_116 = arith.constant 5.000000e-01 : f32
    %169 = vector.broadcast %cst_116 : f32 to vector<1x32xf32>
    %170 = arith.mulf %169, %168 : vector<1x32xf32>
    %171 = math.tanh %170 : vector<1x32xf32>
    %cst_117 = arith.constant 1.000000e+00 : f32
    %172 = vector.broadcast %cst_117 : f32 to vector<1x32xf32>
    %173 = arith.addf %171, %172 : vector<1x32xf32>
    %cst_118 = arith.constant 5.000000e-01 : f32
    %174 = vector.broadcast %cst_118 : f32 to vector<1x32xf32>
    %175 = arith.mulf %174, %173 : vector<1x32xf32>
    %176 = vector.broadcast %157 : vector<1x32xf32> to vector<16x32xf32>
    %177 = arith.mulf %152, %176 : vector<16x32xf32>
    %cst_119 = arith.constant dense<0.000000e+00> : vector<16xf32>
    %178 = vector.multi_reduction <add>, %177, %cst_119 [1] : vector<16x32xf32> to vector<16xf32>
    %179 = vector.shape_cast %178 : vector<16xf32> to vector<16x1xf32>
    %180 = vector.broadcast %158 : vector<1x1xf32> to vector<16x1xf32>
    %181 = arith.addf %179, %180 : vector<16x1xf32>
    %cst_120 = arith.constant 5.000000e-01 : f32
    %182 = vector.broadcast %cst_120 : f32 to vector<16x1xf32>
    %183 = arith.mulf %182, %181 : vector<16x1xf32>
    %184 = math.tanh %183 : vector<16x1xf32>
    %cst_121 = arith.constant 1.000000e+00 : f32
    %185 = vector.broadcast %cst_121 : f32 to vector<16x1xf32>
    %186 = arith.addf %184, %185 : vector<16x1xf32>
    %cst_122 = arith.constant 5.000000e-01 : f32
    %187 = vector.broadcast %cst_122 : f32 to vector<16x1xf32>
    %188 = arith.mulf %187, %186 : vector<16x1xf32>
    %189 = vector.broadcast %188 : vector<16x1xf32> to vector<16x32xf32>
    %190 = arith.mulf %152, %189 : vector<16x32xf32>
    %191 = vector.broadcast %175 : vector<1x32xf32> to vector<16x32xf32>
    %192 = arith.mulf %152, %191 : vector<16x32xf32>
    %193 = arith.addf %190, %192 : vector<16x32xf32>
    %c1_123 = arith.constant 1 : index
    %c0_124 = arith.constant 0 : index
    %c0_125 = arith.constant 0 : index
    %194 = vector.load %arg15[%c1_123, %c0_124, %c0_125] : memref<2x16x32xf32, #tpu.memory_space<vmem>>, vector<1x16x32xf32>
    %195 = vector.shape_cast %194 : vector<1x16x32xf32> to vector<16x32xf32>
    %196 = vector.shape_cast %193 : vector<16x32xf32> to vector<1x16x32xf32>
    tpu.vector_store %arg15[%c1_123, %c0_124, %c0_125], %196 {strides = array<i32>} : memref<2x16x32xf32, #tpu.memory_space<vmem>>, vector<1x16x32xf32>,
    return
  }
}

module attributes {stable_mosaic.version = 11 : i64} {
  func.func @_matmul_kernel(%arg0: memref<8x144xbf16, #tpu.memory_space<vmem>>, %arg1: memref<144x8xbf16, #tpu.memory_space<vmem>>, %arg2: memref<8x8xf32, #tpu.memory_space<vmem>>) attributes {dimension_semantics = [], scalar_prefetch = 0 : i64, scratch_operands = 0 : i64, tpu.core_type = #tpu.core_type<tc>} {
    %c0 = arith.constant 0 : index
    %c0_0 = arith.constant 0 : index
    %0 = vector.load %arg0[%c0, %c0_0] : memref<8x144xbf16, #tpu.memory_space<vmem>>, vector<8x144xbf16>
    %c0_1 = arith.constant 0 : index
    %c0_2 = arith.constant 0 : index
    %1 = vector.load %arg1[%c0_1, %c0_2] : memref<144x8xbf16, #tpu.memory_space<vmem>>, vector<144x8xbf16>
    %cst = arith.constant dense<0.000000e+00> : vector<8x8xf32>
    %2 = tpu.matmul %0, %1, %cst {dimension_numbers = #tpu.dot_dimension_numbers<[1], [0], [0], [1], [0, 0, 1, 1], [], []>} : vector<8x144xbf16>, vector<144x8xbf16>, vector<8x8xf32> -> vector<8x8xf32>
    %c0_3 = arith.constant 0 : index
    %c0_4 = arith.constant 0 : index
    %3 = vector.load %arg2[%c0_3, %c0_4] : memref<8x8xf32, #tpu.memory_space<vmem>>, vector<8x8xf32>
    tpu.vector_store %arg2[%c0_3, %c0_4], %2 {strides = array<i32>} : memref<8x8xf32, #tpu.memory_space<vmem>>, vector<8x8xf32>,
    return
  }
}

module attributes {stable_mosaic.version = 11 : i64} {
  func.func @_bn_relu_mm_bias_relu_kernel(%arg0: memref<8x24xf32, #tpu.memory_space<vmem>>, %arg1: memref<1x24xf32, #tpu.memory_space<vmem>>, %arg2: memref<1x24xf32, #tpu.memory_space<vmem>>, %arg3: memref<24x16xbf16, #tpu.memory_space<vmem>>, %arg4: memref<1x16xf32, #tpu.memory_space<vmem>>, %arg5: memref<8x16xbf16, #tpu.memory_space<vmem>>) attributes {dimension_semantics = [], scalar_prefetch = 0 : i64, scratch_operands = 0 : i64, tpu.core_type = #tpu.core_type<tc>} {
    %c0 = arith.constant 0 : index
    %c0_0 = arith.constant 0 : index
    %0 = vector.load %arg0[%c0, %c0_0] : memref<8x24xf32, #tpu.memory_space<vmem>>, vector<8x24xf32>
    %c0_1 = arith.constant 0 : index
    %c0_2 = arith.constant 0 : index
    %1 = vector.load %arg1[%c0_1, %c0_2] : memref<1x24xf32, #tpu.memory_space<vmem>>, vector<1x24xf32>
    %2 = vector.broadcast %1 : vector<1x24xf32> to vector<8x24xf32>
    %3 = arith.mulf %0, %2 : vector<8x24xf32>
    %c0_3 = arith.constant 0 : index
    %c0_4 = arith.constant 0 : index
    %4 = vector.load %arg2[%c0_3, %c0_4] : memref<1x24xf32, #tpu.memory_space<vmem>>, vector<1x24xf32>
    %5 = vector.broadcast %4 : vector<1x24xf32> to vector<8x24xf32>
    %6 = arith.addf %3, %5 : vector<8x24xf32>
    %cst = arith.constant 0.000000e+00 : f32
    %7 = vector.broadcast %cst : f32 to vector<8x24xf32>
    %8 = arith.maximumf %6, %7 : vector<8x24xf32>
    %9 = arith.truncf %8 : vector<8x24xf32> to vector<8x24xbf16>
    %c0_5 = arith.constant 0 : index
    %c0_6 = arith.constant 0 : index
    %10 = vector.load %arg3[%c0_5, %c0_6] : memref<24x16xbf16, #tpu.memory_space<vmem>>, vector<24x16xbf16>
    %cst_7 = arith.constant dense<0.000000e+00> : vector<8x16xf32>
    %11 = tpu.matmul %9, %10, %cst_7 {dimension_numbers = #tpu.dot_dimension_numbers<[1], [0], [0], [1], [0, 0, 1, 1], [], []>} : vector<8x24xbf16>, vector<24x16xbf16>, vector<8x16xf32> -> vector<8x16xf32>
    %c0_8 = arith.constant 0 : index
    %c0_9 = arith.constant 0 : index
    %12 = vector.load %arg4[%c0_8, %c0_9] : memref<1x16xf32, #tpu.memory_space<vmem>>, vector<1x16xf32>
    %13 = vector.broadcast %12 : vector<1x16xf32> to vector<8x16xf32>
    %14 = arith.addf %11, %13 : vector<8x16xf32>
    %cst_10 = arith.constant 0.000000e+00 : f32
    %15 = vector.broadcast %cst_10 : f32 to vector<8x16xf32>
    %16 = arith.maximumf %14, %15 : vector<8x16xf32>
    %17 = arith.truncf %16 : vector<8x16xf32> to vector<8x16xbf16>
    %c0_11 = arith.constant 0 : index
    %c0_12 = arith.constant 0 : index
    %18 = vector.load %arg5[%c0_11, %c0_12] : memref<8x16xbf16, #tpu.memory_space<vmem>>, vector<8x16xbf16>
    tpu.vector_store %arg5[%c0_11, %c0_12], %17 {strides = array<i32>} : memref<8x16xbf16, #tpu.memory_space<vmem>>, vector<8x16xbf16>,
    return
  }
}

module attributes {stable_mosaic.version = 11 : i64} {
  func.func @_transition_kernel(%arg0: memref<8x32xf32, #tpu.memory_space<vmem>>, %arg1: memref<1x32xf32, #tpu.memory_space<vmem>>, %arg2: memref<1x32xf32, #tpu.memory_space<vmem>>, %arg3: memref<32x16xbf16, #tpu.memory_space<vmem>>, %arg4: memref<8x32xf32, #tpu.memory_space<vmem>>, %arg5: memref<8x16xf32, #tpu.memory_space<vmem>>) attributes {dimension_semantics = [], scalar_prefetch = 0 : i64, scratch_operands = 0 : i64, tpu.core_type = #tpu.core_type<tc>} {
    %c0 = arith.constant 0 : index
    %c0_0 = arith.constant 0 : index
    %0 = vector.load %arg0[%c0, %c0_0] : memref<8x32xf32, #tpu.memory_space<vmem>>, vector<8x32xf32>
    %c0_1 = arith.constant 0 : index
    %c0_2 = arith.constant 0 : index
    %1 = vector.load %arg1[%c0_1, %c0_2] : memref<1x32xf32, #tpu.memory_space<vmem>>, vector<1x32xf32>
    %2 = vector.broadcast %1 : vector<1x32xf32> to vector<8x32xf32>
    %3 = arith.mulf %0, %2 : vector<8x32xf32>
    %c0_3 = arith.constant 0 : index
    %c0_4 = arith.constant 0 : index
    %4 = vector.load %arg2[%c0_3, %c0_4] : memref<1x32xf32, #tpu.memory_space<vmem>>, vector<1x32xf32>
    %5 = vector.broadcast %4 : vector<1x32xf32> to vector<8x32xf32>
    %6 = arith.addf %3, %5 : vector<8x32xf32>
    %cst = arith.constant 0.000000e+00 : f32
    %7 = vector.broadcast %cst : f32 to vector<8x32xf32>
    %8 = arith.maximumf %6, %7 : vector<8x32xf32>
    %c0_5 = arith.constant 0 : index
    %c0_6 = arith.constant 0 : index
    %9 = vector.load %arg4[%c0_5, %c0_6] : memref<8x32xf32, #tpu.memory_space<vmem>>, vector<8x32xf32>
    tpu.vector_store %arg4[%c0_5, %c0_6], %8 {strides = array<i32>} : memref<8x32xf32, #tpu.memory_space<vmem>>, vector<8x32xf32>,
    %10 = arith.truncf %8 : vector<8x32xf32> to vector<8x32xbf16>
    %c0_7 = arith.constant 0 : index
    %c0_8 = arith.constant 0 : index
    %11 = vector.load %arg3[%c0_7, %c0_8] : memref<32x16xbf16, #tpu.memory_space<vmem>>, vector<32x16xbf16>
    %cst_9 = arith.constant dense<0.000000e+00> : vector<8x16xf32>
    %12 = tpu.matmul %10, %11, %cst_9 {dimension_numbers = #tpu.dot_dimension_numbers<[1], [0], [0], [1], [0, 0, 1, 1], [], []>} : vector<8x32xbf16>, vector<32x16xbf16>, vector<8x16xf32> -> vector<8x16xf32>
    %c0_10 = arith.constant 0 : index
    %c0_11 = arith.constant 0 : index
    %13 = vector.load %arg5[%c0_10, %c0_11] : memref<8x16xf32, #tpu.memory_space<vmem>>, vector<8x16xf32>
    tpu.vector_store %arg5[%c0_10, %c0_11], %12 {strides = array<i32>} : memref<8x16xf32, #tpu.memory_space<vmem>>, vector<8x16xf32>,
    return
  }
}

module attributes {stable_mosaic.version = 11 : i64} {
  func.func @_bn_relu_mm_bias_relu_kernel(%arg0: memref<2x16xf32, #tpu.memory_space<vmem>>, %arg1: memref<1x16xf32, #tpu.memory_space<vmem>>, %arg2: memref<1x16xf32, #tpu.memory_space<vmem>>, %arg3: memref<16x16xbf16, #tpu.memory_space<vmem>>, %arg4: memref<1x16xf32, #tpu.memory_space<vmem>>, %arg5: memref<2x16xbf16, #tpu.memory_space<vmem>>) attributes {dimension_semantics = [], scalar_prefetch = 0 : i64, scratch_operands = 0 : i64, tpu.core_type = #tpu.core_type<tc>} {
    %c0 = arith.constant 0 : index
    %c0_0 = arith.constant 0 : index
    %0 = vector.load %arg0[%c0, %c0_0] : memref<2x16xf32, #tpu.memory_space<vmem>>, vector<2x16xf32>
    %c0_1 = arith.constant 0 : index
    %c0_2 = arith.constant 0 : index
    %1 = vector.load %arg1[%c0_1, %c0_2] : memref<1x16xf32, #tpu.memory_space<vmem>>, vector<1x16xf32>
    %2 = vector.broadcast %1 : vector<1x16xf32> to vector<2x16xf32>
    %3 = arith.mulf %0, %2 : vector<2x16xf32>
    %c0_3 = arith.constant 0 : index
    %c0_4 = arith.constant 0 : index
    %4 = vector.load %arg2[%c0_3, %c0_4] : memref<1x16xf32, #tpu.memory_space<vmem>>, vector<1x16xf32>
    %5 = vector.broadcast %4 : vector<1x16xf32> to vector<2x16xf32>
    %6 = arith.addf %3, %5 : vector<2x16xf32>
    %cst = arith.constant 0.000000e+00 : f32
    %7 = vector.broadcast %cst : f32 to vector<2x16xf32>
    %8 = arith.maximumf %6, %7 : vector<2x16xf32>
    %9 = arith.truncf %8 : vector<2x16xf32> to vector<2x16xbf16>
    %c0_5 = arith.constant 0 : index
    %c0_6 = arith.constant 0 : index
    %10 = vector.load %arg3[%c0_5, %c0_6] : memref<16x16xbf16, #tpu.memory_space<vmem>>, vector<16x16xbf16>
    %cst_7 = arith.constant dense<0.000000e+00> : vector<2x16xf32>
    %11 = tpu.matmul %9, %10, %cst_7 {dimension_numbers = #tpu.dot_dimension_numbers<[1], [0], [0], [1], [0, 0, 1, 1], [], []>} : vector<2x16xbf16>, vector<16x16xbf16>, vector<2x16xf32> -> vector<2x16xf32>
    %c0_8 = arith.constant 0 : index
    %c0_9 = arith.constant 0 : index
    %12 = vector.load %arg4[%c0_8, %c0_9] : memref<1x16xf32, #tpu.memory_space<vmem>>, vector<1x16xf32>
    %13 = vector.broadcast %12 : vector<1x16xf32> to vector<2x16xf32>
    %14 = arith.addf %11, %13 : vector<2x16xf32>
    %cst_10 = arith.constant 0.000000e+00 : f32
    %15 = vector.broadcast %cst_10 : f32 to vector<2x16xf32>
    %16 = arith.maximumf %14, %15 : vector<2x16xf32>
    %17 = arith.truncf %16 : vector<2x16xf32> to vector<2x16xbf16>
    %c0_11 = arith.constant 0 : index
    %c0_12 = arith.constant 0 : index
    %18 = vector.load %arg5[%c0_11, %c0_12] : memref<2x16xbf16, #tpu.memory_space<vmem>>, vector<2x16xbf16>
    tpu.vector_store %arg5[%c0_11, %c0_12], %17 {strides = array<i32>} : memref<2x16xbf16, #tpu.memory_space<vmem>>, vector<2x16xbf16>,
    return
  }
}

module attributes {stable_mosaic.version = 11 : i64} {
  func.func @_avgpool_scse_pair_kernel(%arg0: memref<4x2x1x16xf32, #tpu.memory_space<vmem>>, %arg1: memref<2x4x32xf32, #tpu.memory_space<vmem>>, %arg2: memref<16x8xf32, #tpu.memory_space<vmem>>, %arg3: memref<1x8xf32, #tpu.memory_space<vmem>>, %arg4: memref<8x16xf32, #tpu.memory_space<vmem>>, %arg5: memref<1x16xf32, #tpu.memory_space<vmem>>, %arg6: memref<1x16xf32, #tpu.memory_space<vmem>>, %arg7: memref<1x1xf32, #tpu.memory_space<vmem>>, %arg8: memref<32x16xf32, #tpu.memory_space<vmem>>, %arg9: memref<1x16xf32, #tpu.memory_space<vmem>>, %arg10: memref<16x32xf32, #tpu.memory_space<vmem>>, %arg11: memref<1x32xf32, #tpu.memory_space<vmem>>, %arg12: memref<1x32xf32, #tpu.memory_space<vmem>>, %arg13: memref<1x1xf32, #tpu.memory_space<vmem>>, %arg14: memref<2x1x16xf32, #tpu.memory_space<vmem>>, %arg15: memref<2x4x32xf32, #tpu.memory_space<vmem>>) attributes {dimension_semantics = [], scalar_prefetch = 0 : i64, scratch_operands = 0 : i64, tpu.core_type = #tpu.core_type<tc>} {
    %c0 = arith.constant 0 : index
    %c0_0 = arith.constant 0 : index
    %c0_1 = arith.constant 0 : index
    %c0_2 = arith.constant 0 : index
    %0 = vector.load %arg0[%c0, %c0_0, %c0_1, %c0_2] : memref<4x2x1x16xf32, #tpu.memory_space<vmem>>, vector<1x2x1x16xf32>
    %1 = vector.shape_cast %0 : vector<1x2x1x16xf32> to vector<2x1x16xf32>
    %c1 = arith.constant 1 : index
    %c0_3 = arith.constant 0 : index
    %c0_4 = arith.constant 0 : index
    %c0_5 = arith.constant 0 : index
    %2 = vector.load %arg0[%c1, %c0_3, %c0_4, %c0_5] : memref<4x2x1x16xf32, #tpu.memory_space<vmem>>, vector<1x2x1x16xf32>
    %3 = vector.shape_cast %2 : vector<1x2x1x16xf32> to vector<2x1x16xf32>
    %4 = arith.addf %1, %3 : vector<2x1x16xf32>
    %c2 = arith.constant 2 : index
    %c0_6 = arith.constant 0 : index
    %c0_7 = arith.constant 0 : index
    %c0_8 = arith.constant 0 : index
    %5 = vector.load %arg0[%c2, %c0_6, %c0_7, %c0_8] : memref<4x2x1x16xf32, #tpu.memory_space<vmem>>, vector<1x2x1x16xf32>
    %6 = vector.shape_cast %5 : vector<1x2x1x16xf32> to vector<2x1x16xf32>
    %7 = arith.addf %4, %6 : vector<2x1x16xf32>
    %c3 = arith.constant 3 : index
    %c0_9 = arith.constant 0 : index
    %c0_10 = arith.constant 0 : index
    %c0_11 = arith.constant 0 : index
    %8 = vector.load %arg0[%c3, %c0_9, %c0_10, %c0_11] : memref<4x2x1x16xf32, #tpu.memory_space<vmem>>, vector<1x2x1x16xf32>
    %9 = vector.shape_cast %8 : vector<1x2x1x16xf32> to vector<2x1x16xf32>
    %10 = arith.addf %7, %9 : vector<2x1x16xf32>
    %cst = arith.constant 2.500000e-01 : f32
    %11 = vector.broadcast %cst : f32 to vector<2x1x16xf32>
    %12 = arith.mulf %10, %11 : vector<2x1x16xf32>
    %13 = vector.extract_strided_slice %12 {offsets = [0, 0, 0], sizes = [1, 1, 16], strides = [1, 1, 1]} : vector<2x1x16xf32> to vector<1x1x16xf32>
    %14 = vector.shape_cast %13 : vector<1x1x16xf32> to vector<1x16xf32>
    %c0_12 = arith.constant 0 : index
    %c0_13 = arith.constant 0 : index
    %15 = vector.load %arg2[%c0_12, %c0_13] : memref<16x8xf32, #tpu.memory_space<vmem>>, vector<16x8xf32>
    %c0_14 = arith.constant 0 : index
    %c0_15 = arith.constant 0 : index
    %16 = vector.load %arg3[%c0_14, %c0_15] : memref<1x8xf32, #tpu.memory_space<vmem>>, vector<1x8xf32>
    %c0_16 = arith.constant 0 : index
    %c0_17 = arith.constant 0 : index
    %17 = vector.load %arg4[%c0_16, %c0_17] : memref<8x16xf32, #tpu.memory_space<vmem>>, vector<8x16xf32>
    %c0_18 = arith.constant 0 : index
    %c0_19 = arith.constant 0 : index
    %18 = vector.load %arg5[%c0_18, %c0_19] : memref<1x16xf32, #tpu.memory_space<vmem>>, vector<1x16xf32>
    %c0_20 = arith.constant 0 : index
    %c0_21 = arith.constant 0 : index
    %19 = vector.load %arg6[%c0_20, %c0_21] : memref<1x16xf32, #tpu.memory_space<vmem>>, vector<1x16xf32>
    %c0_22 = arith.constant 0 : index
    %c0_23 = arith.constant 0 : index
    %20 = vector.load %arg7[%c0_22, %c0_23] : memref<1x1xf32, #tpu.memory_space<vmem>>, vector<1x1xf32>
    %cst_24 = arith.constant dense<0.000000e+00> : vector<16xf32>
    %21 = vector.multi_reduction <add>, %14, %cst_24 [0] : vector<1x16xf32> to vector<16xf32>
    %22 = vector.shape_cast %21 : vector<16xf32> to vector<1x16xf32>
    %cst_25 = arith.constant 1.000000e+00 : f32
    %23 = vector.broadcast %cst_25 : f32 to vector<1x16xf32>
    %24 = arith.mulf %22, %23 : vector<1x16xf32>
    %cst_26 = arith.constant dense<0.000000e+00> : vector<1x8xf32>
    %25 = tpu.matmul %24, %15, %cst_26 {dimension_numbers = #tpu.dot_dimension_numbers<[1], [0], [0], [1], [0, 0, 1, 1], [], []>} : vector<1x16xf32>, vector<16x8xf32>, vector<1x8xf32> -> vector<1x8xf32>
    %26 = arith.addf %25, %16 : vector<1x8xf32>
    %cst_27 = arith.constant 0.000000e+00 : f32
    %27 = vector.broadcast %cst_27 : f32 to vector<1x8xf32>
    %28 = arith.maximumf %26, %27 : vector<1x8xf32>
    %cst_28 = arith.constant dense<0.000000e+00> : vector<1x16xf32>
    %29 = tpu.matmul %28, %17, %cst_28 {dimension_numbers = #tpu.dot_dimension_numbers<[1], [0], [0], [1], [0, 0, 1, 1], [], []>} : vector<1x8xf32>, vector<8x16xf32>, vector<1x16xf32> -> vector<1x16xf32>
    %30 = arith.addf %29, %18 : vector<1x16xf32>
    %cst_29 = arith.constant 5.000000e-01 : f32
    %31 = vector.broadcast %cst_29 : f32 to vector<1x16xf32>
    %32 = arith.mulf %31, %30 : vector<1x16xf32>
    %33 = math.tanh %32 : vector<1x16xf32>
    %cst_30 = arith.constant 1.000000e+00 : f32
    %34 = vector.broadcast %cst_30 : f32 to vector<1x16xf32>
    %35 = arith.addf %33, %34 : vector<1x16xf32>
    %cst_31 = arith.constant 5.000000e-01 : f32
    %36 = vector.broadcast %cst_31 : f32 to vector<1x16xf32>
    %37 = arith.mulf %36, %35 : vector<1x16xf32>
    %38 = arith.mulf %14, %19 : vector<1x16xf32>
    %cst_32 = arith.constant dense<0.000000e+00> : vector<1xf32>
    %39 = vector.multi_reduction <add>, %38, %cst_32 [1] : vector<1x16xf32> to vector<1xf32>
    %40 = vector.shape_cast %39 : vector<1xf32> to vector<1x1xf32>
    %41 = arith.addf %40, %20 : vector<1x1xf32>
    %cst_33 = arith.constant 5.000000e-01 : f32
    %42 = vector.broadcast %cst_33 : f32 to vector<1x1xf32>
    %43 = arith.mulf %42, %41 : vector<1x1xf32>
    %44 = math.tanh %43 : vector<1x1xf32>
    %cst_34 = arith.constant 1.000000e+00 : f32
    %45 = vector.broadcast %cst_34 : f32 to vector<1x1xf32>
    %46 = arith.addf %44, %45 : vector<1x1xf32>
    %cst_35 = arith.constant 5.000000e-01 : f32
    %47 = vector.broadcast %cst_35 : f32 to vector<1x1xf32>
    %48 = arith.mulf %47, %46 : vector<1x1xf32>
    %49 = vector.broadcast %48 : vector<1x1xf32> to vector<1x16xf32>
    %50 = arith.mulf %14, %49 : vector<1x16xf32>
    %51 = arith.mulf %14, %37 : vector<1x16xf32>
    %52 = arith.addf %50, %51 : vector<1x16xf32>
    %c0_36 = arith.constant 0 : index
    %c0_37 = arith.constant 0 : index
    %c0_38 = arith.constant 0 : index
    %53 = vector.load %arg14[%c0_36, %c0_37, %c0_38] : memref<2x1x16xf32, #tpu.memory_space<vmem>>, vector<1x1x16xf32>
    %54 = vector.shape_cast %53 : vector<1x1x16xf32> to vector<1x16xf32>
    %55 = vector.shape_cast %52 : vector<1x16xf32> to vector<1x1x16xf32>
    tpu.vector_store %arg14[%c0_36, %c0_37, %c0_38], %55 {strides = array<i32>} : memref<2x1x16xf32, #tpu.memory_space<vmem>>, vector<1x1x16xf32>,
    %c0_39 = arith.constant 0 : index
    %c0_40 = arith.constant 0 : index
    %c0_41 = arith.constant 0 : index
    %56 = vector.load %arg1[%c0_39, %c0_40, %c0_41] : memref<2x4x32xf32, #tpu.memory_space<vmem>>, vector<1x4x32xf32>
    %57 = vector.shape_cast %56 : vector<1x4x32xf32> to vector<4x32xf32>
    %c0_42 = arith.constant 0 : index
    %c0_43 = arith.constant 0 : index
    %58 = vector.load %arg8[%c0_42, %c0_43] : memref<32x16xf32, #tpu.memory_space<vmem>>, vector<32x16xf32>
    %c0_44 = arith.constant 0 : index
    %c0_45 = arith.constant 0 : index
    %59 = vector.load %arg9[%c0_44, %c0_45] : memref<1x16xf32, #tpu.memory_space<vmem>>, vector<1x16xf32>
    %c0_46 = arith.constant 0 : index
    %c0_47 = arith.constant 0 : index
    %60 = vector.load %arg10[%c0_46, %c0_47] : memref<16x32xf32, #tpu.memory_space<vmem>>, vector<16x32xf32>
    %c0_48 = arith.constant 0 : index
    %c0_49 = arith.constant 0 : index
    %61 = vector.load %arg11[%c0_48, %c0_49] : memref<1x32xf32, #tpu.memory_space<vmem>>, vector<1x32xf32>
    %c0_50 = arith.constant 0 : index
    %c0_51 = arith.constant 0 : index
    %62 = vector.load %arg12[%c0_50, %c0_51] : memref<1x32xf32, #tpu.memory_space<vmem>>, vector<1x32xf32>
    %c0_52 = arith.constant 0 : index
    %c0_53 = arith.constant 0 : index
    %63 = vector.load %arg13[%c0_52, %c0_53] : memref<1x1xf32, #tpu.memory_space<vmem>>, vector<1x1xf32>
    %cst_54 = arith.constant dense<0.000000e+00> : vector<32xf32>
    %64 = vector.multi_reduction <add>, %57, %cst_54 [0] : vector<4x32xf32> to vector<32xf32>
    %65 = vector.shape_cast %64 : vector<32xf32> to vector<1x32xf32>
    %cst_55 = arith.constant 2.500000e-01 : f32
    %66 = vector.broadcast %cst_55 : f32 to vector<1x32xf32>
    %67 = arith.mulf %65, %66 : vector<1x32xf32>
    %cst_56 = arith.constant dense<0.000000e+00> : vector<1x16xf32>
    %68 = tpu.matmul %67, %58, %cst_56 {dimension_numbers = #tpu.dot_dimension_numbers<[1], [0], [0], [1], [0, 0, 1, 1], [], []>} : vector<1x32xf32>, vector<32x16xf32>, vector<1x16xf32> -> vector<1x16xf32>
    %69 = arith.addf %68, %59 : vector<1x16xf32>
    %cst_57 = arith.constant 0.000000e+00 : f32
    %70 = vector.broadcast %cst_57 : f32 to vector<1x16xf32>
    %71 = arith.maximumf %69, %70 : vector<1x16xf32>
    %cst_58 = arith.constant dense<0.000000e+00> : vector<1x32xf32>
    %72 = tpu.matmul %71, %60, %cst_58 {dimension_numbers = #tpu.dot_dimension_numbers<[1], [0], [0], [1], [0, 0, 1, 1], [], []>} : vector<1x16xf32>, vector<16x32xf32>, vector<1x32xf32> -> vector<1x32xf32>
    %73 = arith.addf %72, %61 : vector<1x32xf32>
    %cst_59 = arith.constant 5.000000e-01 : f32
    %74 = vector.broadcast %cst_59 : f32 to vector<1x32xf32>
    %75 = arith.mulf %74, %73 : vector<1x32xf32>
    %76 = math.tanh %75 : vector<1x32xf32>
    %cst_60 = arith.constant 1.000000e+00 : f32
    %77 = vector.broadcast %cst_60 : f32 to vector<1x32xf32>
    %78 = arith.addf %76, %77 : vector<1x32xf32>
    %cst_61 = arith.constant 5.000000e-01 : f32
    %79 = vector.broadcast %cst_61 : f32 to vector<1x32xf32>
    %80 = arith.mulf %79, %78 : vector<1x32xf32>
    %81 = vector.broadcast %62 : vector<1x32xf32> to vector<4x32xf32>
    %82 = arith.mulf %57, %81 : vector<4x32xf32>
    %cst_62 = arith.constant dense<0.000000e+00> : vector<4xf32>
    %83 = vector.multi_reduction <add>, %82, %cst_62 [1] : vector<4x32xf32> to vector<4xf32>
    %84 = vector.shape_cast %83 : vector<4xf32> to vector<4x1xf32>
    %85 = vector.broadcast %63 : vector<1x1xf32> to vector<4x1xf32>
    %86 = arith.addf %84, %85 : vector<4x1xf32>
    %cst_63 = arith.constant 5.000000e-01 : f32
    %87 = vector.broadcast %cst_63 : f32 to vector<4x1xf32>
    %88 = arith.mulf %87, %86 : vector<4x1xf32>
    %89 = math.tanh %88 : vector<4x1xf32>
    %cst_64 = arith.constant 1.000000e+00 : f32
    %90 = vector.broadcast %cst_64 : f32 to vector<4x1xf32>
    %91 = arith.addf %89, %90 : vector<4x1xf32>
    %cst_65 = arith.constant 5.000000e-01 : f32
    %92 = vector.broadcast %cst_65 : f32 to vector<4x1xf32>
    %93 = arith.mulf %92, %91 : vector<4x1xf32>
    %94 = vector.broadcast %93 : vector<4x1xf32> to vector<4x32xf32>
    %95 = arith.mulf %57, %94 : vector<4x32xf32>
    %96 = vector.broadcast %80 : vector<1x32xf32> to vector<4x32xf32>
    %97 = arith.mulf %57, %96 : vector<4x32xf32>
    %98 = arith.addf %95, %97 : vector<4x32xf32>
    %c0_66 = arith.constant 0 : index
    %c0_67 = arith.constant 0 : index
    %c0_68 = arith.constant 0 : index
    %99 = vector.load %arg15[%c0_66, %c0_67, %c0_68] : memref<2x4x32xf32, #tpu.memory_space<vmem>>, vector<1x4x32xf32>
    %100 = vector.shape_cast %99 : vector<1x4x32xf32> to vector<4x32xf32>
    %101 = vector.shape_cast %98 : vector<4x32xf32> to vector<1x4x32xf32>
    tpu.vector_store %arg15[%c0_66, %c0_67, %c0_68], %101 {strides = array<i32>} : memref<2x4x32xf32, #tpu.memory_space<vmem>>, vector<1x4x32xf32>,
    %102 = vector.extract_strided_slice %12 {offsets = [1, 0, 0], sizes = [1, 1, 16], strides = [1, 1, 1]} : vector<2x1x16xf32> to vector<1x1x16xf32>
    %103 = vector.shape_cast %102 : vector<1x1x16xf32> to vector<1x16xf32>
    %c0_69 = arith.constant 0 : index
    %c0_70 = arith.constant 0 : index
    %104 = vector.load %arg2[%c0_69, %c0_70] : memref<16x8xf32, #tpu.memory_space<vmem>>, vector<16x8xf32>
    %c0_71 = arith.constant 0 : index
    %c0_72 = arith.constant 0 : index
    %105 = vector.load %arg3[%c0_71, %c0_72] : memref<1x8xf32, #tpu.memory_space<vmem>>, vector<1x8xf32>
    %c0_73 = arith.constant 0 : index
    %c0_74 = arith.constant 0 : index
    %106 = vector.load %arg4[%c0_73, %c0_74] : memref<8x16xf32, #tpu.memory_space<vmem>>, vector<8x16xf32>
    %c0_75 = arith.constant 0 : index
    %c0_76 = arith.constant 0 : index
    %107 = vector.load %arg5[%c0_75, %c0_76] : memref<1x16xf32, #tpu.memory_space<vmem>>, vector<1x16xf32>
    %c0_77 = arith.constant 0 : index
    %c0_78 = arith.constant 0 : index
    %108 = vector.load %arg6[%c0_77, %c0_78] : memref<1x16xf32, #tpu.memory_space<vmem>>, vector<1x16xf32>
    %c0_79 = arith.constant 0 : index
    %c0_80 = arith.constant 0 : index
    %109 = vector.load %arg7[%c0_79, %c0_80] : memref<1x1xf32, #tpu.memory_space<vmem>>, vector<1x1xf32>
    %cst_81 = arith.constant dense<0.000000e+00> : vector<16xf32>
    %110 = vector.multi_reduction <add>, %103, %cst_81 [0] : vector<1x16xf32> to vector<16xf32>
    %111 = vector.shape_cast %110 : vector<16xf32> to vector<1x16xf32>
    %cst_82 = arith.constant 1.000000e+00 : f32
    %112 = vector.broadcast %cst_82 : f32 to vector<1x16xf32>
    %113 = arith.mulf %111, %112 : vector<1x16xf32>
    %cst_83 = arith.constant dense<0.000000e+00> : vector<1x8xf32>
    %114 = tpu.matmul %113, %104, %cst_83 {dimension_numbers = #tpu.dot_dimension_numbers<[1], [0], [0], [1], [0, 0, 1, 1], [], []>} : vector<1x16xf32>, vector<16x8xf32>, vector<1x8xf32> -> vector<1x8xf32>
    %115 = arith.addf %114, %105 : vector<1x8xf32>
    %cst_84 = arith.constant 0.000000e+00 : f32
    %116 = vector.broadcast %cst_84 : f32 to vector<1x8xf32>
    %117 = arith.maximumf %115, %116 : vector<1x8xf32>
    %cst_85 = arith.constant dense<0.000000e+00> : vector<1x16xf32>
    %118 = tpu.matmul %117, %106, %cst_85 {dimension_numbers = #tpu.dot_dimension_numbers<[1], [0], [0], [1], [0, 0, 1, 1], [], []>} : vector<1x8xf32>, vector<8x16xf32>, vector<1x16xf32> -> vector<1x16xf32>
    %119 = arith.addf %118, %107 : vector<1x16xf32>
    %cst_86 = arith.constant 5.000000e-01 : f32
    %120 = vector.broadcast %cst_86 : f32 to vector<1x16xf32>
    %121 = arith.mulf %120, %119 : vector<1x16xf32>
    %122 = math.tanh %121 : vector<1x16xf32>
    %cst_87 = arith.constant 1.000000e+00 : f32
    %123 = vector.broadcast %cst_87 : f32 to vector<1x16xf32>
    %124 = arith.addf %122, %123 : vector<1x16xf32>
    %cst_88 = arith.constant 5.000000e-01 : f32
    %125 = vector.broadcast %cst_88 : f32 to vector<1x16xf32>
    %126 = arith.mulf %125, %124 : vector<1x16xf32>
    %127 = arith.mulf %103, %108 : vector<1x16xf32>
    %cst_89 = arith.constant dense<0.000000e+00> : vector<1xf32>
    %128 = vector.multi_reduction <add>, %127, %cst_89 [1] : vector<1x16xf32> to vector<1xf32>
    %129 = vector.shape_cast %128 : vector<1xf32> to vector<1x1xf32>
    %130 = arith.addf %129, %109 : vector<1x1xf32>
    %cst_90 = arith.constant 5.000000e-01 : f32
    %131 = vector.broadcast %cst_90 : f32 to vector<1x1xf32>
    %132 = arith.mulf %131, %130 : vector<1x1xf32>
    %133 = math.tanh %132 : vector<1x1xf32>
    %cst_91 = arith.constant 1.000000e+00 : f32
    %134 = vector.broadcast %cst_91 : f32 to vector<1x1xf32>
    %135 = arith.addf %133, %134 : vector<1x1xf32>
    %cst_92 = arith.constant 5.000000e-01 : f32
    %136 = vector.broadcast %cst_92 : f32 to vector<1x1xf32>
    %137 = arith.mulf %136, %135 : vector<1x1xf32>
    %138 = vector.broadcast %137 : vector<1x1xf32> to vector<1x16xf32>
    %139 = arith.mulf %103, %138 : vector<1x16xf32>
    %140 = arith.mulf %103, %126 : vector<1x16xf32>
    %141 = arith.addf %139, %140 : vector<1x16xf32>
    %c1_93 = arith.constant 1 : index
    %c0_94 = arith.constant 0 : index
    %c0_95 = arith.constant 0 : index
    %142 = vector.load %arg14[%c1_93, %c0_94, %c0_95] : memref<2x1x16xf32, #tpu.memory_space<vmem>>, vector<1x1x16xf32>
    %143 = vector.shape_cast %142 : vector<1x1x16xf32> to vector<1x16xf32>
    %144 = vector.shape_cast %141 : vector<1x16xf32> to vector<1x1x16xf32>
    tpu.vector_store %arg14[%c1_93, %c0_94, %c0_95], %144 {strides = array<i32>} : memref<2x1x16xf32, #tpu.memory_space<vmem>>, vector<1x1x16xf32>,
    %c1_96 = arith.constant 1 : index
    %c0_97 = arith.constant 0 : index
    %c0_98 = arith.constant 0 : index
    %145 = vector.load %arg1[%c1_96, %c0_97, %c0_98] : memref<2x4x32xf32, #tpu.memory_space<vmem>>, vector<1x4x32xf32>
    %146 = vector.shape_cast %145 : vector<1x4x32xf32> to vector<4x32xf32>
    %c0_99 = arith.constant 0 : index
    %c0_100 = arith.constant 0 : index
    %147 = vector.load %arg8[%c0_99, %c0_100] : memref<32x16xf32, #tpu.memory_space<vmem>>, vector<32x16xf32>
    %c0_101 = arith.constant 0 : index
    %c0_102 = arith.constant 0 : index
    %148 = vector.load %arg9[%c0_101, %c0_102] : memref<1x16xf32, #tpu.memory_space<vmem>>, vector<1x16xf32>
    %c0_103 = arith.constant 0 : index
    %c0_104 = arith.constant 0 : index
    %149 = vector.load %arg10[%c0_103, %c0_104] : memref<16x32xf32, #tpu.memory_space<vmem>>, vector<16x32xf32>
    %c0_105 = arith.constant 0 : index
    %c0_106 = arith.constant 0 : index
    %150 = vector.load %arg11[%c0_105, %c0_106] : memref<1x32xf32, #tpu.memory_space<vmem>>, vector<1x32xf32>
    %c0_107 = arith.constant 0 : index
    %c0_108 = arith.constant 0 : index
    %151 = vector.load %arg12[%c0_107, %c0_108] : memref<1x32xf32, #tpu.memory_space<vmem>>, vector<1x32xf32>
    %c0_109 = arith.constant 0 : index
    %c0_110 = arith.constant 0 : index
    %152 = vector.load %arg13[%c0_109, %c0_110] : memref<1x1xf32, #tpu.memory_space<vmem>>, vector<1x1xf32>
    %cst_111 = arith.constant dense<0.000000e+00> : vector<32xf32>
    %153 = vector.multi_reduction <add>, %146, %cst_111 [0] : vector<4x32xf32> to vector<32xf32>
    %154 = vector.shape_cast %153 : vector<32xf32> to vector<1x32xf32>
    %cst_112 = arith.constant 2.500000e-01 : f32
    %155 = vector.broadcast %cst_112 : f32 to vector<1x32xf32>
    %156 = arith.mulf %154, %155 : vector<1x32xf32>
    %cst_113 = arith.constant dense<0.000000e+00> : vector<1x16xf32>
    %157 = tpu.matmul %156, %147, %cst_113 {dimension_numbers = #tpu.dot_dimension_numbers<[1], [0], [0], [1], [0, 0, 1, 1], [], []>} : vector<1x32xf32>, vector<32x16xf32>, vector<1x16xf32> -> vector<1x16xf32>
    %158 = arith.addf %157, %148 : vector<1x16xf32>
    %cst_114 = arith.constant 0.000000e+00 : f32
    %159 = vector.broadcast %cst_114 : f32 to vector<1x16xf32>
    %160 = arith.maximumf %158, %159 : vector<1x16xf32>
    %cst_115 = arith.constant dense<0.000000e+00> : vector<1x32xf32>
    %161 = tpu.matmul %160, %149, %cst_115 {dimension_numbers = #tpu.dot_dimension_numbers<[1], [0], [0], [1], [0, 0, 1, 1], [], []>} : vector<1x16xf32>, vector<16x32xf32>, vector<1x32xf32> -> vector<1x32xf32>
    %162 = arith.addf %161, %150 : vector<1x32xf32>
    %cst_116 = arith.constant 5.000000e-01 : f32
    %163 = vector.broadcast %cst_116 : f32 to vector<1x32xf32>
    %164 = arith.mulf %163, %162 : vector<1x32xf32>
    %165 = math.tanh %164 : vector<1x32xf32>
    %cst_117 = arith.constant 1.000000e+00 : f32
    %166 = vector.broadcast %cst_117 : f32 to vector<1x32xf32>
    %167 = arith.addf %165, %166 : vector<1x32xf32>
    %cst_118 = arith.constant 5.000000e-01 : f32
    %168 = vector.broadcast %cst_118 : f32 to vector<1x32xf32>
    %169 = arith.mulf %168, %167 : vector<1x32xf32>
    %170 = vector.broadcast %151 : vector<1x32xf32> to vector<4x32xf32>
    %171 = arith.mulf %146, %170 : vector<4x32xf32>
    %cst_119 = arith.constant dense<0.000000e+00> : vector<4xf32>
    %172 = vector.multi_reduction <add>, %171, %cst_119 [1] : vector<4x32xf32> to vector<4xf32>
    %173 = vector.shape_cast %172 : vector<4xf32> to vector<4x1xf32>
    %174 = vector.broadcast %152 : vector<1x1xf32> to vector<4x1xf32>
    %175 = arith.addf %173, %174 : vector<4x1xf32>
    %cst_120 = arith.constant 5.000000e-01 : f32
    %176 = vector.broadcast %cst_120 : f32 to vector<4x1xf32>
    %177 = arith.mulf %176, %175 : vector<4x1xf32>
    %178 = math.tanh %177 : vector<4x1xf32>
    %cst_121 = arith.constant 1.000000e+00 : f32
    %179 = vector.broadcast %cst_121 : f32 to vector<4x1xf32>
    %180 = arith.addf %178, %179 : vector<4x1xf32>
    %cst_122 = arith.constant 5.000000e-01 : f32
    %181 = vector.broadcast %cst_122 : f32 to vector<4x1xf32>
    %182 = arith.mulf %181, %180 : vector<4x1xf32>
    %183 = vector.broadcast %182 : vector<4x1xf32> to vector<4x32xf32>
    %184 = arith.mulf %146, %183 : vector<4x32xf32>
    %185 = vector.broadcast %169 : vector<1x32xf32> to vector<4x32xf32>
    %186 = arith.mulf %146, %185 : vector<4x32xf32>
    %187 = arith.addf %184, %186 : vector<4x32xf32>
    %c1_123 = arith.constant 1 : index
    %c0_124 = arith.constant 0 : index
    %c0_125 = arith.constant 0 : index
    %188 = vector.load %arg15[%c1_123, %c0_124, %c0_125] : memref<2x4x32xf32, #tpu.memory_space<vmem>>, vector<1x4x32xf32>
    %189 = vector.shape_cast %188 : vector<1x4x32xf32> to vector<4x32xf32>
    %190 = vector.shape_cast %187 : vector<4x32xf32> to vector<1x4x32xf32>
    tpu.vector_store %arg15[%c1_123, %c0_124, %c0_125], %190 {strides = array<i32>} : memref<2x4x32xf32, #tpu.memory_space<vmem>>, vector<1x4x32xf32>,
    return
  }
}

module attributes {stable_mosaic.version = 11 : i64} {
  func.func @_matmul_kernel(%arg0: memref<2x144xbf16, #tpu.memory_space<vmem>>, %arg1: memref<144x8xbf16, #tpu.memory_space<vmem>>, %arg2: memref<2x8xf32, #tpu.memory_space<vmem>>) attributes {dimension_semantics = [], scalar_prefetch = 0 : i64, scratch_operands = 0 : i64, tpu.core_type = #tpu.core_type<tc>} {
    %c0 = arith.constant 0 : index
    %c0_0 = arith.constant 0 : index
    %0 = vector.load %arg0[%c0, %c0_0] : memref<2x144xbf16, #tpu.memory_space<vmem>>, vector<2x144xbf16>
    %c0_1 = arith.constant 0 : index
    %c0_2 = arith.constant 0 : index
    %1 = vector.load %arg1[%c0_1, %c0_2] : memref<144x8xbf16, #tpu.memory_space<vmem>>, vector<144x8xbf16>
    %cst = arith.constant dense<0.000000e+00> : vector<2x8xf32>
    %2 = tpu.matmul %0, %1, %cst {dimension_numbers = #tpu.dot_dimension_numbers<[1], [0], [0], [1], [0, 0, 1, 1], [], []>} : vector<2x144xbf16>, vector<144x8xbf16>, vector<2x8xf32> -> vector<2x8xf32>
    %c0_3 = arith.constant 0 : index
    %c0_4 = arith.constant 0 : index
    %3 = vector.load %arg2[%c0_3, %c0_4] : memref<2x8xf32, #tpu.memory_space<vmem>>, vector<2x8xf32>
    tpu.vector_store %arg2[%c0_3, %c0_4], %2 {strides = array<i32>} : memref<2x8xf32, #tpu.memory_space<vmem>>, vector<2x8xf32>,
    return
  }
}

module attributes {stable_mosaic.version = 11 : i64} {
  func.func @_bn_relu_mm_bias_relu_kernel(%arg0: memref<2x24xf32, #tpu.memory_space<vmem>>, %arg1: memref<1x24xf32, #tpu.memory_space<vmem>>, %arg2: memref<1x24xf32, #tpu.memory_space<vmem>>, %arg3: memref<24x16xbf16, #tpu.memory_space<vmem>>, %arg4: memref<1x16xf32, #tpu.memory_space<vmem>>, %arg5: memref<2x16xbf16, #tpu.memory_space<vmem>>) attributes {dimension_semantics = [], scalar_prefetch = 0 : i64, scratch_operands = 0 : i64, tpu.core_type = #tpu.core_type<tc>} {
    %c0 = arith.constant 0 : index
    %c0_0 = arith.constant 0 : index
    %0 = vector.load %arg0[%c0, %c0_0] : memref<2x24xf32, #tpu.memory_space<vmem>>, vector<2x24xf32>
    %c0_1 = arith.constant 0 : index
    %c0_2 = arith.constant 0 : index
    %1 = vector.load %arg1[%c0_1, %c0_2] : memref<1x24xf32, #tpu.memory_space<vmem>>, vector<1x24xf32>
    %2 = vector.broadcast %1 : vector<1x24xf32> to vector<2x24xf32>
    %3 = arith.mulf %0, %2 : vector<2x24xf32>
    %c0_3 = arith.constant 0 : index
    %c0_4 = arith.constant 0 : index
    %4 = vector.load %arg2[%c0_3, %c0_4] : memref<1x24xf32, #tpu.memory_space<vmem>>, vector<1x24xf32>
    %5 = vector.broadcast %4 : vector<1x24xf32> to vector<2x24xf32>
    %6 = arith.addf %3, %5 : vector<2x24xf32>
    %cst = arith.constant 0.000000e+00 : f32
    %7 = vector.broadcast %cst : f32 to vector<2x24xf32>
    %8 = arith.maximumf %6, %7 : vector<2x24xf32>
    %9 = arith.truncf %8 : vector<2x24xf32> to vector<2x24xbf16>
    %c0_5 = arith.constant 0 : index
    %c0_6 = arith.constant 0 : index
    %10 = vector.load %arg3[%c0_5, %c0_6] : memref<24x16xbf16, #tpu.memory_space<vmem>>, vector<24x16xbf16>
    %cst_7 = arith.constant dense<0.000000e+00> : vector<2x16xf32>
    %11 = tpu.matmul %9, %10, %cst_7 {dimension_numbers = #tpu.dot_dimension_numbers<[1], [0], [0], [1], [0, 0, 1, 1], [], []>} : vector<2x24xbf16>, vector<24x16xbf16>, vector<2x16xf32> -> vector<2x16xf32>
    %c0_8 = arith.constant 0 : index
    %c0_9 = arith.constant 0 : index
    %12 = vector.load %arg4[%c0_8, %c0_9] : memref<1x16xf32, #tpu.memory_space<vmem>>, vector<1x16xf32>
    %13 = vector.broadcast %12 : vector<1x16xf32> to vector<2x16xf32>
    %14 = arith.addf %11, %13 : vector<2x16xf32>
    %cst_10 = arith.constant 0.000000e+00 : f32
    %15 = vector.broadcast %cst_10 : f32 to vector<2x16xf32>
    %16 = arith.maximumf %14, %15 : vector<2x16xf32>
    %17 = arith.truncf %16 : vector<2x16xf32> to vector<2x16xbf16>
    %c0_11 = arith.constant 0 : index
    %c0_12 = arith.constant 0 : index
    %18 = vector.load %arg5[%c0_11, %c0_12] : memref<2x16xbf16, #tpu.memory_space<vmem>>, vector<2x16xbf16>
    tpu.vector_store %arg5[%c0_11, %c0_12], %17 {strides = array<i32>} : memref<2x16xbf16, #tpu.memory_space<vmem>>, vector<2x16xbf16>,
    return
  }
}

module attributes {stable_mosaic.version = 11 : i64} {
  func.func @_bn_scse_kernel(%arg0: memref<2x1x32xf32, #tpu.memory_space<vmem>>, %arg1: memref<1x1x32xf32, #tpu.memory_space<vmem>>, %arg2: memref<1x1x32xf32, #tpu.memory_space<vmem>>, %arg3: memref<32x16xf32, #tpu.memory_space<vmem>>, %arg4: memref<1x16xf32, #tpu.memory_space<vmem>>, %arg5: memref<16x32xf32, #tpu.memory_space<vmem>>, %arg6: memref<1x32xf32, #tpu.memory_space<vmem>>, %arg7: memref<1x32xf32, #tpu.memory_space<vmem>>, %arg8: memref<1x1xf32, #tpu.memory_space<vmem>>, %arg9: memref<2x1x32xf32, #tpu.memory_space<vmem>>) attributes {dimension_semantics = [], scalar_prefetch = 0 : i64, scratch_operands = 0 : i64, tpu.core_type = #tpu.core_type<tc>} {
    %c0 = arith.constant 0 : index
    %c0_0 = arith.constant 0 : index
    %c0_1 = arith.constant 0 : index
    %0 = vector.load %arg0[%c0, %c0_0, %c0_1] : memref<2x1x32xf32, #tpu.memory_space<vmem>>, vector<2x1x32xf32>
    %c0_2 = arith.constant 0 : index
    %c0_3 = arith.constant 0 : index
    %c0_4 = arith.constant 0 : index
    %1 = vector.load %arg1[%c0_2, %c0_3, %c0_4] : memref<1x1x32xf32, #tpu.memory_space<vmem>>, vector<1x1x32xf32>
    %2 = vector.broadcast %1 : vector<1x1x32xf32> to vector<2x1x32xf32>
    %3 = arith.mulf %0, %2 : vector<2x1x32xf32>
    %c0_5 = arith.constant 0 : index
    %c0_6 = arith.constant 0 : index
    %c0_7 = arith.constant 0 : index
    %4 = vector.load %arg2[%c0_5, %c0_6, %c0_7] : memref<1x1x32xf32, #tpu.memory_space<vmem>>, vector<1x1x32xf32>
    %5 = vector.broadcast %4 : vector<1x1x32xf32> to vector<2x1x32xf32>
    %6 = arith.addf %3, %5 : vector<2x1x32xf32>
    %7 = vector.extract_strided_slice %6 {offsets = [0, 0, 0], sizes = [1, 1, 32], strides = [1, 1, 1]} : vector<2x1x32xf32> to vector<1x1x32xf32>
    %8 = vector.shape_cast %7 : vector<1x1x32xf32> to vector<1x32xf32>
    %c0_8 = arith.constant 0 : index
    %c0_9 = arith.constant 0 : index
    %9 = vector.load %arg3[%c0_8, %c0_9] : memref<32x16xf32, #tpu.memory_space<vmem>>, vector<32x16xf32>
    %c0_10 = arith.constant 0 : index
    %c0_11 = arith.constant 0 : index
    %10 = vector.load %arg4[%c0_10, %c0_11] : memref<1x16xf32, #tpu.memory_space<vmem>>, vector<1x16xf32>
    %c0_12 = arith.constant 0 : index
    %c0_13 = arith.constant 0 : index
    %11 = vector.load %arg5[%c0_12, %c0_13] : memref<16x32xf32, #tpu.memory_space<vmem>>, vector<16x32xf32>
    %c0_14 = arith.constant 0 : index
    %c0_15 = arith.constant 0 : index
    %12 = vector.load %arg6[%c0_14, %c0_15] : memref<1x32xf32, #tpu.memory_space<vmem>>, vector<1x32xf32>
    %c0_16 = arith.constant 0 : index
    %c0_17 = arith.constant 0 : index
    %13 = vector.load %arg7[%c0_16, %c0_17] : memref<1x32xf32, #tpu.memory_space<vmem>>, vector<1x32xf32>
    %c0_18 = arith.constant 0 : index
    %c0_19 = arith.constant 0 : index
    %14 = vector.load %arg8[%c0_18, %c0_19] : memref<1x1xf32, #tpu.memory_space<vmem>>, vector<1x1xf32>
    %cst = arith.constant dense<0.000000e+00> : vector<32xf32>
    %15 = vector.multi_reduction <add>, %8, %cst [0] : vector<1x32xf32> to vector<32xf32>
    %16 = vector.shape_cast %15 : vector<32xf32> to vector<1x32xf32>
    %cst_20 = arith.constant 1.000000e+00 : f32
    %17 = vector.broadcast %cst_20 : f32 to vector<1x32xf32>
    %18 = arith.mulf %16, %17 : vector<1x32xf32>
    %cst_21 = arith.constant dense<0.000000e+00> : vector<1x16xf32>
    %19 = tpu.matmul %18, %9, %cst_21 {dimension_numbers = #tpu.dot_dimension_numbers<[1], [0], [0], [1], [0, 0, 1, 1], [], []>} : vector<1x32xf32>, vector<32x16xf32>, vector<1x16xf32> -> vector<1x16xf32>
    %20 = arith.addf %19, %10 : vector<1x16xf32>
    %cst_22 = arith.constant 0.000000e+00 : f32
    %21 = vector.broadcast %cst_22 : f32 to vector<1x16xf32>
    %22 = arith.maximumf %20, %21 : vector<1x16xf32>
    %cst_23 = arith.constant dense<0.000000e+00> : vector<1x32xf32>
    %23 = tpu.matmul %22, %11, %cst_23 {dimension_numbers = #tpu.dot_dimension_numbers<[1], [0], [0], [1], [0, 0, 1, 1], [], []>} : vector<1x16xf32>, vector<16x32xf32>, vector<1x32xf32> -> vector<1x32xf32>
    %24 = arith.addf %23, %12 : vector<1x32xf32>
    %cst_24 = arith.constant 5.000000e-01 : f32
    %25 = vector.broadcast %cst_24 : f32 to vector<1x32xf32>
    %26 = arith.mulf %25, %24 : vector<1x32xf32>
    %27 = math.tanh %26 : vector<1x32xf32>
    %cst_25 = arith.constant 1.000000e+00 : f32
    %28 = vector.broadcast %cst_25 : f32 to vector<1x32xf32>
    %29 = arith.addf %27, %28 : vector<1x32xf32>
    %cst_26 = arith.constant 5.000000e-01 : f32
    %30 = vector.broadcast %cst_26 : f32 to vector<1x32xf32>
    %31 = arith.mulf %30, %29 : vector<1x32xf32>
    %32 = arith.mulf %8, %13 : vector<1x32xf32>
    %cst_27 = arith.constant dense<0.000000e+00> : vector<1xf32>
    %33 = vector.multi_reduction <add>, %32, %cst_27 [1] : vector<1x32xf32> to vector<1xf32>
    %34 = vector.shape_cast %33 : vector<1xf32> to vector<1x1xf32>
    %35 = arith.addf %34, %14 : vector<1x1xf32>
    %cst_28 = arith.constant 5.000000e-01 : f32
    %36 = vector.broadcast %cst_28 : f32 to vector<1x1xf32>
    %37 = arith.mulf %36, %35 : vector<1x1xf32>
    %38 = math.tanh %37 : vector<1x1xf32>
    %cst_29 = arith.constant 1.000000e+00 : f32
    %39 = vector.broadcast %cst_29 : f32 to vector<1x1xf32>
    %40 = arith.addf %38, %39 : vector<1x1xf32>
    %cst_30 = arith.constant 5.000000e-01 : f32
    %41 = vector.broadcast %cst_30 : f32 to vector<1x1xf32>
    %42 = arith.mulf %41, %40 : vector<1x1xf32>
    %43 = vector.broadcast %42 : vector<1x1xf32> to vector<1x32xf32>
    %44 = arith.mulf %8, %43 : vector<1x32xf32>
    %45 = arith.mulf %8, %31 : vector<1x32xf32>
    %46 = arith.addf %44, %45 : vector<1x32xf32>
    %c0_31 = arith.constant 0 : index
    %c0_32 = arith.constant 0 : index
    %c0_33 = arith.constant 0 : index
    %47 = vector.load %arg9[%c0_31, %c0_32, %c0_33] : memref<2x1x32xf32, #tpu.memory_space<vmem>>, vector<1x1x32xf32>
    %48 = vector.shape_cast %47 : vector<1x1x32xf32> to vector<1x32xf32>
    %49 = vector.shape_cast %46 : vector<1x32xf32> to vector<1x1x32xf32>
    tpu.vector_store %arg9[%c0_31, %c0_32, %c0_33], %49 {strides = array<i32>} : memref<2x1x32xf32, #tpu.memory_space<vmem>>, vector<1x1x32xf32>,
    %50 = vector.extract_strided_slice %6 {offsets = [1, 0, 0], sizes = [1, 1, 32], strides = [1, 1, 1]} : vector<2x1x32xf32> to vector<1x1x32xf32>
    %51 = vector.shape_cast %50 : vector<1x1x32xf32> to vector<1x32xf32>
    %c0_34 = arith.constant 0 : index
    %c0_35 = arith.constant 0 : index
    %52 = vector.load %arg3[%c0_34, %c0_35] : memref<32x16xf32, #tpu.memory_space<vmem>>, vector<32x16xf32>
    %c0_36 = arith.constant 0 : index
    %c0_37 = arith.constant 0 : index
    %53 = vector.load %arg4[%c0_36, %c0_37] : memref<1x16xf32, #tpu.memory_space<vmem>>, vector<1x16xf32>
    %c0_38 = arith.constant 0 : index
    %c0_39 = arith.constant 0 : index
    %54 = vector.load %arg5[%c0_38, %c0_39] : memref<16x32xf32, #tpu.memory_space<vmem>>, vector<16x32xf32>
    %c0_40 = arith.constant 0 : index
    %c0_41 = arith.constant 0 : index
    %55 = vector.load %arg6[%c0_40, %c0_41] : memref<1x32xf32, #tpu.memory_space<vmem>>, vector<1x32xf32>
    %c0_42 = arith.constant 0 : index
    %c0_43 = arith.constant 0 : index
    %56 = vector.load %arg7[%c0_42, %c0_43] : memref<1x32xf32, #tpu.memory_space<vmem>>, vector<1x32xf32>
    %c0_44 = arith.constant 0 : index
    %c0_45 = arith.constant 0 : index
    %57 = vector.load %arg8[%c0_44, %c0_45] : memref<1x1xf32, #tpu.memory_space<vmem>>, vector<1x1xf32>
    %cst_46 = arith.constant dense<0.000000e+00> : vector<32xf32>
    %58 = vector.multi_reduction <add>, %51, %cst_46 [0] : vector<1x32xf32> to vector<32xf32>
    %59 = vector.shape_cast %58 : vector<32xf32> to vector<1x32xf32>
    %cst_47 = arith.constant 1.000000e+00 : f32
    %60 = vector.broadcast %cst_47 : f32 to vector<1x32xf32>
    %61 = arith.mulf %59, %60 : vector<1x32xf32>
    %cst_48 = arith.constant dense<0.000000e+00> : vector<1x16xf32>
    %62 = tpu.matmul %61, %52, %cst_48 {dimension_numbers = #tpu.dot_dimension_numbers<[1], [0], [0], [1], [0, 0, 1, 1], [], []>} : vector<1x32xf32>, vector<32x16xf32>, vector<1x16xf32> -> vector<1x16xf32>
    %63 = arith.addf %62, %53 : vector<1x16xf32>
    %cst_49 = arith.constant 0.000000e+00 : f32
    %64 = vector.broadcast %cst_49 : f32 to vector<1x16xf32>
    %65 = arith.maximumf %63, %64 : vector<1x16xf32>
    %cst_50 = arith.constant dense<0.000000e+00> : vector<1x32xf32>
    %66 = tpu.matmul %65, %54, %cst_50 {dimension_numbers = #tpu.dot_dimension_numbers<[1], [0], [0], [1], [0, 0, 1, 1], [], []>} : vector<1x16xf32>, vector<16x32xf32>, vector<1x32xf32> -> vector<1x32xf32>
    %67 = arith.addf %66, %55 : vector<1x32xf32>
    %cst_51 = arith.constant 5.000000e-01 : f32
    %68 = vector.broadcast %cst_51 : f32 to vector<1x32xf32>
    %69 = arith.mulf %68, %67 : vector<1x32xf32>
    %70 = math.tanh %69 : vector<1x32xf32>
    %cst_52 = arith.constant 1.000000e+00 : f32
    %71 = vector.broadcast %cst_52 : f32 to vector<1x32xf32>
    %72 = arith.addf %70, %71 : vector<1x32xf32>
    %cst_53 = arith.constant 5.000000e-01 : f32
    %73 = vector.broadcast %cst_53 : f32 to vector<1x32xf32>
    %74 = arith.mulf %73, %72 : vector<1x32xf32>
    %75 = arith.mulf %51, %56 : vector<1x32xf32>
    %cst_54 = arith.constant dense<0.000000e+00> : vector<1xf32>
    %76 = vector.multi_reduction <add>, %75, %cst_54 [1] : vector<1x32xf32> to vector<1xf32>
    %77 = vector.shape_cast %76 : vector<1xf32> to vector<1x1xf32>
    %78 = arith.addf %77, %57 : vector<1x1xf32>
    %cst_55 = arith.constant 5.000000e-01 : f32
    %79 = vector.broadcast %cst_55 : f32 to vector<1x1xf32>
    %80 = arith.mulf %79, %78 : vector<1x1xf32>
    %81 = math.tanh %80 : vector<1x1xf32>
    %cst_56 = arith.constant 1.000000e+00 : f32
    %82 = vector.broadcast %cst_56 : f32 to vector<1x1xf32>
    %83 = arith.addf %81, %82 : vector<1x1xf32>
    %cst_57 = arith.constant 5.000000e-01 : f32
    %84 = vector.broadcast %cst_57 : f32 to vector<1x1xf32>
    %85 = arith.mulf %84, %83 : vector<1x1xf32>
    %86 = vector.broadcast %85 : vector<1x1xf32> to vector<1x32xf32>
    %87 = arith.mulf %51, %86 : vector<1x32xf32>
    %88 = arith.mulf %51, %74 : vector<1x32xf32>
    %89 = arith.addf %87, %88 : vector<1x32xf32>
    %c1 = arith.constant 1 : index
    %c0_58 = arith.constant 0 : index
    %c0_59 = arith.constant 0 : index
    %90 = vector.load %arg9[%c1, %c0_58, %c0_59] : memref<2x1x32xf32, #tpu.memory_space<vmem>>, vector<1x1x32xf32>
    %91 = vector.shape_cast %90 : vector<1x1x32xf32> to vector<1x32xf32>
    %92 = vector.shape_cast %89 : vector<1x32xf32> to vector<1x1x32xf32>
    tpu.vector_store %arg9[%c1, %c0_58, %c0_59], %92 {strides = array<i32>} : memref<2x1x32xf32, #tpu.memory_space<vmem>>, vector<1x1x32xf32>,
    return
  }
}

</mosaic_0001>

<llo_original>
// kernel: densenet_se_forward.26
$region0: #{densenet_se_forward.26}
  #allocation0 [shape = 'u32[]', space=smem, size = 0x4, offset = 0x4, fixed_abs, tag = 'smem constant byte address 0x4 - core index']
  #allocation1 [shape = 'u32[144,128]{1,0:T(1,128)}', space=vmem, size = 0x12000, scoped, tag = 'internal scratch']
  %s0 = inlined_call_operand.vmem [shape: f32[9,16,128], index: 0, kind: input, shape index: {}]
  %s1 = inlined_call_operand.vmem [shape: f32[16,128], index: 1, kind: output, shape index: {}]
  %s2 = sld [smem:[#allocation0]]
  $region14: #{densenet_se_forward.26} parent=0
    _
  %s4 = ssub.s32 1, %s2
  %s5 = scalar_select 0, %s4, %s2
  // Predicated region
  $region2: #{densenet_se_forward.26} parent=0 // pred_check
    _
  $region3: #{densenet_se_forward.26} parent=0 // pred_check_branch
    %7 = sbr.rel (0) target = $region5
  $region4: #{densenet_se_forward.26} parent=0 // pred_region
    _
  $region5: #{densenet_se_forward.26} parent=0 // pred_fallthru
    _
  %v8 = vld [vmem:[%s0] sm:$0xff]
  %v9 = vld [vmem:[%s0 + $0x8] sm:$0xff]
  %v10 = vld [vmem:[%s0 + $0x10] sm:$0xff]
  %v11 = vld [vmem:[%s0 + $0x18] sm:$0xff]
  %v12 = vld [vmem:[%s0 + $0x20] sm:$0xff]
  %v13 = vld [vmem:[%s0 + $0x28] sm:$0xff]
  %v14 = vld [vmem:[%s0 + $0x30] sm:$0xff]
  %v15 = vld [vmem:[%s0 + $0x38] sm:$0xff]
  %v16 = vld [vmem:[%s0 + $0x40] sm:$0xff]
  %v17 = vld [vmem:[%s0 + $0x48] sm:$0xff]
  %v18 = vld [vmem:[%s0 + $0x50] sm:$0xff]
  %v19 = vld [vmem:[%s0 + $0x58] sm:$0xff]
  %v20 = vld [vmem:[%s0 + $0x60] sm:$0xff]
  %v21 = vld [vmem:[%s0 + $0x68] sm:$0xff]
  %v22 = vld [vmem:[%s0 + $0x70] sm:$0xff]
  %v23 = vld [vmem:[%s0 + $0x78] sm:$0xff]
  %v24 = vld [vmem:[%s0 + $0x80] sm:$0xff]
  %v25 = vld [vmem:[%s0 + $0x88] sm:$0xff]
  %v26 = vmax.f32 %v8, %v12
  %v27 = vmax.f32 %v10, %v14
  %v28 = vmax.f32 %v26, %v16
  %v29 = vmax.f32 %v27, %v18
  %v30 = vmax.f32 %v28, %v20
  %v31 = vmax.f32 %v29, %v22
  %v32 = vmax.f32 %v30, %v24
  %v33 = vmax.f32 %v32, %v31
  %v34 = vmax.f32 %v9, %v13
  %v35 = vmax.f32 %v11, %v15
  %v36 = vmax.f32 %v34, %v17
  %v37 = vmax.f32 %v35, %v19
  %v38 = vmax.f32 %v36, %v21
  %v39 = vmax.f32 %v37, %v23
  %v40 = vmax.f32 %v38, %v25
  %v41 = vmax.f32 %v40, %v39
  %42 = vst [vmem:[%s1] sm:$0xff] %v33
  %43 = vst [vmem:[%s1 + $0x8] sm:$0xff] %v41
  // Predicated region
  $region6: #{densenet_se_forward.26} parent=0 // pred_check
    _
  $region7: #{densenet_se_forward.26} parent=0 // pred_check_branch
    %45 = sbr.rel (0) target = $region9
  $region8: #{densenet_se_forward.26} parent=0 // pred_region
    _
  $region9: #{densenet_se_forward.26} parent=0 // pred_fallthru
    _
  // Predicated region
  $region10: #{densenet_se_forward.26} parent=0 // pred_check
    _
  $region11: #{densenet_se_forward.26} parent=0 // pred_check_branch
    %47 = sbr.rel (0) target = $region13
  $region12: #{densenet_se_forward.26} parent=0 // pred_region
    _
  $region13: #{densenet_se_forward.26} parent=0 // pred_fallthru
    _

// kernel: densenet_se_forward.25
$region0: #{densenet_se_forward.25}
  #allocation0 [shape = 'u32[]', space=smem, size = 0x4, offset = 0x4, fixed_abs, tag = 'smem constant byte address 0x4 - core index']
  #allocation1 [shape = 'u32[144,128]{1,0:T(1,128)}', space=vmem, size = 0x12000, scoped, tag = 'internal scratch']
  %s0 = inlined_call_operand.hbm [shape: bf16[512,147], index: 0, kind: input, shape index: {}]
  %s1 = inlined_call_operand.hbm [shape: bf16[147,16], index: 1, kind: input, shape index: {}]
  %s2 = inlined_call_operand.hbm [shape: f32[1,16], index: 2, kind: input, shape index: {}]
  %s3 = inlined_call_operand.hbm [shape: f32[512,16], index: 3, kind: output, shape index: {}]
  %s4 = sld [smem:[#allocation0]]
  $region57: #{densenet_se_forward.25} parent=0
    _
  %s6 = ssub.s32 1, %s4
  %s7 = scalar_select 0, %s6, %s4
  $region1: #{densenet_se_forward.25} parent=0
    #allocation2 [shape = 'u8[262144]{0}', space=vmem, size = 0x40000, scoped, tag = 'input window, operand 0']
    #allocation3 [shape = 's32[2]{0}', space=sflag, size = 0x8, scoped, tag = 'scoped memory for densenet_se_forward.25']
    #allocation4 [shape = 's32[2]{0}', space=sflag, size = 0x8, scoped, tag = 'scoped memory for densenet_se_forward.25']
    #allocation5 [shape = 'u8[38912]{0}', space=vmem, size = 0x9800, scoped, tag = 'input window, operand 1, single buffered']
    #allocation6 [shape = 's32[1]{0}', space=sflag, size = 0x4, scoped, tag = 'scoped memory for densenet_se_forward.25']
    #allocation7 [shape = 'u8[512]{0}', space=vmem, size = 0x400, scoped, tag = 'input window, operand 2, single buffered']
    #allocation8 [shape = 'u8[262144]{0}', space=vmem, size = 0x40000, scoped, tag = 'output window, operand 0']
    %8 = vsyncpa [#allocation3], 0
    %s9 = scalar_lea.sflag [#allocation3], 1
    %10 = vsyncpa %s9, 0
    %11 = vsyncpa [#allocation6], 0
    %12 = vsyncpa [#allocation4], 0
    %s13 = scalar_lea.sflag [#allocation4], 1
    %14 = vsyncpa %s13, 0
    loop: start=0, step=1, limit=4
    $region2: #{densenet_se_forward.25} parent=1 // loop_pre_header
      _
    $region3: #{densenet_se_forward.25} parent=1 // loop_header
      %s16 = sphi 0, %s20
      %p17 = scmp.ge.s32.totalorder %s16, 4
      %s26 = sphi 0, %s28
      %s29 = sphi 0, %s26
      %s30 = sphi 0, %s29
      %s46 = sphi 0, %s30
      %s50 = sphi 0, %s50
      %s52 = sphi 0, %s50
      %s53 = sphi 0, %s52
      %s67 = sphi 0, %s53
      %s71 = sphi 0, %s71
      %s73 = sphi 0, %s71
      %s74 = sphi 0, %s73
      %s88 = sphi 0, %s74
      %s94 = sphi 0, %s96
      %s97 = sphi 0, %s94
      %s98 = sphi 0, %s97
      %s114 = sphi 0, %s98
    $region4: #{densenet_se_forward.25} parent=1 // loop_header_branch
      %19 = sbr.rel (%p17) target = $region8
    $region5: #{densenet_se_forward.25} parent=1 // loop_body
      %s21 = ssub.s32 %s16, 1
      %s22 = ssub.s32 %s16, 2
      %s23 = sadd.s32 %s16, 1
      %s24 = ssub.s32 %s16, %s23
      %p25 = scmp.eq.s32.totalorder %s24, 0
      %s27 = sadd.s32 %s26, 1
      %s28 = scalar_select %p25, %s26, %s27
      %p31 = pneg %p25
      %p32 = scmp.eq.s32.totalorder %s16, 1
      %p33 = por %p31, %p32
      %p34 = scmp.ne.s32.totalorder %s26, %s29
      %p35 = scmp.eq.s32.totalorder %s16, 0
      %p36 = por %p34, %p35
      %p37 = scmp.ne.s32.totalorder %s26, %s29
      %p38 = scmp.eq.s32.totalorder %s21, 1
      %p39 = por %p37, %p38
      %p40 = scmp.ne.s32.totalorder %s29, %s30
      %p41 = scmp.eq.s32.totalorder %s21, 0
      %p42 = por %p40, %p41
      %p43 = scmp.ne.s32.totalorder %s29, %s30
      %p44 = scmp.eq.s32.totalorder %s22, 1
      %p45 = por %p43, %p44
      %p47 = scmp.ne.s32.totalorder %s30, %s46
      %p48 = scmp.eq.s32.totalorder %s22, 0
      %p49 = por %p47, %p48
      %s51 = sadd.s32 %s50, 1
      %p54 = scmp.eq.s32.totalorder %s16, 1
      %p55 = scmp.ne.s32.totalorder %s50, %s52
      %p56 = scmp.eq.s32.totalorder %s16, 0
      %p57 = por %p55, %p56
      %p58 = scmp.ne.s32.totalorder %s50, %s52
      %p59 = scmp.eq.s32.totalorder %s21, 1
      %p60 = por %p58, %p59
      %p61 = scmp.ne.s32.totalorder %s52, %s53
      %p62 = scmp.eq.s32.totalorder %s21, 0
      %p63 = por %p61, %p62
      %p64 = scmp.ne.s32.totalorder %s52, %s53
      %p65 = scmp.eq.s32.totalorder %s22, 1
      %p66 = por %p64, %p65
      %p68 = scmp.ne.s32.totalorder %s53, %s67
      %p69 = scmp.eq.s32.totalorder %s22, 0
      %p70 = por %p68, %p69
      %s72 = sadd.s32 %s71, 1
      %p75 = scmp.eq.s32.totalorder %s16, 1
      %p76 = scmp.ne.s32.totalorder %s71, %s73
      %p77 = scmp.eq.s32.totalorder %s16, 0
      %p78 = por %p76, %p77
      %p79 = scmp.ne.s32.totalorder %s71, %s73
      %p80 = scmp.eq.s32.totalorder %s21, 1
      %p81 = por %p79, %p80
      %p82 = scmp.ne.s32.totalorder %s73, %s74
      %p83 = scmp.eq.s32.totalorder %s21, 0
      %p84 = por %p82, %p83
      %p85 = scmp.ne.s32.totalorder %s73, %s74
      %p86 = scmp.eq.s32.totalorder %s22, 1
      %p87 = por %p85, %p86
      %p89 = scmp.ne.s32.totalorder %s74, %s88
      %p90 = scmp.eq.s32.totalorder %s22, 0
      %p91 = por %p89, %p90
      %s92 = ssub.s32 %s16, %s23
      %p93 = scmp.eq.s32.totalorder %s92, 0
      %s95 = sadd.s32 %s94, 1
      %s96 = scalar_select %p93, %s94, %s95
      %p99 = pneg %p93
      %p100 = scmp.eq.s32.totalorder %s16, 1
      %p101 = por %p99, %p100
      %p102 = scmp.ne.s32.totalorder %s94, %s97
      %p103 = scmp.eq.s32.totalorder %s16, 0
      %p104 = por %p102, %p103
      %p105 = scmp.ne.s32.totalorder %s94, %s97
      %p106 = scmp.eq.s32.totalorder %s21, 1
      %p107 = por %p105, %p106
      %p108 = scmp.ne.s32.totalorder %s97, %s98
      %p109 = scmp.eq.s32.totalorder %s21, 0
      %p110 = por %p108, %p109
      %p111 = scmp.ne.s32.totalorder %s97, %s98
      %p112 = scmp.eq.s32.totalorder %s22, 1
      %p113 = por %p111, %p112
      %p115 = scmp.ne.s32.totalorder %s98, %s114
      %p116 = scmp.eq.s32.totalorder %s22, 0
      %p117 = por %p115, %p116
      %p118 = scmp.le.s32.totalorder 1, %s16
      %p119 = scmp.lt.s32.totalorder %s16, 3
      %p120 = pnand %p118, %p119
      %p121 = pneg %p120
      // Predicated region
      $region9: #{densenet_se_forward.25} parent=5 // pred_check
        _
      $region10: #{densenet_se_forward.25} parent=5 // pred_check_branch
        %123 = sbr.rel (%p120) target = $region12
      $region11: #{densenet_se_forward.25} parent=5 // pred_region
        %s124 = ssub.s32 %s16, 1
        // Predicated region
        $region13: #{densenet_se_forward.25} parent=11 // pred_check
          %p125 = pneg %p63
        $region14: #{densenet_se_forward.25} parent=11 // pred_check_branch
          %127 = sbr.rel (%p125) target = $region16
        $region15: #{densenet_se_forward.25} parent=11 // pred_region
          %s129 = ssub.s32 1216, 1216
          %130 = vsyncadd [#allocation6], %s129
          %s131 = sshll.u32 [#allocation5], 4
          %s132 = int_to_ptr.vmem [resolvable:$true] %s131
          %137 = dma.hbm_to_vmem [thread:$0]  %s1, 1216, %s132, [#allocation6], 64, 64, 4
        $region16: #{densenet_se_forward.25} parent=11 // pred_fallthru
          _
        // Predicated region
        $region17: #{densenet_se_forward.25} parent=11 // pred_check
          %p138 = pneg %p84
        $region18: #{densenet_se_forward.25} parent=11 // pred_check_branch
          %140 = sbr.rel (%p138) target = $region20
        $region19: #{densenet_se_forward.25} parent=11 // pred_region
          %s142 = ssub.s32 16, 16
          %143 = vsyncadd [#allocation6], %s142
          %s145 = sshll.u32 [#allocation7], 4
          %s146 = int_to_ptr.vmem [resolvable:$true] %s145
          %148 = dma.hbm_to_vmem [thread:$0]  %s2, 16, %s146, [#allocation6]
        $region20: #{densenet_se_forward.25} parent=11 // pred_fallthru
          _
      $region12: #{densenet_se_forward.25} parent=5 // pred_fallthru
        _
      %p149 = scmp.lt.s32.totalorder %s16, 2
      // Predicated region
      $region21: #{densenet_se_forward.25} parent=5 // pred_check
        %p150 = pneg %p149
      $region22: #{densenet_se_forward.25} parent=5 // pred_check_branch
        %152 = sbr.rel (%p150) target = $region24
      $region23: #{densenet_se_forward.25} parent=5 // pred_region
        // Predicated region
        $region25: #{densenet_se_forward.25} parent=23 // pred_check
          %p153 = pneg %p36
        $region26: #{densenet_se_forward.25} parent=23 // pred_check_branch
          %155 = sbr.rel (%p153) target = $region28
        $region27: #{densenet_se_forward.25} parent=23 // pred_region
          %s156 = sand.u32 %s26, 1
          %s157 = scalar_lea.sflag [#allocation3], %s156
          %s158 = sand.u32 %s26, 1
          %s159 = smul.addr %s158, 256
          %s160 = scalar_lea.vmem [#allocation2], %s159
          %s161 = smul.u32 32, %s16
          %s163 = ssub.s32 4096, 4096
          %164 = vsyncadd %s157, %s163
          %s165 = smul.addr %s161, 2
          %s166 = smul.addr %s165, 64
          %s167 = scalar_lea.hbm %s0, %s166
          %s168 = sshll.u32 %s160, 4
          %s169 = int_to_ptr.vmem [resolvable:$true] %s168
          %174 = dma.hbm_to_vmem [thread:$0]  %s167, 4096, %s169, %s157, 128, 128, 8
        $region28: #{densenet_se_forward.25} parent=23 // pred_fallthru
          _
      $region24: #{densenet_se_forward.25} parent=5 // pred_fallthru
        _
      %p175 = scmp.le.s32.totalorder 1, %s16
      %p176 = scmp.lt.s32.totalorder %s16, 3
      %p177 = pnand %p175, %p176
      %p178 = pneg %p177
      // Predicated region
      $region29: #{densenet_se_forward.25} parent=5 // pred_check
        _
      $region30: #{densenet_se_forward.25} parent=5 // pred_check_branch
        %180 = sbr.rel (%p177) target = $region32
      $region31: #{densenet_se_forward.25} parent=5 // pred_region
        %s181 = ssub.s32 %s16, 1
        %s182 = sand.u32 %s29, 1
        %s183 = scalar_lea.sflag [#allocation3], %s182
        %s184 = sand.u32 %s29, 1
        %s185 = smul.addr %s184, 256
        %s186 = scalar_lea.vmem [#allocation2], %s185
        // Predicated region
        $region33: #{densenet_se_forward.25} parent=31 // pred_check
          %p187 = pneg %p42
        $region34: #{densenet_se_forward.25} parent=31 // pred_check_branch
          %189 = sbr.rel (%p187) target = $region36
        $region35: #{densenet_se_forward.25} parent=31 // pred_region
          %190 = dma.done %s183, 4096
        $region36: #{densenet_se_forward.25} parent=31 // pred_fallthru
          _
        // Predicated region
        $region37: #{densenet_se_forward.25} parent=31 // pred_check
          %p191 = pneg %p63
        $region38: #{densenet_se_forward.25} parent=31 // pred_check_branch
          %193 = sbr.rel (%p191) target = $region40
        $region39: #{densenet_se_forward.25} parent=31 // pred_region
          %194 = dma.done [#allocation6], 1216
        $region40: #{densenet_se_forward.25} parent=31 // pred_fallthru
          _
        // Predicated region
        $region41: #{densenet_se_forward.25} parent=31 // pred_check
          %p195 = pneg %p84
        $region42: #{densenet_se_forward.25} parent=31 // pred_check_branch
          %197 = sbr.rel (%p195) target = $region44
        $region43: #{densenet_se_forward.25} parent=31 // pred_region
          %198 = dma.done [#allocation6], 16
        $region44: #{densenet_se_forward.25} parent=31 // pred_fallthru
          _
        %s199 = sand.u32 %s29, 1
        %s200 = scalar_lea.sflag [#allocation3], %s199
        %s201 = sand.u32 %s29, 1
        %s202 = smul.addr %s201, 256
        %s203 = scalar_lea.vmem [#allocation2], %s202
        %p204 = pneg %p42
        %p205 = pneg %p39
        %p206 = pneg %p63
        %p207 = pneg %p60
        %p208 = pneg %p84
        %p209 = pneg %p81
        %p210 = pneg %p110
        %p211 = pneg %p107
        %s212 = sand.u32 %s97, 1
        %s213 = scalar_lea.sflag [#allocation4], %s212
        %s214 = sand.u32 %s97, 1
        %s215 = smul.addr %s214, 256
        %s216 = scalar_lea.vmem [#allocation8], %s215
        %s217 = smul.u32 32, %s21
        %s218 = smul.u32 32, %s21
        %v220 = vld [vmem:[%s186] sm:$0xff]
        %v221 = vld [vmem:[%s186 + $0x8] sm:$0xff]
        %v222 = vld [vmem:[%s186 + $0x10] sm:$0xff]
        %v223 = vld [vmem:[%s186 + $0x18] sm:$0xff]
        %v224 = vld [vmem:[%s186 + $0x20] sm:$0xff]
        %v225 = vld [vmem:[%s186 + $0x28] sm:$0xff]
        %v226 = vld [vmem:[%s186 + $0x30] sm:$0xff]
        %v227 = vld [vmem:[%s186 + $0x38] sm:$0xff]
        %v228 = vld [vmem:[%s186 + $0x40] sm:$0xff]
        %v229 = vld [vmem:[%s186 + $0x48] sm:$0xff]
        %v230 = vld [vmem:[%s186 + $0x50] sm:$0xff]
        %v231 = vld [vmem:[%s186 + $0x58] sm:$0xff]
        %v232 = vld [vmem:[%s186 + $0x60] sm:$0xff]
        %v233 = vld [vmem:[%s186 + $0x68] sm:$0xff]
        %v234 = vld [vmem:[%s186 + $0x70] sm:$0xff]
        %v235 = vld [vmem:[%s186 + $0x78] sm:$0xff]
        %v236 = vld [vmem:[%s186 + $0x80] sm:$0xff]
        %v237 = vld [vmem:[%s186 + $0x88] sm:$0xff]
        %v238 = vld [vmem:[%s186 + $0x90] sm:$0xff]
        %v239 = vld [vmem:[%s186 + $0x98] sm:$0xff]
        %v240 = vld [vmem:[%s186 + $0xa0] sm:$0xff]
        %v241 = vld [vmem:[%s186 + $0xa8] sm:$0xff]
        %v242 = vld [vmem:[%s186 + $0xb0] sm:$0xff]
        %v243 = vld [vmem:[%s186 + $0xb8] sm:$0xff]
        %v244 = vld [vmem:[%s186 + $0xc0] sm:$0xff]
        %v245 = vld [vmem:[%s186 + $0xc8] sm:$0xff]
        %v246 = vld [vmem:[%s186 + $0xd0] sm:$0xff]
        %v247 = vld [vmem:[%s186 + $0xd8] sm:$0xff]
        %v248 = vld [vmem:[%s186 + $0xe0] sm:$0xff]
        %v249 = vld [vmem:[%s186 + $0xe8] sm:$0xff]
        %v250 = vld [vmem:[%s186 + $0xf0] sm:$0xff]
        %v251 = vld [vmem:[%s186 + $0xf8] sm:$0xff]
        %v252 = vld [vmem:[#allocation5] sm:$0xf]
        %v253 = vld [vmem:[#allocation5 + $0x4] sm:$0xf]
        %v254 = vld [vmem:[#allocation5 + $0x8] sm:$0xf]
        %v255 = vld [vmem:[#allocation5 + $0xc] sm:$0xf]
        %v256 = vld [vmem:[#allocation5 + $0x10] sm:$0xf]
        %v257 = vld [vmem:[#allocation5 + $0x14] sm:$0xf]
        %v258 = vld [vmem:[#allocation5 + $0x18] sm:$0xf]
        %v259 = vld [vmem:[#allocation5 + $0x1c] sm:$0xf]
        %v260 = vld [vmem:[#allocation5 + $0x20] sm:$0xf]
        %v261 = vld [vmem:[#allocation5 + $0x24] sm:$0xf]
        %v262 = vld [vmem:[#allocation5 + $0x28] sm:$0xf]
        %v263 = vld [vmem:[#allocation5 + $0x2c] sm:$0xf]
        %v264 = vld [vmem:[#allocation5 + $0x30] sm:$0xf]
        %v265 = vld [vmem:[#allocation5 + $0x34] sm:$0xf]
        %v266 = vld [vmem:[#allocation5 + $0x38] sm:$0xf]
        %v267 = vld [vmem:[#allocation5 + $0x3c] sm:$0xf]
        %v268 = vld [vmem:[#allocation5 + $0x40] sm:$0xf]
        %v269 = vld [vmem:[#allocation5 + $0x44] sm:$0xf]
        %v270 = vld [vmem:[#allocation5 + $0x48] sm:$0x3]
        %v271 = vld [vmem:[#allocation7] sm:$0x1]
        %v273 = vlaneseq
        %v274 = vshrl.u32 %v273, 7
        %v275 = vsub.s32 0, %v274
        %v276 = vrot.slane %v271, %v275
        %v310 = vunpack.c.l.b16 %v220
        %v311 = vunpack.c.h.b16 %v220
        %v312 = vunpack.c.l.b16 %v221
        %v313 = vunpack.c.h.b16 %v221
        %v314 = vunpack.c.l.b16 %v222
        %v315 = vunpack.c.h.b16 %v222
        %v316 = vunpack.c.l.b16 %v223
        %v317 = vunpack.c.h.b16 %v223
        %v318 = vunpack.c.l.b16 %v224
        %v319 = vunpack.c.h.b16 %v224
        %v320 = vunpack.c.l.b16 %v225
        %v321 = vunpack.c.h.b16 %v225
        %v322 = vunpack.c.l.b16 %v226
        %v323 = vunpack.c.h.b16 %v226
        %v324 = vunpack.c.l.b16 %v227
        %v325 = vunpack.c.h.b16 %v227
        %v326 = vunpack.c.l.b16 %v228
        %v327 = vunpack.c.h.b16 %v228
        %v328 = vunpack.c.l.b16 %v229
        %v329 = vunpack.c.h.b16 %v229
        %v330 = vunpack.c.l.b16 %v230
        %v331 = vunpack.c.h.b16 %v230
        %v332 = vunpack.c.l.b16 %v231
        %v333 = vunpack.c.h.b16 %v231
        %v334 = vunpack.c.l.b16 %v232
        %v335 = vunpack.c.h.b16 %v232
        %v336 = vunpack.c.l.b16 %v233
        %v337 = vunpack.c.h.b16 %v233
        %v338 = vunpack.c.l.b16 %v234
        %v339 = vunpack.c.h.b16 %v234
        %v340 = vunpack.c.l.b16 %v235
        %v341 = vunpack.c.h.b16 %v235
        %v342 = vunpack.c.l.b16 %v236
        %v343 = vunpack.c.h.b16 %v236
        %v344 = vunpack.c.l.b16 %v237
        %v345 = vunpack.c.h.b16 %v237
        %v346 = vunpack.c.l.b16 %v238
        %v347 = vunpack.c.h.b16 %v238
        %v348 = vunpack.c.l.b16 %v239
        %v349 = vunpack.c.h.b16 %v239
        %v350 = vunpack.c.l.b16 %v240
        %v351 = vunpack.c.h.b16 %v240
        %v352 = vunpack.c.l.b16 %v241
        %v353 = vunpack.c.h.b16 %v241
        %v354 = vunpack.c.l.b16 %v242
        %v355 = vunpack.c.h.b16 %v242
        %v356 = vunpack.c.l.b16 %v243
        %v357 = vunpack.c.h.b16 %v243
        %v358 = vunpack.c.l.b16 %v244
        %v359 = vunpack.c.h.b16 %v244
        %v360 = vunpack.c.l.b16 %v245
        %v361 = vunpack.c.h.b16 %v245
        %v362 = vunpack.c.l.b16 %v246
        %v363 = vunpack.c.h.b16 %v246
        %v364 = vunpack.c.l.b16 %v247
        %v365 = vunpack.c.h.b16 %v247
        %v366 = vunpack.c.l.b16 %v248
        %v367 = vunpack.c.h.b16 %v248
        %v368 = vunpack.c.l.b16 %v249
        %v369 = vunpack.c.h.b16 %v249
        %v370 = vunpack.c.l.b16 %v250
        %v371 = vunpack.c.h.b16 %v250
        %v372 = vunpack.c.l.b16 %v251
        %v373 = vunpack.c.h.b16 %v251
        %v374 = vpack.c.b16 %v312, %v310
        %v375 = vpack.c.b16 %v313, %v311
        %v376 = vpack.c.b16 %v316, %v314
        %v377 = vpack.c.b16 %v317, %v315
        %v378 = vpack.c.b16 %v320, %v318
        %v379 = vpack.c.b16 %v321, %v319
        %v380 = vpack.c.b16 %v324, %v322
        %v381 = vpack.c.b16 %v325, %v323
        %v382 = vpack.c.b16 %v328, %v326
        %v383 = vpack.c.b16 %v329, %v327
        %v384 = vpack.c.b16 %v332, %v330
        %v385 = vpack.c.b16 %v333, %v331
        %v386 = vpack.c.b16 %v336, %v334
        %v387 = vpack.c.b16 %v337, %v335
        %v388 = vpack.c.b16 %v340, %v338
        %v389 = vpack.c.b16 %v341, %v339
        %v390 = vpack.c.b16 %v344, %v342
        %v391 = vpack.c.b16 %v345, %v343
        %v392 = vpack.c.b16 %v348, %v346
        %v393 = vpack.c.b16 %v349, %v347
        %v394 = vpack.c.b16 %v352, %v350
        %v395 = vpack.c.b16 %v353, %v351
        %v396 = vpack.c.b16 %v356, %v354
        %v397 = vpack.c.b16 %v357, %v355
        %v398 = vpack.c.b16 %v360, %v358
        %v399 = vpack.c.b16 %v361, %v359
        %v400 = vpack.c.b16 %v364, %v362
        %v401 = vpack.c.b16 %v365, %v363
        %v402 = vpack.c.b16 %v368, %v366
        %v403 = vpack.c.b16 %v369, %v367
        %v404 = vpack.c.b16 %v372, %v370
        %v405 = vpack.c.b16 %v373, %v371
        %v441 = vunpack.c.l.b16 %v252
        %v442 = vunpack.c.l.b16 %v253
        %v443 = vunpack.c.l.b16 %v254
        %v444 = vunpack.c.l.b16 %v255
        %v445 = vunpack.c.l.b16 %v256
        %v446 = vunpack.c.l.b16 %v257
        %v447 = vunpack.c.l.b16 %v258
        %v448 = vunpack.c.l.b16 %v259
        %v449 = vunpack.c.l.b16 %v260
        %v450 = vunpack.c.l.b16 %v261
        %v451 = vunpack.c.l.b16 %v262
        %v452 = vunpack.c.l.b16 %v263
        %v453 = vunpack.c.l.b16 %v264
        %v454 = vunpack.c.l.b16 %v265
        %v455 = vunpack.c.l.b16 %v266
        %v456 = vunpack.c.l.b16 %v267
        %v457 = vunpack.c.l.b16 %v268
        %v458 = vunpack.c.l.b16 %v269
        %v459 = vunpack.c.l.b16 %v270
        %v460 = vpack.c.b16 %v442, %v441
        %v461 = vpack.c.b16 %v444, %v443
        %v462 = vpack.c.b16 %v446, %v445
        %v463 = vpack.c.b16 %v448, %v447
        %v464 = vpack.c.b16 %v450, %v449
        %v465 = vpack.c.b16 %v452, %v451
        %v466 = vpack.c.b16 %v454, %v453
        %v467 = vpack.c.b16 %v456, %v455
        %v468 = vpack.c.b16 %v458, %v457
        %v469 = vpack.c.b16 %v459, %v459
        %vm479 = vcmask 154624
        %v481 = vsel %vm479, %v375, 0
        %v484 = vsel %vm479, %v377, 0
        %v487 = vsel %vm479, %v379, 0
        %v490 = vsel %vm479, %v381, 0
        %v493 = vsel %vm479, %v383, 0
        %v496 = vsel %vm479, %v385, 0
        %v499 = vsel %vm479, %v387, 0
        %v502 = vsel %vm479, %v389, 0
        %v505 = vsel %vm479, %v391, 0
        %v508 = vsel %vm479, %v393, 0
        %v511 = vsel %vm479, %v395, 0
        %v514 = vsel %vm479, %v397, 0
        %v517 = vsel %vm479, %v399, 0
        %v520 = vsel %vm479, %v401, 0
        %v523 = vsel %vm479, %v403, 0
        %v526 = vsel %vm479, %v405, 0
        %vm528 = vcmask 1040384
        %vm529 = vcmask 1041408
        %v530 = vsel %vm528, 4294967295, 65535
        %v531 = vsel %vm529, %v530, 0
        %v533 = vand.u32 %v469, %v531
        %535 = vmatprep.subr.bf16.mxu0 0
        %536 = vmatpush1.bf16.msra.mxu0 %v460
        %537 = vmatprep.subr.bf16.mxu0 0
        %538 = vmatpush1.bf16.msra.mxu0 %v461
        %539 = vmatprep.subr.bf16.mxu0 0
        %540 = vmatpush1.bf16.msra.mxu0 %v462
        %541 = vmatprep.subr.bf16.mxu0 0
        %542 = vmatpush1.bf16.msra.mxu0 %v463
        %543 = vmatprep.subr.bf16.mxu0 0
        %544 = vmatpush1.bf16.msra.mxu0 %v464
        %545 = vmatprep.subr.bf16.mxu0 0
        %546 = vmatpush1.bf16.msra.mxu0 %v465
        %547 = vmatprep.subr.bf16.mxu0 0
        %548 = vmatpush1.bf16.msra.mxu0 %v466
        %549 = vmatprep.subr.bf16.mxu0 0
        %550 = vmatpush1.bf16.msra.mxu0 %v467
        %551 = vmatprep.subr.bf16.mxu0 0
        %552 = vmatpush1.bf16.msra.mxu0 %v468
        %553 = vmatprep.subr.bf16.mxu0 0
        %554 = vmatpush1.bf16.msra.mxu0 %v533
        %555 = vmatprep.subr.bf16.mxu0 0
        %556 = vmatpush1.bf16.msra.mxu0 0
        %557 = vmatprep.subr.bf16.mxu0 0
        %558 = vmatpush1.bf16.msra.mxu0 0
        %559 = vmatprep.subr.bf16.mxu0 0
        %560 = vmatpush1.bf16.msra.mxu0 0
        %561 = vmatprep.subr.bf16.mxu0 0
        %562 = vmatpush1.bf16.msra.mxu0 0
        %563 = vmatprep.subr.bf16.mxu0 0
        %564 = vmatpush1.bf16.msra.mxu0 0
        %565 = vmatprep.subr.bf16.mxu0 0
        %566 = vmatpush1.bf16.msra.mxu0 0
        %567 = vmatprep.mubr.bf16.mxu0 %v481
        %568 = vmatmul.mubr.bf16.gmra.mrb[0].mxu0 %v374
        %v569 = vpop.f32.mrb[0].mxu0
        %v570 = vadd.f32 %v276, %v569
        %v571 = vpop.f32.mrb[0].mxu0
        %v572 = vpop.f32.mrb[0].mxu0
        %v573 = vadd.f32 %v276, %v572
        %v574 = vpop.f32.mrb[0].mxu0
        %575 = vmatprep.mubr.bf16.mxu0 %v484
        %576 = vmatmul.mubr.bf16.gmra.mrb[0].mxu0 %v376
        %v577 = vpop.f32.mrb[0].mxu0
        %v578 = vadd.f32 %v276, %v577
        %v579 = vpop.f32.mrb[0].mxu0
        %v580 = vpop.f32.mrb[0].mxu0
        %v581 = vadd.f32 %v276, %v580
        %v582 = vpop.f32.mrb[0].mxu0
        %583 = vmatprep.mubr.bf16.mxu0 %v487
        %584 = vmatmul.mubr.bf16.gmra.mrb[0].mxu0 %v378
        %v585 = vpop.f32.mrb[0].mxu0
        %v586 = vadd.f32 %v276, %v585
        %v587 = vpop.f32.mrb[0].mxu0
        %v588 = vpop.f32.mrb[0].mxu0
        %v589 = vadd.f32 %v276, %v588
        %v590 = vpop.f32.mrb[0].mxu0
        %591 = vmatprep.mubr.bf16.mxu0 %v490
        %592 = vmatmul.mubr.bf16.gmra.mrb[0].mxu0 %v380
        %v593 = vpop.f32.mrb[0].mxu0
        %v594 = vadd.f32 %v276, %v593
        %v595 = vpop.f32.mrb[0].mxu0
        %v596 = vpop.f32.mrb[0].mxu0
        %v597 = vadd.f32 %v276, %v596
        %v598 = vpop.f32.mrb[0].mxu0
        %599 = vmatprep.mubr.bf16.mxu0 %v493
        %600 = vmatmul.mubr.bf16.gmra.mrb[0].mxu0 %v382
        %v601 = vpop.f32.mrb[0].mxu0
        %v602 = vadd.f32 %v276, %v601
        %v603 = vpop.f32.mrb[0].mxu0
        %v604 = vpop.f32.mrb[0].mxu0
        %v605 = vadd.f32 %v276, %v604
        %v606 = vpop.f32.mrb[0].mxu0
        %607 = vmatprep.mubr.bf16.mxu0 %v496
        %608 = vmatmul.mubr.bf16.gmra.mrb[0].mxu0 %v384
        %v609 = vpop.f32.mrb[0].mxu0
        %v610 = vadd.f32 %v276, %v609
        %v611 = vpop.f32.mrb[0].mxu0
        %v612 = vpop.f32.mrb[0].mxu0
        %v613 = vadd.f32 %v276, %v612
        %v614 = vpop.f32.mrb[0].mxu0
        %615 = vmatprep.mubr.bf16.mxu0 %v499
        %616 = vmatmul.mubr.bf16.gmra.mrb[0].mxu0 %v386
        %v617 = vpop.f32.mrb[0].mxu0
        %v618 = vadd.f32 %v276, %v617
        %v619 = vpop.f32.mrb[0].mxu0
        %v620 = vpop.f32.mrb[0].mxu0
        %v621 = vadd.f32 %v276, %v620
        %v622 = vpop.f32.mrb[0].mxu0
        %623 = vmatprep.mubr.bf16.mxu0 %v502
        %624 = vmatmul.mubr.bf16.gmra.mrb[0].mxu0 %v388
        %v625 = vpop.f32.mrb[0].mxu0
        %v626 = vadd.f32 %v276, %v625
        %v627 = vpop.f32.mrb[0].mxu0
        %v628 = vpop.f32.mrb[0].mxu0
        %v629 = vadd.f32 %v276, %v628
        %v630 = vpop.f32.mrb[0].mxu0
        %631 = vmatprep.mubr.bf16.mxu0 %v505
        %632 = vmatmul.mubr.bf16.gmra.mrb[0].mxu0 %v390
        %v633 = vpop.f32.mrb[0].mxu0
        %v634 = vadd.f32 %v276, %v633
        %v635 = vpop.f32.mrb[0].mxu0
        %v636 = vpop.f32.mrb[0].mxu0
        %v637 = vadd.f32 %v276, %v636
        %v638 = vpop.f32.mrb[0].mxu0
        %639 = vmatprep.mubr.bf16.mxu0 %v508
        %640 = vmatmul.mubr.bf16.gmra.mrb[0].mxu0 %v392
        %v641 = vpop.f32.mrb[0].mxu0
        %v642 = vadd.f32 %v276, %v641
        %v643 = vpop.f32.mrb[0].mxu0
        %v644 = vpop.f32.mrb[0].mxu0
        %v645 = vadd.f32 %v276, %v644
        %v646 = vpop.f32.mrb[0].mxu0
        %647 = vmatprep.mubr.bf16.mxu0 %v511
        %648 = vmatmul.mubr.bf16.gmra.mrb[0].mxu0 %v394
        %v649 = vpop.f32.mrb[0].mxu0
        %v650 = vadd.f32 %v276, %v649
        %v651 = vpop.f32.mrb[0].mxu0
        %v652 = vpop.f32.mrb[0].mxu0
        %v653 = vadd.f32 %v276, %v652
        %v654 = vpop.f32.mrb[0].mxu0
        %655 = vmatprep.mubr.bf16.mxu0 %v514
        %656 = vmatmul.mubr.bf16.gmra.mrb[0].mxu0 %v396
        %v657 = vpop.f32.mrb[0].mxu0
        %v658 = vadd.f32 %v276, %v657
        %v659 = vpop.f32.mrb[0].mxu0
        %v660 = vpop.f32.mrb[0].mxu0
        %v661 = vadd.f32 %v276, %v660
        %v662 = vpop.f32.mrb[0].mxu0
        %663 = vmatprep.mubr.bf16.mxu0 %v517
        %664 = vmatmul.mubr.bf16.gmra.mrb[0].mxu0 %v398
        %v665 = vpop.f32.mrb[0].mxu0
        %v666 = vadd.f32 %v276, %v665
        %v667 = vpop.f32.mrb[0].mxu0
        %v668 = vpop.f32.mrb[0].mxu0
        %v669 = vadd.f32 %v276, %v668
        %v670 = vpop.f32.mrb[0].mxu0
        %671 = vmatprep.mubr.bf16.mxu0 %v520
        %672 = vmatmul.mubr.bf16.gmra.mrb[0].mxu0 %v400
        %v673 = vpop.f32.mrb[0].mxu0
        %v674 = vadd.f32 %v276, %v673
        %v675 = vpop.f32.mrb[0].mxu0
        %v676 = vpop.f32.mrb[0].mxu0
        %v677 = vadd.f32 %v276, %v676
        %v678 = vpop.f32.mrb[0].mxu0
        %679 = vmatprep.mubr.bf16.mxu0 %v523
        %680 = vmatmul.mubr.bf16.gmra.mrb[0].mxu0 %v402
        %v681 = vpop.f32.mrb[0].mxu0
        %v682 = vadd.f32 %v276, %v681
        %v683 = vpop.f32.mrb[0].mxu0
        %v684 = vpop.f32.mrb[0].mxu0
        %v685 = vadd.f32 %v276, %v684
        %v686 = vpop.f32.mrb[0].mxu0
        %687 = vmatprep.mubr.bf16.mxu0 %v526
        %688 = vmatmul.mubr.bf16.gmra.mrb[0].mxu0 %v404
        %v689 = vpop.f32.mrb[0].mxu0
        %v690 = vadd.f32 %v276, %v689
        %v691 = vpop.f32.mrb[0].mxu0
        %v692 = vpop.f32.mrb[0].mxu0
        %v693 = vadd.f32 %v276, %v692
        %v694 = vpop.f32.mrb[0].mxu0
        %695 = vdwg.mxu0
        %v696 = vmax.f32 %v570, 0.0
        %v697 = vmax.f32 %v573, 0.0
        %v698 = vmax.f32 %v578, 0.0
        %v699 = vmax.f32 %v581, 0.0
        %v700 = vmax.f32 %v586, 0.0
        %v701 = vmax.f32 %v589, 0.0
        %v702 = vmax.f32 %v594, 0.0
        %v703 = vmax.f32 %v597, 0.0
        %v704 = vmax.f32 %v602, 0.0
        %v705 = vmax.f32 %v605, 0.0
        %v706 = vmax.f32 %v610, 0.0
        %v707 = vmax.f32 %v613, 0.0
        %v708 = vmax.f32 %v618, 0.0
        %v709 = vmax.f32 %v621, 0.0
        %v710 = vmax.f32 %v626, 0.0
        %v711 = vmax.f32 %v629, 0.0
        %v712 = vmax.f32 %v634, 0.0
        %v713 = vmax.f32 %v637, 0.0
        %v714 = vmax.f32 %v642, 0.0
        %v715 = vmax.f32 %v645, 0.0
        %v716 = vmax.f32 %v650, 0.0
        %v717 = vmax.f32 %v653, 0.0
        %v718 = vmax.f32 %v658, 0.0
        %v719 = vmax.f32 %v661, 0.0
        %v720 = vmax.f32 %v666, 0.0
        %v721 = vmax.f32 %v669, 0.0
        %v722 = vmax.f32 %v674, 0.0
        %v723 = vmax.f32 %v677, 0.0
        %v724 = vmax.f32 %v682, 0.0
        %v725 = vmax.f32 %v685, 0.0
        %v726 = vmax.f32 %v690, 0.0
        %v727 = vmax.f32 %v693, 0.0
        %vm728 = vcmask 130048
        %729 = vst.msk [vmem:[%s216] sm:$0xff] %vm728, %v696
        %730 = vst.msk [vmem:[%s216 + $0x8] sm:$0xff] %vm728, %v697
        %731 = vst.msk [vmem:[%s216 + $0x10] sm:$0xff] %vm728, %v698
        %732 = vst.msk [vmem:[%s216 + $0x18] sm:$0xff] %vm728, %v699
        %733 = vst.msk [vmem:[%s216 + $0x20] sm:$0xff] %vm728, %v700
        %734 = vst.msk [vmem:[%s216 + $0x28] sm:$0xff] %vm728, %v701
        %735 = vst.msk [vmem:[%s216 + $0x30] sm:$0xff] %vm728, %v702
        %736 = vst.msk [vmem:[%s216 + $0x38] sm:$0xff] %vm728, %v703
        %737 = vst.msk [vmem:[%s216 + $0x40] sm:$0xff] %vm728, %v704
        %738 = vst.msk [vmem:[%s216 + $0x48] sm:$0xff] %vm728, %v705
        %739 = vst.msk [vmem:[%s216 + $0x50] sm:$0xff] %vm728, %v706
        %740 = vst.msk [vmem:[%s216 + $0x58] sm:$0xff] %vm728, %v707
        %741 = vst.msk [vmem:[%s216 + $0x60] sm:$0xff] %vm728, %v708
        %742 = vst.msk [vmem:[%s216 + $0x68] sm:$0xff] %vm728, %v709
        %743 = vst.msk [vmem:[%s216 + $0x70] sm:$0xff] %vm728, %v710
        %744 = vst.msk [vmem:[%s216 + $0x78] sm:$0xff] %vm728, %v711
        %745 = vst.msk [vmem:[%s216 + $0x80] sm:$0xff] %vm728, %v712
        %746 = vst.msk [vmem:[%s216 + $0x88] sm:$0xff] %vm728, %v713
        %747 = vst.msk [vmem:[%s216 + $0x90] sm:$0xff] %vm728, %v714
        %748 = vst.msk [vmem:[%s216 + $0x98] sm:$0xff] %vm728, %v715
        %749 = vst.msk [vmem:[%s216 + $0xa0] sm:$0xff] %vm728, %v716
        %750 = vst.msk [vmem:[%s216 + $0xa8] sm:$0xff] %vm728, %v717
        %751 = vst.msk [vmem:[%s216 + $0xb0] sm:$0xff] %vm728, %v718
        %752 = vst.msk [vmem:[%s216 + $0xb8] sm:$0xff] %vm728, %v719
        %753 = vst.msk [vmem:[%s216 + $0xc0] sm:$0xff] %vm728, %v720
        %754 = vst.msk [vmem:[%s216 + $0xc8] sm:$0xff] %vm728, %v721
        %755 = vst.msk [vmem:[%s216 + $0xd0] sm:$0xff] %vm728, %v722
        %756 = vst.msk [vmem:[%s216 + $0xd8] sm:$0xff] %vm728, %v723
        %757 = vst.msk [vmem:[%s216 + $0xe0] sm:$0xff] %vm728, %v724
        %758 = vst.msk [vmem:[%s216 + $0xe8] sm:$0xff] %vm728, %v725
        %759 = vst.msk [vmem:[%s216 + $0xf0] sm:$0xff] %vm728, %v726
        %760 = vst.msk [vmem:[%s216 + $0xf8] sm:$0xff] %vm728, %v727
        %s761 = sand.u32 %s97, 1
        %s762 = scalar_lea.sflag [#allocation4], %s761
        %s763 = sand.u32 %s97, 1
        %s764 = smul.addr %s763, 256
        %s765 = scalar_lea.vmem [#allocation8], %s764
        // Predicated region
        $region45: #{densenet_se_forward.25} parent=31 // pred_check
          %p766 = pneg %p107
        $region46: #{densenet_se_forward.25} parent=31 // pred_check_branch
          %768 = sbr.rel (%p766) target = $region48
        $region47: #{densenet_se_forward.25} parent=31 // pred_region
          %s769 = smul.u32 32, %s21
          %s771 = ssub.s32 4096, 4096
          %772 = vsyncadd %s762, %s771
          %s773 = smul.addr %s769, 128
          %s774 = scalar_lea.hbm %s3, %s773
          %s775 = sshll.u32 %s765, 4
          %s776 = int_to_ptr.vmem [resolvable:$true] %s775
          %781 = dma.vmem_to_hbm [thread:$0]  %s776, 4096, %s774, %s762, 128, 128, 8
        $region48: #{densenet_se_forward.25} parent=31 // pred_fallthru
          _
      $region32: #{densenet_se_forward.25} parent=5 // pred_fallthru
        _
      %p782 = scmp.le.s32.totalorder 2, %s16
      // Predicated region
      $region49: #{densenet_se_forward.25} parent=5 // pred_check
        %p783 = pneg %p782
      $region50: #{densenet_se_forward.25} parent=5 // pred_check_branch
        %785 = sbr.rel (%p783) target = $region52
      $region51: #{densenet_se_forward.25} parent=5 // pred_region
        %s786 = ssub.s32 %s16, 2
        // Predicated region
        $region53: #{densenet_se_forward.25} parent=51 // pred_check
          %p787 = pneg %p113
        $region54: #{densenet_se_forward.25} parent=51 // pred_check_branch
          %789 = sbr.rel (%p787) target = $region56
        $region55: #{densenet_se_forward.25} parent=51 // pred_region
          %s790 = sand.u32 %s98, 1
          %s791 = scalar_lea.sflag [#allocation4], %s790
          %s792 = sand.u32 %s98, 1
          %s793 = smul.addr %s792, 256
          %s794 = scalar_lea.vmem [#allocation8], %s793
          %795 = dma.done %s791, 4096
        $region56: #{densenet_se_forward.25} parent=51 // pred_fallthru
          _
      $region52: #{densenet_se_forward.25} parent=5 // pred_fallthru
        _
    $region6: #{densenet_se_forward.25} parent=1 // loop_footer
      %s20 = sadd.s32 1, %s16
    $region7: #{densenet_se_forward.25} parent=1 // loop_footer_branch
      %15 = sbr.rel target = $region3
    $region8: #{densenet_se_forward.25} parent=1 // loop_exit
      _
    %796 = vsyncpa [#allocation3], 1
    %s797 = scalar_lea.sflag [#allocation3], 1
    %798 = vsyncpa %s797, 1
    %799 = vsyncpa [#allocation6], 1
    %800 = vsyncpa [#allocation4], 1
    %s801 = scalar_lea.sflag [#allocation4], 1
    %802 = vsyncpa %s801, 1

// kernel: densenet_se_forward.27
$region0: #{densenet_se_forward.27}
  #allocation0 [shape = 'u32[]', space=smem, size = 0x4, offset = 0x4, fixed_abs, tag = 'smem constant byte address 0x4 - core index']
  #allocation1 [shape = 'u32[144,128]{1,0:T(1,128)}', space=vmem, size = 0x12000, scoped, tag = 'internal scratch']
  %s0 = inlined_call_operand.vmem [shape: f32[128,16], index: 0, kind: input, shape index: {}]
  %s1 = inlined_call_operand.vmem [shape: f32[1,16], index: 1, kind: input, shape index: {}]
  %s2 = inlined_call_operand.vmem [shape: f32[1,16], index: 2, kind: input, shape index: {}]
  %s3 = inlined_call_operand.vmem [shape: bf16[16,16], index: 3, kind: input, shape index: {}]
  %s4 = inlined_call_operand.vmem [shape: f32[1,16], index: 4, kind: input, shape index: {}]
  %s5 = inlined_call_operand.vmem [shape: bf16[128,16], index: 5, kind: output, shape index: {}]
  %s6 = sld [smem:[#allocation0]]
  $region30: #{densenet_se_forward.27} parent=0
    _
  %s8 = ssub.s32 1, %s6
  %s9 = scalar_select 0, %s8, %s6
  // Predicated region
  $region2: #{densenet_se_forward.27} parent=0 // pred_check
    _
  $region3: #{densenet_se_forward.27} parent=0 // pred_check_branch
    %11 = sbr.rel (0) target = $region5
  $region4: #{densenet_se_forward.27} parent=0 // pred_region
    _
  $region5: #{densenet_se_forward.27} parent=0 // pred_fallthru
    _
  // Predicated region
  $region6: #{densenet_se_forward.27} parent=0 // pred_check
    _
  $region7: #{densenet_se_forward.27} parent=0 // pred_check_branch
    %13 = sbr.rel (0) target = $region9
  $region8: #{densenet_se_forward.27} parent=0 // pred_region
    _
  $region9: #{densenet_se_forward.27} parent=0 // pred_fallthru
    _
  // Predicated region
  $region10: #{densenet_se_forward.27} parent=0 // pred_check
    _
  $region11: #{densenet_se_forward.27} parent=0 // pred_check_branch
    %15 = sbr.rel (0) target = $region13
  $region12: #{densenet_se_forward.27} parent=0 // pred_region
    _
  $region13: #{densenet_se_forward.27} parent=0 // pred_fallthru
    _
  // Predicated region
  $region14: #{densenet_se_forward.27} parent=0 // pred_check
    _
  $region15: #{densenet_se_forward.27} parent=0 // pred_check_branch
    %17 = sbr.rel (0) target = $region17
  $region16: #{densenet_se_forward.27} parent=0 // pred_region
    _
  $region17: #{densenet_se_forward.27} parent=0 // pred_fallthru
    _
  // Predicated region
  $region18: #{densenet_se_forward.27} parent=0 // pred_check
    _
  $region19: #{densenet_se_forward.27} parent=0 // pred_check_branch
    %19 = sbr.rel (0) target = $region21
  $region20: #{densenet_se_forward.27} parent=0 // pred_region
    _
  $region21: #{densenet_se_forward.27} parent=0 // pred_fallthru
    _
  %v21 = vld [vmem:[%s0] sm:$0xff]
  %v22 = vld [vmem:[%s0 + $0x8] sm:$0xff]
  %v23 = vld [vmem:[%s0 + $0x10] sm:$0xff]
  %v24 = vld [vmem:[%s0 + $0x18] sm:$0xff]
  %v25 = vld [vmem:[%s0 + $0x20] sm:$0xff]
  %v26 = vld [vmem:[%s0 + $0x28] sm:$0xff]
  %v27 = vld [vmem:[%s0 + $0x30] sm:$0xff]
  %v28 = vld [vmem:[%s0 + $0x38] sm:$0xff]
  %v29 = vld [vmem:[%s0 + $0x40] sm:$0xff]
  %v30 = vld [vmem:[%s0 + $0x48] sm:$0xff]
  %v31 = vld [vmem:[%s0 + $0x50] sm:$0xff]
  %v32 = vld [vmem:[%s0 + $0x58] sm:$0xff]
  %v33 = vld [vmem:[%s0 + $0x60] sm:$0xff]
  %v34 = vld [vmem:[%s0 + $0x68] sm:$0xff]
  %v35 = vld [vmem:[%s0 + $0x70] sm:$0xff]
  %v36 = vld [vmem:[%s0 + $0x78] sm:$0xff]
  %v37 = vld [vmem:[%s1] sm:$0x1]
  %v39 = vlaneseq
  %v40 = vshrl.u32 %v39, 7
  %v41 = vsub.s32 0, %v40
  %v42 = vrot.slane %v37, %v41
  %v44 = vmul.f32 %v21, %v42
  %v45 = vmul.f32 %v22, %v42
  %v46 = vmul.f32 %v23, %v42
  %v47 = vmul.f32 %v24, %v42
  %v48 = vmul.f32 %v25, %v42
  %v49 = vmul.f32 %v26, %v42
  %v50 = vmul.f32 %v27, %v42
  %v51 = vmul.f32 %v28, %v42
  %v52 = vmul.f32 %v29, %v42
  %v53 = vmul.f32 %v30, %v42
  %v54 = vmul.f32 %v31, %v42
  %v55 = vmul.f32 %v32, %v42
  %v56 = vmul.f32 %v33, %v42
  %v57 = vmul.f32 %v34, %v42
  %v58 = vmul.f32 %v35, %v42
  %v59 = vmul.f32 %v36, %v42
  %v60 = vld [vmem:[%s2] sm:$0x1]
  %v62 = vlaneseq
  %v63 = vshrl.u32 %v62, 7
  %v64 = vsub.s32 0, %v63
  %v65 = vrot.slane %v60, %v64
  %v67 = vadd.f32 %v44, %v65
  %v68 = vadd.f32 %v45, %v65
  %v69 = vadd.f32 %v46, %v65
  %v70 = vadd.f32 %v47, %v65
  %v71 = vadd.f32 %v48, %v65
  %v72 = vadd.f32 %v49, %v65
  %v73 = vadd.f32 %v50, %v65
  %v74 = vadd.f32 %v51, %v65
  %v75 = vadd.f32 %v52, %v65
  %v76 = vadd.f32 %v53, %v65
  %v77 = vadd.f32 %v54, %v65
  %v78 = vadd.f32 %v55, %v65
  %v79 = vadd.f32 %v56, %v65
  %v80 = vadd.f32 %v57, %v65
  %v81 = vadd.f32 %v58, %v65
  %v82 = vadd.f32 %v59, %v65
  %v83 = vmax.f32 %v67, 0.0
  %v84 = vmax.f32 %v68, 0.0
  %v85 = vmax.f32 %v69, 0.0
  %v86 = vmax.f32 %v70, 0.0
  %v87 = vmax.f32 %v71, 0.0
  %v88 = vmax.f32 %v72, 0.0
  %v89 = vmax.f32 %v73, 0.0
  %v90 = vmax.f32 %v74, 0.0
  %v91 = vmax.f32 %v75, 0.0
  %v92 = vmax.f32 %v76, 0.0
  %v93 = vmax.f32 %v77, 0.0
  %v94 = vmax.f32 %v78, 0.0
  %v95 = vmax.f32 %v79, 0.0
  %v96 = vmax.f32 %v80, 0.0
  %v97 = vmax.f32 %v81, 0.0
  %v98 = vmax.f32 %v82, 0.0
  %v99 = vpack.c.bf16 %v84, %v83
  %v100 = vpack.c.bf16 %v86, %v85
  %v101 = vpack.c.bf16 %v88, %v87
  %v102 = vpack.c.bf16 %v90, %v89
  %v103 = vpack.c.bf16 %v92, %v91
  %v104 = vpack.c.bf16 %v94, %v93
  %v105 = vpack.c.bf16 %v96, %v95
  %v106 = vpack.c.bf16 %v98, %v97
  %v107 = vld [vmem:[%s3] sm:$0xf]
  %v108 = vld [vmem:[%s3 + $0x4] sm:$0xf]
  %v109 = vld [vmem:[%s4] sm:$0x1]
  %v111 = vlaneseq
  %v112 = vshrl.u32 %v111, 7
  %v113 = vsub.s32 0, %v112
  %v114 = vrot.slane %v109, %v113
  %v118 = vunpack.c.l.b16 %v107
  %v119 = vunpack.c.l.b16 %v108
  %v120 = vpack.c.b16 %v119, %v118
  %vm122 = vcmask 130048
  %v124 = vsel %vm122, %v99, 0
  %v127 = vsel %vm122, %v100, 0
  %v130 = vsel %vm122, %v101, 0
  %v133 = vsel %vm122, %v102, 0
  %v136 = vsel %vm122, %v103, 0
  %v139 = vsel %vm122, %v104, 0
  %v142 = vsel %vm122, %v105, 0
  %v145 = vsel %vm122, %v106, 0
  %147 = vmatprep.subr.bf16.mxu0 0
  %148 = vmatpush1.bf16.msra.mxu0 %v120
  %149 = vmatprep.subr.bf16.mxu0 0
  %150 = vmatpush1.bf16.msra.mxu0 0
  %151 = vmatprep.subr.bf16.mxu0 0
  %152 = vmatpush1.bf16.msra.mxu0 0
  %153 = vmatprep.subr.bf16.mxu0 0
  %154 = vmatpush1.bf16.msra.mxu0 0
  %155 = vmatprep.subr.bf16.mxu0 0
  %156 = vmatpush1.bf16.msra.mxu0 0
  %157 = vmatprep.subr.bf16.mxu0 0
  %158 = vmatpush1.bf16.msra.mxu0 0
  %159 = vmatprep.subr.bf16.mxu0 0
  %160 = vmatpush1.bf16.msra.mxu0 0
  %161 = vmatprep.subr.bf16.mxu0 0
  %162 = vmatpush1.bf16.msra.mxu0 0
  %163 = vmatprep.subr.bf16.mxu0 0
  %164 = vmatpush1.bf16.msra.mxu0 0
  %165 = vmatprep.subr.bf16.mxu0 0
  %166 = vmatpush1.bf16.msra.mxu0 0
  %167 = vmatprep.subr.bf16.mxu0 0
  %168 = vmatpush1.bf16.msra.mxu0 0
  %169 = vmatprep.subr.bf16.mxu0 0
  %170 = vmatpush1.bf16.msra.mxu0 0
  %171 = vmatprep.subr.bf16.mxu0 0
  %172 = vmatpush1.bf16.msra.mxu0 0
  %173 = vmatprep.subr.bf16.mxu0 0
  %174 = vmatpush1.bf16.msra.mxu0 0
  %175 = vmatprep.subr.bf16.mxu0 0
  %176 = vmatpush1.bf16.msra.mxu0 0
  %177 = vmatprep.subr.bf16.mxu0 0
  %178 = vmatpush1.bf16.msra.mxu0 0
  %179 = vmatprep.mubr.bf16.mxu0 0
  %180 = vmatmul.mubr.bf16.gmra.mrb[0].mxu0 %v124
  %v181 = vpop.f32.mrb[0].mxu0
  %v182 = vadd.f32 %v114, %v181
  %v183 = vpop.f32.mrb[0].mxu0
  %v184 = vpop.f32.mrb[0].mxu0
  %v185 = vadd.f32 %v114, %v184
  %v186 = vpop.f32.mrb[0].mxu0
  %187 = vmatprep.mubr.bf16.mxu0 0
  %188 = vmatmul.mubr.bf16.gmra.mrb[0].mxu0 %v127
  %v189 = vpop.f32.mrb[0].mxu0
  %v190 = vadd.f32 %v114, %v189
  %v191 = vpop.f32.mrb[0].mxu0
  %v192 = vpop.f32.mrb[0].mxu0
  %v193 = vadd.f32 %v114, %v192
  %v194 = vpop.f32.mrb[0].mxu0
  %195 = vmatprep.mubr.bf16.mxu0 0
  %196 = vmatmul.mubr.bf16.gmra.mrb[0].mxu0 %v130
  %v197 = vpop.f32.mrb[0].mxu0
  %v198 = vadd.f32 %v114, %v197
  %v199 = vpop.f32.mrb[0].mxu0
  %v200 = vpop.f32.mrb[0].mxu0
  %v201 = vadd.f32 %v114, %v200
  %v202 = vpop.f32.mrb[0].mxu0
  %203 = vmatprep.mubr.bf16.mxu0 0
  %204 = vmatmul.mubr.bf16.gmra.mrb[0].mxu0 %v133
  %v205 = vpop.f32.mrb[0].mxu0
  %v206 = vadd.f32 %v114, %v205
  %v207 = vpop.f32.mrb[0].mxu0
  %v208 = vpop.f32.mrb[0].mxu0
  %v209 = vadd.f32 %v114, %v208
  %v210 = vpop.f32.mrb[0].mxu0
  %211 = vmatprep.mubr.bf16.mxu0 0
  %212 = vmatmul.mubr.bf16.gmra.mrb[0].mxu0 %v136
  %v213 = vpop.f32.mrb[0].mxu0
  %v214 = vadd.f32 %v114, %v213
  %v215 = vpop.f32.mrb[0].mxu0
  %v216 = vpop.f32.mrb[0].mxu0
  %v217 = vadd.f32 %v114, %v216
  %v218 = vpop.f32.mrb[0].mxu0
  %219 = vmatprep.mubr.bf16.mxu0 0
  %220 = vmatmul.mubr.bf16.gmra.mrb[0].mxu0 %v139
  %v221 = vpop.f32.mrb[0].mxu0
  %v222 = vadd.f32 %v114, %v221
  %v223 = vpop.f32.mrb[0].mxu0
  %v224 = vpop.f32.mrb[0].mxu0
  %v225 = vadd.f32 %v114, %v224
  %v226 = vpop.f32.mrb[0].mxu0
  %227 = vmatprep.mubr.bf16.mxu0 0
  %228 = vmatmul.mubr.bf16.gmra.mrb[0].mxu0 %v142
  %v229 = vpop.f32.mrb[0].mxu0
  %v230 = vadd.f32 %v114, %v229
  %v231 = vpop.f32.mrb[0].mxu0
  %v232 = vpop.f32.mrb[0].mxu0
  %v233 = vadd.f32 %v114, %v232
  %v234 = vpop.f32.mrb[0].mxu0
  %235 = vmatprep.mubr.bf16.mxu0 0
  %236 = vmatmul.mubr.bf16.gmra.mrb[0].mxu0 %v145
  %v237 = vpop.f32.mrb[0].mxu0
  %v238 = vadd.f32 %v114, %v237
  %v239 = vpop.f32.mrb[0].mxu0
  %v240 = vpop.f32.mrb[0].mxu0
  %v241 = vadd.f32 %v114, %v240
  %v242 = vpop.f32.mrb[0].mxu0
  %243 = vdwg.mxu0
  %v244 = vmax.f32 %v182, 0.0
  %v245 = vmax.f32 %v185, 0.0
  %v246 = vmax.f32 %v190, 0.0
  %v247 = vmax.f32 %v193, 0.0
  %v248 = vmax.f32 %v198, 0.0
  %v249 = vmax.f32 %v201, 0.0
  %v250 = vmax.f32 %v206, 0.0
  %v251 = vmax.f32 %v209, 0.0
  %v252 = vmax.f32 %v214, 0.0
  %v253 = vmax.f32 %v217, 0.0
  %v254 = vmax.f32 %v222, 0.0
  %v255 = vmax.f32 %v225, 0.0
  %v256 = vmax.f32 %v230, 0.0
  %v257 = vmax.f32 %v233, 0.0
  %v258 = vmax.f32 %v238, 0.0
  %v259 = vmax.f32 %v241, 0.0
  %v260 = vpack.c.bf16 %v245, %v244
  %v261 = vpack.c.bf16 %v247, %v246
  %v262 = vpack.c.bf16 %v249, %v248
  %v263 = vpack.c.bf16 %v251, %v250
  %v264 = vpack.c.bf16 %v253, %v252
  %v265 = vpack.c.bf16 %v255, %v254
  %v266 = vpack.c.bf16 %v257, %v256
  %v267 = vpack.c.bf16 %v259, %v258
  %v276 = vunpack.c.l.b16 %v260
  %v277 = vunpack.c.h.b16 %v260
  %v278 = vunpack.c.l.b16 %v261
  %v279 = vunpack.c.h.b16 %v261
  %v280 = vunpack.c.l.b16 %v262
  %v281 = vunpack.c.h.b16 %v262
  %v282 = vunpack.c.l.b16 %v263
  %v283 = vunpack.c.h.b16 %v263
  %v284 = vunpack.c.l.b16 %v264
  %v285 = vunpack.c.h.b16 %v264
  %v286 = vunpack.c.l.b16 %v265
  %v287 = vunpack.c.h.b16 %v265
  %v288 = vunpack.c.l.b16 %v266
  %v289 = vunpack.c.h.b16 %v266
  %v290 = vunpack.c.l.b16 %v267
  %v291 = vunpack.c.h.b16 %v267
  %v292 = vpack.c.b16 %v276, %v276
  %v293 = vpack.c.b16 %v277, %v277
  %v294 = vpack.c.b16 %v278, %v278
  %v295 = vpack.c.b16 %v279, %v279
  %v296 = vpack.c.b16 %v280, %v280
  %v297 = vpack.c.b16 %v281, %v281
  %v298 = vpack.c.b16 %v282, %v282
  %v299 = vpack.c.b16 %v283, %v283
  %v300 = vpack.c.b16 %v284, %v284
  %v301 = vpack.c.b16 %v285, %v285
  %v302 = vpack.c.b16 %v286, %v286
  %v303 = vpack.c.b16 %v287, %v287
  %v304 = vpack.c.b16 %v288, %v288
  %v305 = vpack.c.b16 %v289, %v289
  %v306 = vpack.c.b16 %v290, %v290
  %v307 = vpack.c.b16 %v291, %v291
  %vm324 = vcmask 125952
  %325 = vst.msk [vmem:[%s5] sm:$0xf] %vm324, %v292
  %326 = vst.msk [vmem:[%s5 + $0x4] sm:$0xf] %vm324, %v293
  %327 = vst.msk [vmem:[%s5 + $0x8] sm:$0xf] %vm324, %v294
  %328 = vst.msk [vmem:[%s5 + $0xc] sm:$0xf] %vm324, %v295
  %329 = vst.msk [vmem:[%s5 + $0x10] sm:$0xf] %vm324, %v296
  %330 = vst.msk [vmem:[%s5 + $0x14] sm:$0xf] %vm324, %v297
  %331 = vst.msk [vmem:[%s5 + $0x18] sm:$0xf] %vm324, %v298
  %332 = vst.msk [vmem:[%s5 + $0x1c] sm:$0xf] %vm324, %v299
  %333 = vst.msk [vmem:[%s5 + $0x20] sm:$0xf] %vm324, %v300
  %334 = vst.msk [vmem:[%s5 + $0x24] sm:$0xf] %vm324, %v301
  %335 = vst.msk [vmem:[%s5 + $0x28] sm:$0xf] %vm324, %v302
  %336 = vst.msk [vmem:[%s5 + $0x2c] sm:$0xf] %vm324, %v303
  %337 = vst.msk [vmem:[%s5 + $0x30] sm:$0xf] %vm324, %v304
  %338 = vst.msk [vmem:[%s5 + $0x34] sm:$0xf] %vm324, %v305
  %339 = vst.msk [vmem:[%s5 + $0x38] sm:$0xf] %vm324, %v306
  %340 = vst.msk [vmem:[%s5 + $0x3c] sm:$0xf] %vm324, %v307
  // Predicated region
  $region22: #{densenet_se_forward.27} parent=0 // pred_check
    _
  $region23: #{densenet_se_forward.27} parent=0 // pred_check_branch
    %342 = sbr.rel (0) target = $region25
  $region24: #{densenet_se_forward.27} parent=0 // pred_region
    _
  $region25: #{densenet_se_forward.27} parent=0 // pred_fallthru
    _
  // Predicated region
  $region26: #{densenet_se_forward.27} parent=0 // pred_check
    _
  $region27: #{densenet_se_forward.27} parent=0 // pred_check_branch
    %344 = sbr.rel (0) target = $region29
  $region28: #{densenet_se_forward.27} parent=0 // pred_region
    _
  $region29: #{densenet_se_forward.27} parent=0 // pred_fallthru
    _

// kernel: densenet_se_forward.28
$region0: #{densenet_se_forward.28}
  #allocation0 [shape = 'u32[]', space=smem, size = 0x4, offset = 0x4, fixed_abs, tag = 'smem constant byte address 0x4 - core index']
  #allocation1 [shape = 'u32[144,128]{1,0:T(1,128)}', space=vmem, size = 0x12000, scoped, tag = 'internal scratch']
  %s0 = inlined_call_operand.vmem [shape: bf16[128,144], index: 0, kind: input, shape index: {}]
  %s1 = inlined_call_operand.vmem [shape: bf16[144,8], index: 1, kind: input, shape index: {}]
  %s2 = inlined_call_operand.vmem [shape: f32[128,8], index: 2, kind: output, shape index: {}]
  %s3 = sld [smem:[#allocation0]]
  $region18: #{densenet_se_forward.28} parent=0
    _
  %s5 = ssub.s32 1, %s3
  %s6 = scalar_select 0, %s5, %s3
  // Predicated region
  $region2: #{densenet_se_forward.28} parent=0 // pred_check
    _
  $region3: #{densenet_se_forward.28} parent=0 // pred_check_branch
    %8 = sbr.rel (0) target = $region5
  $region4: #{densenet_se_forward.28} parent=0 // pred_region
    _
  $region5: #{densenet_se_forward.28} parent=0 // pred_fallthru
    _
  // Predicated region
  $region6: #{densenet_se_forward.28} parent=0 // pred_check
    _
  $region7: #{densenet_se_forward.28} parent=0 // pred_check_branch
    %10 = sbr.rel (0) target = $region9
  $region8: #{densenet_se_forward.28} parent=0 // pred_region
    _
  $region9: #{densenet_se_forward.28} parent=0 // pred_fallthru
    _
  %v12 = vld [vmem:[%s0] sm:$0xff]
  %v13 = vld [vmem:[%s0 + $0x8] sm:$0xff]
  %v14 = vld [vmem:[%s0 + $0x10] sm:$0xff]
  %v15 = vld [vmem:[%s0 + $0x18] sm:$0xff]
  %v16 = vld [vmem:[%s0 + $0x20] sm:$0xff]
  %v17 = vld [vmem:[%s0 + $0x28] sm:$0xff]
  %v18 = vld [vmem:[%s0 + $0x30] sm:$0xff]
  %v19 = vld [vmem:[%s0 + $0x38] sm:$0xff]
  %v20 = vld [vmem:[%s0 + $0x40] sm:$0xff]
  %v21 = vld [vmem:[%s0 + $0x48] sm:$0xff]
  %v22 = vld [vmem:[%s0 + $0x50] sm:$0xff]
  %v23 = vld [vmem:[%s0 + $0x58] sm:$0xff]
  %v24 = vld [vmem:[%s0 + $0x60] sm:$0xff]
  %v25 = vld [vmem:[%s0 + $0x68] sm:$0xff]
  %v26 = vld [vmem:[%s0 + $0x70] sm:$0xff]
  %v27 = vld [vmem:[%s0 + $0x78] sm:$0xff]
  %v28 = vld [vmem:[%s1] sm:$0xf]
  %v29 = vld [vmem:[%s1 + $0x4] sm:$0xf]
  %v30 = vld [vmem:[%s1 + $0x8] sm:$0xf]
  %v31 = vld [vmem:[%s1 + $0xc] sm:$0xf]
  %v32 = vld [vmem:[%s1 + $0x10] sm:$0xf]
  %v33 = vld [vmem:[%s1 + $0x14] sm:$0xf]
  %v34 = vld [vmem:[%s1 + $0x18] sm:$0xf]
  %v35 = vld [vmem:[%s1 + $0x1c] sm:$0xf]
  %v36 = vld [vmem:[%s1 + $0x20] sm:$0xf]
  %v37 = vld [vmem:[%s1 + $0x24] sm:$0xf]
  %v38 = vld [vmem:[%s1 + $0x28] sm:$0xf]
  %v39 = vld [vmem:[%s1 + $0x2c] sm:$0xf]
  %v40 = vld [vmem:[%s1 + $0x30] sm:$0xf]
  %v41 = vld [vmem:[%s1 + $0x34] sm:$0xf]
  %v42 = vld [vmem:[%s1 + $0x38] sm:$0xf]
  %v43 = vld [vmem:[%s1 + $0x3c] sm:$0xf]
  %v44 = vld [vmem:[%s1 + $0x40] sm:$0xf]
  %v45 = vld [vmem:[%s1 + $0x44] sm:$0xf]
  %v62 = vunpack.c.l.b16 %v12
  %v63 = vunpack.c.h.b16 %v12
  %v64 = vunpack.c.l.b16 %v13
  %v65 = vunpack.c.h.b16 %v13
  %v66 = vunpack.c.l.b16 %v14
  %v67 = vunpack.c.h.b16 %v14
  %v68 = vunpack.c.l.b16 %v15
  %v69 = vunpack.c.h.b16 %v15
  %v70 = vunpack.c.l.b16 %v16
  %v71 = vunpack.c.h.b16 %v16
  %v72 = vunpack.c.l.b16 %v17
  %v73 = vunpack.c.h.b16 %v17
  %v74 = vunpack.c.l.b16 %v18
  %v75 = vunpack.c.h.b16 %v18
  %v76 = vunpack.c.l.b16 %v19
  %v77 = vunpack.c.h.b16 %v19
  %v78 = vunpack.c.l.b16 %v20
  %v79 = vunpack.c.h.b16 %v20
  %v80 = vunpack.c.l.b16 %v21
  %v81 = vunpack.c.h.b16 %v21
  %v82 = vunpack.c.l.b16 %v22
  %v83 = vunpack.c.h.b16 %v22
  %v84 = vunpack.c.l.b16 %v23
  %v85 = vunpack.c.h.b16 %v23
  %v86 = vunpack.c.l.b16 %v24
  %v87 = vunpack.c.h.b16 %v24
  %v88 = vunpack.c.l.b16 %v25
  %v89 = vunpack.c.h.b16 %v25
  %v90 = vunpack.c.l.b16 %v26
  %v91 = vunpack.c.h.b16 %v26
  %v92 = vunpack.c.l.b16 %v27
  %v93 = vunpack.c.h.b16 %v27
  %v94 = vpack.c.b16 %v64, %v62
  %v95 = vpack.c.b16 %v65, %v63
  %v96 = vpack.c.b16 %v68, %v66
  %v97 = vpack.c.b16 %v69, %v67
  %v98 = vpack.c.b16 %v72, %v70
  %v99 = vpack.c.b16 %v73, %v71
  %v100 = vpack.c.b16 %v76, %v74
  %v101 = vpack.c.b16 %v77, %v75
  %v102 = vpack.c.b16 %v80, %v78
  %v103 = vpack.c.b16 %v81, %v79
  %v104 = vpack.c.b16 %v84, %v82
  %v105 = vpack.c.b16 %v85, %v83
  %v106 = vpack.c.b16 %v88, %v86
  %v107 = vpack.c.b16 %v89, %v87
  %v108 = vpack.c.b16 %v92, %v90
  %v109 = vpack.c.b16 %v93, %v91
  %v136 = vunpack.c.l.b16 %v28
  %v137 = vunpack.c.l.b16 %v29
  %v138 = vunpack.c.l.b16 %v30
  %v139 = vunpack.c.l.b16 %v31
  %v140 = vunpack.c.l.b16 %v32
  %v141 = vunpack.c.l.b16 %v33
  %v142 = vunpack.c.l.b16 %v34
  %v143 = vunpack.c.l.b16 %v35
  %v144 = vunpack.c.l.b16 %v36
  %v145 = vunpack.c.l.b16 %v37
  %v146 = vunpack.c.l.b16 %v38
  %v147 = vunpack.c.l.b16 %v39
  %v148 = vunpack.c.l.b16 %v40
  %v149 = vunpack.c.l.b16 %v41
  %v150 = vunpack.c.l.b16 %v42
  %v151 = vunpack.c.l.b16 %v43
  %v152 = vunpack.c.l.b16 %v44
  %v153 = vunpack.c.l.b16 %v45
  %v154 = vpack.c.b16 %v137, %v136
  %v155 = vpack.c.b16 %v139, %v138
  %v156 = vpack.c.b16 %v141, %v140
  %v157 = vpack.c.b16 %v143, %v142
  %v158 = vpack.c.b16 %v145, %v144
  %v159 = vpack.c.b16 %v147, %v146
  %v160 = vpack.c.b16 %v149, %v148
  %v161 = vpack.c.b16 %v151, %v150
  %v162 = vpack.c.b16 %v153, %v152
  %vm172 = vcmask 130048
  %v174 = vsel %vm172, %v95, 0
  %v177 = vsel %vm172, %v97, 0
  %v180 = vsel %vm172, %v99, 0
  %v183 = vsel %vm172, %v101, 0
  %v186 = vsel %vm172, %v103, 0
  %v189 = vsel %vm172, %v105, 0
  %v192 = vsel %vm172, %v107, 0
  %v195 = vsel %vm172, %v109, 0
  %197 = vmatprep.subr.bf16.mxu0 0
  %198 = vmatpush1.bf16.msra.mxu0 %v154
  %199 = vmatprep.subr.bf16.mxu0 0
  %200 = vmatpush1.bf16.msra.mxu0 %v155
  %201 = vmatprep.subr.bf16.mxu0 0
  %202 = vmatpush1.bf16.msra.mxu0 %v156
  %203 = vmatprep.subr.bf16.mxu0 0
  %204 = vmatpush1.bf16.msra.mxu0 %v157
  %205 = vmatprep.subr.bf16.mxu0 0
  %206 = vmatpush1.bf16.msra.mxu0 %v158
  %207 = vmatprep.subr.bf16.mxu0 0
  %208 = vmatpush1.bf16.msra.mxu0 %v159
  %209 = vmatprep.subr.bf16.mxu0 0
  %210 = vmatpush1.bf16.msra.mxu0 %v160
  %211 = vmatprep.subr.bf16.mxu0 0
  %212 = vmatpush1.bf16.msra.mxu0 %v161
  %213 = vmatprep.subr.bf16.mxu0 0
  %214 = vmatpush1.bf16.msra.mxu0 %v162
  %215 = vmatprep.subr.bf16.mxu0 0
  %216 = vmatpush1.bf16.msra.mxu0 0
  %217 = vmatprep.subr.bf16.mxu0 0
  %218 = vmatpush1.bf16.msra.mxu0 0
  %219 = vmatprep.subr.bf16.mxu0 0
  %220 = vmatpush1.bf16.msra.mxu0 0
  %221 = vmatprep.subr.bf16.mxu0 0
  %222 = vmatpush1.bf16.msra.mxu0 0
  %223 = vmatprep.subr.bf16.mxu0 0
  %224 = vmatpush1.bf16.msra.mxu0 0
  %225 = vmatprep.subr.bf16.mxu0 0
  %226 = vmatpush1.bf16.msra.mxu0 0
  %227 = vmatprep.subr.bf16.mxu0 0
  %228 = vmatpush1.bf16.msra.mxu0 0
  %229 = vmatprep.mubr.bf16.mxu0 %v174
  %230 = vmatmul.mubr.bf16.gmra.mrb[0].mxu0 %v94
  %v231 = vpop.f32.mrb[0].mxu0
  %v232 = vadd.f32 0.0, %v231
  %v233 = vpop.f32.mrb[0].mxu0
  %v234 = vpop.f32.mrb[0].mxu0
  %v235 = vadd.f32 0.0, %v234
  %v236 = vpop.f32.mrb[0].mxu0
  %237 = vmatprep.mubr.bf16.mxu0 %v177
  %238 = vmatmul.mubr.bf16.gmra.mrb[0].mxu0 %v96
  %v239 = vpop.f32.mrb[0].mxu0
  %v240 = vadd.f32 0.0, %v239
  %v241 = vpop.f32.mrb[0].mxu0
  %v242 = vpop.f32.mrb[0].mxu0
  %v243 = vadd.f32 0.0, %v242
  %v244 = vpop.f32.mrb[0].mxu0
  %245 = vmatprep.mubr.bf16.mxu0 %v180
  %246 = vmatmul.mubr.bf16.gmra.mrb[0].mxu0 %v98
  %v247 = vpop.f32.mrb[0].mxu0
  %v248 = vadd.f32 0.0, %v247
  %v249 = vpop.f32.mrb[0].mxu0
  %v250 = vpop.f32.mrb[0].mxu0
  %v251 = vadd.f32 0.0, %v250
  %v252 = vpop.f32.mrb[0].mxu0
  %253 = vmatprep.mubr.bf16.mxu0 %v183
  %254 = vmatmul.mubr.bf16.gmra.mrb[0].mxu0 %v100
  %v255 = vpop.f32.mrb[0].mxu0
  %v256 = vadd.f32 0.0, %v255
  %v257 = vpop.f32.mrb[0].mxu0
  %v258 = vpop.f32.mrb[0].mxu0
  %v259 = vadd.f32 0.0, %v258
  %v260 = vpop.f32.mrb[0].mxu0
  %261 = vmatprep.mubr.bf16.mxu0 %v186
  %262 = vmatmul.mubr.bf16.gmra.mrb[0].mxu0 %v102
  %v263 = vpop.f32.mrb[0].mxu0
  %v264 = vadd.f32 0.0, %v263
  %v265 = vpop.f32.mrb[0].mxu0
  %v266 = vpop.f32.mrb[0].mxu0
  %v267 = vadd.f32 0.0, %v266
  %v268 = vpop.f32.mrb[0].mxu0
  %269 = vmatprep.mubr.bf16.mxu0 %v189
  %270 = vmatmul.mubr.bf16.gmra.mrb[0].mxu0 %v104
  %v271 = vpop.f32.mrb[0].mxu0
  %v272 = vadd.f32 0.0, %v271
  %v273 = vpop.f32.mrb[0].mxu0
  %v274 = vpop.f32.mrb[0].mxu0
  %v275 = vadd.f32 0.0, %v274
  %v276 = vpop.f32.mrb[0].mxu0
  %277 = vmatprep.mubr.bf16.mxu0 %v192
  %278 = vmatmul.mubr.bf16.gmra.mrb[0].mxu0 %v106
  %v279 = vpop.f32.mrb[0].mxu0
  %v280 = vadd.f32 0.0, %v279
  %v281 = vpop.f32.mrb[0].mxu0
  %v282 = vpop.f32.mrb[0].mxu0
  %v283 = vadd.f32 0.0, %v282
  %v284 = vpop.f32.mrb[0].mxu0
  %285 = vmatprep.mubr.bf16.mxu0 %v195
  %286 = vmatmul.mubr.bf16.gmra.mrb[0].mxu0 %v108
  %v287 = vpop.f32.mrb[0].mxu0
  %v288 = vadd.f32 0.0, %v287
  %v289 = vpop.f32.mrb[0].mxu0
  %v290 = vpop.f32.mrb[0].mxu0
  %v291 = vadd.f32 0.0, %v290
  %v292 = vpop.f32.mrb[0].mxu0
  %293 = vdwg.mxu0
  %vm294 = vcmask 64512
  %295 = vst.msk [vmem:[%s2] sm:$0xff] %vm294, %v232
  %296 = vst.msk [vmem:[%s2 + $0x8] sm:$0xff] %vm294, %v235
  %297 = vst.msk [vmem:[%s2 + $0x10] sm:$0xff] %vm294, %v240
  %298 = vst.msk [vmem:[%s2 + $0x18] sm:$0xff] %vm294, %v243
  %299 = vst.msk [vmem:[%s2 + $0x20] sm:$0xff] %vm294, %v248
  %300 = vst.msk [vmem:[%s2 + $0x28] sm:$0xff] %vm294, %v251
  %301 = vst.msk [vmem:[%s2 + $0x30] sm:$0xff] %vm294, %v256
  %302 = vst.msk [vmem:[%s2 + $0x38] sm:$0xff] %vm294, %v259
  %303 = vst.msk [vmem:[%s2 + $0x40] sm:$0xff] %vm294, %v264
  %304 = vst.msk [vmem:[%s2 + $0x48] sm:$0xff] %vm294, %v267
  %305 = vst.msk [vmem:[%s2 + $0x50] sm:$0xff] %vm294, %v272
  %306 = vst.msk [vmem:[%s2 + $0x58] sm:$0xff] %vm294, %v275
  %307 = vst.msk [vmem:[%s2 + $0x60] sm:$0xff] %vm294, %v280
  %308 = vst.msk [vmem:[%s2 + $0x68] sm:$0xff] %vm294, %v283
  %309 = vst.msk [vmem:[%s2 + $0x70] sm:$0xff] %vm294, %v288
  %310 = vst.msk [vmem:[%s2 + $0x78] sm:$0xff] %vm294, %v291
  // Predicated region
  $region10: #{densenet_se_forward.28} parent=0 // pred_check
    _
  $region11: #{densenet_se_forward.28} parent=0 // pred_check_branch
    %312 = sbr.rel (0) target = $region13
  $region12: #{densenet_se_forward.28} parent=0 // pred_region
    _
  $region13: #{densenet_se_forward.28} parent=0 // pred_fallthru
    _
  // Predicated region
  $region14: #{densenet_se_forward.28} parent=0 // pred_check
    _
  $region15: #{densenet_se_forward.28} parent=0 // pred_check_branch
    %314 = sbr.rel (0) target = $region17
  $region16: #{densenet_se_forward.28} parent=0 // pred_region
    _
  $region17: #{densenet_se_forward.28} parent=0 // pred_fallthru
    _

// kernel: densenet_se_forward.29
$region0: #{densenet_se_forward.29}
  #allocation0 [shape = 'u32[]', space=smem, size = 0x4, offset = 0x4, fixed_abs, tag = 'smem constant byte address 0x4 - core index']
  #allocation1 [shape = 'u32[144,128]{1,0:T(1,128)}', space=vmem, size = 0x12000, scoped, tag = 'internal scratch']
  %s0 = inlined_call_operand.vmem [shape: f32[128,24], index: 0, kind: input, shape index: {}]
  %s1 = inlined_call_operand.vmem [shape: f32[1,24], index: 1, kind: input, shape index: {}]
  %s2 = inlined_call_operand.vmem [shape: f32[1,24], index: 2, kind: input, shape index: {}]
  %s3 = inlined_call_operand.vmem [shape: bf16[24,16], index: 3, kind: input, shape index: {}]
  %s4 = inlined_call_operand.vmem [shape: f32[1,16], index: 4, kind: input, shape index: {}]
  %s5 = inlined_call_operand.vmem [shape: bf16[128,16], index: 5, kind: output, shape index: {}]
  %s6 = sld [smem:[#allocation0]]
  $region30: #{densenet_se_forward.29} parent=0
    _
  %s8 = ssub.s32 1, %s6
  %s9 = scalar_select 0, %s8, %s6
  // Predicated region
  $region2: #{densenet_se_forward.29} parent=0 // pred_check
    _
  $region3: #{densenet_se_forward.29} parent=0 // pred_check_branch
    %11 = sbr.rel (0) target = $region5
  $region4: #{densenet_se_forward.29} parent=0 // pred_region
    _
  $region5: #{densenet_se_forward.29} parent=0 // pred_fallthru
    _
  // Predicated region
  $region6: #{densenet_se_forward.29} parent=0 // pred_check
    _
  $region7: #{densenet_se_forward.29} parent=0 // pred_check_branch
    %13 = sbr.rel (0) target = $region9
  $region8: #{densenet_se_forward.29} parent=0 // pred_region
    _
  $region9: #{densenet_se_forward.29} parent=0 // pred_fallthru
    _
  // Predicated region
  $region10: #{densenet_se_forward.29} parent=0 // pred_check
    _
  $region11: #{densenet_se_forward.29} parent=0 // pred_check_branch
    %15 = sbr.rel (0) target = $region13
  $region12: #{densenet_se_forward.29} parent=0 // pred_region
    _
  $region13: #{densenet_se_forward.29} parent=0 // pred_fallthru
    _
  // Predicated region
  $region14: #{densenet_se_forward.29} parent=0 // pred_check
    _
  $region15: #{densenet_se_forward.29} parent=0 // pred_check_branch
    %17 = sbr.rel (0) target = $region17
  $region16: #{densenet_se_forward.29} parent=0 // pred_region
    _
  $region17: #{densenet_se_forward.29} parent=0 // pred_fallthru
    _
  // Predicated region
  $region18: #{densenet_se_forward.29} parent=0 // pred_check
    _
  $region19: #{densenet_se_forward.29} parent=0 // pred_check_branch
    %19 = sbr.rel (0) target = $region21
  $region20: #{densenet_se_forward.29} parent=0 // pred_region
    _
  $region21: #{densenet_se_forward.29} parent=0 // pred_fallthru
    _
  %v21 = vld [vmem:[%s0] sm:$0xff]
  %v22 = vld [vmem:[%s0 + $0x8] sm:$0xff]
  %v23 = vld [vmem:[%s0 + $0x10] sm:$0xff]
  %v24 = vld [vmem:[%s0 + $0x18] sm:$0xff]
  %v25 = vld [vmem:[%s0 + $0x20] sm:$0xff]
  %v26 = vld [vmem:[%s0 + $0x28] sm:$0xff]
  %v27 = vld [vmem:[%s0 + $0x30] sm:$0xff]
  %v28 = vld [vmem:[%s0 + $0x38] sm:$0xff]
  %v29 = vld [vmem:[%s0 + $0x40] sm:$0xff]
  %v30 = vld [vmem:[%s0 + $0x48] sm:$0xff]
  %v31 = vld [vmem:[%s0 + $0x50] sm:$0xff]
  %v32 = vld [vmem:[%s0 + $0x58] sm:$0xff]
  %v33 = vld [vmem:[%s0 + $0x60] sm:$0xff]
  %v34 = vld [vmem:[%s0 + $0x68] sm:$0xff]
  %v35 = vld [vmem:[%s0 + $0x70] sm:$0xff]
  %v36 = vld [vmem:[%s0 + $0x78] sm:$0xff]
  %v37 = vld [vmem:[%s1] sm:$0x1]
  %v39 = vlaneseq
  %v40 = vshrl.u32 %v39, 7
  %v41 = vsub.s32 0, %v40
  %v42 = vrot.slane %v37, %v41
  %v44 = vmul.f32 %v21, %v42
  %v45 = vmul.f32 %v22, %v42
  %v46 = vmul.f32 %v23, %v42
  %v47 = vmul.f32 %v24, %v42
  %v48 = vmul.f32 %v25, %v42
  %v49 = vmul.f32 %v26, %v42
  %v50 = vmul.f32 %v27, %v42
  %v51 = vmul.f32 %v28, %v42
  %v52 = vmul.f32 %v29, %v42
  %v53 = vmul.f32 %v30, %v42
  %v54 = vmul.f32 %v31, %v42
  %v55 = vmul.f32 %v32, %v42
  %v56 = vmul.f32 %v33, %v42
  %v57 = vmul.f32 %v34, %v42
  %v58 = vmul.f32 %v35, %v42
  %v59 = vmul.f32 %v36, %v42
  %v60 = vld [vmem:[%s2] sm:$0x1]
  %v62 = vlaneseq
  %v63 = vshrl.u32 %v62, 7
  %v64 = vsub.s32 0, %v63
  %v65 = vrot.slane %v60, %v64
  %v67 = vadd.f32 %v44, %v65
  %v68 = vadd.f32 %v45, %v65
  %v69 = vadd.f32 %v46, %v65
  %v70 = vadd.f32 %v47, %v65
  %v71 = vadd.f32 %v48, %v65
  %v72 = vadd.f32 %v49, %v65
  %v73 = vadd.f32 %v50, %v65
  %v74 = vadd.f32 %v51, %v65
  %v75 = vadd.f32 %v52, %v65
  %v76 = vadd.f32 %v53, %v65
  %v77 = vadd.f32 %v54, %v65
  %v78 = vadd.f32 %v55, %v65
  %v79 = vadd.f32 %v56, %v65
  %v80 = vadd.f32 %v57, %v65
  %v81 = vadd.f32 %v58, %v65
  %v82 = vadd.f32 %v59, %v65
  %v83 = vmax.f32 %v67, 0.0
  %v84 = vmax.f32 %v68, 0.0
  %v85 = vmax.f32 %v69, 0.0
  %v86 = vmax.f32 %v70, 0.0
  %v87 = vmax.f32 %v71, 0.0
  %v88 = vmax.f32 %v72, 0.0
  %v89 = vmax.f32 %v73, 0.0
  %v90 = vmax.f32 %v74, 0.0
  %v91 = vmax.f32 %v75, 0.0
  %v92 = vmax.f32 %v76, 0.0
  %v93 = vmax.f32 %v77, 0.0
  %v94 = vmax.f32 %v78, 0.0
  %v95 = vmax.f32 %v79, 0.0
  %v96 = vmax.f32 %v80, 0.0
  %v97 = vmax.f32 %v81, 0.0
  %v98 = vmax.f32 %v82, 0.0
  %v99 = vpack.c.bf16 %v84, %v83
  %v100 = vpack.c.bf16 %v86, %v85
  %v101 = vpack.c.bf16 %v88, %v87
  %v102 = vpack.c.bf16 %v90, %v89
  %v103 = vpack.c.bf16 %v92, %v91
  %v104 = vpack.c.bf16 %v94, %v93
  %v105 = vpack.c.bf16 %v96, %v95
  %v106 = vpack.c.bf16 %v98, %v97
  %v107 = vld [vmem:[%s3] sm:$0xf]
  %v108 = vld [vmem:[%s3 + $0x4] sm:$0xf]
  %v109 = vld [vmem:[%s3 + $0x8] sm:$0xf]
  %v110 = vld [vmem:[%s4] sm:$0x1]
  %v112 = vlaneseq
  %v113 = vshrl.u32 %v112, 7
  %v114 = vsub.s32 0, %v113
  %v115 = vrot.slane %v110, %v114
  %v120 = vunpack.c.l.b16 %v107
  %v121 = vunpack.c.l.b16 %v108
  %v122 = vunpack.c.l.b16 %v109
  %v123 = vpack.c.b16 %v121, %v120
  %v124 = vpack.c.b16 %v122, %v122
  %vm126 = vcmask 195584
  %v128 = vsel %vm126, %v99, 0
  %v131 = vsel %vm126, %v100, 0
  %v134 = vsel %vm126, %v101, 0
  %v137 = vsel %vm126, %v102, 0
  %v140 = vsel %vm126, %v103, 0
  %v143 = vsel %vm126, %v104, 0
  %v146 = vsel %vm126, %v105, 0
  %v149 = vsel %vm126, %v106, 0
  %vm151 = vcmask 1043456
  %v153 = vsel %vm151, %v124, 0
  %155 = vmatprep.subr.bf16.mxu0 0
  %156 = vmatpush1.bf16.msra.mxu0 %v123
  %157 = vmatprep.subr.bf16.mxu0 0
  %158 = vmatpush1.bf16.msra.mxu0 %v153
  %159 = vmatprep.subr.bf16.mxu0 0
  %160 = vmatpush1.bf16.msra.mxu0 0
  %161 = vmatprep.subr.bf16.mxu0 0
  %162 = vmatpush1.bf16.msra.mxu0 0
  %163 = vmatprep.subr.bf16.mxu0 0
  %164 = vmatpush1.bf16.msra.mxu0 0
  %165 = vmatprep.subr.bf16.mxu0 0
  %166 = vmatpush1.bf16.msra.mxu0 0
  %167 = vmatprep.subr.bf16.mxu0 0
  %168 = vmatpush1.bf16.msra.mxu0 0
  %169 = vmatprep.subr.bf16.mxu0 0
  %170 = vmatpush1.bf16.msra.mxu0 0
  %171 = vmatprep.subr.bf16.mxu0 0
  %172 = vmatpush1.bf16.msra.mxu0 0
  %173 = vmatprep.subr.bf16.mxu0 0
  %174 = vmatpush1.bf16.msra.mxu0 0
  %175 = vmatprep.subr.bf16.mxu0 0
  %176 = vmatpush1.bf16.msra.mxu0 0
  %177 = vmatprep.subr.bf16.mxu0 0
  %178 = vmatpush1.bf16.msra.mxu0 0
  %179 = vmatprep.subr.bf16.mxu0 0
  %180 = vmatpush1.bf16.msra.mxu0 0
  %181 = vmatprep.subr.bf16.mxu0 0
  %182 = vmatpush1.bf16.msra.mxu0 0
  %183 = vmatprep.subr.bf16.mxu0 0
  %184 = vmatpush1.bf16.msra.mxu0 0
  %185 = vmatprep.subr.bf16.mxu0 0
  %186 = vmatpush1.bf16.msra.mxu0 0
  %187 = vmatprep.mubr.bf16.mxu0 0
  %188 = vmatmul.mubr.bf16.gmra.mrb[0].mxu0 %v128
  %v189 = vpop.f32.mrb[0].mxu0
  %v190 = vadd.f32 %v115, %v189
  %v191 = vpop.f32.mrb[0].mxu0
  %v192 = vpop.f32.mrb[0].mxu0
  %v193 = vadd.f32 %v115, %v192
  %v194 = vpop.f32.mrb[0].mxu0
  %195 = vmatprep.mubr.bf16.mxu0 0
  %196 = vmatmul.mubr.bf16.gmra.mrb[0].mxu0 %v131
  %v197 = vpop.f32.mrb[0].mxu0
  %v198 = vadd.f32 %v115, %v197
  %v199 = vpop.f32.mrb[0].mxu0
  %v200 = vpop.f32.mrb[0].mxu0
  %v201 = vadd.f32 %v115, %v200
  %v202 = vpop.f32.mrb[0].mxu0
  %203 = vmatprep.mubr.bf16.mxu0 0
  %204 = vmatmul.mubr.bf16.gmra.mrb[0].mxu0 %v134
  %v205 = vpop.f32.mrb[0].mxu0
  %v206 = vadd.f32 %v115, %v205
  %v207 = vpop.f32.mrb[0].mxu0
  %v208 = vpop.f32.mrb[0].mxu0
  %v209 = vadd.f32 %v115, %v208
  %v210 = vpop.f32.mrb[0].mxu0
  %211 = vmatprep.mubr.bf16.mxu0 0
  %212 = vmatmul.mubr.bf16.gmra.mrb[0].mxu0 %v137
  %v213 = vpop.f32.mrb[0].mxu0
  %v214 = vadd.f32 %v115, %v213
  %v215 = vpop.f32.mrb[0].mxu0
  %v216 = vpop.f32.mrb[0].mxu0
  %v217 = vadd.f32 %v115, %v216
  %v218 = vpop.f32.mrb[0].mxu0
  %219 = vmatprep.mubr.bf16.mxu0 0
  %220 = vmatmul.mubr.bf16.gmra.mrb[0].mxu0 %v140
  %v221 = vpop.f32.mrb[0].mxu0
  %v222 = vadd.f32 %v115, %v221
  %v223 = vpop.f32.mrb[0].mxu0
  %v224 = vpop.f32.mrb[0].mxu0
  %v225 = vadd.f32 %v115, %v224
  %v226 = vpop.f32.mrb[0].mxu0
  %227 = vmatprep.mubr.bf16.mxu0 0
  %228 = vmatmul.mubr.bf16.gmra.mrb[0].mxu0 %v143
  %v229 = vpop.f32.mrb[0].mxu0
  %v230 = vadd.f32 %v115, %v229
  %v231 = vpop.f32.mrb[0].mxu0
  %v232 = vpop.f32.mrb[0].mxu0
  %v233 = vadd.f32 %v115, %v232
  %v234 = vpop.f32.mrb[0].mxu0
  %235 = vmatprep.mubr.bf16.mxu0 0
  %236 = vmatmul.mubr.bf16.gmra.mrb[0].mxu0 %v146
  %v237 = vpop.f32.mrb[0].mxu0
  %v238 = vadd.f32 %v115, %v237
  %v239 = vpop.f32.mrb[0].mxu0
  %v240 = vpop.f32.mrb[0].mxu0
  %v241 = vadd.f32 %v115, %v240
  %v242 = vpop.f32.mrb[0].mxu0
  %243 = vmatprep.mubr.bf16.mxu0 0
  %244 = vmatmul.mubr.bf16.gmra.mrb[0].mxu0 %v149
  %v245 = vpop.f32.mrb[0].mxu0
  %v246 = vadd.f32 %v115, %v245
  %v247 = vpop.f32.mrb[0].mxu0
  %v248 = vpop.f32.mrb[0].mxu0
  %v249 = vadd.f32 %v115, %v248
  %v250 = vpop.f32.mrb[0].mxu0
  %251 = vdwg.mxu0
  %v252 = vmax.f32 %v190, 0.0
  %v253 = vmax.f32 %v193, 0.0
  %v254 = vmax.f32 %v198, 0.0
  %v255 = vmax.f32 %v201, 0.0
  %v256 = vmax.f32 %v206, 0.0
  %v257 = vmax.f32 %v209, 0.0
  %v258 = vmax.f32 %v214, 0.0
  %v259 = vmax.f32 %v217, 0.0
  %v260 = vmax.f32 %v222, 0.0
  %v261 = vmax.f32 %v225, 0.0
  %v262 = vmax.f32 %v230, 0.0
  %v263 = vmax.f32 %v233, 0.0
  %v264 = vmax.f32 %v238, 0.0
  %v265 = vmax.f32 %v241, 0.0
  %v266 = vmax.f32 %v246, 0.0
  %v267 = vmax.f32 %v249, 0.0
  %v268 = vpack.c.bf16 %v253, %v252
  %v269 = vpack.c.bf16 %v255, %v254
  %v270 = vpack.c.bf16 %v257, %v256
  %v271 = vpack.c.bf16 %v259, %v258
  %v272 = vpack.c.bf16 %v261, %v260
  %v273 = vpack.c.bf16 %v263, %v262
  %v274 = vpack.c.bf16 %v265, %v264
  %v275 = vpack.c.bf16 %v267, %v266
  %v284 = vunpack.c.l.b16 %v268
  %v285 = vunpack.c.h.b16 %v268
  %v286 = vunpack.c.l.b16 %v269
  %v287 = vunpack.c.h.b16 %v269
  %v288 = vunpack.c.l.b16 %v270
  %v289 = vunpack.c.h.b16 %v270
  %v290 = vunpack.c.l.b16 %v271
  %v291 = vunpack.c.h.b16 %v271
  %v292 = vunpack.c.l.b16 %v272
  %v293 = vunpack.c.h.b16 %v272
  %v294 = vunpack.c.l.b16 %v273
  %v295 = vunpack.c.h.b16 %v273
  %v296 = vunpack.c.l.b16 %v274
  %v297 = vunpack.c.h.b16 %v274
  %v298 = vunpack.c.l.b16 %v275
  %v299 = vunpack.c.h.b16 %v275
  %v300 = vpack.c.b16 %v284, %v284
  %v301 = vpack.c.b16 %v285, %v285
  %v302 = vpack.c.b16 %v286, %v286
  %v303 = vpack.c.b16 %v287, %v287
  %v304 = vpack.c.b16 %v288, %v288
  %v305 = vpack.c.b16 %v289, %v289
  %v306 = vpack.c.b16 %v290, %v290
  %v307 = vpack.c.b16 %v291, %v291
  %v308 = vpack.c.b16 %v292, %v292
  %v309 = vpack.c.b16 %v293, %v293
  %v310 = vpack.c.b16 %v294, %v294
  %v311 = vpack.c.b16 %v295, %v295
  %v312 = vpack.c.b16 %v296, %v296
  %v313 = vpack.c.b16 %v297, %v297
  %v314 = vpack.c.b16 %v298, %v298
  %v315 = vpack.c.b16 %v299, %v299
  %vm332 = vcmask 125952
  %333 = vst.msk [vmem:[%s5] sm:$0xf] %vm332, %v300
  %334 = vst.msk [vmem:[%s5 + $0x4] sm:$0xf] %vm332, %v301
  %335 = vst.msk [vmem:[%s5 + $0x8] sm:$0xf] %vm332, %v302
  %336 = vst.msk [vmem:[%s5 + $0xc] sm:$0xf] %vm332, %v303
  %337 = vst.msk [vmem:[%s5 + $0x10] sm:$0xf] %vm332, %v304
  %338 = vst.msk [vmem:[%s5 + $0x14] sm:$0xf] %vm332, %v305
  %339 = vst.msk [vmem:[%s5 + $0x18] sm:$0xf] %vm332, %v306
  %340 = vst.msk [vmem:[%s5 + $0x1c] sm:$0xf] %vm332, %v307
  %341 = vst.msk [vmem:[%s5 + $0x20] sm:$0xf] %vm332, %v308
  %342 = vst.msk [vmem:[%s5 + $0x24] sm:$0xf] %vm332, %v309
  %343 = vst.msk [vmem:[%s5 + $0x28] sm:$0xf] %vm332, %v310
  %344 = vst.msk [vmem:[%s5 + $0x2c] sm:$0xf] %vm332, %v311
  %345 = vst.msk [vmem:[%s5 + $0x30] sm:$0xf] %vm332, %v312
  %346 = vst.msk [vmem:[%s5 + $0x34] sm:$0xf] %vm332, %v313
  %347 = vst.msk [vmem:[%s5 + $0x38] sm:$0xf] %vm332, %v314
  %348 = vst.msk [vmem:[%s5 + $0x3c] sm:$0xf] %vm332, %v315
  // Predicated region
  $region22: #{densenet_se_forward.29} parent=0 // pred_check
    _
  $region23: #{densenet_se_forward.29} parent=0 // pred_check_branch
    %350 = sbr.rel (0) target = $region25
  $region24: #{densenet_se_forward.29} parent=0 // pred_region
    _
  $region25: #{densenet_se_forward.29} parent=0 // pred_fallthru
    _
  // Predicated region
  $region26: #{densenet_se_forward.29} parent=0 // pred_check
    _
  $region27: #{densenet_se_forward.29} parent=0 // pred_check_branch
    %352 = sbr.rel (0) target = $region29
  $region28: #{densenet_se_forward.29} parent=0 // pred_region
    _
  $region29: #{densenet_se_forward.29} parent=0 // pred_fallthru
    _

// kernel: densenet_se_forward.31
$region0: #{densenet_se_forward.31}
  #allocation0 [shape = 'u32[]', space=smem, size = 0x4, offset = 0x4, fixed_abs, tag = 'smem constant byte address 0x4 - core index']
  #allocation1 [shape = 'u32[144,128]{1,0:T(1,128)}', space=vmem, size = 0x12000, scoped, tag = 'internal scratch']
  %s0 = inlined_call_operand.vmem [shape: f32[128,32], index: 0, kind: input, shape index: {}]
  %s1 = inlined_call_operand.vmem [shape: f32[1,32], index: 1, kind: input, shape index: {}]
  %s2 = inlined_call_operand.vmem [shape: f32[1,32], index: 2, kind: input, shape index: {}]
  %s3 = inlined_call_operand.vmem [shape: bf16[32,16], index: 3, kind: input, shape index: {}]
  %s4 = inlined_call_operand.vmem [shape: f32[128,32], index: 4, kind: output, shape index: {0}]
  %s5 = inlined_call_operand.vmem [shape: f32[128,16], index: 5, kind: output, shape index: {1}]
  %6 = xla_tuple %s4, %s5
  %s7 = sld [smem:[#allocation0]]
  $region34: #{densenet_se_forward.31} parent=0
    _
  %s9 = ssub.s32 1, %s7
  %s10 = scalar_select 0, %s9, %s7
  // Predicated region
  $region2: #{densenet_se_forward.31} parent=0 // pred_check
    _
  $region3: #{densenet_se_forward.31} parent=0 // pred_check_branch
    %12 = sbr.rel (0) target = $region5
  $region4: #{densenet_se_forward.31} parent=0 // pred_region
    _
  $region5: #{densenet_se_forward.31} parent=0 // pred_fallthru
    _
  // Predicated region
  $region6: #{densenet_se_forward.31} parent=0 // pred_check
    _
  $region7: #{densenet_se_forward.31} parent=0 // pred_check_branch
    %14 = sbr.rel (0) target = $region9
  $region8: #{densenet_se_forward.31} parent=0 // pred_region
    _
  $region9: #{densenet_se_forward.31} parent=0 // pred_fallthru
    _
  // Predicated region
  $region10: #{densenet_se_forward.31} parent=0 // pred_check
    _
  $region11: #{densenet_se_forward.31} parent=0 // pred_check_branch
    %16 = sbr.rel (0) target = $region13
  $region12: #{densenet_se_forward.31} parent=0 // pred_region
    _
  $region13: #{densenet_se_forward.31} parent=0 // pred_fallthru
    _
  // Predicated region
  $region14: #{densenet_se_forward.31} parent=0 // pred_check
    _
  $region15: #{densenet_se_forward.31} parent=0 // pred_check_branch
    %18 = sbr.rel (0) target = $region17
  $region16: #{densenet_se_forward.31} parent=0 // pred_region
    _
  $region17: #{densenet_se_forward.31} parent=0 // pred_fallthru
    _
  %v20 = vld [vmem:[%s0] sm:$0xff]
  %v21 = vld [vmem:[%s0 + $0x8] sm:$0xff]
  %v22 = vld [vmem:[%s0 + $0x10] sm:$0xff]
  %v23 = vld [vmem:[%s0 + $0x18] sm:$0xff]
  %v24 = vld [vmem:[%s0 + $0x20] sm:$0xff]
  %v25 = vld [vmem:[%s0 + $0x28] sm:$0xff]
  %v26 = vld [vmem:[%s0 + $0x30] sm:$0xff]
  %v27 = vld [vmem:[%s0 + $0x38] sm:$0xff]
  %v28 = vld [vmem:[%s0 + $0x40] sm:$0xff]
  %v29 = vld [vmem:[%s0 + $0x48] sm:$0xff]
  %v30 = vld [vmem:[%s0 + $0x50] sm:$0xff]
  %v31 = vld [vmem:[%s0 + $0x58] sm:$0xff]
  %v32 = vld [vmem:[%s0 + $0x60] sm:$0xff]
  %v33 = vld [vmem:[%s0 + $0x68] sm:$0xff]
  %v34 = vld [vmem:[%s0 + $0x70] sm:$0xff]
  %v35 = vld [vmem:[%s0 + $0x78] sm:$0xff]
  %v36 = vld [vmem:[%s1] sm:$0x1]
  %v38 = vlaneseq
  %v39 = vshrl.u32 %v38, 7
  %v40 = vsub.s32 0, %v39
  %v41 = vrot.slane %v36, %v40
  %v43 = vmul.f32 %v20, %v41
  %v44 = vmul.f32 %v21, %v41
  %v45 = vmul.f32 %v22, %v41
  %v46 = vmul.f32 %v23, %v41
  %v47 = vmul.f32 %v24, %v41
  %v48 = vmul.f32 %v25, %v41
  %v49 = vmul.f32 %v26, %v41
  %v50 = vmul.f32 %v27, %v41
  %v51 = vmul.f32 %v28, %v41
  %v52 = vmul.f32 %v29, %v41
  %v53 = vmul.f32 %v30, %v41
  %v54 = vmul.f32 %v31, %v41
  %v55 = vmul.f32 %v32, %v41
  %v56 = vmul.f32 %v33, %v41
  %v57 = vmul.f32 %v34, %v41
  %v58 = vmul.f32 %v35, %v41
  %v59 = vld [vmem:[%s2] sm:$0x1]
  %v61 = vlaneseq
  %v62 = vshrl.u32 %v61, 7
  %v63 = vsub.s32 0, %v62
  %v64 = vrot.slane %v59, %v63
  %v66 = vadd.f32 %v43, %v64
  %v67 = vadd.f32 %v44, %v64
  %v68 = vadd.f32 %v45, %v64
  %v69 = vadd.f32 %v46, %v64
  %v70 = vadd.f32 %v47, %v64
  %v71 = vadd.f32 %v48, %v64
  %v72 = vadd.f32 %v49, %v64
  %v73 = vadd.f32 %v50, %v64
  %v74 = vadd.f32 %v51, %v64
  %v75 = vadd.f32 %v52, %v64
  %v76 = vadd.f32 %v53, %v64
  %v77 = vadd.f32 %v54, %v64
  %v78 = vadd.f32 %v55, %v64
  %v79 = vadd.f32 %v56, %v64
  %v80 = vadd.f32 %v57, %v64
  %v81 = vadd.f32 %v58, %v64
  %v82 = vmax.f32 %v66, 0.0
  %v83 = vmax.f32 %v67, 0.0
  %v84 = vmax.f32 %v68, 0.0
  %v85 = vmax.f32 %v69, 0.0
  %v86 = vmax.f32 %v70, 0.0
  %v87 = vmax.f32 %v71, 0.0
  %v88 = vmax.f32 %v72, 0.0
  %v89 = vmax.f32 %v73, 0.0
  %v90 = vmax.f32 %v74, 0.0
  %v91 = vmax.f32 %v75, 0.0
  %v92 = vmax.f32 %v76, 0.0
  %v93 = vmax.f32 %v77, 0.0
  %v94 = vmax.f32 %v78, 0.0
  %v95 = vmax.f32 %v79, 0.0
  %v96 = vmax.f32 %v80, 0.0
  %v97 = vmax.f32 %v81, 0.0
  %vm98 = vcmask 261120
  %99 = vst.msk [vmem:[%s4] sm:$0xff] %vm98, %v82
  %100 = vst.msk [vmem:[%s4 + $0x8] sm:$0xff] %vm98, %v83
  %101 = vst.msk [vmem:[%s4 + $0x10] sm:$0xff] %vm98, %v84
  %102 = vst.msk [vmem:[%s4 + $0x18] sm:$0xff] %vm98, %v85
  %103 = vst.msk [vmem:[%s4 + $0x20] sm:$0xff] %vm98, %v86
  %104 = vst.msk [vmem:[%s4 + $0x28] sm:$0xff] %vm98, %v87
  %105 = vst.msk [vmem:[%s4 + $0x30] sm:$0xff] %vm98, %v88
  %106 = vst.msk [vmem:[%s4 + $0x38] sm:$0xff] %vm98, %v89
  %107 = vst.msk [vmem:[%s4 + $0x40] sm:$0xff] %vm98, %v90
  %108 = vst.msk [vmem:[%s4 + $0x48] sm:$0xff] %vm98, %v91
  %109 = vst.msk [vmem:[%s4 + $0x50] sm:$0xff] %vm98, %v92
  %110 = vst.msk [vmem:[%s4 + $0x58] sm:$0xff] %vm98, %v93
  %111 = vst.msk [vmem:[%s4 + $0x60] sm:$0xff] %vm98, %v94
  %112 = vst.msk [vmem:[%s4 + $0x68] sm:$0xff] %vm98, %v95
  %113 = vst.msk [vmem:[%s4 + $0x70] sm:$0xff] %vm98, %v96
  %114 = vst.msk [vmem:[%s4 + $0x78] sm:$0xff] %vm98, %v97
  %v115 = vpack.c.bf16 %v83, %v82
  %v116 = vpack.c.bf16 %v85, %v84
  %v117 = vpack.c.bf16 %v87, %v86
  %v118 = vpack.c.bf16 %v89, %v88
  %v119 = vpack.c.bf16 %v91, %v90
  %v120 = vpack.c.bf16 %v93, %v92
  %v121 = vpack.c.bf16 %v95, %v94
  %v122 = vpack.c.bf16 %v97, %v96
  %v123 = vld [vmem:[%s3] sm:$0xf]
  %v124 = vld [vmem:[%s3 + $0x4] sm:$0xf]
  %v125 = vld [vmem:[%s3 + $0x8] sm:$0xf]
  %v126 = vld [vmem:[%s3 + $0xc] sm:$0xf]
  %v131 = vunpack.c.l.b16 %v123
  %v132 = vunpack.c.l.b16 %v124
  %v133 = vunpack.c.l.b16 %v125
  %v134 = vunpack.c.l.b16 %v126
  %v135 = vpack.c.b16 %v132, %v131
  %v136 = vpack.c.b16 %v134, %v133
  %v140 = vsel %vm98, %v115, 0
  %v143 = vsel %vm98, %v116, 0
  %v146 = vsel %vm98, %v117, 0
  %v149 = vsel %vm98, %v118, 0
  %v152 = vsel %vm98, %v119, 0
  %v155 = vsel %vm98, %v120, 0
  %v158 = vsel %vm98, %v121, 0
  %v161 = vsel %vm98, %v122, 0
  %163 = vmatprep.subr.bf16.mxu0 0
  %164 = vmatpush1.bf16.msra.mxu0 %v135
  %165 = vmatprep.subr.bf16.mxu0 0
  %166 = vmatpush1.bf16.msra.mxu0 %v136
  %167 = vmatprep.subr.bf16.mxu0 0
  %168 = vmatpush1.bf16.msra.mxu0 0
  %169 = vmatprep.subr.bf16.mxu0 0
  %170 = vmatpush1.bf16.msra.mxu0 0
  %171 = vmatprep.subr.bf16.mxu0 0
  %172 = vmatpush1.bf16.msra.mxu0 0
  %173 = vmatprep.subr.bf16.mxu0 0
  %174 = vmatpush1.bf16.msra.mxu0 0
  %175 = vmatprep.subr.bf16.mxu0 0
  %176 = vmatpush1.bf16.msra.mxu0 0
  %177 = vmatprep.subr.bf16.mxu0 0
  %178 = vmatpush1.bf16.msra.mxu0 0
  %179 = vmatprep.subr.bf16.mxu0 0
  %180 = vmatpush1.bf16.msra.mxu0 0
  %181 = vmatprep.subr.bf16.mxu0 0
  %182 = vmatpush1.bf16.msra.mxu0 0
  %183 = vmatprep.subr.bf16.mxu0 0
  %184 = vmatpush1.bf16.msra.mxu0 0
  %185 = vmatprep.subr.bf16.mxu0 0
  %186 = vmatpush1.bf16.msra.mxu0 0
  %187 = vmatprep.subr.bf16.mxu0 0
  %188 = vmatpush1.bf16.msra.mxu0 0
  %189 = vmatprep.subr.bf16.mxu0 0
  %190 = vmatpush1.bf16.msra.mxu0 0
  %191 = vmatprep.subr.bf16.mxu0 0
  %192 = vmatpush1.bf16.msra.mxu0 0
  %193 = vmatprep.subr.bf16.mxu0 0
  %194 = vmatpush1.bf16.msra.mxu0 0
  %195 = vmatprep.mubr.bf16.mxu0 0
  %196 = vmatmul.mubr.bf16.gmra.mrb[0].mxu0 %v140
  %v197 = vpop.f32.mrb[0].mxu0
  %v198 = vadd.f32 0.0, %v197
  %v199 = vpop.f32.mrb[0].mxu0
  %v200 = vpop.f32.mrb[0].mxu0
  %v201 = vadd.f32 0.0, %v200
  %v202 = vpop.f32.mrb[0].mxu0
  %203 = vmatprep.mubr.bf16.mxu0 0
  %204 = vmatmul.mubr.bf16.gmra.mrb[0].mxu0 %v143
  %v205 = vpop.f32.mrb[0].mxu0
  %v206 = vadd.f32 0.0, %v205
  %v207 = vpop.f32.mrb[0].mxu0
  %v208 = vpop.f32.mrb[0].mxu0
  %v209 = vadd.f32 0.0, %v208
  %v210 = vpop.f32.mrb[0].mxu0
  %211 = vmatprep.mubr.bf16.mxu0 0
  %212 = vmatmul.mubr.bf16.gmra.mrb[0].mxu0 %v146
  %v213 = vpop.f32.mrb[0].mxu0
  %v214 = vadd.f32 0.0, %v213
  %v215 = vpop.f32.mrb[0].mxu0
  %v216 = vpop.f32.mrb[0].mxu0
  %v217 = vadd.f32 0.0, %v216
  %v218 = vpop.f32.mrb[0].mxu0
  %219 = vmatprep.mubr.bf16.mxu0 0
  %220 = vmatmul.mubr.bf16.gmra.mrb[0].mxu0 %v149
  %v221 = vpop.f32.mrb[0].mxu0
  %v222 = vadd.f32 0.0, %v221
  %v223 = vpop.f32.mrb[0].mxu0
  %v224 = vpop.f32.mrb[0].mxu0
  %v225 = vadd.f32 0.0, %v224
  %v226 = vpop.f32.mrb[0].mxu0
  %227 = vmatprep.mubr.bf16.mxu0 0
  %228 = vmatmul.mubr.bf16.gmra.mrb[0].mxu0 %v152
  %v229 = vpop.f32.mrb[0].mxu0
  %v230 = vadd.f32 0.0, %v229
  %v231 = vpop.f32.mrb[0].mxu0
  %v232 = vpop.f32.mrb[0].mxu0
  %v233 = vadd.f32 0.0, %v232
  %v234 = vpop.f32.mrb[0].mxu0
  %235 = vmatprep.mubr.bf16.mxu0 0
  %236 = vmatmul.mubr.bf16.gmra.mrb[0].mxu0 %v155
  %v237 = vpop.f32.mrb[0].mxu0
  %v238 = vadd.f32 0.0, %v237
  %v239 = vpop.f32.mrb[0].mxu0
  %v240 = vpop.f32.mrb[0].mxu0
  %v241 = vadd.f32 0.0, %v240
  %v242 = vpop.f32.mrb[0].mxu0
  %243 = vmatprep.mubr.bf16.mxu0 0
  %244 = vmatmul.mubr.bf16.gmra.mrb[0].mxu0 %v158
  %v245 = vpop.f32.mrb[0].mxu0
  %v246 = vadd.f32 0.0, %v245
  %v247 = vpop.f32.mrb[0].mxu0
  %v248 = vpop.f32.mrb[0].mxu0
  %v249 = vadd.f32 0.0, %v248
  %v250 = vpop.f32.mrb[0].mxu0
  %251 = vmatprep.mubr.bf16.mxu0 0
  %252 = vmatmul.mubr.bf16.gmra.mrb[0].mxu0 %v161
  %v253 = vpop.f32.mrb[0].mxu0
  %v254 = vadd.f32 0.0, %v253
  %v255 = vpop.f32.mrb[0].mxu0
  %v256 = vpop.f32.mrb[0].mxu0
  %v257 = vadd.f32 0.0, %v256
  %v258 = vpop.f32.mrb[0].mxu0
  %259 = vdwg.mxu0
  %vm260 = vcmask 130048
  %261 = vst.msk [vmem:[%s5] sm:$0xff] %vm260, %v198
  %262 = vst.msk [vmem:[%s5 + $0x8] sm:$0xff] %vm260, %v201
  %263 = vst.msk [vmem:[%s5 + $0x10] sm:$0xff] %vm260, %v206
  %264 = vst.msk [vmem:[%s5 + $0x18] sm:$0xff] %vm260, %v209
  %265 = vst.msk [vmem:[%s5 + $0x20] sm:$0xff] %vm260, %v214
  %266 = vst.msk [vmem:[%s5 + $0x28] sm:$0xff] %vm260, %v217
  %267 = vst.msk [vmem:[%s5 + $0x30] sm:$0xff] %vm260, %v222
  %268 = vst.msk [vmem:[%s5 + $0x38] sm:$0xff] %vm260, %v225
  %269 = vst.msk [vmem:[%s5 + $0x40] sm:$0xff] %vm260, %v230
  %270 = vst.msk [vmem:[%s5 + $0x48] sm:$0xff] %vm260, %v233
  %271 = vst.msk [vmem:[%s5 + $0x50] sm:$0xff] %vm260, %v238
  %272 = vst.msk [vmem:[%s5 + $0x58] sm:$0xff] %vm260, %v241
  %273 = vst.msk [vmem:[%s5 + $0x60] sm:$0xff] %vm260, %v246
  %274 = vst.msk [vmem:[%s5 + $0x68] sm:$0xff] %vm260, %v249
  %275 = vst.msk [vmem:[%s5 + $0x70] sm:$0xff] %vm260, %v254
  %276 = vst.msk [vmem:[%s5 + $0x78] sm:$0xff] %vm260, %v257
  // Predicated region
  $region18: #{densenet_se_forward.31} parent=0 // pred_check
    _
  $region19: #{densenet_se_forward.31} parent=0 // pred_check_branch
    %278 = sbr.rel (0) target = $region21
  $region20: #{densenet_se_forward.31} parent=0 // pred_region
    _
  $region21: #{densenet_se_forward.31} parent=0 // pred_fallthru
    _
  // Predicated region
  $region22: #{densenet_se_forward.31} parent=0 // pred_check
    _
  $region23: #{densenet_se_forward.31} parent=0 // pred_check_branch
    %280 = sbr.rel (0) target = $region25
  $region24: #{densenet_se_forward.31} parent=0 // pred_region
    _
  $region25: #{densenet_se_forward.31} parent=0 // pred_fallthru
    _
  // Predicated region
  $region26: #{densenet_se_forward.31} parent=0 // pred_check
    _
  $region27: #{densenet_se_forward.31} parent=0 // pred_check_branch
    %282 = sbr.rel (0) target = $region29
  $region28: #{densenet_se_forward.31} parent=0 // pred_region
    _
  $region29: #{densenet_se_forward.31} parent=0 // pred_fallthru
    _
  // Predicated region
  $region30: #{densenet_se_forward.31} parent=0 // pred_check
    _
  $region31: #{densenet_se_forward.31} parent=0 // pred_check_branch
    %284 = sbr.rel (0) target = $region33
  $region32: #{densenet_se_forward.31} parent=0 // pred_region
    _
  $region33: #{densenet_se_forward.31} parent=0 // pred_fallthru
    _

// kernel: densenet_se_forward.33
$region0: #{densenet_se_forward.33}
  #allocation0 [shape = 'u32[]', space=smem, size = 0x4, offset = 0x4, fixed_abs, tag = 'smem constant byte address 0x4 - core index']
  #allocation1 [shape = 'u32[144,128]{1,0:T(1,128)}', space=vmem, size = 0x12000, scoped, tag = 'internal scratch']
  %s0 = inlined_call_operand.vmem [shape: f32[32,16], index: 0, kind: input, shape index: {}]
  %s1 = inlined_call_operand.vmem [shape: f32[1,16], index: 1, kind: input, shape index: {}]
  %s2 = inlined_call_operand.vmem [shape: f32[1,16], index: 2, kind: input, shape index: {}]
  %s3 = inlined_call_operand.vmem [shape: bf16[16,16], index: 3, kind: input, shape index: {}]
  %s4 = inlined_call_operand.vmem [shape: f32[1,16], index: 4, kind: input, shape index: {}]
  %s5 = inlined_call_operand.vmem [shape: bf16[32,16], index: 5, kind: output, shape index: {}]
  %s6 = sld [smem:[#allocation0]]
  $region30: #{densenet_se_forward.33} parent=0
    _
  %s8 = ssub.s32 1, %s6
  %s9 = scalar_select 0, %s8, %s6
  // Predicated region
  $region2: #{densenet_se_forward.33} parent=0 // pred_check
    _
  $region3: #{densenet_se_forward.33} parent=0 // pred_check_branch
    %11 = sbr.rel (0) target = $region5
  $region4: #{densenet_se_forward.33} parent=0 // pred_region
    _
  $region5: #{densenet_se_forward.33} parent=0 // pred_fallthru
    _
  // Predicated region
  $region6: #{densenet_se_forward.33} parent=0 // pred_check
    _
  $region7: #{densenet_se_forward.33} parent=0 // pred_check_branch
    %13 = sbr.rel (0) target = $region9
  $region8: #{densenet_se_forward.33} parent=0 // pred_region
    _
  $region9: #{densenet_se_forward.33} parent=0 // pred_fallthru
    _
  // Predicated region
  $region10: #{densenet_se_forward.33} parent=0 // pred_check
    _
  $region11: #{densenet_se_forward.33} parent=0 // pred_check_branch
    %15 = sbr.rel (0) target = $region13
  $region12: #{densenet_se_forward.33} parent=0 // pred_region
    _
  $region13: #{densenet_se_forward.33} parent=0 // pred_fallthru
    _
  // Predicated region
  $region14: #{densenet_se_forward.33} parent=0 // pred_check
    _
  $region15: #{densenet_se_forward.33} parent=0 // pred_check_branch
    %17 = sbr.rel (0) target = $region17
  $region16: #{densenet_se_forward.33} parent=0 // pred_region
    _
  $region17: #{densenet_se_forward.33} parent=0 // pred_fallthru
    _
  // Predicated region
  $region18: #{densenet_se_forward.33} parent=0 // pred_check
    _
  $region19: #{densenet_se_forward.33} parent=0 // pred_check_branch
    %19 = sbr.rel (0) target = $region21
  $region20: #{densenet_se_forward.33} parent=0 // pred_region
    _
  $region21: #{densenet_se_forward.33} parent=0 // pred_fallthru
    _
  %v21 = vld [vmem:[%s0] sm:$0xff]
  %v22 = vld [vmem:[%s0 + $0x8] sm:$0xff]
  %v23 = vld [vmem:[%s0 + $0x10] sm:$0xff]
  %v24 = vld [vmem:[%s0 + $0x18] sm:$0xff]
  %v25 = vld [vmem:[%s1] sm:$0x1]
  %v27 = vlaneseq
  %v28 = vshrl.u32 %v27, 7
  %v29 = vsub.s32 0, %v28
  %v30 = vrot.slane %v25, %v29
  %v32 = vmul.f32 %v21, %v30
  %v33 = vmul.f32 %v22, %v30
  %v34 = vmul.f32 %v23, %v30
  %v35 = vmul.f32 %v24, %v30
  %v36 = vld [vmem:[%s2] sm:$0x1]
  %v38 = vlaneseq
  %v39 = vshrl.u32 %v38, 7
  %v40 = vsub.s32 0, %v39
  %v41 = vrot.slane %v36, %v40
  %v43 = vadd.f32 %v32, %v41
  %v44 = vadd.f32 %v33, %v41
  %v45 = vadd.f32 %v34, %v41
  %v46 = vadd.f32 %v35, %v41
  %v47 = vmax.f32 %v43, 0.0
  %v48 = vmax.f32 %v44, 0.0
  %v49 = vmax.f32 %v45, 0.0
  %v50 = vmax.f32 %v46, 0.0
  %v51 = vpack.c.bf16 %v48, %v47
  %v52 = vpack.c.bf16 %v50, %v49
  %v53 = vld [vmem:[%s3] sm:$0xf]
  %v54 = vld [vmem:[%s3 + $0x4] sm:$0xf]
  %v55 = vld [vmem:[%s4] sm:$0x1]
  %v57 = vlaneseq
  %v58 = vshrl.u32 %v57, 7
  %v59 = vsub.s32 0, %v58
  %v60 = vrot.slane %v55, %v59
  %v64 = vunpack.c.l.b16 %v53
  %v65 = vunpack.c.l.b16 %v54
  %v66 = vpack.c.b16 %v65, %v64
  %vm68 = vcmask 130048
  %v70 = vsel %vm68, %v51, 0
  %v73 = vsel %vm68, %v52, 0
  %75 = vmatprep.subr.bf16.mxu0 0
  %76 = vmatpush1.bf16.msra.mxu0 %v66
  %77 = vmatprep.subr.bf16.mxu0 0
  %78 = vmatpush1.bf16.msra.mxu0 0
  %79 = vmatprep.subr.bf16.mxu0 0
  %80 = vmatpush1.bf16.msra.mxu0 0
  %81 = vmatprep.subr.bf16.mxu0 0
  %82 = vmatpush1.bf16.msra.mxu0 0
  %83 = vmatprep.subr.bf16.mxu0 0
  %84 = vmatpush1.bf16.msra.mxu0 0
  %85 = vmatprep.subr.bf16.mxu0 0
  %86 = vmatpush1.bf16.msra.mxu0 0
  %87 = vmatprep.subr.bf16.mxu0 0
  %88 = vmatpush1.bf16.msra.mxu0 0
  %89 = vmatprep.subr.bf16.mxu0 0
  %90 = vmatpush1.bf16.msra.mxu0 0
  %91 = vmatprep.subr.bf16.mxu0 0
  %92 = vmatpush1.bf16.msra.mxu0 0
  %93 = vmatprep.subr.bf16.mxu0 0
  %94 = vmatpush1.bf16.msra.mxu0 0
  %95 = vmatprep.subr.bf16.mxu0 0
  %96 = vmatpush1.bf16.msra.mxu0 0
  %97 = vmatprep.subr.bf16.mxu0 0
  %98 = vmatpush1.bf16.msra.mxu0 0
  %99 = vmatprep.subr.bf16.mxu0 0
  %100 = vmatpush1.bf16.msra.mxu0 0
  %101 = vmatprep.subr.bf16.mxu0 0
  %102 = vmatpush1.bf16.msra.mxu0 0
  %103 = vmatprep.subr.bf16.mxu0 0
  %104 = vmatpush1.bf16.msra.mxu0 0
  %105 = vmatprep.subr.bf16.mxu0 0
  %106 = vmatpush1.bf16.msra.mxu0 0
  %107 = vmatprep.mubr.bf16.mxu0 0
  %108 = vmatmul.mubr.bf16.gmra.mrb[0].mxu0 %v70
  %v109 = vpop.f32.mrb[0].mxu0
  %v110 = vadd.f32 %v60, %v109
  %v111 = vpop.f32.mrb[0].mxu0
  %v112 = vpop.f32.mrb[0].mxu0
  %v113 = vadd.f32 %v60, %v112
  %v114 = vpop.f32.mrb[0].mxu0
  %115 = vmatprep.mubr.bf16.mxu0 0
  %116 = vmatmul.mubr.bf16.gmra.mrb[0].mxu0 %v73
  %v117 = vpop.f32.mrb[0].mxu0
  %v118 = vadd.f32 %v60, %v117
  %v119 = vpop.f32.mrb[0].mxu0
  %v120 = vpop.f32.mrb[0].mxu0
  %v121 = vadd.f32 %v60, %v120
  %v122 = vpop.f32.mrb[0].mxu0
  %123 = vdwg.mxu0
  %v124 = vmax.f32 %v110, 0.0
  %v125 = vmax.f32 %v113, 0.0
  %v126 = vmax.f32 %v118, 0.0
  %v127 = vmax.f32 %v121, 0.0
  %v128 = vpack.c.bf16 %v125, %v124
  %v129 = vpack.c.bf16 %v127, %v126
  %v132 = vunpack.c.l.b16 %v128
  %v133 = vunpack.c.h.b16 %v128
  %v134 = vunpack.c.l.b16 %v129
  %v135 = vunpack.c.h.b16 %v129
  %v136 = vpack.c.b16 %v132, %v132
  %v137 = vpack.c.b16 %v133, %v133
  %v138 = vpack.c.b16 %v134, %v134
  %v139 = vpack.c.b16 %v135, %v135
  %vm144 = vcmask 125952
  %145 = vst.msk [vmem:[%s5] sm:$0xf] %vm144, %v136
  %146 = vst.msk [vmem:[%s5 + $0x4] sm:$0xf] %vm144, %v137
  %147 = vst.msk [vmem:[%s5 + $0x8] sm:$0xf] %vm144, %v138
  %148 = vst.msk [vmem:[%s5 + $0xc] sm:$0xf] %vm144, %v139
  // Predicated region
  $region22: #{densenet_se_forward.33} parent=0 // pred_check
    _
  $region23: #{densenet_se_forward.33} parent=0 // pred_check_branch
    %150 = sbr.rel (0) target = $region25
  $region24: #{densenet_se_forward.33} parent=0 // pred_region
    _
  $region25: #{densenet_se_forward.33} parent=0 // pred_fallthru
    _
  // Predicated region
  $region26: #{densenet_se_forward.33} parent=0 // pred_check
    _
  $region27: #{densenet_se_forward.33} parent=0 // pred_check_branch
    %152 = sbr.rel (0) target = $region29
  $region28: #{densenet_se_forward.33} parent=0 // pred_region
    _
  $region29: #{densenet_se_forward.33} parent=0 // pred_fallthru
    _

// kernel: densenet_se_forward.34
$region0: #{densenet_se_forward.34}
  #allocation0 [shape = 'u32[]', space=smem, size = 0x4, offset = 0x4, fixed_abs, tag = 'smem constant byte address 0x4 - core index']
  #allocation1 [shape = 'u32[144,128]{1,0:T(1,128)}', space=vmem, size = 0x12000, scoped, tag = 'internal scratch']
  %s0 = inlined_call_operand.vmem [shape: bf16[32,144], index: 0, kind: input, shape index: {}]
  %s1 = inlined_call_operand.vmem [shape: bf16[144,8], index: 1, kind: input, shape index: {}]
  %s2 = inlined_call_operand.vmem [shape: f32[32,8], index: 2, kind: output, shape index: {}]
  %s3 = sld [smem:[#allocation0]]
  $region18: #{densenet_se_forward.34} parent=0
    _
  %s5 = ssub.s32 1, %s3
  %s6 = scalar_select 0, %s5, %s3
  // Predicated region
  $region2: #{densenet_se_forward.34} parent=0 // pred_check
    _
  $region3: #{densenet_se_forward.34} parent=0 // pred_check_branch
    %8 = sbr.rel (0) target = $region5
  $region4: #{densenet_se_forward.34} parent=0 // pred_region
    _
  $region5: #{densenet_se_forward.34} parent=0 // pred_fallthru
    _
  // Predicated region
  $region6: #{densenet_se_forward.34} parent=0 // pred_check
    _
  $region7: #{densenet_se_forward.34} parent=0 // pred_check_branch
    %10 = sbr.rel (0) target = $region9
  $region8: #{densenet_se_forward.34} parent=0 // pred_region
    _
  $region9: #{densenet_se_forward.34} parent=0 // pred_fallthru
    _
  %v12 = vld [vmem:[%s0] sm:$0xff]
  %v13 = vld [vmem:[%s0 + $0x8] sm:$0xff]
  %v14 = vld [vmem:[%s0 + $0x10] sm:$0xff]
  %v15 = vld [vmem:[%s0 + $0x18] sm:$0xff]
  %v16 = vld [vmem:[%s1] sm:$0xf]
  %v17 = vld [vmem:[%s1 + $0x4] sm:$0xf]
  %v18 = vld [vmem:[%s1 + $0x8] sm:$0xf]
  %v19 = vld [vmem:[%s1 + $0xc] sm:$0xf]
  %v20 = vld [vmem:[%s1 + $0x10] sm:$0xf]
  %v21 = vld [vmem:[%s1 + $0x14] sm:$0xf]
  %v22 = vld [vmem:[%s1 + $0x18] sm:$0xf]
  %v23 = vld [vmem:[%s1 + $0x1c] sm:$0xf]
  %v24 = vld [vmem:[%s1 + $0x20] sm:$0xf]
  %v25 = vld [vmem:[%s1 + $0x24] sm:$0xf]
  %v26 = vld [vmem:[%s1 + $0x28] sm:$0xf]
  %v27 = vld [vmem:[%s1 + $0x2c] sm:$0xf]
  %v28 = vld [vmem:[%s1 + $0x30] sm:$0xf]
  %v29 = vld [vmem:[%s1 + $0x34] sm:$0xf]
  %v30 = vld [vmem:[%s1 + $0x38] sm:$0xf]
  %v31 = vld [vmem:[%s1 + $0x3c] sm:$0xf]
  %v32 = vld [vmem:[%s1 + $0x40] sm:$0xf]
  %v33 = vld [vmem:[%s1 + $0x44] sm:$0xf]
  %v38 = vunpack.c.l.b16 %v12
  %v39 = vunpack.c.h.b16 %v12
  %v40 = vunpack.c.l.b16 %v13
  %v41 = vunpack.c.h.b16 %v13
  %v42 = vunpack.c.l.b16 %v14
  %v43 = vunpack.c.h.b16 %v14
  %v44 = vunpack.c.l.b16 %v15
  %v45 = vunpack.c.h.b16 %v15
  %v46 = vpack.c.b16 %v40, %v38
  %v47 = vpack.c.b16 %v41, %v39
  %v48 = vpack.c.b16 %v44, %v42
  %v49 = vpack.c.b16 %v45, %v43
  %v70 = vunpack.c.l.b16 %v16
  %v71 = vunpack.c.l.b16 %v17
  %v72 = vunpack.c.l.b16 %v18
  %v73 = vunpack.c.l.b16 %v19
  %v74 = vunpack.c.l.b16 %v20
  %v75 = vunpack.c.l.b16 %v21
  %v76 = vunpack.c.l.b16 %v22
  %v77 = vunpack.c.l.b16 %v23
  %v78 = vunpack.c.l.b16 %v24
  %v79 = vunpack.c.l.b16 %v25
  %v80 = vunpack.c.l.b16 %v26
  %v81 = vunpack.c.l.b16 %v27
  %v82 = vunpack.c.l.b16 %v28
  %v83 = vunpack.c.l.b16 %v29
  %v84 = vunpack.c.l.b16 %v30
  %v85 = vunpack.c.l.b16 %v31
  %v86 = vunpack.c.l.b16 %v32
  %v87 = vunpack.c.l.b16 %v33
  %v88 = vpack.c.b16 %v71, %v70
  %v89 = vpack.c.b16 %v73, %v72
  %v90 = vpack.c.b16 %v75, %v74
  %v91 = vpack.c.b16 %v77, %v76
  %v92 = vpack.c.b16 %v79, %v78
  %v93 = vpack.c.b16 %v81, %v80
  %v94 = vpack.c.b16 %v83, %v82
  %v95 = vpack.c.b16 %v85, %v84
  %v96 = vpack.c.b16 %v87, %v86
  %vm106 = vcmask 130048
  %v108 = vsel %vm106, %v47, 0
  %v111 = vsel %vm106, %v49, 0
  %113 = vmatprep.subr.bf16.mxu0 0
  %114 = vmatpush1.bf16.msra.mxu0 %v88
  %115 = vmatprep.subr.bf16.mxu0 0
  %116 = vmatpush1.bf16.msra.mxu0 %v89
  %117 = vmatprep.subr.bf16.mxu0 0
  %118 = vmatpush1.bf16.msra.mxu0 %v90
  %119 = vmatprep.subr.bf16.mxu0 0
  %120 = vmatpush1.bf16.msra.mxu0 %v91
  %121 = vmatprep.subr.bf16.mxu0 0
  %122 = vmatpush1.bf16.msra.mxu0 %v92
  %123 = vmatprep.subr.bf16.mxu0 0
  %124 = vmatpush1.bf16.msra.mxu0 %v93
  %125 = vmatprep.subr.bf16.mxu0 0
  %126 = vmatpush1.bf16.msra.mxu0 %v94
  %127 = vmatprep.subr.bf16.mxu0 0
  %128 = vmatpush1.bf16.msra.mxu0 %v95
  %129 = vmatprep.subr.bf16.mxu0 0
  %130 = vmatpush1.bf16.msra.mxu0 %v96
  %131 = vmatprep.subr.bf16.mxu0 0
  %132 = vmatpush1.bf16.msra.mxu0 0
  %133 = vmatprep.subr.bf16.mxu0 0
  %134 = vmatpush1.bf16.msra.mxu0 0
  %135 = vmatprep.subr.bf16.mxu0 0
  %136 = vmatpush1.bf16.msra.mxu0 0
  %137 = vmatprep.subr.bf16.mxu0 0
  %138 = vmatpush1.bf16.msra.mxu0 0
  %139 = vmatprep.subr.bf16.mxu0 0
  %140 = vmatpush1.bf16.msra.mxu0 0
  %141 = vmatprep.subr.bf16.mxu0 0
  %142 = vmatpush1.bf16.msra.mxu0 0
  %143 = vmatprep.subr.bf16.mxu0 0
  %144 = vmatpush1.bf16.msra.mxu0 0
  %145 = vmatprep.mubr.bf16.mxu0 %v108
  %146 = vmatmul.mubr.bf16.gmra.mrb[0].mxu0 %v46
  %v147 = vpop.f32.mrb[0].mxu0
  %v148 = vadd.f32 0.0, %v147
  %v149 = vpop.f32.mrb[0].mxu0
  %v150 = vpop.f32.mrb[0].mxu0
  %v151 = vadd.f32 0.0, %v150
  %v152 = vpop.f32.mrb[0].mxu0
  %153 = vmatprep.mubr.bf16.mxu0 %v111
  %154 = vmatmul.mubr.bf16.gmra.mrb[0].mxu0 %v48
  %v155 = vpop.f32.mrb[0].mxu0
  %v156 = vadd.f32 0.0, %v155
  %v157 = vpop.f32.mrb[0].mxu0
  %v158 = vpop.f32.mrb[0].mxu0
  %v159 = vadd.f32 0.0, %v158
  %v160 = vpop.f32.mrb[0].mxu0
  %161 = vdwg.mxu0
  %vm162 = vcmask 64512
  %163 = vst.msk [vmem:[%s2] sm:$0xff] %vm162, %v148
  %164 = vst.msk [vmem:[%s2 + $0x8] sm:$0xff] %vm162, %v151
  %165 = vst.msk [vmem:[%s2 + $0x10] sm:$0xff] %vm162, %v156
  %166 = vst.msk [vmem:[%s2 + $0x18] sm:$0xff] %vm162, %v159
  // Predicated region
  $region10: #{densenet_se_forward.34} parent=0 // pred_check
    _
  $region11: #{densenet_se_forward.34} parent=0 // pred_check_branch
    %168 = sbr.rel (0) target = $region13
  $region12: #{densenet_se_forward.34} parent=0 // pred_region
    _
  $region13: #{densenet_se_forward.34} parent=0 // pred_fallthru
    _
  // Predicated region
  $region14: #{densenet_se_forward.34} parent=0 // pred_check
    _
  $region15: #{densenet_se_forward.34} parent=0 // pred_check_branch
    %170 = sbr.rel (0) target = $region17
  $region16: #{densenet_se_forward.34} parent=0 // pred_region
    _
  $region17: #{densenet_se_forward.34} parent=0 // pred_fallthru
    _

// kernel: densenet_se_forward.35
$region0: #{densenet_se_forward.35}
  #allocation0 [shape = 'u32[]', space=smem, size = 0x4, offset = 0x4, fixed_abs, tag = 'smem constant byte address 0x4 - core index']
  #allocation1 [shape = 'u32[144,128]{1,0:T(1,128)}', space=vmem, size = 0x12000, scoped, tag = 'internal scratch']
  %s0 = inlined_call_operand.vmem [shape: f32[32,24], index: 0, kind: input, shape index: {}]
  %s1 = inlined_call_operand.vmem [shape: f32[1,24], index: 1, kind: input, shape index: {}]
  %s2 = inlined_call_operand.vmem [shape: f32[1,24], index: 2, kind: input, shape index: {}]
  %s3 = inlined_call_operand.vmem [shape: bf16[24,16], index: 3, kind: input, shape index: {}]
  %s4 = inlined_call_operand.vmem [shape: f32[1,16], index: 4, kind: input, shape index: {}]
  %s5 = inlined_call_operand.vmem [shape: bf16[32,16], index: 5, kind: output, shape index: {}]
  %s6 = sld [smem:[#allocation0]]
  $region30: #{densenet_se_forward.35} parent=0
    _
  %s8 = ssub.s32 1, %s6
  %s9 = scalar_select 0, %s8, %s6
  // Predicated region
  $region2: #{densenet_se_forward.35} parent=0 // pred_check
    _
  $region3: #{densenet_se_forward.35} parent=0 // pred_check_branch
    %11 = sbr.rel (0) target = $region5
  $region4: #{densenet_se_forward.35} parent=0 // pred_region
    _
  $region5: #{densenet_se_forward.35} parent=0 // pred_fallthru
    _
  // Predicated region
  $region6: #{densenet_se_forward.35} parent=0 // pred_check
    _
  $region7: #{densenet_se_forward.35} parent=0 // pred_check_branch
    %13 = sbr.rel (0) target = $region9
  $region8: #{densenet_se_forward.35} parent=0 // pred_region
    _
  $region9: #{densenet_se_forward.35} parent=0 // pred_fallthru
    _
  // Predicated region
  $region10: #{densenet_se_forward.35} parent=0 // pred_check
    _
  $region11: #{densenet_se_forward.35} parent=0 // pred_check_branch
    %15 = sbr.rel (0) target = $region13
  $region12: #{densenet_se_forward.35} parent=0 // pred_region
    _
  $region13: #{densenet_se_forward.35} parent=0 // pred_fallthru
    _
  // Predicated region
  $region14: #{densenet_se_forward.35} parent=0 // pred_check
    _
  $region15: #{densenet_se_forward.35} parent=0 // pred_check_branch
    %17 = sbr.rel (0) target = $region17
  $region16: #{densenet_se_forward.35} parent=0 // pred_region
    _
  $region17: #{densenet_se_forward.35} parent=0 // pred_fallthru
    _
  // Predicated region
  $region18: #{densenet_se_forward.35} parent=0 // pred_check
    _
  $region19: #{densenet_se_forward.35} parent=0 // pred_check_branch
    %19 = sbr.rel (0) target = $region21
  $region20: #{densenet_se_forward.35} parent=0 // pred_region
    _
  $region21: #{densenet_se_forward.35} parent=0 // pred_fallthru
    _
  %v21 = vld [vmem:[%s0] sm:$0xff]
  %v22 = vld [vmem:[%s0 + $0x8] sm:$0xff]
  %v23 = vld [vmem:[%s0 + $0x10] sm:$0xff]
  %v24 = vld [vmem:[%s0 + $0x18] sm:$0xff]
  %v25 = vld [vmem:[%s1] sm:$0x1]
  %v27 = vlaneseq
  %v28 = vshrl.u32 %v27, 7
  %v29 = vsub.s32 0, %v28
  %v30 = vrot.slane %v25, %v29
  %v32 = vmul.f32 %v21, %v30
  %v33 = vmul.f32 %v22, %v30
  %v34 = vmul.f32 %v23, %v30
  %v35 = vmul.f32 %v24, %v30
  %v36 = vld [vmem:[%s2] sm:$0x1]
  %v38 = vlaneseq
  %v39 = vshrl.u32 %v38, 7
  %v40 = vsub.s32 0, %v39
  %v41 = vrot.slane %v36, %v40
  %v43 = vadd.f32 %v32, %v41
  %v44 = vadd.f32 %v33, %v41
  %v45 = vadd.f32 %v34, %v41
  %v46 = vadd.f32 %v35, %v41
  %v47 = vmax.f32 %v43, 0.0
  %v48 = vmax.f32 %v44, 0.0
  %v49 = vmax.f32 %v45, 0.0
  %v50 = vmax.f32 %v46, 0.0
  %v51 = vpack.c.bf16 %v48, %v47
  %v52 = vpack.c.bf16 %v50, %v49
  %v53 = vld [vmem:[%s3] sm:$0xf]
  %v54 = vld [vmem:[%s3 + $0x4] sm:$0xf]
  %v55 = vld [vmem:[%s3 + $0x8] sm:$0xf]
  %v56 = vld [vmem:[%s4] sm:$0x1]
  %v58 = vlaneseq
  %v59 = vshrl.u32 %v58, 7
  %v60 = vsub.s32 0, %v59
  %v61 = vrot.slane %v56, %v60
  %v66 = vunpack.c.l.b16 %v53
  %v67 = vunpack.c.l.b16 %v54
  %v68 = vunpack.c.l.b16 %v55
  %v69 = vpack.c.b16 %v67, %v66
  %v70 = vpack.c.b16 %v68, %v68
  %vm72 = vcmask 195584
  %v74 = vsel %vm72, %v51, 0
  %v77 = vsel %vm72, %v52, 0
  %vm79 = vcmask 1043456
  %v81 = vsel %vm79, %v70, 0
  %83 = vmatprep.subr.bf16.mxu0 0
  %84 = vmatpush1.bf16.msra.mxu0 %v69
  %85 = vmatprep.subr.bf16.mxu0 0
  %86 = vmatpush1.bf16.msra.mxu0 %v81
  %87 = vmatprep.subr.bf16.mxu0 0
  %88 = vmatpush1.bf16.msra.mxu0 0
  %89 = vmatprep.subr.bf16.mxu0 0
  %90 = vmatpush1.bf16.msra.mxu0 0
  %91 = vmatprep.subr.bf16.mxu0 0
  %92 = vmatpush1.bf16.msra.mxu0 0
  %93 = vmatprep.subr.bf16.mxu0 0
  %94 = vmatpush1.bf16.msra.mxu0 0
  %95 = vmatprep.subr.bf16.mxu0 0
  %96 = vmatpush1.bf16.msra.mxu0 0
  %97 = vmatprep.subr.bf16.mxu0 0
  %98 = vmatpush1.bf16.msra.mxu0 0
  %99 = vmatprep.subr.bf16.mxu0 0
  %100 = vmatpush1.bf16.msra.mxu0 0
  %101 = vmatprep.subr.bf16.mxu0 0
  %102 = vmatpush1.bf16.msra.mxu0 0
  %103 = vmatprep.subr.bf16.mxu0 0
  %104 = vmatpush1.bf16.msra.mxu0 0
  %105 = vmatprep.subr.bf16.mxu0 0
  %106 = vmatpush1.bf16.msra.mxu0 0
  %107 = vmatprep.subr.bf16.mxu0 0
  %108 = vmatpush1.bf16.msra.mxu0 0
  %109 = vmatprep.subr.bf16.mxu0 0
  %110 = vmatpush1.bf16.msra.mxu0 0
  %111 = vmatprep.subr.bf16.mxu0 0
  %112 = vmatpush1.bf16.msra.mxu0 0
  %113 = vmatprep.subr.bf16.mxu0 0
  %114 = vmatpush1.bf16.msra.mxu0 0
  %115 = vmatprep.mubr.bf16.mxu0 0
  %116 = vmatmul.mubr.bf16.gmra.mrb[0].mxu0 %v74
  %v117 = vpop.f32.mrb[0].mxu0
  %v118 = vadd.f32 %v61, %v117
  %v119 = vpop.f32.mrb[0].mxu0
  %v120 = vpop.f32.mrb[0].mxu0
  %v121 = vadd.f32 %v61, %v120
  %v122 = vpop.f32.mrb[0].mxu0
  %123 = vmatprep.mubr.bf16.mxu0 0
  %124 = vmatmul.mubr.bf16.gmra.mrb[0].mxu0 %v77
  %v125 = vpop.f32.mrb[0].mxu0
  %v126 = vadd.f32 %v61, %v125
  %v127 = vpop.f32.mrb[0].mxu0
  %v128 = vpop.f32.mrb[0].mxu0
  %v129 = vadd.f32 %v61, %v128
  %v130 = vpop.f32.mrb[0].mxu0
  %131 = vdwg.mxu0
  %v132 = vmax.f32 %v118, 0.0
  %v133 = vmax.f32 %v121, 0.0
  %v134 = vmax.f32 %v126, 0.0
  %v135 = vmax.f32 %v129, 0.0
  %v136 = vpack.c.bf16 %v133, %v132
  %v137 = vpack.c.bf16 %v135, %v134
  %v140 = vunpack.c.l.b16 %v136
  %v141 = vunpack.c.h.b16 %v136
  %v142 = vunpack.c.l.b16 %v137
  %v143 = vunpack.c.h.b16 %v137
  %v144 = vpack.c.b16 %v140, %v140
  %v145 = vpack.c.b16 %v141, %v141
  %v146 = vpack.c.b16 %v142, %v142
  %v147 = vpack.c.b16 %v143, %v143
  %vm152 = vcmask 125952
  %153 = vst.msk [vmem:[%s5] sm:$0xf] %vm152, %v144
  %154 = vst.msk [vmem:[%s5 + $0x4] sm:$0xf] %vm152, %v145
  %155 = vst.msk [vmem:[%s5 + $0x8] sm:$0xf] %vm152, %v146
  %156 = vst.msk [vmem:[%s5 + $0xc] sm:$0xf] %vm152, %v147
  // Predicated region
  $region22: #{densenet_se_forward.35} parent=0 // pred_check
    _
  $region23: #{densenet_se_forward.35} parent=0 // pred_check_branch
    %158 = sbr.rel (0) target = $region25
  $region24: #{densenet_se_forward.35} parent=0 // pred_region
    _
  $region25: #{densenet_se_forward.35} parent=0 // pred_fallthru
    _
  // Predicated region
  $region26: #{densenet_se_forward.35} parent=0 // pred_check
    _
  $region27: #{densenet_se_forward.35} parent=0 // pred_check_branch
    %160 = sbr.rel (0) target = $region29
  $region28: #{densenet_se_forward.35} parent=0 // pred_region
    _
  $region29: #{densenet_se_forward.35} parent=0 // pred_fallthru
    _

// kernel: densenet_se_forward.37
$region0: #{densenet_se_forward.37}
  #allocation0 [shape = 'u32[]', space=smem, size = 0x4, offset = 0x4, fixed_abs, tag = 'smem constant byte address 0x4 - core index']
  #allocation1 [shape = 'u32[144,128]{1,0:T(1,128)}', space=vmem, size = 0x12000, scoped, tag = 'internal scratch']
  %s0 = inlined_call_operand.vmem [shape: f32[32,32], index: 0, kind: input, shape index: {}]
  %s1 = inlined_call_operand.vmem [shape: f32[1,32], index: 1, kind: input, shape index: {}]
  %s2 = inlined_call_operand.vmem [shape: f32[1,32], index: 2, kind: input, shape index: {}]
  %s3 = inlined_call_operand.vmem [shape: bf16[32,16], index: 3, kind: input, shape index: {}]
  %s4 = inlined_call_operand.vmem [shape: f32[32,32], index: 4, kind: output, shape index: {0}]
  %s5 = inlined_call_operand.vmem [shape: f32[32,16], index: 5, kind: output, shape index: {1}]
  %6 = xla_tuple %s4, %s5
  %s7 = sld [smem:[#allocation0]]
  $region34: #{densenet_se_forward.37} parent=0
    _
  %s9 = ssub.s32 1, %s7
  %s10 = scalar_select 0, %s9, %s7
  // Predicated region
  $region2: #{densenet_se_forward.37} parent=0 // pred_check
    _
  $region3: #{densenet_se_forward.37} parent=0 // pred_check_branch
    %12 = sbr.rel (0) target = $region5
  $region4: #{densenet_se_forward.37} parent=0 // pred_region
    _
  $region5: #{densenet_se_forward.37} parent=0 // pred_fallthru
    _
  // Predicated region
  $region6: #{densenet_se_forward.37} parent=0 // pred_check
    _
  $region7: #{densenet_se_forward.37} parent=0 // pred_check_branch
    %14 = sbr.rel (0) target = $region9
  $region8: #{densenet_se_forward.37} parent=0 // pred_region
    _
  $region9: #{densenet_se_forward.37} parent=0 // pred_fallthru
    _
  // Predicated region
  $region10: #{densenet_se_forward.37} parent=0 // pred_check
    _
  $region11: #{densenet_se_forward.37} parent=0 // pred_check_branch
    %16 = sbr.rel (0) target = $region13
  $region12: #{densenet_se_forward.37} parent=0 // pred_region
    _
  $region13: #{densenet_se_forward.37} parent=0 // pred_fallthru
    _
  // Predicated region
  $region14: #{densenet_se_forward.37} parent=0 // pred_check
    _
  $region15: #{densenet_se_forward.37} parent=0 // pred_check_branch
    %18 = sbr.rel (0) target = $region17
  $region16: #{densenet_se_forward.37} parent=0 // pred_region
    _
  $region17: #{densenet_se_forward.37} parent=0 // pred_fallthru
    _
  %v20 = vld [vmem:[%s0] sm:$0xff]
  %v21 = vld [vmem:[%s0 + $0x8] sm:$0xff]
  %v22 = vld [vmem:[%s0 + $0x10] sm:$0xff]
  %v23 = vld [vmem:[%s0 + $0x18] sm:$0xff]
  %v24 = vld [vmem:[%s1] sm:$0x1]
  %v26 = vlaneseq
  %v27 = vshrl.u32 %v26, 7
  %v28 = vsub.s32 0, %v27
  %v29 = vrot.slane %v24, %v28
  %v31 = vmul.f32 %v20, %v29
  %v32 = vmul.f32 %v21, %v29
  %v33 = vmul.f32 %v22, %v29
  %v34 = vmul.f32 %v23, %v29
  %v35 = vld [vmem:[%s2] sm:$0x1]
  %v37 = vlaneseq
  %v38 = vshrl.u32 %v37, 7
  %v39 = vsub.s32 0, %v38
  %v40 = vrot.slane %v35, %v39
  %v42 = vadd.f32 %v31, %v40
  %v43 = vadd.f32 %v32, %v40
  %v44 = vadd.f32 %v33, %v40
  %v45 = vadd.f32 %v34, %v40
  %v46 = vmax.f32 %v42, 0.0
  %v47 = vmax.f32 %v43, 0.0
  %v48 = vmax.f32 %v44, 0.0
  %v49 = vmax.f32 %v45, 0.0
  %vm50 = vcmask 261120
  %51 = vst.msk [vmem:[%s4] sm:$0xff] %vm50, %v46
  %52 = vst.msk [vmem:[%s4 + $0x8] sm:$0xff] %vm50, %v47
  %53 = vst.msk [vmem:[%s4 + $0x10] sm:$0xff] %vm50, %v48
  %54 = vst.msk [vmem:[%s4 + $0x18] sm:$0xff] %vm50, %v49
  %v55 = vpack.c.bf16 %v47, %v46
  %v56 = vpack.c.bf16 %v49, %v48
  %v57 = vld [vmem:[%s3] sm:$0xf]
  %v58 = vld [vmem:[%s3 + $0x4] sm:$0xf]
  %v59 = vld [vmem:[%s3 + $0x8] sm:$0xf]
  %v60 = vld [vmem:[%s3 + $0xc] sm:$0xf]
  %v65 = vunpack.c.l.b16 %v57
  %v66 = vunpack.c.l.b16 %v58
  %v67 = vunpack.c.l.b16 %v59
  %v68 = vunpack.c.l.b16 %v60
  %v69 = vpack.c.b16 %v66, %v65
  %v70 = vpack.c.b16 %v68, %v67
  %v74 = vsel %vm50, %v55, 0
  %v77 = vsel %vm50, %v56, 0
  %79 = vmatprep.subr.bf16.mxu0 0
  %80 = vmatpush1.bf16.msra.mxu0 %v69
  %81 = vmatprep.subr.bf16.mxu0 0
  %82 = vmatpush1.bf16.msra.mxu0 %v70
  %83 = vmatprep.subr.bf16.mxu0 0
  %84 = vmatpush1.bf16.msra.mxu0 0
  %85 = vmatprep.subr.bf16.mxu0 0
  %86 = vmatpush1.bf16.msra.mxu0 0
  %87 = vmatprep.subr.bf16.mxu0 0
  %88 = vmatpush1.bf16.msra.mxu0 0
  %89 = vmatprep.subr.bf16.mxu0 0
  %90 = vmatpush1.bf16.msra.mxu0 0
  %91 = vmatprep.subr.bf16.mxu0 0
  %92 = vmatpush1.bf16.msra.mxu0 0
  %93 = vmatprep.subr.bf16.mxu0 0
  %94 = vmatpush1.bf16.msra.mxu0 0
  %95 = vmatprep.subr.bf16.mxu0 0
  %96 = vmatpush1.bf16.msra.mxu0 0
  %97 = vmatprep.subr.bf16.mxu0 0
  %98 = vmatpush1.bf16.msra.mxu0 0
  %99 = vmatprep.subr.bf16.mxu0 0
  %100 = vmatpush1.bf16.msra.mxu0 0
  %101 = vmatprep.subr.bf16.mxu0 0
  %102 = vmatpush1.bf16.msra.mxu0 0
  %103 = vmatprep.subr.bf16.mxu0 0
  %104 = vmatpush1.bf16.msra.mxu0 0
  %105 = vmatprep.subr.bf16.mxu0 0
  %106 = vmatpush1.bf16.msra.mxu0 0
  %107 = vmatprep.subr.bf16.mxu0 0
  %108 = vmatpush1.bf16.msra.mxu0 0
  %109 = vmatprep.subr.bf16.mxu0 0
  %110 = vmatpush1.bf16.msra.mxu0 0
  %111 = vmatprep.mubr.bf16.mxu0 0
  %112 = vmatmul.mubr.bf16.gmra.mrb[0].mxu0 %v74
  %v113 = vpop.f32.mrb[0].mxu0
  %v114 = vadd.f32 0.0, %v113
  %v115 = vpop.f32.mrb[0].mxu0
  %v116 = vpop.f32.mrb[0].mxu0
  %v117 = vadd.f32 0.0, %v116
  %v118 = vpop.f32.mrb[0].mxu0
  %119 = vmatprep.mubr.bf16.mxu0 0
  %120 = vmatmul.mubr.bf16.gmra.mrb[0].mxu0 %v77
  %v121 = vpop.f32.mrb[0].mxu0
  %v122 = vadd.f32 0.0, %v121
  %v123 = vpop.f32.mrb[0].mxu0
  %v124 = vpop.f32.mrb[0].mxu0
  %v125 = vadd.f32 0.0, %v124
  %v126 = vpop.f32.mrb[0].mxu0
  %127 = vdwg.mxu0
  %vm128 = vcmask 130048
  %129 = vst.msk [vmem:[%s5] sm:$0xff] %vm128, %v114
  %130 = vst.msk [vmem:[%s5 + $0x8] sm:$0xff] %vm128, %v117
  %131 = vst.msk [vmem:[%s5 + $0x10] sm:$0xff] %vm128, %v122
  %132 = vst.msk [vmem:[%s5 + $0x18] sm:$0xff] %vm128, %v125
  // Predicated region
  $region18: #{densenet_se_forward.37} parent=0 // pred_check
    _
  $region19: #{densenet_se_forward.37} parent=0 // pred_check_branch
    %134 = sbr.rel (0) target = $region21
  $region20: #{densenet_se_forward.37} parent=0 // pred_region
    _
  $region21: #{densenet_se_forward.37} parent=0 // pred_fallthru
    _
  // Predicated region
  $region22: #{densenet_se_forward.37} parent=0 // pred_check
    _
  $region23: #{densenet_se_forward.37} parent=0 // pred_check_branch
    %136 = sbr.rel (0) target = $region25
  $region24: #{densenet_se_forward.37} parent=0 // pred_region
    _
  $region25: #{densenet_se_forward.37} parent=0 // pred_fallthru
    _
  // Predicated region
  $region26: #{densenet_se_forward.37} parent=0 // pred_check
    _
  $region27: #{densenet_se_forward.37} parent=0 // pred_check_branch
    %138 = sbr.rel (0) target = $region29
  $region28: #{densenet_se_forward.37} parent=0 // pred_region
    _
  $region29: #{densenet_se_forward.37} parent=0 // pred_fallthru
    _
  // Predicated region
  $region30: #{densenet_se_forward.37} parent=0 // pred_check
    _
  $region31: #{densenet_se_forward.37} parent=0 // pred_check_branch
    %140 = sbr.rel (0) target = $region33
  $region32: #{densenet_se_forward.37} parent=0 // pred_region
    _
  $region33: #{densenet_se_forward.37} parent=0 // pred_fallthru
    _

// kernel: densenet_se_forward.32
$region0: #{densenet_se_forward.32}
  #allocation0 [shape = 'u32[]', space=smem, size = 0x4, offset = 0x4, fixed_abs, tag = 'smem constant byte address 0x4 - core index']
  #allocation1 [shape = 'u32[144,128]{1,0:T(1,128)}', space=vmem, size = 0x12000, scoped, tag = 'internal scratch']
  #allocation2 [shape = 'f32[1,1]{1,0:T(1,128)S(1)}', space=vmem, size = 0x200, scoped, tag = 'scoped memory for densenet_se_forward.32']
  #allocation3 [shape = 'f32[1,1]{1,0:T(1,128)S(1)}', space=vmem, size = 0x200, scoped, tag = 'scoped memory for densenet_se_forward.32']
  %s0 = inlined_call_operand.vmem [shape: f32[4,2,16,16], index: 0, kind: input, shape index: {}]
  %s1 = inlined_call_operand.vmem [shape: f32[2,64,32], index: 1, kind: input, shape index: {}]
  %s2 = inlined_call_operand.vmem [shape: f32[16,8], index: 2, kind: input, shape index: {}]
  %s3 = inlined_call_operand.vmem [shape: f32[1,8], index: 3, kind: input, shape index: {}]
  %s4 = inlined_call_operand.vmem [shape: f32[8,16], index: 4, kind: input, shape index: {}]
  %s5 = inlined_call_operand.vmem [shape: f32[1,16], index: 5, kind: input, shape index: {}]
  %s6 = inlined_call_operand.vmem [shape: f32[1,16], index: 6, kind: input, shape index: {}]
  %s7 = inlined_call_operand.<no memory space> [shape: f32[1,1], index: 7, kind: input, shape index: {}]
  %s8 = inlined_call_operand.vmem [shape: f32[32,16], index: 8, kind: input, shape index: {}]
  %s9 = inlined_call_operand.vmem [shape: f32[1,16], index: 9, kind: input, shape index: {}]
  %s10 = inlined_call_operand.vmem [shape: f32[16,32], index: 10, kind: input, shape index: {}]
  %s11 = inlined_call_operand.vmem [shape: f32[1,32], index: 11, kind: input, shape index: {}]
  %s12 = inlined_call_operand.vmem [shape: f32[1,32], index: 12, kind: input, shape index: {}]
  %s13 = inlined_call_operand.<no memory space> [shape: f32[1,1], index: 13, kind: input, shape index: {}]
  %s14 = inlined_call_operand.vmem [shape: f32[2,16,16], index: 14, kind: output, shape index: {0}]
  %s15 = inlined_call_operand.hbm [shape: f32[2,64,32], index: 15, kind: output, shape index: {1}]
  %16 = xla_tuple %s14, %s15
  %s17 = sld [smem:[#allocation0]]
  $region74: #{densenet_se_forward.32} parent=0
    _
  %s19 = ssub.s32 1, %s17
  %s20 = scalar_select 0, %s19, %s17
  %v21 = vstv %s7
  %22 = vst [vmem:[#allocation2] sm:$0x1] %v21
  %v23 = vstv %s13
  %24 = vst [vmem:[#allocation3] sm:$0x1] %v23
  $region1: #{densenet_se_forward.32} parent=0
    #allocation4 [shape = 'u8[65536]{0}', space=vmem, size = 0x10000, scoped, tag = 'output window, operand 1, single buffered']
    #allocation5 [shape = 's32[1]{0}', space=sflag, size = 0x4, scoped, tag = 'scoped memory for densenet_se_forward.32']
    %25 = vsyncpa [#allocation5], 0
    // Predicated region
    $region2: #{densenet_se_forward.32} parent=1 // pred_check
      _
    $region3: #{densenet_se_forward.32} parent=1 // pred_check_branch
      %27 = sbr.rel (0) target = $region5
    $region4: #{densenet_se_forward.32} parent=1 // pred_region
      _
    $region5: #{densenet_se_forward.32} parent=1 // pred_fallthru
      _
    // Predicated region
    $region6: #{densenet_se_forward.32} parent=1 // pred_check
      _
    $region7: #{densenet_se_forward.32} parent=1 // pred_check_branch
      %29 = sbr.rel (0) target = $region9
    $region8: #{densenet_se_forward.32} parent=1 // pred_region
      _
    $region9: #{densenet_se_forward.32} parent=1 // pred_fallthru
      _
    // Predicated region
    $region10: #{densenet_se_forward.32} parent=1 // pred_check
      _
    $region11: #{densenet_se_forward.32} parent=1 // pred_check_branch
      %31 = sbr.rel (0) target = $region13
    $region12: #{densenet_se_forward.32} parent=1 // pred_region
      _
    $region13: #{densenet_se_forward.32} parent=1 // pred_fallthru
      _
    // Predicated region
    $region14: #{densenet_se_forward.32} parent=1 // pred_check
      _
    $region15: #{densenet_se_forward.32} parent=1 // pred_check_branch
      %33 = sbr.rel (0) target = $region17
    $region16: #{densenet_se_forward.32} parent=1 // pred_region
      _
    $region17: #{densenet_se_forward.32} parent=1 // pred_fallthru
      _
    // Predicated region
    $region18: #{densenet_se_forward.32} parent=1 // pred_check
      _
    $region19: #{densenet_se_forward.32} parent=1 // pred_check_branch
      %35 = sbr.rel (0) target = $region21
    $region20: #{densenet_se_forward.32} parent=1 // pred_region
      _
    $region21: #{densenet_se_forward.32} parent=1 // pred_fallthru
      _
    // Predicated region
    $region22: #{densenet_se_forward.32} parent=1 // pred_check
      _
    $region23: #{densenet_se_forward.32} parent=1 // pred_check_branch
      %37 = sbr.rel (0) target = $region25
    $region24: #{densenet_se_forward.32} parent=1 // pred_region
      _
    $region25: #{densenet_se_forward.32} parent=1 // pred_fallthru
      _
    // Predicated region
    $region26: #{densenet_se_forward.32} parent=1 // pred_check
      _
    $region27: #{densenet_se_forward.32} parent=1 // pred_check_branch
      %39 = sbr.rel (0) target = $region29
    $region28: #{densenet_se_forward.32} parent=1 // pred_region
      _
    $region29: #{densenet_se_forward.32} parent=1 // pred_fallthru
      _
    // Predicated region
    $region30: #{densenet_se_forward.32} parent=1 // pred_check
      _
    $region31: #{densenet_se_forward.32} parent=1 // pred_check_branch
      %41 = sbr.rel (0) target = $region33
    $region32: #{densenet_se_forward.32} parent=1 // pred_region
      _
    $region33: #{densenet_se_forward.32} parent=1 // pred_fallthru
      _
    // Predicated region
    $region34: #{densenet_se_forward.32} parent=1 // pred_check
      _
    $region35: #{densenet_se_forward.32} parent=1 // pred_check_branch
      %43 = sbr.rel (0) target = $region37
    $region36: #{densenet_se_forward.32} parent=1 // pred_region
      _
    $region37: #{densenet_se_forward.32} parent=1 // pred_fallthru
      _
    // Predicated region
    $region38: #{densenet_se_forward.32} parent=1 // pred_check
      _
    $region39: #{densenet_se_forward.32} parent=1 // pred_check_branch
      %45 = sbr.rel (0) target = $region41
    $region40: #{densenet_se_forward.32} parent=1 // pred_region
      _
    $region41: #{densenet_se_forward.32} parent=1 // pred_fallthru
      _
    // Predicated region
    $region42: #{densenet_se_forward.32} parent=1 // pred_check
      _
    $region43: #{densenet_se_forward.32} parent=1 // pred_check_branch
      %47 = sbr.rel (0) target = $region45
    $region44: #{densenet_se_forward.32} parent=1 // pred_region
      _
    $region45: #{densenet_se_forward.32} parent=1 // pred_fallthru
      _
    // Predicated region
    $region46: #{densenet_se_forward.32} parent=1 // pred_check
      _
    $region47: #{densenet_se_forward.32} parent=1 // pred_check_branch
      %49 = sbr.rel (0) target = $region49
    $region48: #{densenet_se_forward.32} parent=1 // pred_region
      _
    $region49: #{densenet_se_forward.32} parent=1 // pred_fallthru
      _
    // Predicated region
    $region50: #{densenet_se_forward.32} parent=1 // pred_check
      _
    $region51: #{densenet_se_forward.32} parent=1 // pred_check_branch
      %51 = sbr.rel (0) target = $region53
    $region52: #{densenet_se_forward.32} parent=1 // pred_region
      _
    $region53: #{densenet_se_forward.32} parent=1 // pred_fallthru
      _
    // Predicated region
    $region54: #{densenet_se_forward.32} parent=1 // pred_check
      _
    $region55: #{densenet_se_forward.32} parent=1 // pred_check_branch
      %53 = sbr.rel (0) target = $region57
    $region56: #{densenet_se_forward.32} parent=1 // pred_region
      _
    $region57: #{densenet_se_forward.32} parent=1 // pred_fallthru
      _
    %v54 = vld [vmem:[%s0] sm:$0xff]
    %v55 = vld [vmem:[%s0 + $0x8] sm:$0xff]
    %v56 = vld [vmem:[%s0 + $0x10] sm:$0xff]
    %v57 = vld [vmem:[%s0 + $0x18] sm:$0xff]
    %s58 = scalar_lea.vmem %s0, 32
    %v59 = vld [vmem:[%s58] sm:$0xff]
    %v60 = vld [vmem:[%s58 + $0x8] sm:$0xff]
    %v61 = vld [vmem:[%s58 + $0x10] sm:$0xff]
    %v62 = vld [vmem:[%s58 + $0x18] sm:$0xff]
    %v63 = vadd.f32 %v54, %v59
    %v64 = vadd.f32 %v55, %v60
    %v65 = vadd.f32 %v56, %v61
    %v66 = vadd.f32 %v57, %v62
    %s67 = scalar_lea.vmem %s0, 64
    %v68 = vld [vmem:[%s67] sm:$0xff]
    %v69 = vld [vmem:[%s67 + $0x8] sm:$0xff]
    %v70 = vld [vmem:[%s67 + $0x10] sm:$0xff]
    %v71 = vld [vmem:[%s67 + $0x18] sm:$0xff]
    %v72 = vadd.f32 %v63, %v68
    %v73 = vadd.f32 %v64, %v69
    %v74 = vadd.f32 %v65, %v70
    %v75 = vadd.f32 %v66, %v71
    %s76 = scalar_lea.vmem %s0, 96
    %v77 = vld [vmem:[%s76] sm:$0xff]
    %v78 = vld [vmem:[%s76 + $0x8] sm:$0xff]
    %v79 = vld [vmem:[%s76 + $0x10] sm:$0xff]
    %v80 = vld [vmem:[%s76 + $0x18] sm:$0xff]
    %v81 = vadd.f32 %v72, %v77
    %v82 = vadd.f32 %v73, %v78
    %v83 = vadd.f32 %v74, %v79
    %v84 = vadd.f32 %v75, %v80
    %v85 = vmul.f32 %v81, 0.25
    %v86 = vmul.f32 %v82, 0.25
    %v87 = vmul.f32 %v83, 0.25
    %v88 = vmul.f32 %v84, 0.25
    %v89 = vld [vmem:[%s2] sm:$0xff]
    %v90 = vld [vmem:[%s2 + $0x8] sm:$0xff]
    %v91 = vld [vmem:[%s3] sm:$0x1]
    %v92 = vld [vmem:[%s4] sm:$0xff]
    %v93 = vld [vmem:[%s5] sm:$0x1]
    %v94 = vld [vmem:[%s6] sm:$0x1]
    %v95 = vld [vmem:[#allocation2] sm:$0x1]
    %vm96 = vcmask 130048
    %v97 = vsel %vm96, %v85, 0.0
    %v98 = vsel %vm96, %v86, 0.0
    %v99 = vadd.f32 %v97, %v98
    %v100 = vrot.slane %v99, 4
    %v101 = vadd.f32 %v99, %v100
    %v102 = vrot.slane %v101, 2
    %v103 = vadd.f32 %v101, %v102
    %v104 = vrot.slane %v103, 1
    %v105 = vadd.f32 %v103, %v104
    %v106 = vmul.f32 %v105, 0.0625
    %v108 = vsel %vm96, %v106, 0
    %110 = vmatprep.subr.mxu0 0.0
    %111 = vmatpush1.msra.mxu0 %v89
    %112 = vmatprep.subr.mxu0 0.0
    %113 = vmatpush1.msra.mxu0 %v90
    %114 = vmatprep.subr.mxu0 0.0
    %115 = vmatpush1.msra.mxu0 0.0
    %116 = vmatprep.subr.mxu0 0.0
    %117 = vmatpush1.msra.mxu0 0.0
    %118 = vmatprep.subr.mxu0 0.0
    %119 = vmatpush1.msra.mxu0 0.0
    %120 = vmatprep.subr.mxu0 0.0
    %121 = vmatpush1.msra.mxu0 0.0
    %122 = vmatprep.subr.mxu0 0.0
    %123 = vmatpush1.msra.mxu0 0.0
    %124 = vmatprep.subr.mxu0 0.0
    %125 = vmatpush1.msra.mxu0 0.0
    %126 = vmatprep.subr.mxu0 0.0
    %127 = vmatpush1.msra.mxu0 0.0
    %128 = vmatprep.subr.mxu0 0.0
    %129 = vmatpush1.msra.mxu0 0.0
    %130 = vmatprep.subr.mxu0 0.0
    %131 = vmatpush1.msra.mxu0 0.0
    %132 = vmatprep.subr.mxu0 0.0
    %133 = vmatpush1.msra.mxu0 0.0
    %134 = vmatprep.subr.mxu0 0.0
    %135 = vmatpush1.msra.mxu0 0.0
    %136 = vmatprep.subr.mxu0 0.0
    %137 = vmatpush1.msra.mxu0 0.0
    %138 = vmatprep.subr.mxu0 0.0
    %139 = vmatpush1.msra.mxu0 0.0
    %140 = vmatprep.subr.mxu0 0.0
    %141 = vmatpush1.msra.mxu0 0.0
    %142 = vmatprep.subr.mxu0 0.0
    %143 = vmatpush1.msra.mxu0 0.0
    %144 = vmatprep.subr.mxu0 0.0
    %145 = vmatpush1.msra.mxu0 0.0
    %146 = vmatprep.subr.mxu0 0.0
    %147 = vmatpush1.msra.mxu0 0.0
    %148 = vmatprep.subr.mxu0 0.0
    %149 = vmatpush1.msra.mxu0 0.0
    %150 = vmatprep.subr.mxu0 0.0
    %151 = vmatpush1.msra.mxu0 0.0
    %152 = vmatprep.subr.mxu0 0.0
    %153 = vmatpush1.msra.mxu0 0.0
    %154 = vmatprep.subr.mxu0 0.0
    %155 = vmatpush1.msra.mxu0 0.0
    %156 = vmatprep.subr.mxu0 0.0
    %157 = vmatpush1.msra.mxu0 0.0
    %158 = vmatprep.subr.mxu0 0.0
    %159 = vmatpush1.msra.mxu0 0.0
    %160 = vmatprep.subr.mxu0 0.0
    %161 = vmatpush1.msra.mxu0 0.0
    %162 = vmatprep.subr.mxu0 0.0
    %163 = vmatpush1.msra.mxu0 0.0
    %164 = vmatprep.subr.mxu0 0.0
    %165 = vmatpush1.msra.mxu0 0.0
    %166 = vmatprep.subr.mxu0 0.0
    %167 = vmatpush1.msra.mxu0 0.0
    %168 = vmatprep.subr.mxu0 0.0
    %169 = vmatpush1.msra.mxu0 0.0
    %170 = vmatprep.subr.mxu0 0.0
    %171 = vmatpush1.msra.mxu0 0.0
    %172 = vmatprep.subr.mxu0 0.0
    %173 = vmatpush1.msra.mxu0 0.0
    %174 = vmatprep.mubr.f32.mxu0 0.0
    %175 = vmatmul.mubr.f32.gmra.mrb[0].mxu0 %v108
    %v176 = vpop.f32.mrb[0].mxu0
    %v177 = vadd.f32 %v91, %v176
    %v178 = vpop.f32.mrb[0].mxu0
    %179 = vdwg.mxu0
    %v180 = vmax.f32 %v177, 0.0
    %vm181 = vcmask 64512
    %v183 = vsel %vm181, %v180, 0
    %185 = vmatprep.subr.mxu0 0.0
    %186 = vmatpush1.msra.mxu0 %v92
    %187 = vmatprep.subr.mxu0 0.0
    %188 = vmatpush1.msra.mxu0 0.0
    %189 = vmatprep.subr.mxu0 0.0
    %190 = vmatpush1.msra.mxu0 0.0
    %191 = vmatprep.subr.mxu0 0.0
    %192 = vmatpush1.msra.mxu0 0.0
    %193 = vmatprep.subr.mxu0 0.0
    %194 = vmatpush1.msra.mxu0 0.0
    %195 = vmatprep.subr.mxu0 0.0
    %196 = vmatpush1.msra.mxu0 0.0
    %197 = vmatprep.subr.mxu0 0.0
    %198 = vmatpush1.msra.mxu0 0.0
    %199 = vmatprep.subr.mxu0 0.0
    %200 = vmatpush1.msra.mxu0 0.0
    %201 = vmatprep.subr.mxu0 0.0
    %202 = vmatpush1.msra.mxu0 0.0
    %203 = vmatprep.subr.mxu0 0.0
    %204 = vmatpush1.msra.mxu0 0.0
    %205 = vmatprep.subr.mxu0 0.0
    %206 = vmatpush1.msra.mxu0 0.0
    %207 = vmatprep.subr.mxu0 0.0
    %208 = vmatpush1.msra.mxu0 0.0
    %209 = vmatprep.subr.mxu0 0.0
    %210 = vmatpush1.msra.mxu0 0.0
    %211 = vmatprep.subr.mxu0 0.0
    %212 = vmatpush1.msra.mxu0 0.0
    %213 = vmatprep.subr.mxu0 0.0
    %214 = vmatpush1.msra.mxu0 0.0
    %215 = vmatprep.subr.mxu0 0.0
    %216 = vmatpush1.msra.mxu0 0.0
    %217 = vmatprep.subr.mxu0 0.0
    %218 = vmatpush1.msra.mxu0 0.0
    %219 = vmatprep.subr.mxu0 0.0
    %220 = vmatpush1.msra.mxu0 0.0
    %221 = vmatprep.subr.mxu0 0.0
    %222 = vmatpush1.msra.mxu0 0.0
    %223 = vmatprep.subr.mxu0 0.0
    %224 = vmatpush1.msra.mxu0 0.0
    %225 = vmatprep.subr.mxu0 0.0
    %226 = vmatpush1.msra.mxu0 0.0
    %227 = vmatprep.subr.mxu0 0.0
    %228 = vmatpush1.msra.mxu0 0.0
    %229 = vmatprep.subr.mxu0 0.0
    %230 = vmatpush1.msra.mxu0 0.0
    %231 = vmatprep.subr.mxu0 0.0
    %232 = vmatpush1.msra.mxu0 0.0
    %233 = vmatprep.subr.mxu0 0.0
    %234 = vmatpush1.msra.mxu0 0.0
    %235 = vmatprep.subr.mxu0 0.0
    %236 = vmatpush1.msra.mxu0 0.0
    %237 = vmatprep.subr.mxu0 0.0
    %238 = vmatpush1.msra.mxu0 0.0
    %239 = vmatprep.subr.mxu0 0.0
    %240 = vmatpush1.msra.mxu0 0.0
    %241 = vmatprep.subr.mxu0 0.0
    %242 = vmatpush1.msra.mxu0 0.0
    %243 = vmatprep.subr.mxu0 0.0
    %244 = vmatpush1.msra.mxu0 0.0
    %245 = vmatprep.subr.mxu0 0.0
    %246 = vmatpush1.msra.mxu0 0.0
    %247 = vmatprep.subr.mxu0 0.0
    %248 = vmatpush1.msra.mxu0 0.0
    %249 = vmatprep.mubr.f32.mxu0 0.0
    %250 = vmatmul.mubr.f32.gmra.mrb[0].mxu0 %v183
    %v251 = vpop.f32.mrb[0].mxu0
    %v252 = vadd.f32 %v93, %v251
    %v253 = vpop.f32.mrb[0].mxu0
    %254 = vdwg.mxu0
    %v255 = vmul.f32 %v252, 0.5
    %v256 = vtanh.pop %v255
    %v257 = vadd.f32 %v256, 1.0
    %v258 = vmul.f32 %v257, 0.5
    %v260 = vlaneseq
    %v261 = vshrl.u32 %v260, 7
    %v262 = vsub.s32 0, %v261
    %v263 = vrot.slane %v94, %v262
    %v265 = vmul.f32 %v85, %v263
    %v266 = vmul.f32 %v86, %v263
    %v267 = vsel %vm96, %v265, 0.0
    %268 = vadd.xlane.f32.xlu0 %v267
    %v269 = vpop.xlane.xlu0 %268
    %v270 = vsel %vm96, %v266, 0.0
    %271 = vadd.xlane.f32.xlu0 %v270
    %v272 = vpop.xlane.xlu0 %271
    %v274 = vlaneseq
    %v275 = vshrl.u32 %v274, 7
    %v276 = vsub.s32 0, %v275
    %v277 = vrot.slane %v95, %v276
    %v279 = vadd.f32 %v269, %v277
    %v280 = vadd.f32 %v272, %v277
    %v281 = vmul.f32 %v279, 0.5
    %v282 = vmul.f32 %v280, 0.5
    %v283 = vtanh.pop %v281
    %v284 = vtanh.pop %v282
    %v285 = vadd.f32 %v283, 1.0
    %v286 = vadd.f32 %v284, 1.0
    %v287 = vmul.f32 %v285, 0.5
    %v288 = vmul.f32 %v286, 0.5
    %290 = vset.pattern.permute.xlu0 0
    %291 = vperm.xlu0 %290, %v287
    %v292 = vpop.permute.xlu0 %291
    %295 = vset.pattern.permute.xlu0 0
    %296 = vperm.xlu0 %295, %v288
    %v297 = vpop.permute.xlu0 %296
    %v299 = vmul.f32 %v85, %v292
    %v300 = vmul.f32 %v86, %v297
    %v301 = vlaneseq
    %v302 = vshrl.u32 %v301, 7
    %v303 = vsub.s32 0, %v302
    %v304 = vrot.slane %v258, %v303
    %v305 = vmul.f32 %v85, %v304
    %v306 = vmul.f32 %v86, %v304
    %v307 = vadd.f32 %v299, %v305
    %v308 = vadd.f32 %v300, %v306
    %309 = vst.msk [vmem:[%s14] sm:$0xff] %vm96, %v307
    %310 = vst.msk [vmem:[%s14 + $0x8] sm:$0xff] %vm96, %v308
    %v311 = vld [vmem:[%s1] sm:$0xff]
    %v312 = vld [vmem:[%s1 + $0x8] sm:$0xff]
    %v313 = vld [vmem:[%s1 + $0x10] sm:$0xff]
    %v314 = vld [vmem:[%s1 + $0x18] sm:$0xff]
    %v315 = vld [vmem:[%s1 + $0x20] sm:$0xff]
    %v316 = vld [vmem:[%s1 + $0x28] sm:$0xff]
    %v317 = vld [vmem:[%s1 + $0x30] sm:$0xff]
    %v318 = vld [vmem:[%s1 + $0x38] sm:$0xff]
    %v319 = vld [vmem:[%s8] sm:$0xff]
    %v320 = vld [vmem:[%s8 + $0x8] sm:$0xff]
    %v321 = vld [vmem:[%s8 + $0x10] sm:$0xff]
    %v322 = vld [vmem:[%s8 + $0x18] sm:$0xff]
    %v323 = vld [vmem:[%s9] sm:$0x1]
    %v324 = vld [vmem:[%s10] sm:$0xff]
    %v325 = vld [vmem:[%s10 + $0x8] sm:$0xff]
    %v326 = vld [vmem:[%s11] sm:$0x1]
    %v327 = vld [vmem:[%s12] sm:$0x1]
    %v328 = vld [vmem:[#allocation3] sm:$0x1]
    %vm329 = vcmask 261120
    %v330 = vsel %vm329, %v311, 0.0
    %v331 = vsel %vm329, %v312, 0.0
    %v332 = vadd.f32 %v330, %v331
    %v333 = vsel %vm329, %v313, 0.0
    %v334 = vadd.f32 %v332, %v333
    %v335 = vsel %vm329, %v314, 0.0
    %v336 = vadd.f32 %v334, %v335
    %v337 = vsel %vm329, %v315, 0.0
    %v338 = vadd.f32 %v336, %v337
    %v339 = vsel %vm329, %v316, 0.0
    %v340 = vadd.f32 %v338, %v339
    %v341 = vsel %vm329, %v317, 0.0
    %v342 = vadd.f32 %v340, %v341
    %v343 = vsel %vm329, %v318, 0.0
    %v344 = vadd.f32 %v342, %v343
    %v345 = vrot.slane %v344, 4
    %v346 = vadd.f32 %v344, %v345
    %v347 = vrot.slane %v346, 2
    %v348 = vadd.f32 %v346, %v347
    %v349 = vrot.slane %v348, 1
    %v350 = vadd.f32 %v348, %v349
    %v351 = vmul.f32 %v350, 0.015625
    %v353 = vsel %vm329, %v351, 0
    %355 = vmatprep.subr.mxu0 0.0
    %356 = vmatpush1.msra.mxu0 %v319
    %357 = vmatprep.subr.mxu0 0.0
    %358 = vmatpush1.msra.mxu0 %v320
    %359 = vmatprep.subr.mxu0 0.0
    %360 = vmatpush1.msra.mxu0 %v321
    %361 = vmatprep.subr.mxu0 0.0
    %362 = vmatpush1.msra.mxu0 %v322
    %363 = vmatprep.subr.mxu0 0.0
    %364 = vmatpush1.msra.mxu0 0.0
    %365 = vmatprep.subr.mxu0 0.0
    %366 = vmatpush1.msra.mxu0 0.0
    %367 = vmatprep.subr.mxu0 0.0
    %368 = vmatpush1.msra.mxu0 0.0
    %369 = vmatprep.subr.mxu0 0.0
    %370 = vmatpush1.msra.mxu0 0.0
    %371 = vmatprep.subr.mxu0 0.0
    %372 = vmatpush1.msra.mxu0 0.0
    %373 = vmatprep.subr.mxu0 0.0
    %374 = vmatpush1.msra.mxu0 0.0
    %375 = vmatprep.subr.mxu0 0.0
    %376 = vmatpush1.msra.mxu0 0.0
    %377 = vmatprep.subr.mxu0 0.0
    %378 = vmatpush1.msra.mxu0 0.0
    %379 = vmatprep.subr.mxu0 0.0
    %380 = vmatpush1.msra.mxu0 0.0
    %381 = vmatprep.subr.mxu0 0.0
    %382 = vmatpush1.msra.mxu0 0.0
    %383 = vmatprep.subr.mxu0 0.0
    %384 = vmatpush1.msra.mxu0 0.0
    %385 = vmatprep.subr.mxu0 0.0
    %386 = vmatpush1.msra.mxu0 0.0
    %387 = vmatprep.subr.mxu0 0.0
    %388 = vmatpush1.msra.mxu0 0.0
    %389 = vmatprep.subr.mxu0 0.0
    %390 = vmatpush1.msra.mxu0 0.0
    %391 = vmatprep.subr.mxu0 0.0
    %392 = vmatpush1.msra.mxu0 0.0
    %393 = vmatprep.subr.mxu0 0.0
    %394 = vmatpush1.msra.mxu0 0.0
    %395 = vmatprep.subr.mxu0 0.0
    %396 = vmatpush1.msra.mxu0 0.0
    %397 = vmatprep.subr.mxu0 0.0
    %398 = vmatpush1.msra.mxu0 0.0
    %399 = vmatprep.subr.mxu0 0.0
    %400 = vmatpush1.msra.mxu0 0.0
    %401 = vmatprep.subr.mxu0 0.0
    %402 = vmatpush1.msra.mxu0 0.0
    %403 = vmatprep.subr.mxu0 0.0
    %404 = vmatpush1.msra.mxu0 0.0
    %405 = vmatprep.subr.mxu0 0.0
    %406 = vmatpush1.msra.mxu0 0.0
    %407 = vmatprep.subr.mxu0 0.0
    %408 = vmatpush1.msra.mxu0 0.0
    %409 = vmatprep.subr.mxu0 0.0
    %410 = vmatpush1.msra.mxu0 0.0
    %411 = vmatprep.subr.mxu0 0.0
    %412 = vmatpush1.msra.mxu0 0.0
    %413 = vmatprep.subr.mxu0 0.0
    %414 = vmatpush1.msra.mxu0 0.0
    %415 = vmatprep.subr.mxu0 0.0
    %416 = vmatpush1.msra.mxu0 0.0
    %417 = vmatprep.subr.mxu0 0.0
    %418 = vmatpush1.msra.mxu0 0.0
    %419 = vmatprep.mubr.f32.mxu0 0.0
    %420 = vmatmul.mubr.f32.gmra.mrb[0].mxu0 %v353
    %v421 = vpop.f32.mrb[0].mxu0
    %v422 = vadd.f32 %v323, %v421
    %v423 = vpop.f32.mrb[0].mxu0
    %424 = vdwg.mxu0
    %v425 = vmax.f32 %v422, 0.0
    %v427 = vsel %vm96, %v425, 0
    %429 = vmatprep.subr.mxu0 0.0
    %430 = vmatpush1.msra.mxu0 %v324
    %431 = vmatprep.subr.mxu0 0.0
    %432 = vmatpush1.msra.mxu0 %v325
    %433 = vmatprep.subr.mxu0 0.0
    %434 = vmatpush1.msra.mxu0 0.0
    %435 = vmatprep.subr.mxu0 0.0
    %436 = vmatpush1.msra.mxu0 0.0
    %437 = vmatprep.subr.mxu0 0.0
    %438 = vmatpush1.msra.mxu0 0.0
    %439 = vmatprep.subr.mxu0 0.0
    %440 = vmatpush1.msra.mxu0 0.0
    %441 = vmatprep.subr.mxu0 0.0
    %442 = vmatpush1.msra.mxu0 0.0
    %443 = vmatprep.subr.mxu0 0.0
    %444 = vmatpush1.msra.mxu0 0.0
    %445 = vmatprep.subr.mxu0 0.0
    %446 = vmatpush1.msra.mxu0 0.0
    %447 = vmatprep.subr.mxu0 0.0
    %448 = vmatpush1.msra.mxu0 0.0
    %449 = vmatprep.subr.mxu0 0.0
    %450 = vmatpush1.msra.mxu0 0.0
    %451 = vmatprep.subr.mxu0 0.0
    %452 = vmatpush1.msra.mxu0 0.0
    %453 = vmatprep.subr.mxu0 0.0
    %454 = vmatpush1.msra.mxu0 0.0
    %455 = vmatprep.subr.mxu0 0.0
    %456 = vmatpush1.msra.mxu0 0.0
    %457 = vmatprep.subr.mxu0 0.0
    %458 = vmatpush1.msra.mxu0 0.0
    %459 = vmatprep.subr.mxu0 0.0
    %460 = vmatpush1.msra.mxu0 0.0
    %461 = vmatprep.subr.mxu0 0.0
    %462 = vmatpush1.msra.mxu0 0.0
    %463 = vmatprep.subr.mxu0 0.0
    %464 = vmatpush1.msra.mxu0 0.0
    %465 = vmatprep.subr.mxu0 0.0
    %466 = vmatpush1.msra.mxu0 0.0
    %467 = vmatprep.subr.mxu0 0.0
    %468 = vmatpush1.msra.mxu0 0.0
    %469 = vmatprep.subr.mxu0 0.0
    %470 = vmatpush1.msra.mxu0 0.0
    %471 = vmatprep.subr.mxu0 0.0
    %472 = vmatpush1.msra.mxu0 0.0
    %473 = vmatprep.subr.mxu0 0.0
    %474 = vmatpush1.msra.mxu0 0.0
    %475 = vmatprep.subr.mxu0 0.0
    %476 = vmatpush1.msra.mxu0 0.0
    %477 = vmatprep.subr.mxu0 0.0
    %478 = vmatpush1.msra.mxu0 0.0
    %479 = vmatprep.subr.mxu0 0.0
    %480 = vmatpush1.msra.mxu0 0.0
    %481 = vmatprep.subr.mxu0 0.0
    %482 = vmatpush1.msra.mxu0 0.0
    %483 = vmatprep.subr.mxu0 0.0
    %484 = vmatpush1.msra.mxu0 0.0
    %485 = vmatprep.subr.mxu0 0.0
    %486 = vmatpush1.msra.mxu0 0.0
    %487 = vmatprep.subr.mxu0 0.0
    %488 = vmatpush1.msra.mxu0 0.0
    %489 = vmatprep.subr.mxu0 0.0
    %490 = vmatpush1.msra.mxu0 0.0
    %491 = vmatprep.subr.mxu0 0.0
    %492 = vmatpush1.msra.mxu0 0.0
    %493 = vmatprep.mubr.f32.mxu0 0.0
    %494 = vmatmul.mubr.f32.gmra.mrb[0].mxu0 %v427
    %v495 = vpop.f32.mrb[0].mxu0
    %v496 = vadd.f32 %v326, %v495
    %v497 = vpop.f32.mrb[0].mxu0
    %498 = vdwg.mxu0
    %v499 = vmul.f32 %v496, 0.5
    %v500 = vtanh.pop %v499
    %v501 = vadd.f32 %v500, 1.0
    %v502 = vmul.f32 %v501, 0.5
    %v504 = vlaneseq
    %v505 = vshrl.u32 %v504, 7
    %v506 = vsub.s32 0, %v505
    %v507 = vrot.slane %v327, %v506
    %v509 = vmul.f32 %v311, %v507
    %v510 = vmul.f32 %v312, %v507
    %v511 = vmul.f32 %v313, %v507
    %v512 = vmul.f32 %v314, %v507
    %v513 = vmul.f32 %v315, %v507
    %v514 = vmul.f32 %v316, %v507
    %v515 = vmul.f32 %v317, %v507
    %v516 = vmul.f32 %v318, %v507
    %v517 = vsel %vm329, %v509, 0.0
    %518 = vadd.xlane.f32.xlu0 %v517
    %v519 = vpop.xlane.xlu0 %518
    %v520 = vsel %vm329, %v510, 0.0
    %521 = vadd.xlane.f32.xlu0 %v520
    %v522 = vpop.xlane.xlu0 %521
    %v523 = vsel %vm329, %v511, 0.0
    %524 = vadd.xlane.f32.xlu0 %v523
    %v525 = vpop.xlane.xlu0 %524
    %v526 = vsel %vm329, %v512, 0.0
    %527 = vadd.xlane.f32.xlu0 %v526
    %v528 = vpop.xlane.xlu0 %527
    %v529 = vsel %vm329, %v513, 0.0
    %530 = vadd.xlane.f32.xlu0 %v529
    %v531 = vpop.xlane.xlu0 %530
    %v532 = vsel %vm329, %v514, 0.0
    %533 = vadd.xlane.f32.xlu0 %v532
    %v534 = vpop.xlane.xlu0 %533
    %v535 = vsel %vm329, %v515, 0.0
    %536 = vadd.xlane.f32.xlu0 %v535
    %v537 = vpop.xlane.xlu0 %536
    %v538 = vsel %vm329, %v516, 0.0
    %539 = vadd.xlane.f32.xlu0 %v538
    %v540 = vpop.xlane.xlu0 %539
    %v542 = vlaneseq
    %v543 = vshrl.u32 %v542, 7
    %v544 = vsub.s32 0, %v543
    %v545 = vrot.slane %v328, %v544
    %v547 = vadd.f32 %v519, %v545
    %v548 = vadd.f32 %v522, %v545
    %v549 = vadd.f32 %v525, %v545
    %v550 = vadd.f32 %v528, %v545
    %v551 = vadd.f32 %v531, %v545
    %v552 = vadd.f32 %v534, %v545
    %v553 = vadd.f32 %v537, %v545
    %v554 = vadd.f32 %v540, %v545
    %v555 = vmul.f32 %v547, 0.5
    %v556 = vmul.f32 %v548, 0.5
    %v557 = vmul.f32 %v549, 0.5
    %v558 = vmul.f32 %v550, 0.5
    %v559 = vmul.f32 %v551, 0.5
    %v560 = vmul.f32 %v552, 0.5
    %v561 = vmul.f32 %v553, 0.5
    %v562 = vmul.f32 %v554, 0.5
    %v563 = vtanh.pop %v555
    %v564 = vtanh.pop %v556
    %v565 = vtanh.pop %v557
    %v566 = vtanh.pop %v558
    %v567 = vtanh.pop %v559
    %v568 = vtanh.pop %v560
    %v569 = vtanh.pop %v561
    %v570 = vtanh.pop %v562
    %v571 = vadd.f32 %v563, 1.0
    %v572 = vadd.f32 %v564, 1.0
    %v573 = vadd.f32 %v565, 1.0
    %v574 = vadd.f32 %v566, 1.0
    %v575 = vadd.f32 %v567, 1.0
    %v576 = vadd.f32 %v568, 1.0
    %v577 = vadd.f32 %v569, 1.0
    %v578 = vadd.f32 %v570, 1.0
    %v579 = vmul.f32 %v571, 0.5
    %v580 = vmul.f32 %v572, 0.5
    %v581 = vmul.f32 %v573, 0.5
    %v582 = vmul.f32 %v574, 0.5
    %v583 = vmul.f32 %v575, 0.5
    %v584 = vmul.f32 %v576, 0.5
    %v585 = vmul.f32 %v577, 0.5
    %v586 = vmul.f32 %v578, 0.5
    %588 = vset.pattern.permute.xlu0 0
    %589 = vperm.xlu0 %588, %v579
    %v590 = vpop.permute.xlu0 %589
    %593 = vset.pattern.permute.xlu0 0
    %594 = vperm.xlu0 %593, %v580
    %v595 = vpop.permute.xlu0 %594
    %598 = vset.pattern.permute.xlu0 0
    %599 = vperm.xlu0 %598, %v581
    %v600 = vpop.permute.xlu0 %599
    %603 = vset.pattern.permute.xlu0 0
    %604 = vperm.xlu0 %603, %v582
    %v605 = vpop.permute.xlu0 %604
    %608 = vset.pattern.permute.xlu0 0
    %609 = vperm.xlu0 %608, %v583
    %v610 = vpop.permute.xlu0 %609
    %613 = vset.pattern.permute.xlu0 0
    %614 = vperm.xlu0 %613, %v584
    %v615 = vpop.permute.xlu0 %614
    %618 = vset.pattern.permute.xlu0 0
    %619 = vperm.xlu0 %618, %v585
    %v620 = vpop.permute.xlu0 %619
    %623 = vset.pattern.permute.xlu0 0
    %624 = vperm.xlu0 %623, %v586
    %v625 = vpop.permute.xlu0 %624
    %v627 = vmul.f32 %v311, %v590
    %v628 = vmul.f32 %v312, %v595
    %v629 = vmul.f32 %v313, %v600
    %v630 = vmul.f32 %v314, %v605
    %v631 = vmul.f32 %v315, %v610
    %v632 = vmul.f32 %v316, %v615
    %v633 = vmul.f32 %v317, %v620
    %v634 = vmul.f32 %v318, %v625
    %v635 = vlaneseq
    %v636 = vshrl.u32 %v635, 7
    %v637 = vsub.s32 0, %v636
    %v638 = vrot.slane %v502, %v637
    %v639 = vmul.f32 %v311, %v638
    %v640 = vmul.f32 %v312, %v638
    %v641 = vmul.f32 %v313, %v638
    %v642 = vmul.f32 %v314, %v638
    %v643 = vmul.f32 %v315, %v638
    %v644 = vmul.f32 %v316, %v638
    %v645 = vmul.f32 %v317, %v638
    %v646 = vmul.f32 %v318, %v638
    %v647 = vadd.f32 %v627, %v639
    %v648 = vadd.f32 %v628, %v640
    %v649 = vadd.f32 %v629, %v641
    %v650 = vadd.f32 %v630, %v642
    %v651 = vadd.f32 %v631, %v643
    %v652 = vadd.f32 %v632, %v644
    %v653 = vadd.f32 %v633, %v645
    %v654 = vadd.f32 %v634, %v646
    %655 = vst.msk [vmem:[#allocation4] sm:$0xff] %vm329, %v647
    %656 = vst.msk [vmem:[#allocation4 + $0x8] sm:$0xff] %vm329, %v648
    %657 = vst.msk [vmem:[#allocation4 + $0x10] sm:$0xff] %vm329, %v649
    %658 = vst.msk [vmem:[#allocation4 + $0x18] sm:$0xff] %vm329, %v650
    %659 = vst.msk [vmem:[#allocation4 + $0x20] sm:$0xff] %vm329, %v651
    %660 = vst.msk [vmem:[#allocation4 + $0x28] sm:$0xff] %vm329, %v652
    %661 = vst.msk [vmem:[#allocation4 + $0x30] sm:$0xff] %vm329, %v653
    %662 = vst.msk [vmem:[#allocation4 + $0x38] sm:$0xff] %vm329, %v654
    %v663 = vld [vmem:[%s2] sm:$0xff]
    %v664 = vld [vmem:[%s2 + $0x8] sm:$0xff]
    %v665 = vld [vmem:[%s3] sm:$0x1]
    %v666 = vld [vmem:[%s4] sm:$0xff]
    %v667 = vld [vmem:[%s5] sm:$0x1]
    %v668 = vld [vmem:[%s6] sm:$0x1]
    %v669 = vld [vmem:[#allocation2] sm:$0x1]
    %v670 = vsel %vm96, %v87, 0.0
    %v671 = vsel %vm96, %v88, 0.0
    %v672 = vadd.f32 %v670, %v671
    %v673 = vrot.slane %v672, 4
    %v674 = vadd.f32 %v672, %v673
    %v675 = vrot.slane %v674, 2
    %v676 = vadd.f32 %v674, %v675
    %v677 = vrot.slane %v676, 1
    %v678 = vadd.f32 %v676, %v677
    %v679 = vmul.f32 %v678, 0.0625
    %v681 = vsel %vm96, %v679, 0
    %683 = vmatprep.subr.mxu0 0.0
    %684 = vmatpush1.msra.mxu0 %v663
    %685 = vmatprep.subr.mxu0 0.0
    %686 = vmatpush1.msra.mxu0 %v664
    %687 = vmatprep.subr.mxu0 0.0
    %688 = vmatpush1.msra.mxu0 0.0
    %689 = vmatprep.subr.mxu0 0.0
    %690 = vmatpush1.msra.mxu0 0.0
    %691 = vmatprep.subr.mxu0 0.0
    %692 = vmatpush1.msra.mxu0 0.0
    %693 = vmatprep.subr.mxu0 0.0
    %694 = vmatpush1.msra.mxu0 0.0
    %695 = vmatprep.subr.mxu0 0.0
    %696 = vmatpush1.msra.mxu0 0.0
    %697 = vmatprep.subr.mxu0 0.0
    %698 = vmatpush1.msra.mxu0 0.0
    %699 = vmatprep.subr.mxu0 0.0
    %700 = vmatpush1.msra.mxu0 0.0
    %701 = vmatprep.subr.mxu0 0.0
    %702 = vmatpush1.msra.mxu0 0.0
    %703 = vmatprep.subr.mxu0 0.0
    %704 = vmatpush1.msra.mxu0 0.0
    %705 = vmatprep.subr.mxu0 0.0
    %706 = vmatpush1.msra.mxu0 0.0
    %707 = vmatprep.subr.mxu0 0.0
    %708 = vmatpush1.msra.mxu0 0.0
    %709 = vmatprep.subr.mxu0 0.0
    %710 = vmatpush1.msra.mxu0 0.0
    %711 = vmatprep.subr.mxu0 0.0
    %712 = vmatpush1.msra.mxu0 0.0
    %713 = vmatprep.subr.mxu0 0.0
    %714 = vmatpush1.msra.mxu0 0.0
    %715 = vmatprep.subr.mxu0 0.0
    %716 = vmatpush1.msra.mxu0 0.0
    %717 = vmatprep.subr.mxu0 0.0
    %718 = vmatpush1.msra.mxu0 0.0
    %719 = vmatprep.subr.mxu0 0.0
    %720 = vmatpush1.msra.mxu0 0.0
    %721 = vmatprep.subr.mxu0 0.0
    %722 = vmatpush1.msra.mxu0 0.0
    %723 = vmatprep.subr.mxu0 0.0
    %724 = vmatpush1.msra.mxu0 0.0
    %725 = vmatprep.subr.mxu0 0.0
    %726 = vmatpush1.msra.mxu0 0.0
    %727 = vmatprep.subr.mxu0 0.0
    %728 = vmatpush1.msra.mxu0 0.0
    %729 = vmatprep.subr.mxu0 0.0
    %730 = vmatpush1.msra.mxu0 0.0
    %731 = vmatprep.subr.mxu0 0.0
    %732 = vmatpush1.msra.mxu0 0.0
    %733 = vmatprep.subr.mxu0 0.0
    %734 = vmatpush1.msra.mxu0 0.0
    %735 = vmatprep.subr.mxu0 0.0
    %736 = vmatpush1.msra.mxu0 0.0
    %737 = vmatprep.subr.mxu0 0.0
    %738 = vmatpush1.msra.mxu0 0.0
    %739 = vmatprep.subr.mxu0 0.0
    %740 = vmatpush1.msra.mxu0 0.0
    %741 = vmatprep.subr.mxu0 0.0
    %742 = vmatpush1.msra.mxu0 0.0
    %743 = vmatprep.subr.mxu0 0.0
    %744 = vmatpush1.msra.mxu0 0.0
    %745 = vmatprep.subr.mxu0 0.0
    %746 = vmatpush1.msra.mxu0 0.0
    %747 = vmatprep.mubr.f32.mxu0 0.0
    %748 = vmatmul.mubr.f32.gmra.mrb[0].mxu0 %v681
    %v749 = vpop.f32.mrb[0].mxu0
    %v750 = vadd.f32 %v665, %v749
    %v751 = vpop.f32.mrb[0].mxu0
    %752 = vdwg.mxu0
    %v753 = vmax.f32 %v750, 0.0
    %v755 = vsel %vm181, %v753, 0
    %757 = vmatprep.subr.mxu0 0.0
    %758 = vmatpush1.msra.mxu0 %v666
    %759 = vmatprep.subr.mxu0 0.0
    %760 = vmatpush1.msra.mxu0 0.0
    %761 = vmatprep.subr.mxu0 0.0
    %762 = vmatpush1.msra.mxu0 0.0
    %763 = vmatprep.subr.mxu0 0.0
    %764 = vmatpush1.msra.mxu0 0.0
    %765 = vmatprep.subr.mxu0 0.0
    %766 = vmatpush1.msra.mxu0 0.0
    %767 = vmatprep.subr.mxu0 0.0
    %768 = vmatpush1.msra.mxu0 0.0
    %769 = vmatprep.subr.mxu0 0.0
    %770 = vmatpush1.msra.mxu0 0.0
    %771 = vmatprep.subr.mxu0 0.0
    %772 = vmatpush1.msra.mxu0 0.0
    %773 = vmatprep.subr.mxu0 0.0
    %774 = vmatpush1.msra.mxu0 0.0
    %775 = vmatprep.subr.mxu0 0.0
    %776 = vmatpush1.msra.mxu0 0.0
    %777 = vmatprep.subr.mxu0 0.0
    %778 = vmatpush1.msra.mxu0 0.0
    %779 = vmatprep.subr.mxu0 0.0
    %780 = vmatpush1.msra.mxu0 0.0
    %781 = vmatprep.subr.mxu0 0.0
    %782 = vmatpush1.msra.mxu0 0.0
    %783 = vmatprep.subr.mxu0 0.0
    %784 = vmatpush1.msra.mxu0 0.0
    %785 = vmatprep.subr.mxu0 0.0
    %786 = vmatpush1.msra.mxu0 0.0
    %787 = vmatprep.subr.mxu0 0.0
    %788 = vmatpush1.msra.mxu0 0.0
    %789 = vmatprep.subr.mxu0 0.0
    %790 = vmatpush1.msra.mxu0 0.0
    %791 = vmatprep.subr.mxu0 0.0
    %792 = vmatpush1.msra.mxu0 0.0
    %793 = vmatprep.subr.mxu0 0.0
    %794 = vmatpush1.msra.mxu0 0.0
    %795 = vmatprep.subr.mxu0 0.0
    %796 = vmatpush1.msra.mxu0 0.0
    %797 = vmatprep.subr.mxu0 0.0
    %798 = vmatpush1.msra.mxu0 0.0
    %799 = vmatprep.subr.mxu0 0.0
    %800 = vmatpush1.msra.mxu0 0.0
    %801 = vmatprep.subr.mxu0 0.0
    %802 = vmatpush1.msra.mxu0 0.0
    %803 = vmatprep.subr.mxu0 0.0
    %804 = vmatpush1.msra.mxu0 0.0
    %805 = vmatprep.subr.mxu0 0.0
    %806 = vmatpush1.msra.mxu0 0.0
    %807 = vmatprep.subr.mxu0 0.0
    %808 = vmatpush1.msra.mxu0 0.0
    %809 = vmatprep.subr.mxu0 0.0
    %810 = vmatpush1.msra.mxu0 0.0
    %811 = vmatprep.subr.mxu0 0.0
    %812 = vmatpush1.msra.mxu0 0.0
    %813 = vmatprep.subr.mxu0 0.0
    %814 = vmatpush1.msra.mxu0 0.0
    %815 = vmatprep.subr.mxu0 0.0
    %816 = vmatpush1.msra.mxu0 0.0
    %817 = vmatprep.subr.mxu0 0.0
    %818 = vmatpush1.msra.mxu0 0.0
    %819 = vmatprep.subr.mxu0 0.0
    %820 = vmatpush1.msra.mxu0 0.0
    %821 = vmatprep.mubr.f32.mxu0 0.0
    %822 = vmatmul.mubr.f32.gmra.mrb[0].mxu0 %v755
    %v823 = vpop.f32.mrb[0].mxu0
    %v824 = vadd.f32 %v667, %v823
    %v825 = vpop.f32.mrb[0].mxu0
    %826 = vdwg.mxu0
    %v827 = vmul.f32 %v824, 0.5
    %v828 = vtanh.pop %v827
    %v829 = vadd.f32 %v828, 1.0
    %v830 = vmul.f32 %v829, 0.5
    %v832 = vlaneseq
    %v833 = vshrl.u32 %v832, 7
    %v834 = vsub.s32 0, %v833
    %v835 = vrot.slane %v668, %v834
    %v837 = vmul.f32 %v87, %v835
    %v838 = vmul.f32 %v88, %v835
    %v839 = vsel %vm96, %v837, 0.0
    %840 = vadd.xlane.f32.xlu0 %v839
    %v841 = vpop.xlane.xlu0 %840
    %v842 = vsel %vm96, %v838, 0.0
    %843 = vadd.xlane.f32.xlu0 %v842
    %v844 = vpop.xlane.xlu0 %843
    %v846 = vlaneseq
    %v847 = vshrl.u32 %v846, 7
    %v848 = vsub.s32 0, %v847
    %v849 = vrot.slane %v669, %v848
    %v851 = vadd.f32 %v841, %v849
    %v852 = vadd.f32 %v844, %v849
    %v853 = vmul.f32 %v851, 0.5
    %v854 = vmul.f32 %v852, 0.5
    %v855 = vtanh.pop %v853
    %v856 = vtanh.pop %v854
    %v857 = vadd.f32 %v855, 1.0
    %v858 = vadd.f32 %v856, 1.0
    %v859 = vmul.f32 %v857, 0.5
    %v860 = vmul.f32 %v858, 0.5
    %862 = vset.pattern.permute.xlu0 0
    %863 = vperm.xlu0 %862, %v859
    %v864 = vpop.permute.xlu0 %863
    %867 = vset.pattern.permute.xlu0 0
    %868 = vperm.xlu0 %867, %v860
    %v869 = vpop.permute.xlu0 %868
    %v871 = vmul.f32 %v87, %v864
    %v872 = vmul.f32 %v88, %v869
    %v873 = vlaneseq
    %v874 = vshrl.u32 %v873, 7
    %v875 = vsub.s32 0, %v874
    %v876 = vrot.slane %v830, %v875
    %v877 = vmul.f32 %v87, %v876
    %v878 = vmul.f32 %v88, %v876
    %v879 = vadd.f32 %v871, %v877
    %v880 = vadd.f32 %v872, %v878
    %s881 = scalar_lea.vmem %s14, 16
    %882 = vst.msk [vmem:[%s881] sm:$0xff] %vm96, %v879
    %883 = vst.msk [vmem:[%s881 + $0x8] sm:$0xff] %vm96, %v880
    %s884 = scalar_lea.vmem %s1, 64
    %v885 = vld [vmem:[%s884] sm:$0xff]
    %v886 = vld [vmem:[%s884 + $0x8] sm:$0xff]
    %v887 = vld [vmem:[%s884 + $0x10] sm:$0xff]
    %v888 = vld [vmem:[%s884 + $0x18] sm:$0xff]
    %v889 = vld [vmem:[%s884 + $0x20] sm:$0xff]
    %v890 = vld [vmem:[%s884 + $0x28] sm:$0xff]
    %v891 = vld [vmem:[%s884 + $0x30] sm:$0xff]
    %v892 = vld [vmem:[%s884 + $0x38] sm:$0xff]
    %v893 = vld [vmem:[%s8] sm:$0xff]
    %v894 = vld [vmem:[%s8 + $0x8] sm:$0xff]
    %v895 = vld [vmem:[%s8 + $0x10] sm:$0xff]
    %v896 = vld [vmem:[%s8 + $0x18] sm:$0xff]
    %v897 = vld [vmem:[%s9] sm:$0x1]
    %v898 = vld [vmem:[%s10] sm:$0xff]
    %v899 = vld [vmem:[%s10 + $0x8] sm:$0xff]
    %v900 = vld [vmem:[%s11] sm:$0x1]
    %v901 = vld [vmem:[%s12] sm:$0x1]
    %v902 = vld [vmem:[#allocation3] sm:$0x1]
    %v903 = vsel %vm329, %v885, 0.0
    %v904 = vsel %vm329, %v886, 0.0
    %v905 = vadd.f32 %v903, %v904
    %v906 = vsel %vm329, %v887, 0.0
    %v907 = vadd.f32 %v905, %v906
    %v908 = vsel %vm329, %v888, 0.0
    %v909 = vadd.f32 %v907, %v908
    %v910 = vsel %vm329, %v889, 0.0
    %v911 = vadd.f32 %v909, %v910
    %v912 = vsel %vm329, %v890, 0.0
    %v913 = vadd.f32 %v911, %v912
    %v914 = vsel %vm329, %v891, 0.0
    %v915 = vadd.f32 %v913, %v914
    %v916 = vsel %vm329, %v892, 0.0
    %v917 = vadd.f32 %v915, %v916
    %v918 = vrot.slane %v917, 4
    %v919 = vadd.f32 %v917, %v918
    %v920 = vrot.slane %v919, 2
    %v921 = vadd.f32 %v919, %v920
    %v922 = vrot.slane %v921, 1
    %v923 = vadd.f32 %v921, %v922
    %v924 = vmul.f32 %v923, 0.015625
    %v926 = vsel %vm329, %v924, 0
    %928 = vmatprep.subr.mxu0 0.0
    %929 = vmatpush1.msra.mxu0 %v893
    %930 = vmatprep.subr.mxu0 0.0
    %931 = vmatpush1.msra.mxu0 %v894
    %932 = vmatprep.subr.mxu0 0.0
    %933 = vmatpush1.msra.mxu0 %v895
    %934 = vmatprep.subr.mxu0 0.0
    %935 = vmatpush1.msra.mxu0 %v896
    %936 = vmatprep.subr.mxu0 0.0
    %937 = vmatpush1.msra.mxu0 0.0
    %938 = vmatprep.subr.mxu0 0.0
    %939 = vmatpush1.msra.mxu0 0.0
    %940 = vmatprep.subr.mxu0 0.0
    %941 = vmatpush1.msra.mxu0 0.0
    %942 = vmatprep.subr.mxu0 0.0
    %943 = vmatpush1.msra.mxu0 0.0
    %944 = vmatprep.subr.mxu0 0.0
    %945 = vmatpush1.msra.mxu0 0.0
    %946 = vmatprep.subr.mxu0 0.0
    %947 = vmatpush1.msra.mxu0 0.0
    %948 = vmatprep.subr.mxu0 0.0
    %949 = vmatpush1.msra.mxu0 0.0
    %950 = vmatprep.subr.mxu0 0.0
    %951 = vmatpush1.msra.mxu0 0.0
    %952 = vmatprep.subr.mxu0 0.0
    %953 = vmatpush1.msra.mxu0 0.0
    %954 = vmatprep.subr.mxu0 0.0
    %955 = vmatpush1.msra.mxu0 0.0
    %956 = vmatprep.subr.mxu0 0.0
    %957 = vmatpush1.msra.mxu0 0.0
    %958 = vmatprep.subr.mxu0 0.0
    %959 = vmatpush1.msra.mxu0 0.0
    %960 = vmatprep.subr.mxu0 0.0
    %961 = vmatpush1.msra.mxu0 0.0
    %962 = vmatprep.subr.mxu0 0.0
    %963 = vmatpush1.msra.mxu0 0.0
    %964 = vmatprep.subr.mxu0 0.0
    %965 = vmatpush1.msra.mxu0 0.0
    %966 = vmatprep.subr.mxu0 0.0
    %967 = vmatpush1.msra.mxu0 0.0
    %968 = vmatprep.subr.mxu0 0.0
    %969 = vmatpush1.msra.mxu0 0.0
    %970 = vmatprep.subr.mxu0 0.0
    %971 = vmatpush1.msra.mxu0 0.0
    %972 = vmatprep.subr.mxu0 0.0
    %973 = vmatpush1.msra.mxu0 0.0
    %974 = vmatprep.subr.mxu0 0.0
    %975 = vmatpush1.msra.mxu0 0.0
    %976 = vmatprep.subr.mxu0 0.0
    %977 = vmatpush1.msra.mxu0 0.0
    %978 = vmatprep.subr.mxu0 0.0
    %979 = vmatpush1.msra.mxu0 0.0
    %980 = vmatprep.subr.mxu0 0.0
    %981 = vmatpush1.msra.mxu0 0.0
    %982 = vmatprep.subr.mxu0 0.0
    %983 = vmatpush1.msra.mxu0 0.0
    %984 = vmatprep.subr.mxu0 0.0
    %985 = vmatpush1.msra.mxu0 0.0
    %986 = vmatprep.subr.mxu0 0.0
    %987 = vmatpush1.msra.mxu0 0.0
    %988 = vmatprep.subr.mxu0 0.0
    %989 = vmatpush1.msra.mxu0 0.0
    %990 = vmatprep.subr.mxu0 0.0
    %991 = vmatpush1.msra.mxu0 0.0
    %992 = vmatprep.mubr.f32.mxu0 0.0
    %993 = vmatmul.mubr.f32.gmra.mrb[0].mxu0 %v926
    %v994 = vpop.f32.mrb[0].mxu0
    %v995 = vadd.f32 %v897, %v994
    %v996 = vpop.f32.mrb[0].mxu0
    %997 = vdwg.mxu0
    %v998 = vmax.f32 %v995, 0.0
    %v1000 = vsel %vm96, %v998, 0
    %1002 = vmatprep.subr.mxu0 0.0
    %1003 = vmatpush1.msra.mxu0 %v898
    %1004 = vmatprep.subr.mxu0 0.0
    %1005 = vmatpush1.msra.mxu0 %v899
    %1006 = vmatprep.subr.mxu0 0.0
    %1007 = vmatpush1.msra.mxu0 0.0
    %1008 = vmatprep.subr.mxu0 0.0
    %1009 = vmatpush1.msra.mxu0 0.0
    %1010 = vmatprep.subr.mxu0 0.0
    %1011 = vmatpush1.msra.mxu0 0.0
    %1012 = vmatprep.subr.mxu0 0.0
    %1013 = vmatpush1.msra.mxu0 0.0
    %1014 = vmatprep.subr.mxu0 0.0
    %1015 = vmatpush1.msra.mxu0 0.0
    %1016 = vmatprep.subr.mxu0 0.0
    %1017 = vmatpush1.msra.mxu0 0.0
    %1018 = vmatprep.subr.mxu0 0.0
    %1019 = vmatpush1.msra.mxu0 0.0
    %1020 = vmatprep.subr.mxu0 0.0
    %1021 = vmatpush1.msra.mxu0 0.0
    %1022 = vmatprep.subr.mxu0 0.0
    %1023 = vmatpush1.msra.mxu0 0.0
    %1024 = vmatprep.subr.mxu0 0.0
    %1025 = vmatpush1.msra.mxu0 0.0
    %1026 = vmatprep.subr.mxu0 0.0
    %1027 = vmatpush1.msra.mxu0 0.0
    %1028 = vmatprep.subr.mxu0 0.0
    %1029 = vmatpush1.msra.mxu0 0.0
    %1030 = vmatprep.subr.mxu0 0.0
    %1031 = vmatpush1.msra.mxu0 0.0
    %1032 = vmatprep.subr.mxu0 0.0
    %1033 = vmatpush1.msra.mxu0 0.0
    %1034 = vmatprep.subr.mxu0 0.0
    %1035 = vmatpush1.msra.mxu0 0.0
    %1036 = vmatprep.subr.mxu0 0.0
    %1037 = vmatpush1.msra.mxu0 0.0
    %1038 = vmatprep.subr.mxu0 0.0
    %1039 = vmatpush1.msra.mxu0 0.0
    %1040 = vmatprep.subr.mxu0 0.0
    %1041 = vmatpush1.msra.mxu0 0.0
    %1042 = vmatprep.subr.mxu0 0.0
    %1043 = vmatpush1.msra.mxu0 0.0
    %1044 = vmatprep.subr.mxu0 0.0
    %1045 = vmatpush1.msra.mxu0 0.0
    %1046 = vmatprep.subr.mxu0 0.0
    %1047 = vmatpush1.msra.mxu0 0.0
    %1048 = vmatprep.subr.mxu0 0.0
    %1049 = vmatpush1.msra.mxu0 0.0
    %1050 = vmatprep.subr.mxu0 0.0
    %1051 = vmatpush1.msra.mxu0 0.0
    %1052 = vmatprep.subr.mxu0 0.0
    %1053 = vmatpush1.msra.mxu0 0.0
    %1054 = vmatprep.subr.mxu0 0.0
    %1055 = vmatpush1.msra.mxu0 0.0
    %1056 = vmatprep.subr.mxu0 0.0
    %1057 = vmatpush1.msra.mxu0 0.0
    %1058 = vmatprep.subr.mxu0 0.0
    %1059 = vmatpush1.msra.mxu0 0.0
    %1060 = vmatprep.subr.mxu0 0.0
    %1061 = vmatpush1.msra.mxu0 0.0
    %1062 = vmatprep.subr.mxu0 0.0
    %1063 = vmatpush1.msra.mxu0 0.0
    %1064 = vmatprep.subr.mxu0 0.0
    %1065 = vmatpush1.msra.mxu0 0.0
    %1066 = vmatprep.mubr.f32.mxu0 0.0
    %1067 = vmatmul.mubr.f32.gmra.mrb[0].mxu0 %v1000
    %v1068 = vpop.f32.mrb[0].mxu0
    %v1069 = vadd.f32 %v900, %v1068
    %v1070 = vpop.f32.mrb[0].mxu0
    %1071 = vdwg.mxu0
    %v1072 = vmul.f32 %v1069, 0.5
    %v1073 = vtanh.pop %v1072
    %v1074 = vadd.f32 %v1073, 1.0
    %v1075 = vmul.f32 %v1074, 0.5
    %v1077 = vlaneseq
    %v1078 = vshrl.u32 %v1077, 7
    %v1079 = vsub.s32 0, %v1078
    %v1080 = vrot.slane %v901, %v1079
    %v1082 = vmul.f32 %v885, %v1080
    %v1083 = vmul.f32 %v886, %v1080
    %v1084 = vmul.f32 %v887, %v1080
    %v1085 = vmul.f32 %v888, %v1080
    %v1086 = vmul.f32 %v889, %v1080
    %v1087 = vmul.f32 %v890, %v1080
    %v1088 = vmul.f32 %v891, %v1080
    %v1089 = vmul.f32 %v892, %v1080
    %v1090 = vsel %vm329, %v1082, 0.0
    %1091 = vadd.xlane.f32.xlu0 %v1090
    %v1092 = vpop.xlane.xlu0 %1091
    %v1093 = vsel %vm329, %v1083, 0.0
    %1094 = vadd.xlane.f32.xlu0 %v1093
    %v1095 = vpop.xlane.xlu0 %1094
    %v1096 = vsel %vm329, %v1084, 0.0
    %1097 = vadd.xlane.f32.xlu0 %v1096
    %v1098 = vpop.xlane.xlu0 %1097
    %v1099 = vsel %vm329, %v1085, 0.0
    %1100 = vadd.xlane.f32.xlu0 %v1099
    %v1101 = vpop.xlane.xlu0 %1100
    %v1102 = vsel %vm329, %v1086, 0.0
    %1103 = vadd.xlane.f32.xlu0 %v1102
    %v1104 = vpop.xlane.xlu0 %1103
    %v1105 = vsel %vm329, %v1087, 0.0
    %1106 = vadd.xlane.f32.xlu0 %v1105
    %v1107 = vpop.xlane.xlu0 %1106
    %v1108 = vsel %vm329, %v1088, 0.0
    %1109 = vadd.xlane.f32.xlu0 %v1108
    %v1110 = vpop.xlane.xlu0 %1109
    %v1111 = vsel %vm329, %v1089, 0.0
    %1112 = vadd.xlane.f32.xlu0 %v1111
    %v1113 = vpop.xlane.xlu0 %1112
    %v1115 = vlaneseq
    %v1116 = vshrl.u32 %v1115, 7
    %v1117 = vsub.s32 0, %v1116
    %v1118 = vrot.slane %v902, %v1117
    %v1120 = vadd.f32 %v1092, %v1118
    %v1121 = vadd.f32 %v1095, %v1118
    %v1122 = vadd.f32 %v1098, %v1118
    %v1123 = vadd.f32 %v1101, %v1118
    %v1124 = vadd.f32 %v1104, %v1118
    %v1125 = vadd.f32 %v1107, %v1118
    %v1126 = vadd.f32 %v1110, %v1118
    %v1127 = vadd.f32 %v1113, %v1118
    %v1128 = vmul.f32 %v1120, 0.5
    %v1129 = vmul.f32 %v1121, 0.5
    %v1130 = vmul.f32 %v1122, 0.5
    %v1131 = vmul.f32 %v1123, 0.5
    %v1132 = vmul.f32 %v1124, 0.5
    %v1133 = vmul.f32 %v1125, 0.5
    %v1134 = vmul.f32 %v1126, 0.5
    %v1135 = vmul.f32 %v1127, 0.5
    %v1136 = vtanh.pop %v1128
    %v1137 = vtanh.pop %v1129
    %v1138 = vtanh.pop %v1130
    %v1139 = vtanh.pop %v1131
    %v1140 = vtanh.pop %v1132
    %v1141 = vtanh.pop %v1133
    %v1142 = vtanh.pop %v1134
    %v1143 = vtanh.pop %v1135
    %v1144 = vadd.f32 %v1136, 1.0
    %v1145 = vadd.f32 %v1137, 1.0
    %v1146 = vadd.f32 %v1138, 1.0
    %v1147 = vadd.f32 %v1139, 1.0
    %v1148 = vadd.f32 %v1140, 1.0
    %v1149 = vadd.f32 %v1141, 1.0
    %v1150 = vadd.f32 %v1142, 1.0
    %v1151 = vadd.f32 %v1143, 1.0
    %v1152 = vmul.f32 %v1144, 0.5
    %v1153 = vmul.f32 %v1145, 0.5
    %v1154 = vmul.f32 %v1146, 0.5
    %v1155 = vmul.f32 %v1147, 0.5
    %v1156 = vmul.f32 %v1148, 0.5
    %v1157 = vmul.f32 %v1149, 0.5
    %v1158 = vmul.f32 %v1150, 0.5
    %v1159 = vmul.f32 %v1151, 0.5
    %1161 = vset.pattern.permute.xlu0 0
    %1162 = vperm.xlu0 %1161, %v1152
    %v1163 = vpop.permute.xlu0 %1162
    %1166 = vset.pattern.permute.xlu0 0
    %1167 = vperm.xlu0 %1166, %v1153
    %v1168 = vpop.permute.xlu0 %1167
    %1171 = vset.pattern.permute.xlu0 0
    %1172 = vperm.xlu0 %1171, %v1154
    %v1173 = vpop.permute.xlu0 %1172
    %1176 = vset.pattern.permute.xlu0 0
    %1177 = vperm.xlu0 %1176, %v1155
    %v1178 = vpop.permute.xlu0 %1177
    %1181 = vset.pattern.permute.xlu0 0
    %1182 = vperm.xlu0 %1181, %v1156
    %v1183 = vpop.permute.xlu0 %1182
    %1186 = vset.pattern.permute.xlu0 0
    %1187 = vperm.xlu0 %1186, %v1157
    %v1188 = vpop.permute.xlu0 %1187
    %1191 = vset.pattern.permute.xlu0 0
    %1192 = vperm.xlu0 %1191, %v1158
    %v1193 = vpop.permute.xlu0 %1192
    %1196 = vset.pattern.permute.xlu0 0
    %1197 = vperm.xlu0 %1196, %v1159
    %v1198 = vpop.permute.xlu0 %1197
    %v1200 = vmul.f32 %v885, %v1163
    %v1201 = vmul.f32 %v886, %v1168
    %v1202 = vmul.f32 %v887, %v1173
    %v1203 = vmul.f32 %v888, %v1178
    %v1204 = vmul.f32 %v889, %v1183
    %v1205 = vmul.f32 %v890, %v1188
    %v1206 = vmul.f32 %v891, %v1193
    %v1207 = vmul.f32 %v892, %v1198
    %v1208 = vlaneseq
    %v1209 = vshrl.u32 %v1208, 7
    %v1210 = vsub.s32 0, %v1209
    %v1211 = vrot.slane %v1075, %v1210
    %v1212 = vmul.f32 %v885, %v1211
    %v1213 = vmul.f32 %v886, %v1211
    %v1214 = vmul.f32 %v887, %v1211
    %v1215 = vmul.f32 %v888, %v1211
    %v1216 = vmul.f32 %v889, %v1211
    %v1217 = vmul.f32 %v890, %v1211
    %v1218 = vmul.f32 %v891, %v1211
    %v1219 = vmul.f32 %v892, %v1211
    %v1220 = vadd.f32 %v1200, %v1212
    %v1221 = vadd.f32 %v1201, %v1213
    %v1222 = vadd.f32 %v1202, %v1214
    %v1223 = vadd.f32 %v1203, %v1215
    %v1224 = vadd.f32 %v1204, %v1216
    %v1225 = vadd.f32 %v1205, %v1217
    %v1226 = vadd.f32 %v1206, %v1218
    %v1227 = vadd.f32 %v1207, %v1219
    %s1228 = scalar_lea.vmem [#allocation4], 64
    %1229 = vst.msk [vmem:[%s1228] sm:$0xff] %vm329, %v1220
    %1230 = vst.msk [vmem:[%s1228 + $0x8] sm:$0xff] %vm329, %v1221
    %1231 = vst.msk [vmem:[%s1228 + $0x10] sm:$0xff] %vm329, %v1222
    %1232 = vst.msk [vmem:[%s1228 + $0x18] sm:$0xff] %vm329, %v1223
    %1233 = vst.msk [vmem:[%s1228 + $0x20] sm:$0xff] %vm329, %v1224
    %1234 = vst.msk [vmem:[%s1228 + $0x28] sm:$0xff] %vm329, %v1225
    %1235 = vst.msk [vmem:[%s1228 + $0x30] sm:$0xff] %vm329, %v1226
    %1236 = vst.msk [vmem:[%s1228 + $0x38] sm:$0xff] %vm329, %v1227
    // Predicated region
    $region58: #{densenet_se_forward.32} parent=1 // pred_check
      _
    $region59: #{densenet_se_forward.32} parent=1 // pred_check_branch
      %1238 = sbr.rel (0) target = $region61
    $region60: #{densenet_se_forward.32} parent=1 // pred_region
      _
    $region61: #{densenet_se_forward.32} parent=1 // pred_fallthru
      _
    // Predicated region
    $region62: #{densenet_se_forward.32} parent=1 // pred_check
      _
    $region63: #{densenet_se_forward.32} parent=1 // pred_check_branch
      %1240 = sbr.rel (0) target = $region65
    $region64: #{densenet_se_forward.32} parent=1 // pred_region
      %s1242 = ssub.s32 2048, 2048
      %1243 = vsyncadd [#allocation5], %s1242
      %s1244 = sshll.u32 [#allocation4], 4
      %s1245 = int_to_ptr.vmem [resolvable:$true] %s1244
      %1250 = dma.vmem_to_hbm [thread:$0]  %s1245, 2048, %s15, [#allocation5], 128, 128, 8
    $region65: #{densenet_se_forward.32} parent=1 // pred_fallthru
      _
    // Predicated region
    $region66: #{densenet_se_forward.32} parent=1 // pred_check
      _
    $region67: #{densenet_se_forward.32} parent=1 // pred_check_branch
      %1252 = sbr.rel (0) target = $region69
    $region68: #{densenet_se_forward.32} parent=1 // pred_region
      _
    $region69: #{densenet_se_forward.32} parent=1 // pred_fallthru
      _
    // Predicated region
    $region70: #{densenet_se_forward.32} parent=1 // pred_check
      _
    $region71: #{densenet_se_forward.32} parent=1 // pred_check_branch
      %1254 = sbr.rel (0) target = $region73
    $region72: #{densenet_se_forward.32} parent=1 // pred_region
      %1255 = dma.done [#allocation5], 2048
    $region73: #{densenet_se_forward.32} parent=1 // pred_fallthru
      _
    %1256 = vsyncpa [#allocation5], 1

// kernel: densenet_se_forward.39
$region0: #{densenet_se_forward.39}
  #allocation0 [shape = 'u32[]', space=smem, size = 0x4, offset = 0x4, fixed_abs, tag = 'smem constant byte address 0x4 - core index']
  #allocation1 [shape = 'u32[144,128]{1,0:T(1,128)}', space=vmem, size = 0x12000, scoped, tag = 'internal scratch']
  %s0 = inlined_call_operand.vmem [shape: f32[8,16], index: 0, kind: input, shape index: {}]
  %s1 = inlined_call_operand.vmem [shape: f32[1,16], index: 1, kind: input, shape index: {}]
  %s2 = inlined_call_operand.vmem [shape: f32[1,16], index: 2, kind: input, shape index: {}]
  %s3 = inlined_call_operand.vmem [shape: bf16[16,16], index: 3, kind: input, shape index: {}]
  %s4 = inlined_call_operand.vmem [shape: f32[1,16], index: 4, kind: input, shape index: {}]
  %s5 = inlined_call_operand.vmem [shape: bf16[8,16], index: 5, kind: output, shape index: {}]
  %s6 = sld [smem:[#allocation0]]
  $region30: #{densenet_se_forward.39} parent=0
    _
  %s8 = ssub.s32 1, %s6
  %s9 = scalar_select 0, %s8, %s6
  // Predicated region
  $region2: #{densenet_se_forward.39} parent=0 // pred_check
    _
  $region3: #{densenet_se_forward.39} parent=0 // pred_check_branch
    %11 = sbr.rel (0) target = $region5
  $region4: #{densenet_se_forward.39} parent=0 // pred_region
    _
  $region5: #{densenet_se_forward.39} parent=0 // pred_fallthru
    _
  // Predicated region
  $region6: #{densenet_se_forward.39} parent=0 // pred_check
    _
  $region7: #{densenet_se_forward.39} parent=0 // pred_check_branch
    %13 = sbr.rel (0) target = $region9
  $region8: #{densenet_se_forward.39} parent=0 // pred_region
    _
  $region9: #{densenet_se_forward.39} parent=0 // pred_fallthru
    _
  // Predicated region
  $region10: #{densenet_se_forward.39} parent=0 // pred_check
    _
  $region11: #{densenet_se_forward.39} parent=0 // pred_check_branch
    %15 = sbr.rel (0) target = $region13
  $region12: #{densenet_se_forward.39} parent=0 // pred_region
    _
  $region13: #{densenet_se_forward.39} parent=0 // pred_fallthru
    _
  // Predicated region
  $region14: #{densenet_se_forward.39} parent=0 // pred_check
    _
  $region15: #{densenet_se_forward.39} parent=0 // pred_check_branch
    %17 = sbr.rel (0) target = $region17
  $region16: #{densenet_se_forward.39} parent=0 // pred_region
    _
  $region17: #{densenet_se_forward.39} parent=0 // pred_fallthru
    _
  // Predicated region
  $region18: #{densenet_se_forward.39} parent=0 // pred_check
    _
  $region19: #{densenet_se_forward.39} parent=0 // pred_check_branch
    %19 = sbr.rel (0) target = $region21
  $region20: #{densenet_se_forward.39} parent=0 // pred_region
    _
  $region21: #{densenet_se_forward.39} parent=0 // pred_fallthru
    _
  %v21 = vld [vmem:[%s0] sm:$0xff]
  %v22 = vld [vmem:[%s1] sm:$0x1]
  %v24 = vlaneseq
  %v25 = vshrl.u32 %v24, 7
  %v26 = vsub.s32 0, %v25
  %v27 = vrot.slane %v22, %v26
  %v29 = vmul.f32 %v21, %v27
  %v30 = vld [vmem:[%s2] sm:$0x1]
  %v32 = vlaneseq
  %v33 = vshrl.u32 %v32, 7
  %v34 = vsub.s32 0, %v33
  %v35 = vrot.slane %v30, %v34
  %v37 = vadd.f32 %v29, %v35
  %v38 = vmax.f32 %v37, 0.0
  %v39 = vpack.c.bf16 %v38, %v38
  %v40 = vld [vmem:[%s3] sm:$0xf]
  %v41 = vld [vmem:[%s3 + $0x4] sm:$0xf]
  %v42 = vld [vmem:[%s4] sm:$0x1]
  %v44 = vlaneseq
  %v45 = vshrl.u32 %v44, 7
  %v46 = vsub.s32 0, %v45
  %v47 = vrot.slane %v42, %v46
  %v51 = vunpack.c.l.b16 %v40
  %v52 = vunpack.c.l.b16 %v41
  %v53 = vpack.c.b16 %v52, %v51
  %vm55 = vcmask 130048
  %v57 = vsel %vm55, %v39, 0
  %59 = vmatprep.subr.bf16.mxu0 0
  %60 = vmatpush1.bf16.msra.mxu0 %v53
  %61 = vmatprep.subr.bf16.mxu0 0
  %62 = vmatpush1.bf16.msra.mxu0 0
  %63 = vmatprep.subr.bf16.mxu0 0
  %64 = vmatpush1.bf16.msra.mxu0 0
  %65 = vmatprep.subr.bf16.mxu0 0
  %66 = vmatpush1.bf16.msra.mxu0 0
  %67 = vmatprep.subr.bf16.mxu0 0
  %68 = vmatpush1.bf16.msra.mxu0 0
  %69 = vmatprep.subr.bf16.mxu0 0
  %70 = vmatpush1.bf16.msra.mxu0 0
  %71 = vmatprep.subr.bf16.mxu0 0
  %72 = vmatpush1.bf16.msra.mxu0 0
  %73 = vmatprep.subr.bf16.mxu0 0
  %74 = vmatpush1.bf16.msra.mxu0 0
  %75 = vmatprep.subr.bf16.mxu0 0
  %76 = vmatpush1.bf16.msra.mxu0 0
  %77 = vmatprep.subr.bf16.mxu0 0
  %78 = vmatpush1.bf16.msra.mxu0 0
  %79 = vmatprep.subr.bf16.mxu0 0
  %80 = vmatpush1.bf16.msra.mxu0 0
  %81 = vmatprep.subr.bf16.mxu0 0
  %82 = vmatpush1.bf16.msra.mxu0 0
  %83 = vmatprep.subr.bf16.mxu0 0
  %84 = vmatpush1.bf16.msra.mxu0 0
  %85 = vmatprep.subr.bf16.mxu0 0
  %86 = vmatpush1.bf16.msra.mxu0 0
  %87 = vmatprep.subr.bf16.mxu0 0
  %88 = vmatpush1.bf16.msra.mxu0 0
  %89 = vmatprep.subr.bf16.mxu0 0
  %90 = vmatpush1.bf16.msra.mxu0 0
  %91 = vmatprep.mubr.bf16.mxu0 0
  %92 = vmatmul.mubr.bf16.gmra.mrb[0].mxu0 %v57
  %v93 = vpop.f32.mrb[0].mxu0
  %v94 = vadd.f32 %v47, %v93
  %v95 = vpop.f32.mrb[0].mxu0
  %v96 = vpop.f32.mrb[0].mxu0
  %v97 = vpop.f32.mrb[0].mxu0
  %98 = vdwg.mxu0
  %v99 = vmax.f32 %v94, 0.0
  %v100 = vpack.c.bf16 %v99, %v99
  %vm101 = vcmask 125952
  %102 = vst.msk [vmem:[%s5] sm:$0xf] %vm101, %v100
  // Predicated region
  $region22: #{densenet_se_forward.39} parent=0 // pred_check
    _
  $region23: #{densenet_se_forward.39} parent=0 // pred_check_branch
    %104 = sbr.rel (0) target = $region25
  $region24: #{densenet_se_forward.39} parent=0 // pred_region
    _
  $region25: #{densenet_se_forward.39} parent=0 // pred_fallthru
    _
  // Predicated region
  $region26: #{densenet_se_forward.39} parent=0 // pred_check
    _
  $region27: #{densenet_se_forward.39} parent=0 // pred_check_branch
    %106 = sbr.rel (0) target = $region29
  $region28: #{densenet_se_forward.39} parent=0 // pred_region
    _
  $region29: #{densenet_se_forward.39} parent=0 // pred_fallthru
    _

// kernel: densenet_se_forward.40
$region0: #{densenet_se_forward.40}
  #allocation0 [shape = 'u32[]', space=smem, size = 0x4, offset = 0x4, fixed_abs, tag = 'smem constant byte address 0x4 - core index']
  #allocation1 [shape = 'u32[144,128]{1,0:T(1,128)}', space=vmem, size = 0x12000, scoped, tag = 'internal scratch']
  %s0 = inlined_call_operand.vmem [shape: bf16[8,144], index: 0, kind: input, shape index: {}]
  %s1 = inlined_call_operand.vmem [shape: bf16[144,8], index: 1, kind: input, shape index: {}]
  %s2 = inlined_call_operand.vmem [shape: f32[8,8], index: 2, kind: output, shape index: {}]
  %s3 = sld [smem:[#allocation0]]
  $region18: #{densenet_se_forward.40} parent=0
    _
  %s5 = ssub.s32 1, %s3
  %s6 = scalar_select 0, %s5, %s3
  // Predicated region
  $region2: #{densenet_se_forward.40} parent=0 // pred_check
    _
  $region3: #{densenet_se_forward.40} parent=0 // pred_check_branch
    %8 = sbr.rel (0) target = $region5
  $region4: #{densenet_se_forward.40} parent=0 // pred_region
    _
  $region5: #{densenet_se_forward.40} parent=0 // pred_fallthru
    _
  // Predicated region
  $region6: #{densenet_se_forward.40} parent=0 // pred_check
    _
  $region7: #{densenet_se_forward.40} parent=0 // pred_check_branch
    %10 = sbr.rel (0) target = $region9
  $region8: #{densenet_se_forward.40} parent=0 // pred_region
    _
  $region9: #{densenet_se_forward.40} parent=0 // pred_fallthru
    _
  %v12 = vld [vmem:[%s0] sm:$0xff]
  %v13 = vld [vmem:[%s1] sm:$0xf]
  %v14 = vld [vmem:[%s1 + $0x4] sm:$0xf]
  %v15 = vld [vmem:[%s1 + $0x8] sm:$0xf]
  %v16 = vld [vmem:[%s1 + $0xc] sm:$0xf]
  %v17 = vld [vmem:[%s1 + $0x10] sm:$0xf]
  %v18 = vld [vmem:[%s1 + $0x14] sm:$0xf]
  %v19 = vld [vmem:[%s1 + $0x18] sm:$0xf]
  %v20 = vld [vmem:[%s1 + $0x1c] sm:$0xf]
  %v21 = vld [vmem:[%s1 + $0x20] sm:$0xf]
  %v22 = vld [vmem:[%s1 + $0x24] sm:$0xf]
  %v23 = vld [vmem:[%s1 + $0x28] sm:$0xf]
  %v24 = vld [vmem:[%s1 + $0x2c] sm:$0xf]
  %v25 = vld [vmem:[%s1 + $0x30] sm:$0xf]
  %v26 = vld [vmem:[%s1 + $0x34] sm:$0xf]
  %v27 = vld [vmem:[%s1 + $0x38] sm:$0xf]
  %v28 = vld [vmem:[%s1 + $0x3c] sm:$0xf]
  %v29 = vld [vmem:[%s1 + $0x40] sm:$0xf]
  %v30 = vld [vmem:[%s1 + $0x44] sm:$0xf]
  %v32 = vunpack.c.l.b16 %v12
  %v33 = vunpack.c.h.b16 %v12
  %v34 = vpack.c.b16 %v32, %v32
  %v35 = vpack.c.b16 %v33, %v33
  %v55 = vunpack.c.l.b16 %v13
  %v56 = vunpack.c.l.b16 %v14
  %v57 = vunpack.c.l.b16 %v15
  %v58 = vunpack.c.l.b16 %v16
  %v59 = vunpack.c.l.b16 %v17
  %v60 = vunpack.c.l.b16 %v18
  %v61 = vunpack.c.l.b16 %v19
  %v62 = vunpack.c.l.b16 %v20
  %v63 = vunpack.c.l.b16 %v21
  %v64 = vunpack.c.l.b16 %v22
  %v65 = vunpack.c.l.b16 %v23
  %v66 = vunpack.c.l.b16 %v24
  %v67 = vunpack.c.l.b16 %v25
  %v68 = vunpack.c.l.b16 %v26
  %v69 = vunpack.c.l.b16 %v27
  %v70 = vunpack.c.l.b16 %v28
  %v71 = vunpack.c.l.b16 %v29
  %v72 = vunpack.c.l.b16 %v30
  %v73 = vpack.c.b16 %v56, %v55
  %v74 = vpack.c.b16 %v58, %v57
  %v75 = vpack.c.b16 %v60, %v59
  %v76 = vpack.c.b16 %v62, %v61
  %v77 = vpack.c.b16 %v64, %v63
  %v78 = vpack.c.b16 %v66, %v65
  %v79 = vpack.c.b16 %v68, %v67
  %v80 = vpack.c.b16 %v70, %v69
  %v81 = vpack.c.b16 %v72, %v71
  %vm91 = vcmask 130048
  %v93 = vsel %vm91, %v35, 0
  %95 = vmatprep.subr.bf16.mxu0 0
  %96 = vmatpush1.bf16.msra.mxu0 %v73
  %97 = vmatprep.subr.bf16.mxu0 0
  %98 = vmatpush1.bf16.msra.mxu0 %v74
  %99 = vmatprep.subr.bf16.mxu0 0
  %100 = vmatpush1.bf16.msra.mxu0 %v75
  %101 = vmatprep.subr.bf16.mxu0 0
  %102 = vmatpush1.bf16.msra.mxu0 %v76
  %103 = vmatprep.subr.bf16.mxu0 0
  %104 = vmatpush1.bf16.msra.mxu0 %v77
  %105 = vmatprep.subr.bf16.mxu0 0
  %106 = vmatpush1.bf16.msra.mxu0 %v78
  %107 = vmatprep.subr.bf16.mxu0 0
  %108 = vmatpush1.bf16.msra.mxu0 %v79
  %109 = vmatprep.subr.bf16.mxu0 0
  %110 = vmatpush1.bf16.msra.mxu0 %v80
  %111 = vmatprep.subr.bf16.mxu0 0
  %112 = vmatpush1.bf16.msra.mxu0 %v81
  %113 = vmatprep.subr.bf16.mxu0 0
  %114 = vmatpush1.bf16.msra.mxu0 0
  %115 = vmatprep.subr.bf16.mxu0 0
  %116 = vmatpush1.bf16.msra.mxu0 0
  %117 = vmatprep.subr.bf16.mxu0 0
  %118 = vmatpush1.bf16.msra.mxu0 0
  %119 = vmatprep.subr.bf16.mxu0 0
  %120 = vmatpush1.bf16.msra.mxu0 0
  %121 = vmatprep.subr.bf16.mxu0 0
  %122 = vmatpush1.bf16.msra.mxu0 0
  %123 = vmatprep.subr.bf16.mxu0 0
  %124 = vmatpush1.bf16.msra.mxu0 0
  %125 = vmatprep.subr.bf16.mxu0 0
  %126 = vmatpush1.bf16.msra.mxu0 0
  %127 = vmatprep.mubr.bf16.mxu0 %v93
  %128 = vmatmul.mubr.bf16.gmra.mrb[0].mxu0 %v34
  %v129 = vpop.f32.mrb[0].mxu0
  %v130 = vadd.f32 0.0, %v129
  %v131 = vpop.f32.mrb[0].mxu0
  %v132 = vpop.f32.mrb[0].mxu0
  %v133 = vpop.f32.mrb[0].mxu0
  %134 = vdwg.mxu0
  %vm135 = vcmask 64512
  %136 = vst.msk [vmem:[%s2] sm:$0xff] %vm135, %v130
  // Predicated region
  $region10: #{densenet_se_forward.40} parent=0 // pred_check
    _
  $region11: #{densenet_se_forward.40} parent=0 // pred_check_branch
    %138 = sbr.rel (0) target = $region13
  $region12: #{densenet_se_forward.40} parent=0 // pred_region
    _
  $region13: #{densenet_se_forward.40} parent=0 // pred_fallthru
    _
  // Predicated region
  $region14: #{densenet_se_forward.40} parent=0 // pred_check
    _
  $region15: #{densenet_se_forward.40} parent=0 // pred_check_branch
    %140 = sbr.rel (0) target = $region17
  $region16: #{densenet_se_forward.40} parent=0 // pred_region
    _
  $region17: #{densenet_se_forward.40} parent=0 // pred_fallthru
    _

// kernel: densenet_se_forward.41
$region0: #{densenet_se_forward.41}
  #allocation0 [shape = 'u32[]', space=smem, size = 0x4, offset = 0x4, fixed_abs, tag = 'smem constant byte address 0x4 - core index']
  #allocation1 [shape = 'u32[144,128]{1,0:T(1,128)}', space=vmem, size = 0x12000, scoped, tag = 'internal scratch']
  %s0 = inlined_call_operand.vmem [shape: f32[8,24], index: 0, kind: input, shape index: {}]
  %s1 = inlined_call_operand.vmem [shape: f32[1,24], index: 1, kind: input, shape index: {}]
  %s2 = inlined_call_operand.vmem [shape: f32[1,24], index: 2, kind: input, shape index: {}]
  %s3 = inlined_call_operand.vmem [shape: bf16[24,16], index: 3, kind: input, shape index: {}]
  %s4 = inlined_call_operand.vmem [shape: f32[1,16], index: 4, kind: input, shape index: {}]
  %s5 = inlined_call_operand.vmem [shape: bf16[8,16], index: 5, kind: output, shape index: {}]
  %s6 = sld [smem:[#allocation0]]
  $region30: #{densenet_se_forward.41} parent=0
    _
  %s8 = ssub.s32 1, %s6
  %s9 = scalar_select 0, %s8, %s6
  // Predicated region
  $region2: #{densenet_se_forward.41} parent=0 // pred_check
    _
  $region3: #{densenet_se_forward.41} parent=0 // pred_check_branch
    %11 = sbr.rel (0) target = $region5
  $region4: #{densenet_se_forward.41} parent=0 // pred_region
    _
  $region5: #{densenet_se_forward.41} parent=0 // pred_fallthru
    _
  // Predicated region
  $region6: #{densenet_se_forward.41} parent=0 // pred_check
    _
  $region7: #{densenet_se_forward.41} parent=0 // pred_check_branch
    %13 = sbr.rel (0) target = $region9
  $region8: #{densenet_se_forward.41} parent=0 // pred_region
    _
  $region9: #{densenet_se_forward.41} parent=0 // pred_fallthru
    _
  // Predicated region
  $region10: #{densenet_se_forward.41} parent=0 // pred_check
    _
  $region11: #{densenet_se_forward.41} parent=0 // pred_check_branch
    %15 = sbr.rel (0) target = $region13
  $region12: #{densenet_se_forward.41} parent=0 // pred_region
    _
  $region13: #{densenet_se_forward.41} parent=0 // pred_fallthru
    _
  // Predicated region
  $region14: #{densenet_se_forward.41} parent=0 // pred_check
    _
  $region15: #{densenet_se_forward.41} parent=0 // pred_check_branch
    %17 = sbr.rel (0) target = $region17
  $region16: #{densenet_se_forward.41} parent=0 // pred_region
    _
  $region17: #{densenet_se_forward.41} parent=0 // pred_fallthru
    _
  // Predicated region
  $region18: #{densenet_se_forward.41} parent=0 // pred_check
    _
  $region19: #{densenet_se_forward.41} parent=0 // pred_check_branch
    %19 = sbr.rel (0) target = $region21
  $region20: #{densenet_se_forward.41} parent=0 // pred_region
    _
  $region21: #{densenet_se_forward.41} parent=0 // pred_fallthru
    _
  %v21 = vld [vmem:[%s0] sm:$0xff]
  %v22 = vld [vmem:[%s1] sm:$0x1]
  %v24 = vlaneseq
  %v25 = vshrl.u32 %v24, 7
  %v26 = vsub.s32 0, %v25
  %v27 = vrot.slane %v22, %v26
  %v29 = vmul.f32 %v21, %v27
  %v30 = vld [vmem:[%s2] sm:$0x1]
  %v32 = vlaneseq
  %v33 = vshrl.u32 %v32, 7
  %v34 = vsub.s32 0, %v33
  %v35 = vrot.slane %v30, %v34
  %v37 = vadd.f32 %v29, %v35
  %v38 = vmax.f32 %v37, 0.0
  %v39 = vpack.c.bf16 %v38, %v38
  %v40 = vld [vmem:[%s3] sm:$0xf]
  %v41 = vld [vmem:[%s3 + $0x4] sm:$0xf]
  %v42 = vld [vmem:[%s3 + $0x8] sm:$0xf]
  %v43 = vld [vmem:[%s4] sm:$0x1]
  %v45 = vlaneseq
  %v46 = vshrl.u32 %v45, 7
  %v47 = vsub.s32 0, %v46
  %v48 = vrot.slane %v43, %v47
  %v53 = vunpack.c.l.b16 %v40
  %v54 = vunpack.c.l.b16 %v41
  %v55 = vunpack.c.l.b16 %v42
  %v56 = vpack.c.b16 %v54, %v53
  %v57 = vpack.c.b16 %v55, %v55
  %vm59 = vcmask 195584
  %v61 = vsel %vm59, %v39, 0
  %vm63 = vcmask 1043456
  %v65 = vsel %vm63, %v57, 0
  %67 = vmatprep.subr.bf16.mxu0 0
  %68 = vmatpush1.bf16.msra.mxu0 %v56
  %69 = vmatprep.subr.bf16.mxu0 0
  %70 = vmatpush1.bf16.msra.mxu0 %v65
  %71 = vmatprep.subr.bf16.mxu0 0
  %72 = vmatpush1.bf16.msra.mxu0 0
  %73 = vmatprep.subr.bf16.mxu0 0
  %74 = vmatpush1.bf16.msra.mxu0 0
  %75 = vmatprep.subr.bf16.mxu0 0
  %76 = vmatpush1.bf16.msra.mxu0 0
  %77 = vmatprep.subr.bf16.mxu0 0
  %78 = vmatpush1.bf16.msra.mxu0 0
  %79 = vmatprep.subr.bf16.mxu0 0
  %80 = vmatpush1.bf16.msra.mxu0 0
  %81 = vmatprep.subr.bf16.mxu0 0
  %82 = vmatpush1.bf16.msra.mxu0 0
  %83 = vmatprep.subr.bf16.mxu0 0
  %84 = vmatpush1.bf16.msra.mxu0 0
  %85 = vmatprep.subr.bf16.mxu0 0
  %86 = vmatpush1.bf16.msra.mxu0 0
  %87 = vmatprep.subr.bf16.mxu0 0
  %88 = vmatpush1.bf16.msra.mxu0 0
  %89 = vmatprep.subr.bf16.mxu0 0
  %90 = vmatpush1.bf16.msra.mxu0 0
  %91 = vmatprep.subr.bf16.mxu0 0
  %92 = vmatpush1.bf16.msra.mxu0 0
  %93 = vmatprep.subr.bf16.mxu0 0
  %94 = vmatpush1.bf16.msra.mxu0 0
  %95 = vmatprep.subr.bf16.mxu0 0
  %96 = vmatpush1.bf16.msra.mxu0 0
  %97 = vmatprep.subr.bf16.mxu0 0
  %98 = vmatpush1.bf16.msra.mxu0 0
  %99 = vmatprep.mubr.bf16.mxu0 0
  %100 = vmatmul.mubr.bf16.gmra.mrb[0].mxu0 %v61
  %v101 = vpop.f32.mrb[0].mxu0
  %v102 = vadd.f32 %v48, %v101
  %v103 = vpop.f32.mrb[0].mxu0
  %v104 = vpop.f32.mrb[0].mxu0
  %v105 = vpop.f32.mrb[0].mxu0
  %106 = vdwg.mxu0
  %v107 = vmax.f32 %v102, 0.0
  %v108 = vpack.c.bf16 %v107, %v107
  %vm109 = vcmask 125952
  %110 = vst.msk [vmem:[%s5] sm:$0xf] %vm109, %v108
  // Predicated region
  $region22: #{densenet_se_forward.41} parent=0 // pred_check
    _
  $region23: #{densenet_se_forward.41} parent=0 // pred_check_branch
    %112 = sbr.rel (0) target = $region25
  $region24: #{densenet_se_forward.41} parent=0 // pred_region
    _
  $region25: #{densenet_se_forward.41} parent=0 // pred_fallthru
    _
  // Predicated region
  $region26: #{densenet_se_forward.41} parent=0 // pred_check
    _
  $region27: #{densenet_se_forward.41} parent=0 // pred_check_branch
    %114 = sbr.rel (0) target = $region29
  $region28: #{densenet_se_forward.41} parent=0 // pred_region
    _
  $region29: #{densenet_se_forward.41} parent=0 // pred_fallthru
    _

// kernel: densenet_se_forward.43
$region0: #{densenet_se_forward.43}
  #allocation0 [shape = 'u32[]', space=smem, size = 0x4, offset = 0x4, fixed_abs, tag = 'smem constant byte address 0x4 - core index']
  #allocation1 [shape = 'u32[144,128]{1,0:T(1,128)}', space=vmem, size = 0x12000, scoped, tag = 'internal scratch']
  %s0 = inlined_call_operand.vmem [shape: f32[8,32], index: 0, kind: input, shape index: {}]
  %s1 = inlined_call_operand.vmem [shape: f32[1,32], index: 1, kind: input, shape index: {}]
  %s2 = inlined_call_operand.vmem [shape: f32[1,32], index: 2, kind: input, shape index: {}]
  %s3 = inlined_call_operand.vmem [shape: bf16[32,16], index: 3, kind: input, shape index: {}]
  %s4 = inlined_call_operand.vmem [shape: f32[8,32], index: 4, kind: output, shape index: {0}]
  %s5 = inlined_call_operand.vmem [shape: f32[8,16], index: 5, kind: output, shape index: {1}]
  %6 = xla_tuple %s4, %s5
  %s7 = sld [smem:[#allocation0]]
  $region34: #{densenet_se_forward.43} parent=0
    _
  %s9 = ssub.s32 1, %s7
  %s10 = scalar_select 0, %s9, %s7
  // Predicated region
  $region2: #{densenet_se_forward.43} parent=0 // pred_check
    _
  $region3: #{densenet_se_forward.43} parent=0 // pred_check_branch
    %12 = sbr.rel (0) target = $region5
  $region4: #{densenet_se_forward.43} parent=0 // pred_region
    _
  $region5: #{densenet_se_forward.43} parent=0 // pred_fallthru
    _
  // Predicated region
  $region6: #{densenet_se_forward.43} parent=0 // pred_check
    _
  $region7: #{densenet_se_forward.43} parent=0 // pred_check_branch
    %14 = sbr.rel (0) target = $region9
  $region8: #{densenet_se_forward.43} parent=0 // pred_region
    _
  $region9: #{densenet_se_forward.43} parent=0 // pred_fallthru
    _
  // Predicated region
  $region10: #{densenet_se_forward.43} parent=0 // pred_check
    _
  $region11: #{densenet_se_forward.43} parent=0 // pred_check_branch
    %16 = sbr.rel (0) target = $region13
  $region12: #{densenet_se_forward.43} parent=0 // pred_region
    _
  $region13: #{densenet_se_forward.43} parent=0 // pred_fallthru
    _
  // Predicated region
  $region14: #{densenet_se_forward.43} parent=0 // pred_check
    _
  $region15: #{densenet_se_forward.43} parent=0 // pred_check_branch
    %18 = sbr.rel (0) target = $region17
  $region16: #{densenet_se_forward.43} parent=0 // pred_region
    _
  $region17: #{densenet_se_forward.43} parent=0 // pred_fallthru
    _
  %v20 = vld [vmem:[%s0] sm:$0xff]
  %v21 = vld [vmem:[%s1] sm:$0x1]
  %v23 = vlaneseq
  %v24 = vshrl.u32 %v23, 7
  %v25 = vsub.s32 0, %v24
  %v26 = vrot.slane %v21, %v25
  %v28 = vmul.f32 %v20, %v26
  %v29 = vld [vmem:[%s2] sm:$0x1]
  %v31 = vlaneseq
  %v32 = vshrl.u32 %v31, 7
  %v33 = vsub.s32 0, %v32
  %v34 = vrot.slane %v29, %v33
  %v36 = vadd.f32 %v28, %v34
  %v37 = vmax.f32 %v36, 0.0
  %vm38 = vcmask 261120
  %39 = vst.msk [vmem:[%s4] sm:$0xff] %vm38, %v37
  %v40 = vpack.c.bf16 %v37, %v37
  %v41 = vld [vmem:[%s3] sm:$0xf]
  %v42 = vld [vmem:[%s3 + $0x4] sm:$0xf]
  %v43 = vld [vmem:[%s3 + $0x8] sm:$0xf]
  %v44 = vld [vmem:[%s3 + $0xc] sm:$0xf]
  %v49 = vunpack.c.l.b16 %v41
  %v50 = vunpack.c.l.b16 %v42
  %v51 = vunpack.c.l.b16 %v43
  %v52 = vunpack.c.l.b16 %v44
  %v53 = vpack.c.b16 %v50, %v49
  %v54 = vpack.c.b16 %v52, %v51
  %v58 = vsel %vm38, %v40, 0
  %60 = vmatprep.subr.bf16.mxu0 0
  %61 = vmatpush1.bf16.msra.mxu0 %v53
  %62 = vmatprep.subr.bf16.mxu0 0
  %63 = vmatpush1.bf16.msra.mxu0 %v54
  %64 = vmatprep.subr.bf16.mxu0 0
  %65 = vmatpush1.bf16.msra.mxu0 0
  %66 = vmatprep.subr.bf16.mxu0 0
  %67 = vmatpush1.bf16.msra.mxu0 0
  %68 = vmatprep.subr.bf16.mxu0 0
  %69 = vmatpush1.bf16.msra.mxu0 0
  %70 = vmatprep.subr.bf16.mxu0 0
  %71 = vmatpush1.bf16.msra.mxu0 0
  %72 = vmatprep.subr.bf16.mxu0 0
  %73 = vmatpush1.bf16.msra.mxu0 0
  %74 = vmatprep.subr.bf16.mxu0 0
  %75 = vmatpush1.bf16.msra.mxu0 0
  %76 = vmatprep.subr.bf16.mxu0 0
  %77 = vmatpush1.bf16.msra.mxu0 0
  %78 = vmatprep.subr.bf16.mxu0 0
  %79 = vmatpush1.bf16.msra.mxu0 0
  %80 = vmatprep.subr.bf16.mxu0 0
  %81 = vmatpush1.bf16.msra.mxu0 0
  %82 = vmatprep.subr.bf16.mxu0 0
  %83 = vmatpush1.bf16.msra.mxu0 0
  %84 = vmatprep.subr.bf16.mxu0 0
  %85 = vmatpush1.bf16.msra.mxu0 0
  %86 = vmatprep.subr.bf16.mxu0 0
  %87 = vmatpush1.bf16.msra.mxu0 0
  %88 = vmatprep.subr.bf16.mxu0 0
  %89 = vmatpush1.bf16.msra.mxu0 0
  %90 = vmatprep.subr.bf16.mxu0 0
  %91 = vmatpush1.bf16.msra.mxu0 0
  %92 = vmatprep.mubr.bf16.mxu0 0
  %93 = vmatmul.mubr.bf16.gmra.mrb[0].mxu0 %v58
  %v94 = vpop.f32.mrb[0].mxu0
  %v95 = vadd.f32 0.0, %v94
  %v96 = vpop.f32.mrb[0].mxu0
  %v97 = vpop.f32.mrb[0].mxu0
  %v98 = vpop.f32.mrb[0].mxu0
  %99 = vdwg.mxu0
  %vm100 = vcmask 130048
  %101 = vst.msk [vmem:[%s5] sm:$0xff] %vm100, %v95
  // Predicated region
  $region18: #{densenet_se_forward.43} parent=0 // pred_check
    _
  $region19: #{densenet_se_forward.43} parent=0 // pred_check_branch
    %103 = sbr.rel (0) target = $region21
  $region20: #{densenet_se_forward.43} parent=0 // pred_region
    _
  $region21: #{densenet_se_forward.43} parent=0 // pred_fallthru
    _
  // Predicated region
  $region22: #{densenet_se_forward.43} parent=0 // pred_check
    _
  $region23: #{densenet_se_forward.43} parent=0 // pred_check_branch
    %105 = sbr.rel (0) target = $region25
  $region24: #{densenet_se_forward.43} parent=0 // pred_region
    _
  $region25: #{densenet_se_forward.43} parent=0 // pred_fallthru
    _
  // Predicated region
  $region26: #{densenet_se_forward.43} parent=0 // pred_check
    _
  $region27: #{densenet_se_forward.43} parent=0 // pred_check_branch
    %107 = sbr.rel (0) target = $region29
  $region28: #{densenet_se_forward.43} parent=0 // pred_region
    _
  $region29: #{densenet_se_forward.43} parent=0 // pred_fallthru
    _
  // Predicated region
  $region30: #{densenet_se_forward.43} parent=0 // pred_check
    _
  $region31: #{densenet_se_forward.43} parent=0 // pred_check_branch
    %109 = sbr.rel (0) target = $region33
  $region32: #{densenet_se_forward.43} parent=0 // pred_region
    _
  $region33: #{densenet_se_forward.43} parent=0 // pred_fallthru
    _

// kernel: densenet_se_forward.38
$region0: #{densenet_se_forward.38}
  #allocation0 [shape = 'u32[]', space=smem, size = 0x4, offset = 0x4, fixed_abs, tag = 'smem constant byte address 0x4 - core index']
  #allocation1 [shape = 'u32[144,128]{1,0:T(1,128)}', space=vmem, size = 0x12000, scoped, tag = 'internal scratch']
  #allocation2 [shape = 'f32[1,1]{1,0:T(1,128)S(1)}', space=vmem, size = 0x200, scoped, tag = 'scoped memory for densenet_se_forward.38']
  #allocation3 [shape = 'f32[1,1]{1,0:T(1,128)S(1)}', space=vmem, size = 0x200, scoped, tag = 'scoped memory for densenet_se_forward.38']
  %s0 = inlined_call_operand.vmem [shape: f32[4,2,4,16], index: 0, kind: input, shape index: {}]
  %s1 = inlined_call_operand.vmem [shape: f32[2,16,32], index: 1, kind: input, shape index: {}]
  %s2 = inlined_call_operand.vmem [shape: f32[16,8], index: 2, kind: input, shape index: {}]
  %s3 = inlined_call_operand.vmem [shape: f32[1,8], index: 3, kind: input, shape index: {}]
  %s4 = inlined_call_operand.vmem [shape: f32[8,16], index: 4, kind: input, shape index: {}]
  %s5 = inlined_call_operand.vmem [shape: f32[1,16], index: 5, kind: input, shape index: {}]
  %s6 = inlined_call_operand.vmem [shape: f32[1,16], index: 6, kind: input, shape index: {}]
  %s7 = inlined_call_operand.<no memory space> [shape: f32[1,1], index: 7, kind: input, shape index: {}]
  %s8 = inlined_call_operand.vmem [shape: f32[32,16], index: 8, kind: input, shape index: {}]
  %s9 = inlined_call_operand.vmem [shape: f32[1,16], index: 9, kind: input, shape index: {}]
  %s10 = inlined_call_operand.vmem [shape: f32[16,32], index: 10, kind: input, shape index: {}]
  %s11 = inlined_call_operand.vmem [shape: f32[1,32], index: 11, kind: input, shape index: {}]
  %s12 = inlined_call_operand.vmem [shape: f32[1,32], index: 12, kind: input, shape index: {}]
  %s13 = inlined_call_operand.<no memory space> [shape: f32[1,1], index: 13, kind: input, shape index: {}]
  %s14 = inlined_call_operand.vmem [shape: f32[2,4,16], index: 14, kind: output, shape index: {0}]
  %s15 = inlined_call_operand.hbm [shape: f32[2,16,32], index: 15, kind: output, shape index: {1}]
  %16 = xla_tuple %s14, %s15
  %s17 = sld [smem:[#allocation0]]
  $region74: #{densenet_se_forward.38} parent=0
    _
  %s19 = ssub.s32 1, %s17
  %s20 = scalar_select 0, %s19, %s17
  %v21 = vstv %s7
  %22 = vst [vmem:[#allocation2] sm:$0x1] %v21
  %v23 = vstv %s13
  %24 = vst [vmem:[#allocation3] sm:$0x1] %v23
  $region1: #{densenet_se_forward.38} parent=0
    #allocation4 [shape = 'u8[16384]{0}', space=vmem, size = 0x4000, scoped, tag = 'output window, operand 1, single buffered']
    #allocation5 [shape = 's32[1]{0}', space=sflag, size = 0x4, scoped, tag = 'scoped memory for densenet_se_forward.38']
    %25 = vsyncpa [#allocation5], 0
    // Predicated region
    $region2: #{densenet_se_forward.38} parent=1 // pred_check
      _
    $region3: #{densenet_se_forward.38} parent=1 // pred_check_branch
      %27 = sbr.rel (0) target = $region5
    $region4: #{densenet_se_forward.38} parent=1 // pred_region
      _
    $region5: #{densenet_se_forward.38} parent=1 // pred_fallthru
      _
    // Predicated region
    $region6: #{densenet_se_forward.38} parent=1 // pred_check
      _
    $region7: #{densenet_se_forward.38} parent=1 // pred_check_branch
      %29 = sbr.rel (0) target = $region9
    $region8: #{densenet_se_forward.38} parent=1 // pred_region
      _
    $region9: #{densenet_se_forward.38} parent=1 // pred_fallthru
      _
    // Predicated region
    $region10: #{densenet_se_forward.38} parent=1 // pred_check
      _
    $region11: #{densenet_se_forward.38} parent=1 // pred_check_branch
      %31 = sbr.rel (0) target = $region13
    $region12: #{densenet_se_forward.38} parent=1 // pred_region
      _
    $region13: #{densenet_se_forward.38} parent=1 // pred_fallthru
      _
    // Predicated region
    $region14: #{densenet_se_forward.38} parent=1 // pred_check
      _
    $region15: #{densenet_se_forward.38} parent=1 // pred_check_branch
      %33 = sbr.rel (0) target = $region17
    $region16: #{densenet_se_forward.38} parent=1 // pred_region
      _
    $region17: #{densenet_se_forward.38} parent=1 // pred_fallthru
      _
    // Predicated region
    $region18: #{densenet_se_forward.38} parent=1 // pred_check
      _
    $region19: #{densenet_se_forward.38} parent=1 // pred_check_branch
      %35 = sbr.rel (0) target = $region21
    $region20: #{densenet_se_forward.38} parent=1 // pred_region
      _
    $region21: #{densenet_se_forward.38} parent=1 // pred_fallthru
      _
    // Predicated region
    $region22: #{densenet_se_forward.38} parent=1 // pred_check
      _
    $region23: #{densenet_se_forward.38} parent=1 // pred_check_branch
      %37 = sbr.rel (0) target = $region25
    $region24: #{densenet_se_forward.38} parent=1 // pred_region
      _
    $region25: #{densenet_se_forward.38} parent=1 // pred_fallthru
      _
    // Predicated region
    $region26: #{densenet_se_forward.38} parent=1 // pred_check
      _
    $region27: #{densenet_se_forward.38} parent=1 // pred_check_branch
      %39 = sbr.rel (0) target = $region29
    $region28: #{densenet_se_forward.38} parent=1 // pred_region
      _
    $region29: #{densenet_se_forward.38} parent=1 // pred_fallthru
      _
    // Predicated region
    $region30: #{densenet_se_forward.38} parent=1 // pred_check
      _
    $region31: #{densenet_se_forward.38} parent=1 // pred_check_branch
      %41 = sbr.rel (0) target = $region33
    $region32: #{densenet_se_forward.38} parent=1 // pred_region
      _
    $region33: #{densenet_se_forward.38} parent=1 // pred_fallthru
      _
    // Predicated region
    $region34: #{densenet_se_forward.38} parent=1 // pred_check
      _
    $region35: #{densenet_se_forward.38} parent=1 // pred_check_branch
      %43 = sbr.rel (0) target = $region37
    $region36: #{densenet_se_forward.38} parent=1 // pred_region
      _
    $region37: #{densenet_se_forward.38} parent=1 // pred_fallthru
      _
    // Predicated region
    $region38: #{densenet_se_forward.38} parent=1 // pred_check
      _
    $region39: #{densenet_se_forward.38} parent=1 // pred_check_branch
      %45 = sbr.rel (0) target = $region41
    $region40: #{densenet_se_forward.38} parent=1 // pred_region
      _
    $region41: #{densenet_se_forward.38} parent=1 // pred_fallthru
      _
    // Predicated region
    $region42: #{densenet_se_forward.38} parent=1 // pred_check
      _
    $region43: #{densenet_se_forward.38} parent=1 // pred_check_branch
      %47 = sbr.rel (0) target = $region45
    $region44: #{densenet_se_forward.38} parent=1 // pred_region
      _
    $region45: #{densenet_se_forward.38} parent=1 // pred_fallthru
      _
    // Predicated region
    $region46: #{densenet_se_forward.38} parent=1 // pred_check
      _
    $region47: #{densenet_se_forward.38} parent=1 // pred_check_branch
      %49 = sbr.rel (0) target = $region49
    $region48: #{densenet_se_forward.38} parent=1 // pred_region
      _
    $region49: #{densenet_se_forward.38} parent=1 // pred_fallthru
      _
    // Predicated region
    $region50: #{densenet_se_forward.38} parent=1 // pred_check
      _
    $region51: #{densenet_se_forward.38} parent=1 // pred_check_branch
      %51 = sbr.rel (0) target = $region53
    $region52: #{densenet_se_forward.38} parent=1 // pred_region
      _
    $region53: #{densenet_se_forward.38} parent=1 // pred_fallthru
      _
    // Predicated region
    $region54: #{densenet_se_forward.38} parent=1 // pred_check
      _
    $region55: #{densenet_se_forward.38} parent=1 // pred_check_branch
      %53 = sbr.rel (0) target = $region57
    $region56: #{densenet_se_forward.38} parent=1 // pred_region
      _
    $region57: #{densenet_se_forward.38} parent=1 // pred_fallthru
      _
    %v54 = vld [vmem:[%s0] sm:$0xf]
    %v55 = vld [vmem:[%s0 + $0x4] sm:$0xf]
    %s56 = scalar_lea.vmem %s0, 8
    %v57 = vld [vmem:[%s56] sm:$0xf]
    %v58 = vld [vmem:[%s56 + $0x4] sm:$0xf]
    %v59 = vadd.f32 %v54, %v57
    %v60 = vadd.f32 %v55, %v58
    %s61 = scalar_lea.vmem %s0, 16
    %v62 = vld [vmem:[%s61] sm:$0xf]
    %v63 = vld [vmem:[%s61 + $0x4] sm:$0xf]
    %v64 = vadd.f32 %v59, %v62
    %v65 = vadd.f32 %v60, %v63
    %s66 = scalar_lea.vmem %s0, 24
    %v67 = vld [vmem:[%s66] sm:$0xf]
    %v68 = vld [vmem:[%s66 + $0x4] sm:$0xf]
    %v69 = vadd.f32 %v64, %v67
    %v70 = vadd.f32 %v65, %v68
    %v71 = vmul.f32 %v69, 0.25
    %v72 = vmul.f32 %v70, 0.25
    %v73 = vld [vmem:[%s2] sm:$0xff]
    %v74 = vld [vmem:[%s2 + $0x8] sm:$0xff]
    %v75 = vld [vmem:[%s3] sm:$0x1]
    %v76 = vld [vmem:[%s4] sm:$0xff]
    %v77 = vld [vmem:[%s5] sm:$0x1]
    %v78 = vld [vmem:[%s6] sm:$0x1]
    %v79 = vld [vmem:[#allocation2] sm:$0x1]
    %vm80 = vcmask 125952
    %v81 = vsel %vm80, %v71, 0.0
    %v82 = vrot.slane %v81, 4
    %v83 = vadd.f32 %v81, %v82
    %v84 = vrot.slane %v83, 2
    %v85 = vadd.f32 %v83, %v84
    %v86 = vrot.slane %v85, 1
    %v87 = vadd.f32 %v85, %v86
    %v88 = vmul.f32 %v87, 0.25
    %vm89 = vcmask 130048
    %v91 = vsel %vm89, %v88, 0
    %93 = vmatprep.subr.mxu0 0.0
    %94 = vmatpush1.msra.mxu0 %v73
    %95 = vmatprep.subr.mxu0 0.0
    %96 = vmatpush1.msra.mxu0 %v74
    %97 = vmatprep.subr.mxu0 0.0
    %98 = vmatpush1.msra.mxu0 0.0
    %99 = vmatprep.subr.mxu0 0.0
    %100 = vmatpush1.msra.mxu0 0.0
    %101 = vmatprep.subr.mxu0 0.0
    %102 = vmatpush1.msra.mxu0 0.0
    %103 = vmatprep.subr.mxu0 0.0
    %104 = vmatpush1.msra.mxu0 0.0
    %105 = vmatprep.subr.mxu0 0.0
    %106 = vmatpush1.msra.mxu0 0.0
    %107 = vmatprep.subr.mxu0 0.0
    %108 = vmatpush1.msra.mxu0 0.0
    %109 = vmatprep.subr.mxu0 0.0
    %110 = vmatpush1.msra.mxu0 0.0
    %111 = vmatprep.subr.mxu0 0.0
    %112 = vmatpush1.msra.mxu0 0.0
    %113 = vmatprep.subr.mxu0 0.0
    %114 = vmatpush1.msra.mxu0 0.0
    %115 = vmatprep.subr.mxu0 0.0
    %116 = vmatpush1.msra.mxu0 0.0
    %117 = vmatprep.subr.mxu0 0.0
    %118 = vmatpush1.msra.mxu0 0.0
    %119 = vmatprep.subr.mxu0 0.0
    %120 = vmatpush1.msra.mxu0 0.0
    %121 = vmatprep.subr.mxu0 0.0
    %122 = vmatpush1.msra.mxu0 0.0
    %123 = vmatprep.subr.mxu0 0.0
    %124 = vmatpush1.msra.mxu0 0.0
    %125 = vmatprep.subr.mxu0 0.0
    %126 = vmatpush1.msra.mxu0 0.0
    %127 = vmatprep.subr.mxu0 0.0
    %128 = vmatpush1.msra.mxu0 0.0
    %129 = vmatprep.subr.mxu0 0.0
    %130 = vmatpush1.msra.mxu0 0.0
    %131 = vmatprep.subr.mxu0 0.0
    %132 = vmatpush1.msra.mxu0 0.0
    %133 = vmatprep.subr.mxu0 0.0
    %134 = vmatpush1.msra.mxu0 0.0
    %135 = vmatprep.subr.mxu0 0.0
    %136 = vmatpush1.msra.mxu0 0.0
    %137 = vmatprep.subr.mxu0 0.0
    %138 = vmatpush1.msra.mxu0 0.0
    %139 = vmatprep.subr.mxu0 0.0
    %140 = vmatpush1.msra.mxu0 0.0
    %141 = vmatprep.subr.mxu0 0.0
    %142 = vmatpush1.msra.mxu0 0.0
    %143 = vmatprep.subr.mxu0 0.0
    %144 = vmatpush1.msra.mxu0 0.0
    %145 = vmatprep.subr.mxu0 0.0
    %146 = vmatpush1.msra.mxu0 0.0
    %147 = vmatprep.subr.mxu0 0.0
    %148 = vmatpush1.msra.mxu0 0.0
    %149 = vmatprep.subr.mxu0 0.0
    %150 = vmatpush1.msra.mxu0 0.0
    %151 = vmatprep.subr.mxu0 0.0
    %152 = vmatpush1.msra.mxu0 0.0
    %153 = vmatprep.subr.mxu0 0.0
    %154 = vmatpush1.msra.mxu0 0.0
    %155 = vmatprep.subr.mxu0 0.0
    %156 = vmatpush1.msra.mxu0 0.0
    %157 = vmatprep.mubr.f32.mxu0 0.0
    %158 = vmatmul.mubr.f32.gmra.mrb[0].mxu0 %v91
    %v159 = vpop.f32.mrb[0].mxu0
    %v160 = vadd.f32 %v75, %v159
    %v161 = vpop.f32.mrb[0].mxu0
    %162 = vdwg.mxu0
    %v163 = vmax.f32 %v160, 0.0
    %vm164 = vcmask 64512
    %v166 = vsel %vm164, %v163, 0
    %168 = vmatprep.subr.mxu0 0.0
    %169 = vmatpush1.msra.mxu0 %v76
    %170 = vmatprep.subr.mxu0 0.0
    %171 = vmatpush1.msra.mxu0 0.0
    %172 = vmatprep.subr.mxu0 0.0
    %173 = vmatpush1.msra.mxu0 0.0
    %174 = vmatprep.subr.mxu0 0.0
    %175 = vmatpush1.msra.mxu0 0.0
    %176 = vmatprep.subr.mxu0 0.0
    %177 = vmatpush1.msra.mxu0 0.0
    %178 = vmatprep.subr.mxu0 0.0
    %179 = vmatpush1.msra.mxu0 0.0
    %180 = vmatprep.subr.mxu0 0.0
    %181 = vmatpush1.msra.mxu0 0.0
    %182 = vmatprep.subr.mxu0 0.0
    %183 = vmatpush1.msra.mxu0 0.0
    %184 = vmatprep.subr.mxu0 0.0
    %185 = vmatpush1.msra.mxu0 0.0
    %186 = vmatprep.subr.mxu0 0.0
    %187 = vmatpush1.msra.mxu0 0.0
    %188 = vmatprep.subr.mxu0 0.0
    %189 = vmatpush1.msra.mxu0 0.0
    %190 = vmatprep.subr.mxu0 0.0
    %191 = vmatpush1.msra.mxu0 0.0
    %192 = vmatprep.subr.mxu0 0.0
    %193 = vmatpush1.msra.mxu0 0.0
    %194 = vmatprep.subr.mxu0 0.0
    %195 = vmatpush1.msra.mxu0 0.0
    %196 = vmatprep.subr.mxu0 0.0
    %197 = vmatpush1.msra.mxu0 0.0
    %198 = vmatprep.subr.mxu0 0.0
    %199 = vmatpush1.msra.mxu0 0.0
    %200 = vmatprep.subr.mxu0 0.0
    %201 = vmatpush1.msra.mxu0 0.0
    %202 = vmatprep.subr.mxu0 0.0
    %203 = vmatpush1.msra.mxu0 0.0
    %204 = vmatprep.subr.mxu0 0.0
    %205 = vmatpush1.msra.mxu0 0.0
    %206 = vmatprep.subr.mxu0 0.0
    %207 = vmatpush1.msra.mxu0 0.0
    %208 = vmatprep.subr.mxu0 0.0
    %209 = vmatpush1.msra.mxu0 0.0
    %210 = vmatprep.subr.mxu0 0.0
    %211 = vmatpush1.msra.mxu0 0.0
    %212 = vmatprep.subr.mxu0 0.0
    %213 = vmatpush1.msra.mxu0 0.0
    %214 = vmatprep.subr.mxu0 0.0
    %215 = vmatpush1.msra.mxu0 0.0
    %216 = vmatprep.subr.mxu0 0.0
    %217 = vmatpush1.msra.mxu0 0.0
    %218 = vmatprep.subr.mxu0 0.0
    %219 = vmatpush1.msra.mxu0 0.0
    %220 = vmatprep.subr.mxu0 0.0
    %221 = vmatpush1.msra.mxu0 0.0
    %222 = vmatprep.subr.mxu0 0.0
    %223 = vmatpush1.msra.mxu0 0.0
    %224 = vmatprep.subr.mxu0 0.0
    %225 = vmatpush1.msra.mxu0 0.0
    %226 = vmatprep.subr.mxu0 0.0
    %227 = vmatpush1.msra.mxu0 0.0
    %228 = vmatprep.subr.mxu0 0.0
    %229 = vmatpush1.msra.mxu0 0.0
    %230 = vmatprep.subr.mxu0 0.0
    %231 = vmatpush1.msra.mxu0 0.0
    %232 = vmatprep.mubr.f32.mxu0 0.0
    %233 = vmatmul.mubr.f32.gmra.mrb[0].mxu0 %v166
    %v234 = vpop.f32.mrb[0].mxu0
    %v235 = vadd.f32 %v77, %v234
    %v236 = vpop.f32.mrb[0].mxu0
    %237 = vdwg.mxu0
    %v238 = vmul.f32 %v235, 0.5
    %v239 = vtanh.pop %v238
    %v240 = vadd.f32 %v239, 1.0
    %v241 = vmul.f32 %v240, 0.5
    %v243 = vlaneseq
    %v244 = vshrl.u32 %v243, 7
    %v245 = vsub.s32 0, %v244
    %v246 = vrot.slane %v78, %v245
    %v248 = vmul.f32 %v71, %v246
    %v249 = vsel %vm80, %v248, 0.0
    %250 = vadd.xlane.f32.xlu0 %v249
    %v251 = vpop.xlane.xlu0 %250
    %v253 = vlaneseq
    %v254 = vshrl.u32 %v253, 7
    %v255 = vsub.s32 0, %v254
    %v256 = vrot.slane %v79, %v255
    %v258 = vadd.f32 %v251, %v256
    %v259 = vmul.f32 %v258, 0.5
    %v260 = vtanh.pop %v259
    %v261 = vadd.f32 %v260, 1.0
    %v262 = vmul.f32 %v261, 0.5
    %264 = vset.pattern.permute.xlu0 0
    %265 = vperm.xlu0 %264, %v262
    %v266 = vpop.permute.xlu0 %265
    %v268 = vmul.f32 %v71, %v266
    %v269 = vlaneseq
    %v270 = vshrl.u32 %v269, 7
    %v271 = vsub.s32 0, %v270
    %v272 = vrot.slane %v241, %v271
    %v273 = vmul.f32 %v71, %v272
    %v274 = vadd.f32 %v268, %v273
    %275 = vst.msk [vmem:[%s14] sm:$0xf] %vm80, %v274
    %v276 = vld [vmem:[%s1] sm:$0xff]
    %v277 = vld [vmem:[%s1 + $0x8] sm:$0xff]
    %v278 = vld [vmem:[%s8] sm:$0xff]
    %v279 = vld [vmem:[%s8 + $0x8] sm:$0xff]
    %v280 = vld [vmem:[%s8 + $0x10] sm:$0xff]
    %v281 = vld [vmem:[%s8 + $0x18] sm:$0xff]
    %v282 = vld [vmem:[%s9] sm:$0x1]
    %v283 = vld [vmem:[%s10] sm:$0xff]
    %v284 = vld [vmem:[%s10 + $0x8] sm:$0xff]
    %v285 = vld [vmem:[%s11] sm:$0x1]
    %v286 = vld [vmem:[%s12] sm:$0x1]
    %v287 = vld [vmem:[#allocation3] sm:$0x1]
    %vm288 = vcmask 261120
    %v289 = vsel %vm288, %v276, 0.0
    %v290 = vsel %vm288, %v277, 0.0
    %v291 = vadd.f32 %v289, %v290
    %v292 = vrot.slane %v291, 4
    %v293 = vadd.f32 %v291, %v292
    %v294 = vrot.slane %v293, 2
    %v295 = vadd.f32 %v293, %v294
    %v296 = vrot.slane %v295, 1
    %v297 = vadd.f32 %v295, %v296
    %v298 = vmul.f32 %v297, 0.0625
    %v300 = vsel %vm288, %v298, 0
    %302 = vmatprep.subr.mxu0 0.0
    %303 = vmatpush1.msra.mxu0 %v278
    %304 = vmatprep.subr.mxu0 0.0
    %305 = vmatpush1.msra.mxu0 %v279
    %306 = vmatprep.subr.mxu0 0.0
    %307 = vmatpush1.msra.mxu0 %v280
    %308 = vmatprep.subr.mxu0 0.0
    %309 = vmatpush1.msra.mxu0 %v281
    %310 = vmatprep.subr.mxu0 0.0
    %311 = vmatpush1.msra.mxu0 0.0
    %312 = vmatprep.subr.mxu0 0.0
    %313 = vmatpush1.msra.mxu0 0.0
    %314 = vmatprep.subr.mxu0 0.0
    %315 = vmatpush1.msra.mxu0 0.0
    %316 = vmatprep.subr.mxu0 0.0
    %317 = vmatpush1.msra.mxu0 0.0
    %318 = vmatprep.subr.mxu0 0.0
    %319 = vmatpush1.msra.mxu0 0.0
    %320 = vmatprep.subr.mxu0 0.0
    %321 = vmatpush1.msra.mxu0 0.0
    %322 = vmatprep.subr.mxu0 0.0
    %323 = vmatpush1.msra.mxu0 0.0
    %324 = vmatprep.subr.mxu0 0.0
    %325 = vmatpush1.msra.mxu0 0.0
    %326 = vmatprep.subr.mxu0 0.0
    %327 = vmatpush1.msra.mxu0 0.0
    %328 = vmatprep.subr.mxu0 0.0
    %329 = vmatpush1.msra.mxu0 0.0
    %330 = vmatprep.subr.mxu0 0.0
    %331 = vmatpush1.msra.mxu0 0.0
    %332 = vmatprep.subr.mxu0 0.0
    %333 = vmatpush1.msra.mxu0 0.0
    %334 = vmatprep.subr.mxu0 0.0
    %335 = vmatpush1.msra.mxu0 0.0
    %336 = vmatprep.subr.mxu0 0.0
    %337 = vmatpush1.msra.mxu0 0.0
    %338 = vmatprep.subr.mxu0 0.0
    %339 = vmatpush1.msra.mxu0 0.0
    %340 = vmatprep.subr.mxu0 0.0
    %341 = vmatpush1.msra.mxu0 0.0
    %342 = vmatprep.subr.mxu0 0.0
    %343 = vmatpush1.msra.mxu0 0.0
    %344 = vmatprep.subr.mxu0 0.0
    %345 = vmatpush1.msra.mxu0 0.0
    %346 = vmatprep.subr.mxu0 0.0
    %347 = vmatpush1.msra.mxu0 0.0
    %348 = vmatprep.subr.mxu0 0.0
    %349 = vmatpush1.msra.mxu0 0.0
    %350 = vmatprep.subr.mxu0 0.0
    %351 = vmatpush1.msra.mxu0 0.0
    %352 = vmatprep.subr.mxu0 0.0
    %353 = vmatpush1.msra.mxu0 0.0
    %354 = vmatprep.subr.mxu0 0.0
    %355 = vmatpush1.msra.mxu0 0.0
    %356 = vmatprep.subr.mxu0 0.0
    %357 = vmatpush1.msra.mxu0 0.0
    %358 = vmatprep.subr.mxu0 0.0
    %359 = vmatpush1.msra.mxu0 0.0
    %360 = vmatprep.subr.mxu0 0.0
    %361 = vmatpush1.msra.mxu0 0.0
    %362 = vmatprep.subr.mxu0 0.0
    %363 = vmatpush1.msra.mxu0 0.0
    %364 = vmatprep.subr.mxu0 0.0
    %365 = vmatpush1.msra.mxu0 0.0
    %366 = vmatprep.mubr.f32.mxu0 0.0
    %367 = vmatmul.mubr.f32.gmra.mrb[0].mxu0 %v300
    %v368 = vpop.f32.mrb[0].mxu0
    %v369 = vadd.f32 %v282, %v368
    %v370 = vpop.f32.mrb[0].mxu0
    %371 = vdwg.mxu0
    %v372 = vmax.f32 %v369, 0.0
    %v374 = vsel %vm89, %v372, 0
    %376 = vmatprep.subr.mxu0 0.0
    %377 = vmatpush1.msra.mxu0 %v283
    %378 = vmatprep.subr.mxu0 0.0
    %379 = vmatpush1.msra.mxu0 %v284
    %380 = vmatprep.subr.mxu0 0.0
    %381 = vmatpush1.msra.mxu0 0.0
    %382 = vmatprep.subr.mxu0 0.0
    %383 = vmatpush1.msra.mxu0 0.0
    %384 = vmatprep.subr.mxu0 0.0
    %385 = vmatpush1.msra.mxu0 0.0
    %386 = vmatprep.subr.mxu0 0.0
    %387 = vmatpush1.msra.mxu0 0.0
    %388 = vmatprep.subr.mxu0 0.0
    %389 = vmatpush1.msra.mxu0 0.0
    %390 = vmatprep.subr.mxu0 0.0
    %391 = vmatpush1.msra.mxu0 0.0
    %392 = vmatprep.subr.mxu0 0.0
    %393 = vmatpush1.msra.mxu0 0.0
    %394 = vmatprep.subr.mxu0 0.0
    %395 = vmatpush1.msra.mxu0 0.0
    %396 = vmatprep.subr.mxu0 0.0
    %397 = vmatpush1.msra.mxu0 0.0
    %398 = vmatprep.subr.mxu0 0.0
    %399 = vmatpush1.msra.mxu0 0.0
    %400 = vmatprep.subr.mxu0 0.0
    %401 = vmatpush1.msra.mxu0 0.0
    %402 = vmatprep.subr.mxu0 0.0
    %403 = vmatpush1.msra.mxu0 0.0
    %404 = vmatprep.subr.mxu0 0.0
    %405 = vmatpush1.msra.mxu0 0.0
    %406 = vmatprep.subr.mxu0 0.0
    %407 = vmatpush1.msra.mxu0 0.0
    %408 = vmatprep.subr.mxu0 0.0
    %409 = vmatpush1.msra.mxu0 0.0
    %410 = vmatprep.subr.mxu0 0.0
    %411 = vmatpush1.msra.mxu0 0.0
    %412 = vmatprep.subr.mxu0 0.0
    %413 = vmatpush1.msra.mxu0 0.0
    %414 = vmatprep.subr.mxu0 0.0
    %415 = vmatpush1.msra.mxu0 0.0
    %416 = vmatprep.subr.mxu0 0.0
    %417 = vmatpush1.msra.mxu0 0.0
    %418 = vmatprep.subr.mxu0 0.0
    %419 = vmatpush1.msra.mxu0 0.0
    %420 = vmatprep.subr.mxu0 0.0
    %421 = vmatpush1.msra.mxu0 0.0
    %422 = vmatprep.subr.mxu0 0.0
    %423 = vmatpush1.msra.mxu0 0.0
    %424 = vmatprep.subr.mxu0 0.0
    %425 = vmatpush1.msra.mxu0 0.0
    %426 = vmatprep.subr.mxu0 0.0
    %427 = vmatpush1.msra.mxu0 0.0
    %428 = vmatprep.subr.mxu0 0.0
    %429 = vmatpush1.msra.mxu0 0.0
    %430 = vmatprep.subr.mxu0 0.0
    %431 = vmatpush1.msra.mxu0 0.0
    %432 = vmatprep.subr.mxu0 0.0
    %433 = vmatpush1.msra.mxu0 0.0
    %434 = vmatprep.subr.mxu0 0.0
    %435 = vmatpush1.msra.mxu0 0.0
    %436 = vmatprep.subr.mxu0 0.0
    %437 = vmatpush1.msra.mxu0 0.0
    %438 = vmatprep.subr.mxu0 0.0
    %439 = vmatpush1.msra.mxu0 0.0
    %440 = vmatprep.mubr.f32.mxu0 0.0
    %441 = vmatmul.mubr.f32.gmra.mrb[0].mxu0 %v374
    %v442 = vpop.f32.mrb[0].mxu0
    %v443 = vadd.f32 %v285, %v442
    %v444 = vpop.f32.mrb[0].mxu0
    %445 = vdwg.mxu0
    %v446 = vmul.f32 %v443, 0.5
    %v447 = vtanh.pop %v446
    %v448 = vadd.f32 %v447, 1.0
    %v449 = vmul.f32 %v448, 0.5
    %v451 = vlaneseq
    %v452 = vshrl.u32 %v451, 7
    %v453 = vsub.s32 0, %v452
    %v454 = vrot.slane %v286, %v453
    %v456 = vmul.f32 %v276, %v454
    %v457 = vmul.f32 %v277, %v454
    %v458 = vsel %vm288, %v456, 0.0
    %459 = vadd.xlane.f32.xlu0 %v458
    %v460 = vpop.xlane.xlu0 %459
    %v461 = vsel %vm288, %v457, 0.0
    %462 = vadd.xlane.f32.xlu0 %v461
    %v463 = vpop.xlane.xlu0 %462
    %v465 = vlaneseq
    %v466 = vshrl.u32 %v465, 7
    %v467 = vsub.s32 0, %v466
    %v468 = vrot.slane %v287, %v467
    %v470 = vadd.f32 %v460, %v468
    %v471 = vadd.f32 %v463, %v468
    %v472 = vmul.f32 %v470, 0.5
    %v473 = vmul.f32 %v471, 0.5
    %v474 = vtanh.pop %v472
    %v475 = vtanh.pop %v473
    %v476 = vadd.f32 %v474, 1.0
    %v477 = vadd.f32 %v475, 1.0
    %v478 = vmul.f32 %v476, 0.5
    %v479 = vmul.f32 %v477, 0.5
    %481 = vset.pattern.permute.xlu0 0
    %482 = vperm.xlu0 %481, %v478
    %v483 = vpop.permute.xlu0 %482
    %486 = vset.pattern.permute.xlu0 0
    %487 = vperm.xlu0 %486, %v479
    %v488 = vpop.permute.xlu0 %487
    %v490 = vmul.f32 %v276, %v483
    %v491 = vmul.f32 %v277, %v488
    %v492 = vlaneseq
    %v493 = vshrl.u32 %v492, 7
    %v494 = vsub.s32 0, %v493
    %v495 = vrot.slane %v449, %v494
    %v496 = vmul.f32 %v276, %v495
    %v497 = vmul.f32 %v277, %v495
    %v498 = vadd.f32 %v490, %v496
    %v499 = vadd.f32 %v491, %v497
    %500 = vst.msk [vmem:[#allocation4] sm:$0xff] %vm288, %v498
    %501 = vst.msk [vmem:[#allocation4 + $0x8] sm:$0xff] %vm288, %v499
    %v502 = vld [vmem:[%s2] sm:$0xff]
    %v503 = vld [vmem:[%s2 + $0x8] sm:$0xff]
    %v504 = vld [vmem:[%s3] sm:$0x1]
    %v505 = vld [vmem:[%s4] sm:$0xff]
    %v506 = vld [vmem:[%s5] sm:$0x1]
    %v507 = vld [vmem:[%s6] sm:$0x1]
    %v508 = vld [vmem:[#allocation2] sm:$0x1]
    %v509 = vsel %vm80, %v72, 0.0
    %v510 = vrot.slane %v509, 4
    %v511 = vadd.f32 %v509, %v510
    %v512 = vrot.slane %v511, 2
    %v513 = vadd.f32 %v511, %v512
    %v514 = vrot.slane %v513, 1
    %v515 = vadd.f32 %v513, %v514
    %v516 = vmul.f32 %v515, 0.25
    %v518 = vsel %vm89, %v516, 0
    %520 = vmatprep.subr.mxu0 0.0
    %521 = vmatpush1.msra.mxu0 %v502
    %522 = vmatprep.subr.mxu0 0.0
    %523 = vmatpush1.msra.mxu0 %v503
    %524 = vmatprep.subr.mxu0 0.0
    %525 = vmatpush1.msra.mxu0 0.0
    %526 = vmatprep.subr.mxu0 0.0
    %527 = vmatpush1.msra.mxu0 0.0
    %528 = vmatprep.subr.mxu0 0.0
    %529 = vmatpush1.msra.mxu0 0.0
    %530 = vmatprep.subr.mxu0 0.0
    %531 = vmatpush1.msra.mxu0 0.0
    %532 = vmatprep.subr.mxu0 0.0
    %533 = vmatpush1.msra.mxu0 0.0
    %534 = vmatprep.subr.mxu0 0.0
    %535 = vmatpush1.msra.mxu0 0.0
    %536 = vmatprep.subr.mxu0 0.0
    %537 = vmatpush1.msra.mxu0 0.0
    %538 = vmatprep.subr.mxu0 0.0
    %539 = vmatpush1.msra.mxu0 0.0
    %540 = vmatprep.subr.mxu0 0.0
    %541 = vmatpush1.msra.mxu0 0.0
    %542 = vmatprep.subr.mxu0 0.0
    %543 = vmatpush1.msra.mxu0 0.0
    %544 = vmatprep.subr.mxu0 0.0
    %545 = vmatpush1.msra.mxu0 0.0
    %546 = vmatprep.subr.mxu0 0.0
    %547 = vmatpush1.msra.mxu0 0.0
    %548 = vmatprep.subr.mxu0 0.0
    %549 = vmatpush1.msra.mxu0 0.0
    %550 = vmatprep.subr.mxu0 0.0
    %551 = vmatpush1.msra.mxu0 0.0
    %552 = vmatprep.subr.mxu0 0.0
    %553 = vmatpush1.msra.mxu0 0.0
    %554 = vmatprep.subr.mxu0 0.0
    %555 = vmatpush1.msra.mxu0 0.0
    %556 = vmatprep.subr.mxu0 0.0
    %557 = vmatpush1.msra.mxu0 0.0
    %558 = vmatprep.subr.mxu0 0.0
    %559 = vmatpush1.msra.mxu0 0.0
    %560 = vmatprep.subr.mxu0 0.0
    %561 = vmatpush1.msra.mxu0 0.0
    %562 = vmatprep.subr.mxu0 0.0
    %563 = vmatpush1.msra.mxu0 0.0
    %564 = vmatprep.subr.mxu0 0.0
    %565 = vmatpush1.msra.mxu0 0.0
    %566 = vmatprep.subr.mxu0 0.0
    %567 = vmatpush1.msra.mxu0 0.0
    %568 = vmatprep.subr.mxu0 0.0
    %569 = vmatpush1.msra.mxu0 0.0
    %570 = vmatprep.subr.mxu0 0.0
    %571 = vmatpush1.msra.mxu0 0.0
    %572 = vmatprep.subr.mxu0 0.0
    %573 = vmatpush1.msra.mxu0 0.0
    %574 = vmatprep.subr.mxu0 0.0
    %575 = vmatpush1.msra.mxu0 0.0
    %576 = vmatprep.subr.mxu0 0.0
    %577 = vmatpush1.msra.mxu0 0.0
    %578 = vmatprep.subr.mxu0 0.0
    %579 = vmatpush1.msra.mxu0 0.0
    %580 = vmatprep.subr.mxu0 0.0
    %581 = vmatpush1.msra.mxu0 0.0
    %582 = vmatprep.subr.mxu0 0.0
    %583 = vmatpush1.msra.mxu0 0.0
    %584 = vmatprep.mubr.f32.mxu0 0.0
    %585 = vmatmul.mubr.f32.gmra.mrb[0].mxu0 %v518
    %v586 = vpop.f32.mrb[0].mxu0
    %v587 = vadd.f32 %v504, %v586
    %v588 = vpop.f32.mrb[0].mxu0
    %589 = vdwg.mxu0
    %v590 = vmax.f32 %v587, 0.0
    %v592 = vsel %vm164, %v590, 0
    %594 = vmatprep.subr.mxu0 0.0
    %595 = vmatpush1.msra.mxu0 %v505
    %596 = vmatprep.subr.mxu0 0.0
    %597 = vmatpush1.msra.mxu0 0.0
    %598 = vmatprep.subr.mxu0 0.0
    %599 = vmatpush1.msra.mxu0 0.0
    %600 = vmatprep.subr.mxu0 0.0
    %601 = vmatpush1.msra.mxu0 0.0
    %602 = vmatprep.subr.mxu0 0.0
    %603 = vmatpush1.msra.mxu0 0.0
    %604 = vmatprep.subr.mxu0 0.0
    %605 = vmatpush1.msra.mxu0 0.0
    %606 = vmatprep.subr.mxu0 0.0
    %607 = vmatpush1.msra.mxu0 0.0
    %608 = vmatprep.subr.mxu0 0.0
    %609 = vmatpush1.msra.mxu0 0.0
    %610 = vmatprep.subr.mxu0 0.0
    %611 = vmatpush1.msra.mxu0 0.0
    %612 = vmatprep.subr.mxu0 0.0
    %613 = vmatpush1.msra.mxu0 0.0
    %614 = vmatprep.subr.mxu0 0.0
    %615 = vmatpush1.msra.mxu0 0.0
    %616 = vmatprep.subr.mxu0 0.0
    %617 = vmatpush1.msra.mxu0 0.0
    %618 = vmatprep.subr.mxu0 0.0
    %619 = vmatpush1.msra.mxu0 0.0
    %620 = vmatprep.subr.mxu0 0.0
    %621 = vmatpush1.msra.mxu0 0.0
    %622 = vmatprep.subr.mxu0 0.0
    %623 = vmatpush1.msra.mxu0 0.0
    %624 = vmatprep.subr.mxu0 0.0
    %625 = vmatpush1.msra.mxu0 0.0
    %626 = vmatprep.subr.mxu0 0.0
    %627 = vmatpush1.msra.mxu0 0.0
    %628 = vmatprep.subr.mxu0 0.0
    %629 = vmatpush1.msra.mxu0 0.0
    %630 = vmatprep.subr.mxu0 0.0
    %631 = vmatpush1.msra.mxu0 0.0
    %632 = vmatprep.subr.mxu0 0.0
    %633 = vmatpush1.msra.mxu0 0.0
    %634 = vmatprep.subr.mxu0 0.0
    %635 = vmatpush1.msra.mxu0 0.0
    %636 = vmatprep.subr.mxu0 0.0
    %637 = vmatpush1.msra.mxu0 0.0
    %638 = vmatprep.subr.mxu0 0.0
    %639 = vmatpush1.msra.mxu0 0.0
    %640 = vmatprep.subr.mxu0 0.0
    %641 = vmatpush1.msra.mxu0 0.0
    %642 = vmatprep.subr.mxu0 0.0
    %643 = vmatpush1.msra.mxu0 0.0
    %644 = vmatprep.subr.mxu0 0.0
    %645 = vmatpush1.msra.mxu0 0.0
    %646 = vmatprep.subr.mxu0 0.0
    %647 = vmatpush1.msra.mxu0 0.0
    %648 = vmatprep.subr.mxu0 0.0
    %649 = vmatpush1.msra.mxu0 0.0
    %650 = vmatprep.subr.mxu0 0.0
    %651 = vmatpush1.msra.mxu0 0.0
    %652 = vmatprep.subr.mxu0 0.0
    %653 = vmatpush1.msra.mxu0 0.0
    %654 = vmatprep.subr.mxu0 0.0
    %655 = vmatpush1.msra.mxu0 0.0
    %656 = vmatprep.subr.mxu0 0.0
    %657 = vmatpush1.msra.mxu0 0.0
    %658 = vmatprep.mubr.f32.mxu0 0.0
    %659 = vmatmul.mubr.f32.gmra.mrb[0].mxu0 %v592
    %v660 = vpop.f32.mrb[0].mxu0
    %v661 = vadd.f32 %v506, %v660
    %v662 = vpop.f32.mrb[0].mxu0
    %663 = vdwg.mxu0
    %v664 = vmul.f32 %v661, 0.5
    %v665 = vtanh.pop %v664
    %v666 = vadd.f32 %v665, 1.0
    %v667 = vmul.f32 %v666, 0.5
    %v669 = vlaneseq
    %v670 = vshrl.u32 %v669, 7
    %v671 = vsub.s32 0, %v670
    %v672 = vrot.slane %v507, %v671
    %v674 = vmul.f32 %v72, %v672
    %v675 = vsel %vm80, %v674, 0.0
    %676 = vadd.xlane.f32.xlu0 %v675
    %v677 = vpop.xlane.xlu0 %676
    %v679 = vlaneseq
    %v680 = vshrl.u32 %v679, 7
    %v681 = vsub.s32 0, %v680
    %v682 = vrot.slane %v508, %v681
    %v684 = vadd.f32 %v677, %v682
    %v685 = vmul.f32 %v684, 0.5
    %v686 = vtanh.pop %v685
    %v687 = vadd.f32 %v686, 1.0
    %v688 = vmul.f32 %v687, 0.5
    %690 = vset.pattern.permute.xlu0 0
    %691 = vperm.xlu0 %690, %v688
    %v692 = vpop.permute.xlu0 %691
    %v694 = vmul.f32 %v72, %v692
    %v695 = vlaneseq
    %v696 = vshrl.u32 %v695, 7
    %v697 = vsub.s32 0, %v696
    %v698 = vrot.slane %v667, %v697
    %v699 = vmul.f32 %v72, %v698
    %v700 = vadd.f32 %v694, %v699
    %s701 = scalar_lea.vmem %s14, 4
    %702 = vst.msk [vmem:[%s701] sm:$0xf] %vm80, %v700
    %s703 = scalar_lea.vmem %s1, 16
    %v704 = vld [vmem:[%s703] sm:$0xff]
    %v705 = vld [vmem:[%s703 + $0x8] sm:$0xff]
    %v706 = vld [vmem:[%s8] sm:$0xff]
    %v707 = vld [vmem:[%s8 + $0x8] sm:$0xff]
    %v708 = vld [vmem:[%s8 + $0x10] sm:$0xff]
    %v709 = vld [vmem:[%s8 + $0x18] sm:$0xff]
    %v710 = vld [vmem:[%s9] sm:$0x1]
    %v711 = vld [vmem:[%s10] sm:$0xff]
    %v712 = vld [vmem:[%s10 + $0x8] sm:$0xff]
    %v713 = vld [vmem:[%s11] sm:$0x1]
    %v714 = vld [vmem:[%s12] sm:$0x1]
    %v715 = vld [vmem:[#allocation3] sm:$0x1]
    %v716 = vsel %vm288, %v704, 0.0
    %v717 = vsel %vm288, %v705, 0.0
    %v718 = vadd.f32 %v716, %v717
    %v719 = vrot.slane %v718, 4
    %v720 = vadd.f32 %v718, %v719
    %v721 = vrot.slane %v720, 2
    %v722 = vadd.f32 %v720, %v721
    %v723 = vrot.slane %v722, 1
    %v724 = vadd.f32 %v722, %v723
    %v725 = vmul.f32 %v724, 0.0625
    %v727 = vsel %vm288, %v725, 0
    %729 = vmatprep.subr.mxu0 0.0
    %730 = vmatpush1.msra.mxu0 %v706
    %731 = vmatprep.subr.mxu0 0.0
    %732 = vmatpush1.msra.mxu0 %v707
    %733 = vmatprep.subr.mxu0 0.0
    %734 = vmatpush1.msra.mxu0 %v708
    %735 = vmatprep.subr.mxu0 0.0
    %736 = vmatpush1.msra.mxu0 %v709
    %737 = vmatprep.subr.mxu0 0.0
    %738 = vmatpush1.msra.mxu0 0.0
    %739 = vmatprep.subr.mxu0 0.0
    %740 = vmatpush1.msra.mxu0 0.0
    %741 = vmatprep.subr.mxu0 0.0
    %742 = vmatpush1.msra.mxu0 0.0
    %743 = vmatprep.subr.mxu0 0.0
    %744 = vmatpush1.msra.mxu0 0.0
    %745 = vmatprep.subr.mxu0 0.0
    %746 = vmatpush1.msra.mxu0 0.0
    %747 = vmatprep.subr.mxu0 0.0
    %748 = vmatpush1.msra.mxu0 0.0
    %749 = vmatprep.subr.mxu0 0.0
    %750 = vmatpush1.msra.mxu0 0.0
    %751 = vmatprep.subr.mxu0 0.0
    %752 = vmatpush1.msra.mxu0 0.0
    %753 = vmatprep.subr.mxu0 0.0
    %754 = vmatpush1.msra.mxu0 0.0
    %755 = vmatprep.subr.mxu0 0.0
    %756 = vmatpush1.msra.mxu0 0.0
    %757 = vmatprep.subr.mxu0 0.0
    %758 = vmatpush1.msra.mxu0 0.0
    %759 = vmatprep.subr.mxu0 0.0
    %760 = vmatpush1.msra.mxu0 0.0
    %761 = vmatprep.subr.mxu0 0.0
    %762 = vmatpush1.msra.mxu0 0.0
    %763 = vmatprep.subr.mxu0 0.0
    %764 = vmatpush1.msra.mxu0 0.0
    %765 = vmatprep.subr.mxu0 0.0
    %766 = vmatpush1.msra.mxu0 0.0
    %767 = vmatprep.subr.mxu0 0.0
    %768 = vmatpush1.msra.mxu0 0.0
    %769 = vmatprep.subr.mxu0 0.0
    %770 = vmatpush1.msra.mxu0 0.0
    %771 = vmatprep.subr.mxu0 0.0
    %772 = vmatpush1.msra.mxu0 0.0
    %773 = vmatprep.subr.mxu0 0.0
    %774 = vmatpush1.msra.mxu0 0.0
    %775 = vmatprep.subr.mxu0 0.0
    %776 = vmatpush1.msra.mxu0 0.0
    %777 = vmatprep.subr.mxu0 0.0
    %778 = vmatpush1.msra.mxu0 0.0
    %779 = vmatprep.subr.mxu0 0.0
    %780 = vmatpush1.msra.mxu0 0.0
    %781 = vmatprep.subr.mxu0 0.0
    %782 = vmatpush1.msra.mxu0 0.0
    %783 = vmatprep.subr.mxu0 0.0
    %784 = vmatpush1.msra.mxu0 0.0
    %785 = vmatprep.subr.mxu0 0.0
    %786 = vmatpush1.msra.mxu0 0.0
    %787 = vmatprep.subr.mxu0 0.0
    %788 = vmatpush1.msra.mxu0 0.0
    %789 = vmatprep.subr.mxu0 0.0
    %790 = vmatpush1.msra.mxu0 0.0
    %791 = vmatprep.subr.mxu0 0.0
    %792 = vmatpush1.msra.mxu0 0.0
    %793 = vmatprep.mubr.f32.mxu0 0.0
    %794 = vmatmul.mubr.f32.gmra.mrb[0].mxu0 %v727
    %v795 = vpop.f32.mrb[0].mxu0
    %v796 = vadd.f32 %v710, %v795
    %v797 = vpop.f32.mrb[0].mxu0
    %798 = vdwg.mxu0
    %v799 = vmax.f32 %v796, 0.0
    %v801 = vsel %vm89, %v799, 0
    %803 = vmatprep.subr.mxu0 0.0
    %804 = vmatpush1.msra.mxu0 %v711
    %805 = vmatprep.subr.mxu0 0.0
    %806 = vmatpush1.msra.mxu0 %v712
    %807 = vmatprep.subr.mxu0 0.0
    %808 = vmatpush1.msra.mxu0 0.0
    %809 = vmatprep.subr.mxu0 0.0
    %810 = vmatpush1.msra.mxu0 0.0
    %811 = vmatprep.subr.mxu0 0.0
    %812 = vmatpush1.msra.mxu0 0.0
    %813 = vmatprep.subr.mxu0 0.0
    %814 = vmatpush1.msra.mxu0 0.0
    %815 = vmatprep.subr.mxu0 0.0
    %816 = vmatpush1.msra.mxu0 0.0
    %817 = vmatprep.subr.mxu0 0.0
    %818 = vmatpush1.msra.mxu0 0.0
    %819 = vmatprep.subr.mxu0 0.0
    %820 = vmatpush1.msra.mxu0 0.0
    %821 = vmatprep.subr.mxu0 0.0
    %822 = vmatpush1.msra.mxu0 0.0
    %823 = vmatprep.subr.mxu0 0.0
    %824 = vmatpush1.msra.mxu0 0.0
    %825 = vmatprep.subr.mxu0 0.0
    %826 = vmatpush1.msra.mxu0 0.0
    %827 = vmatprep.subr.mxu0 0.0
    %828 = vmatpush1.msra.mxu0 0.0
    %829 = vmatprep.subr.mxu0 0.0
    %830 = vmatpush1.msra.mxu0 0.0
    %831 = vmatprep.subr.mxu0 0.0
    %832 = vmatpush1.msra.mxu0 0.0
    %833 = vmatprep.subr.mxu0 0.0
    %834 = vmatpush1.msra.mxu0 0.0
    %835 = vmatprep.subr.mxu0 0.0
    %836 = vmatpush1.msra.mxu0 0.0
    %837 = vmatprep.subr.mxu0 0.0
    %838 = vmatpush1.msra.mxu0 0.0
    %839 = vmatprep.subr.mxu0 0.0
    %840 = vmatpush1.msra.mxu0 0.0
    %841 = vmatprep.subr.mxu0 0.0
    %842 = vmatpush1.msra.mxu0 0.0
    %843 = vmatprep.subr.mxu0 0.0
    %844 = vmatpush1.msra.mxu0 0.0
    %845 = vmatprep.subr.mxu0 0.0
    %846 = vmatpush1.msra.mxu0 0.0
    %847 = vmatprep.subr.mxu0 0.0
    %848 = vmatpush1.msra.mxu0 0.0
    %849 = vmatprep.subr.mxu0 0.0
    %850 = vmatpush1.msra.mxu0 0.0
    %851 = vmatprep.subr.mxu0 0.0
    %852 = vmatpush1.msra.mxu0 0.0
    %853 = vmatprep.subr.mxu0 0.0
    %854 = vmatpush1.msra.mxu0 0.0
    %855 = vmatprep.subr.mxu0 0.0
    %856 = vmatpush1.msra.mxu0 0.0
    %857 = vmatprep.subr.mxu0 0.0
    %858 = vmatpush1.msra.mxu0 0.0
    %859 = vmatprep.subr.mxu0 0.0
    %860 = vmatpush1.msra.mxu0 0.0
    %861 = vmatprep.subr.mxu0 0.0
    %862 = vmatpush1.msra.mxu0 0.0
    %863 = vmatprep.subr.mxu0 0.0
    %864 = vmatpush1.msra.mxu0 0.0
    %865 = vmatprep.subr.mxu0 0.0
    %866 = vmatpush1.msra.mxu0 0.0
    %867 = vmatprep.mubr.f32.mxu0 0.0
    %868 = vmatmul.mubr.f32.gmra.mrb[0].mxu0 %v801
    %v869 = vpop.f32.mrb[0].mxu0
    %v870 = vadd.f32 %v713, %v869
    %v871 = vpop.f32.mrb[0].mxu0
    %872 = vdwg.mxu0
    %v873 = vmul.f32 %v870, 0.5
    %v874 = vtanh.pop %v873
    %v875 = vadd.f32 %v874, 1.0
    %v876 = vmul.f32 %v875, 0.5
    %v878 = vlaneseq
    %v879 = vshrl.u32 %v878, 7
    %v880 = vsub.s32 0, %v879
    %v881 = vrot.slane %v714, %v880
    %v883 = vmul.f32 %v704, %v881
    %v884 = vmul.f32 %v705, %v881
    %v885 = vsel %vm288, %v883, 0.0
    %886 = vadd.xlane.f32.xlu0 %v885
    %v887 = vpop.xlane.xlu0 %886
    %v888 = vsel %vm288, %v884, 0.0
    %889 = vadd.xlane.f32.xlu0 %v888
    %v890 = vpop.xlane.xlu0 %889
    %v892 = vlaneseq
    %v893 = vshrl.u32 %v892, 7
    %v894 = vsub.s32 0, %v893
    %v895 = vrot.slane %v715, %v894
    %v897 = vadd.f32 %v887, %v895
    %v898 = vadd.f32 %v890, %v895
    %v899 = vmul.f32 %v897, 0.5
    %v900 = vmul.f32 %v898, 0.5
    %v901 = vtanh.pop %v899
    %v902 = vtanh.pop %v900
    %v903 = vadd.f32 %v901, 1.0
    %v904 = vadd.f32 %v902, 1.0
    %v905 = vmul.f32 %v903, 0.5
    %v906 = vmul.f32 %v904, 0.5
    %908 = vset.pattern.permute.xlu0 0
    %909 = vperm.xlu0 %908, %v905
    %v910 = vpop.permute.xlu0 %909
    %913 = vset.pattern.permute.xlu0 0
    %914 = vperm.xlu0 %913, %v906
    %v915 = vpop.permute.xlu0 %914
    %v917 = vmul.f32 %v704, %v910
    %v918 = vmul.f32 %v705, %v915
    %v919 = vlaneseq
    %v920 = vshrl.u32 %v919, 7
    %v921 = vsub.s32 0, %v920
    %v922 = vrot.slane %v876, %v921
    %v923 = vmul.f32 %v704, %v922
    %v924 = vmul.f32 %v705, %v922
    %v925 = vadd.f32 %v917, %v923
    %v926 = vadd.f32 %v918, %v924
    %s927 = scalar_lea.vmem [#allocation4], 16
    %928 = vst.msk [vmem:[%s927] sm:$0xff] %vm288, %v925
    %929 = vst.msk [vmem:[%s927 + $0x8] sm:$0xff] %vm288, %v926
    // Predicated region
    $region58: #{densenet_se_forward.38} parent=1 // pred_check
      _
    $region59: #{densenet_se_forward.38} parent=1 // pred_check_branch
      %931 = sbr.rel (0) target = $region61
    $region60: #{densenet_se_forward.38} parent=1 // pred_region
      _
    $region61: #{densenet_se_forward.38} parent=1 // pred_fallthru
      _
    // Predicated region
    $region62: #{densenet_se_forward.38} parent=1 // pred_check
      _
    $region63: #{densenet_se_forward.38} parent=1 // pred_check_branch
      %933 = sbr.rel (0) target = $region65
    $region64: #{densenet_se_forward.38} parent=1 // pred_region
      %s935 = ssub.s32 512, 512
      %936 = vsyncadd [#allocation5], %s935
      %s937 = sshll.u32 [#allocation4], 4
      %s938 = int_to_ptr.vmem [resolvable:$true] %s937
      %943 = dma.vmem_to_hbm [thread:$0]  %s938, 512, %s15, [#allocation5], 128, 128, 8
    $region65: #{densenet_se_forward.38} parent=1 // pred_fallthru
      _
    // Predicated region
    $region66: #{densenet_se_forward.38} parent=1 // pred_check
      _
    $region67: #{densenet_se_forward.38} parent=1 // pred_check_branch
      %945 = sbr.rel (0) target = $region69
    $region68: #{densenet_se_forward.38} parent=1 // pred_region
      _
    $region69: #{densenet_se_forward.38} parent=1 // pred_fallthru
      _
    // Predicated region
    $region70: #{densenet_se_forward.38} parent=1 // pred_check
      _
    $region71: #{densenet_se_forward.38} parent=1 // pred_check_branch
      %947 = sbr.rel (0) target = $region73
    $region72: #{densenet_se_forward.38} parent=1 // pred_region
      %948 = dma.done [#allocation5], 512
    $region73: #{densenet_se_forward.38} parent=1 // pred_fallthru
      _
    %949 = vsyncpa [#allocation5], 1

// kernel: densenet_se_forward.45
$region0: #{densenet_se_forward.45}
  #allocation0 [shape = 'u32[]', space=smem, size = 0x4, offset = 0x4, fixed_abs, tag = 'smem constant byte address 0x4 - core index']
  #allocation1 [shape = 'u32[144,128]{1,0:T(1,128)}', space=vmem, size = 0x12000, scoped, tag = 'internal scratch']
  %s0 = inlined_call_operand.vmem [shape: f32[2,16], index: 0, kind: input, shape index: {}]
  %s1 = inlined_call_operand.vmem [shape: f32[1,16], index: 1, kind: input, shape index: {}]
  %s2 = inlined_call_operand.vmem [shape: f32[1,16], index: 2, kind: input, shape index: {}]
  %s3 = inlined_call_operand.vmem [shape: bf16[16,16], index: 3, kind: input, shape index: {}]
  %s4 = inlined_call_operand.vmem [shape: f32[1,16], index: 4, kind: input, shape index: {}]
  %s5 = inlined_call_operand.vmem [shape: bf16[2,16], index: 5, kind: output, shape index: {}]
  %s6 = sld [smem:[#allocation0]]
  $region30: #{densenet_se_forward.45} parent=0
    _
  %s8 = ssub.s32 1, %s6
  %s9 = scalar_select 0, %s8, %s6
  // Predicated region
  $region2: #{densenet_se_forward.45} parent=0 // pred_check
    _
  $region3: #{densenet_se_forward.45} parent=0 // pred_check_branch
    %11 = sbr.rel (0) target = $region5
  $region4: #{densenet_se_forward.45} parent=0 // pred_region
    _
  $region5: #{densenet_se_forward.45} parent=0 // pred_fallthru
    _
  // Predicated region
  $region6: #{densenet_se_forward.45} parent=0 // pred_check
    _
  $region7: #{densenet_se_forward.45} parent=0 // pred_check_branch
    %13 = sbr.rel (0) target = $region9
  $region8: #{densenet_se_forward.45} parent=0 // pred_region
    _
  $region9: #{densenet_se_forward.45} parent=0 // pred_fallthru
    _
  // Predicated region
  $region10: #{densenet_se_forward.45} parent=0 // pred_check
    _
  $region11: #{densenet_se_forward.45} parent=0 // pred_check_branch
    %15 = sbr.rel (0) target = $region13
  $region12: #{densenet_se_forward.45} parent=0 // pred_region
    _
  $region13: #{densenet_se_forward.45} parent=0 // pred_fallthru
    _
  // Predicated region
  $region14: #{densenet_se_forward.45} parent=0 // pred_check
    _
  $region15: #{densenet_se_forward.45} parent=0 // pred_check_branch
    %17 = sbr.rel (0) target = $region17
  $region16: #{densenet_se_forward.45} parent=0 // pred_region
    _
  $region17: #{densenet_se_forward.45} parent=0 // pred_fallthru
    _
  // Predicated region
  $region18: #{densenet_se_forward.45} parent=0 // pred_check
    _
  $region19: #{densenet_se_forward.45} parent=0 // pred_check_branch
    %19 = sbr.rel (0) target = $region21
  $region20: #{densenet_se_forward.45} parent=0 // pred_region
    _
  $region21: #{densenet_se_forward.45} parent=0 // pred_fallthru
    _
  %v21 = vld [vmem:[%s0] sm:$0x3]
  %v22 = vld [vmem:[%s1] sm:$0x1]
  %v24 = vlaneseq
  %v25 = vshrl.u32 %v24, 7
  %v26 = vsub.s32 0, %v25
  %v27 = vrot.slane %v22, %v26
  %v29 = vmul.f32 %v21, %v27
  %v30 = vld [vmem:[%s2] sm:$0x1]
  %v32 = vlaneseq
  %v33 = vshrl.u32 %v32, 7
  %v34 = vsub.s32 0, %v33
  %v35 = vrot.slane %v30, %v34
  %v37 = vadd.f32 %v29, %v35
  %v38 = vmax.f32 %v37, 0.0
  %v39 = vpack.c.bf16 %v38, %v38
  %v40 = vld [vmem:[%s3] sm:$0xf]
  %v41 = vld [vmem:[%s3 + $0x4] sm:$0xf]
  %v42 = vld [vmem:[%s4] sm:$0x1]
  %v44 = vlaneseq
  %v45 = vshrl.u32 %v44, 7
  %v46 = vsub.s32 0, %v45
  %v47 = vrot.slane %v42, %v46
  %v51 = vunpack.c.l.b16 %v40
  %v52 = vunpack.c.l.b16 %v41
  %v53 = vpack.c.b16 %v52, %v51
  %vm55 = vcmask 130048
  %v57 = vsel %vm55, %v39, 0
  %59 = vmatprep.subr.bf16.mxu0 0
  %60 = vmatpush1.bf16.msra.mxu0 %v53
  %61 = vmatprep.subr.bf16.mxu0 0
  %62 = vmatpush1.bf16.msra.mxu0 0
  %63 = vmatprep.subr.bf16.mxu0 0
  %64 = vmatpush1.bf16.msra.mxu0 0
  %65 = vmatprep.subr.bf16.mxu0 0
  %66 = vmatpush1.bf16.msra.mxu0 0
  %67 = vmatprep.subr.bf16.mxu0 0
  %68 = vmatpush1.bf16.msra.mxu0 0
  %69 = vmatprep.subr.bf16.mxu0 0
  %70 = vmatpush1.bf16.msra.mxu0 0
  %71 = vmatprep.subr.bf16.mxu0 0
  %72 = vmatpush1.bf16.msra.mxu0 0
  %73 = vmatprep.subr.bf16.mxu0 0
  %74 = vmatpush1.bf16.msra.mxu0 0
  %75 = vmatprep.subr.bf16.mxu0 0
  %76 = vmatpush1.bf16.msra.mxu0 0
  %77 = vmatprep.subr.bf16.mxu0 0
  %78 = vmatpush1.bf16.msra.mxu0 0
  %79 = vmatprep.subr.bf16.mxu0 0
  %80 = vmatpush1.bf16.msra.mxu0 0
  %81 = vmatprep.subr.bf16.mxu0 0
  %82 = vmatpush1.bf16.msra.mxu0 0
  %83 = vmatprep.subr.bf16.mxu0 0
  %84 = vmatpush1.bf16.msra.mxu0 0
  %85 = vmatprep.subr.bf16.mxu0 0
  %86 = vmatpush1.bf16.msra.mxu0 0
  %87 = vmatprep.subr.bf16.mxu0 0
  %88 = vmatpush1.bf16.msra.mxu0 0
  %89 = vmatprep.subr.bf16.mxu0 0
  %90 = vmatpush1.bf16.msra.mxu0 0
  %91 = vmatprep.mubr.bf16.mxu0 0
  %92 = vmatmul.mubr.bf16.gmra.mrb[0].mxu0 %v57
  %v93 = vpop.f32.mrb[0].mxu0
  %v94 = vadd.f32 %v47, %v93
  %v95 = vpop.f32.mrb[0].mxu0
  %v96 = vpop.f32.mrb[0].mxu0
  %v97 = vpop.f32.mrb[0].mxu0
  %98 = vdwg.mxu0
  %v99 = vmax.f32 %v94, 0.0
  %v100 = vpack.c.bf16 %v99, %v99
  %vm101 = vcmask 122880
  %102 = vst.msk [vmem:[%s5] sm:$0x1] %vm101, %v100
  // Predicated region
  $region22: #{densenet_se_forward.45} parent=0 // pred_check
    _
  $region23: #{densenet_se_forward.45} parent=0 // pred_check_branch
    %104 = sbr.rel (0) target = $region25
  $region24: #{densenet_se_forward.45} parent=0 // pred_region
    _
  $region25: #{densenet_se_forward.45} parent=0 // pred_fallthru
    _
  // Predicated region
  $region26: #{densenet_se_forward.45} parent=0 // pred_check
    _
  $region27: #{densenet_se_forward.45} parent=0 // pred_check_branch
    %106 = sbr.rel (0) target = $region29
  $region28: #{densenet_se_forward.45} parent=0 // pred_region
    _
  $region29: #{densenet_se_forward.45} parent=0 // pred_fallthru
    _

// kernel: densenet_se_forward.46
$region0: #{densenet_se_forward.46}
  #allocation0 [shape = 'u32[]', space=smem, size = 0x4, offset = 0x4, fixed_abs, tag = 'smem constant byte address 0x4 - core index']
  #allocation1 [shape = 'u32[144,128]{1,0:T(1,128)}', space=vmem, size = 0x12000, scoped, tag = 'internal scratch']
  %s0 = inlined_call_operand.vmem [shape: bf16[2,144], index: 0, kind: input, shape index: {}]
  %s1 = inlined_call_operand.vmem [shape: bf16[144,8], index: 1, kind: input, shape index: {}]
  %s2 = inlined_call_operand.vmem [shape: f32[2,8], index: 2, kind: output, shape index: {}]
  %s3 = sld [smem:[#allocation0]]
  $region18: #{densenet_se_forward.46} parent=0
    _
  %s5 = ssub.s32 1, %s3
  %s6 = scalar_select 0, %s5, %s3
  // Predicated region
  $region2: #{densenet_se_forward.46} parent=0 // pred_check
    _
  $region3: #{densenet_se_forward.46} parent=0 // pred_check_branch
    %8 = sbr.rel (0) target = $region5
  $region4: #{densenet_se_forward.46} parent=0 // pred_region
    _
  $region5: #{densenet_se_forward.46} parent=0 // pred_fallthru
    _
  // Predicated region
  $region6: #{densenet_se_forward.46} parent=0 // pred_check
    _
  $region7: #{densenet_se_forward.46} parent=0 // pred_check_branch
    %10 = sbr.rel (0) target = $region9
  $region8: #{densenet_se_forward.46} parent=0 // pred_region
    _
  $region9: #{densenet_se_forward.46} parent=0 // pred_fallthru
    _
  %v12 = vld [vmem:[%s0] sm:$0x3]
  %v13 = vld [vmem:[%s1] sm:$0xf]
  %v14 = vld [vmem:[%s1 + $0x4] sm:$0xf]
  %v15 = vld [vmem:[%s1 + $0x8] sm:$0xf]
  %v16 = vld [vmem:[%s1 + $0xc] sm:$0xf]
  %v17 = vld [vmem:[%s1 + $0x10] sm:$0xf]
  %v18 = vld [vmem:[%s1 + $0x14] sm:$0xf]
  %v19 = vld [vmem:[%s1 + $0x18] sm:$0xf]
  %v20 = vld [vmem:[%s1 + $0x1c] sm:$0xf]
  %v21 = vld [vmem:[%s1 + $0x20] sm:$0xf]
  %v22 = vld [vmem:[%s1 + $0x24] sm:$0xf]
  %v23 = vld [vmem:[%s1 + $0x28] sm:$0xf]
  %v24 = vld [vmem:[%s1 + $0x2c] sm:$0xf]
  %v25 = vld [vmem:[%s1 + $0x30] sm:$0xf]
  %v26 = vld [vmem:[%s1 + $0x34] sm:$0xf]
  %v27 = vld [vmem:[%s1 + $0x38] sm:$0xf]
  %v28 = vld [vmem:[%s1 + $0x3c] sm:$0xf]
  %v29 = vld [vmem:[%s1 + $0x40] sm:$0xf]
  %v30 = vld [vmem:[%s1 + $0x44] sm:$0xf]
  %v33 = vunpack.c.l.s4 1966171168
  %v34 = vunpack.c.0.s8 %v33
  %v35 = vlaneseq
  %v36 = vshrl.u32 %v35, 7
  %v37 = vsub.s32 %v34, %v36
  %v38 = vrot.slane %v12, %v37
  %v39 = vcombine.high %v38, %v38
  %v41 = vunpack.c.l.s4 1966171168
  %v42 = vunpack.c.0.s8 %v41
  %v43 = vlaneseq
  %v44 = vshrl.u32 %v43, 7
  %v45 = vsub.s32 %v42, %v44
  %v46 = vrot.slane %v38, %v45
  %v48 = vunpack.c.l.s4 1966171168
  %v49 = vunpack.c.0.s8 %v48
  %v50 = vlaneseq
  %v51 = vshrl.u32 %v50, 7
  %v52 = vsub.s32 %v49, %v51
  %v53 = vrot.slane %v39, %v52
  %v73 = vunpack.c.l.b16 %v13
  %v74 = vunpack.c.l.b16 %v14
  %v75 = vunpack.c.l.b16 %v15
  %v76 = vunpack.c.l.b16 %v16
  %v77 = vunpack.c.l.b16 %v17
  %v78 = vunpack.c.l.b16 %v18
  %v79 = vunpack.c.l.b16 %v19
  %v80 = vunpack.c.l.b16 %v20
  %v81 = vunpack.c.l.b16 %v21
  %v82 = vunpack.c.l.b16 %v22
  %v83 = vunpack.c.l.b16 %v23
  %v84 = vunpack.c.l.b16 %v24
  %v85 = vunpack.c.l.b16 %v25
  %v86 = vunpack.c.l.b16 %v26
  %v87 = vunpack.c.l.b16 %v27
  %v88 = vunpack.c.l.b16 %v28
  %v89 = vunpack.c.l.b16 %v29
  %v90 = vunpack.c.l.b16 %v30
  %v91 = vpack.c.b16 %v74, %v73
  %v92 = vpack.c.b16 %v76, %v75
  %v93 = vpack.c.b16 %v78, %v77
  %v94 = vpack.c.b16 %v80, %v79
  %v95 = vpack.c.b16 %v82, %v81
  %v96 = vpack.c.b16 %v84, %v83
  %v97 = vpack.c.b16 %v86, %v85
  %v98 = vpack.c.b16 %v88, %v87
  %v99 = vpack.c.b16 %v90, %v89
  %vm109 = vcmask 130048
  %v111 = vsel %vm109, %v53, 0
  %113 = vmatprep.subr.bf16.mxu0 0
  %114 = vmatpush1.bf16.msra.mxu0 %v91
  %115 = vmatprep.subr.bf16.mxu0 0
  %116 = vmatpush1.bf16.msra.mxu0 %v92
  %117 = vmatprep.subr.bf16.mxu0 0
  %118 = vmatpush1.bf16.msra.mxu0 %v93
  %119 = vmatprep.subr.bf16.mxu0 0
  %120 = vmatpush1.bf16.msra.mxu0 %v94
  %121 = vmatprep.subr.bf16.mxu0 0
  %122 = vmatpush1.bf16.msra.mxu0 %v95
  %123 = vmatprep.subr.bf16.mxu0 0
  %124 = vmatpush1.bf16.msra.mxu0 %v96
  %125 = vmatprep.subr.bf16.mxu0 0
  %126 = vmatpush1.bf16.msra.mxu0 %v97
  %127 = vmatprep.subr.bf16.mxu0 0
  %128 = vmatpush1.bf16.msra.mxu0 %v98
  %129 = vmatprep.subr.bf16.mxu0 0
  %130 = vmatpush1.bf16.msra.mxu0 %v99
  %131 = vmatprep.subr.bf16.mxu0 0
  %132 = vmatpush1.bf16.msra.mxu0 0
  %133 = vmatprep.subr.bf16.mxu0 0
  %134 = vmatpush1.bf16.msra.mxu0 0
  %135 = vmatprep.subr.bf16.mxu0 0
  %136 = vmatpush1.bf16.msra.mxu0 0
  %137 = vmatprep.subr.bf16.mxu0 0
  %138 = vmatpush1.bf16.msra.mxu0 0
  %139 = vmatprep.subr.bf16.mxu0 0
  %140 = vmatpush1.bf16.msra.mxu0 0
  %141 = vmatprep.subr.bf16.mxu0 0
  %142 = vmatpush1.bf16.msra.mxu0 0
  %143 = vmatprep.subr.bf16.mxu0 0
  %144 = vmatpush1.bf16.msra.mxu0 0
  %145 = vmatprep.mubr.bf16.mxu0 %v111
  %146 = vmatmul.mubr.bf16.gmra.mrb[0].mxu0 %v46
  %v147 = vpop.f32.mrb[0].mxu0
  %v148 = vadd.f32 0.0, %v147
  %v149 = vpop.f32.mrb[0].mxu0
  %v150 = vpop.f32.mrb[0].mxu0
  %v151 = vpop.f32.mrb[0].mxu0
  %152 = vdwg.mxu0
  %vm153 = vcmask 58368
  %154 = vst.msk [vmem:[%s2] sm:$0x3] %vm153, %v148
  // Predicated region
  $region10: #{densenet_se_forward.46} parent=0 // pred_check
    _
  $region11: #{densenet_se_forward.46} parent=0 // pred_check_branch
    %156 = sbr.rel (0) target = $region13
  $region12: #{densenet_se_forward.46} parent=0 // pred_region
    _
  $region13: #{densenet_se_forward.46} parent=0 // pred_fallthru
    _
  // Predicated region
  $region14: #{densenet_se_forward.46} parent=0 // pred_check
    _
  $region15: #{densenet_se_forward.46} parent=0 // pred_check_branch
    %158 = sbr.rel (0) target = $region17
  $region16: #{densenet_se_forward.46} parent=0 // pred_region
    _
  $region17: #{densenet_se_forward.46} parent=0 // pred_fallthru
    _

// kernel: densenet_se_forward.47
$region0: #{densenet_se_forward.47}
  #allocation0 [shape = 'u32[]', space=smem, size = 0x4, offset = 0x4, fixed_abs, tag = 'smem constant byte address 0x4 - core index']
  #allocation1 [shape = 'u32[144,128]{1,0:T(1,128)}', space=vmem, size = 0x12000, scoped, tag = 'internal scratch']
  %s0 = inlined_call_operand.vmem [shape: f32[2,24], index: 0, kind: input, shape index: {}]
  %s1 = inlined_call_operand.vmem [shape: f32[1,24], index: 1, kind: input, shape index: {}]
  %s2 = inlined_call_operand.vmem [shape: f32[1,24], index: 2, kind: input, shape index: {}]
  %s3 = inlined_call_operand.vmem [shape: bf16[24,16], index: 3, kind: input, shape index: {}]
  %s4 = inlined_call_operand.vmem [shape: f32[1,16], index: 4, kind: input, shape index: {}]
  %s5 = inlined_call_operand.vmem [shape: bf16[2,16], index: 5, kind: output, shape index: {}]
  %s6 = sld [smem:[#allocation0]]
  $region30: #{densenet_se_forward.47} parent=0
    _
  %s8 = ssub.s32 1, %s6
  %s9 = scalar_select 0, %s8, %s6
  // Predicated region
  $region2: #{densenet_se_forward.47} parent=0 // pred_check
    _
  $region3: #{densenet_se_forward.47} parent=0 // pred_check_branch
    %11 = sbr.rel (0) target = $region5
  $region4: #{densenet_se_forward.47} parent=0 // pred_region
    _
  $region5: #{densenet_se_forward.47} parent=0 // pred_fallthru
    _
  // Predicated region
  $region6: #{densenet_se_forward.47} parent=0 // pred_check
    _
  $region7: #{densenet_se_forward.47} parent=0 // pred_check_branch
    %13 = sbr.rel (0) target = $region9
  $region8: #{densenet_se_forward.47} parent=0 // pred_region
    _
  $region9: #{densenet_se_forward.47} parent=0 // pred_fallthru
    _
  // Predicated region
  $region10: #{densenet_se_forward.47} parent=0 // pred_check
    _
  $region11: #{densenet_se_forward.47} parent=0 // pred_check_branch
    %15 = sbr.rel (0) target = $region13
  $region12: #{densenet_se_forward.47} parent=0 // pred_region
    _
  $region13: #{densenet_se_forward.47} parent=0 // pred_fallthru
    _
  // Predicated region
  $region14: #{densenet_se_forward.47} parent=0 // pred_check
    _
  $region15: #{densenet_se_forward.47} parent=0 // pred_check_branch
    %17 = sbr.rel (0) target = $region17
  $region16: #{densenet_se_forward.47} parent=0 // pred_region
    _
  $region17: #{densenet_se_forward.47} parent=0 // pred_fallthru
    _
  // Predicated region
  $region18: #{densenet_se_forward.47} parent=0 // pred_check
    _
  $region19: #{densenet_se_forward.47} parent=0 // pred_check_branch
    %19 = sbr.rel (0) target = $region21
  $region20: #{densenet_se_forward.47} parent=0 // pred_region
    _
  $region21: #{densenet_se_forward.47} parent=0 // pred_fallthru
    _
  %v21 = vld [vmem:[%s0] sm:$0x3]
  %v22 = vld [vmem:[%s1] sm:$0x1]
  %v24 = vlaneseq
  %v25 = vshrl.u32 %v24, 7
  %v26 = vsub.s32 0, %v25
  %v27 = vrot.slane %v22, %v26
  %v29 = vmul.f32 %v21, %v27
  %v30 = vld [vmem:[%s2] sm:$0x1]
  %v32 = vlaneseq
  %v33 = vshrl.u32 %v32, 7
  %v34 = vsub.s32 0, %v33
  %v35 = vrot.slane %v30, %v34
  %v37 = vadd.f32 %v29, %v35
  %v38 = vmax.f32 %v37, 0.0
  %v39 = vpack.c.bf16 %v38, %v38
  %v40 = vld [vmem:[%s3] sm:$0xf]
  %v41 = vld [vmem:[%s3 + $0x4] sm:$0xf]
  %v42 = vld [vmem:[%s3 + $0x8] sm:$0xf]
  %v43 = vld [vmem:[%s4] sm:$0x1]
  %v45 = vlaneseq
  %v46 = vshrl.u32 %v45, 7
  %v47 = vsub.s32 0, %v46
  %v48 = vrot.slane %v43, %v47
  %v53 = vunpack.c.l.b16 %v40
  %v54 = vunpack.c.l.b16 %v41
  %v55 = vunpack.c.l.b16 %v42
  %v56 = vpack.c.b16 %v54, %v53
  %v57 = vpack.c.b16 %v55, %v55
  %vm59 = vcmask 195584
  %v61 = vsel %vm59, %v39, 0
  %vm63 = vcmask 1043456
  %v65 = vsel %vm63, %v57, 0
  %67 = vmatprep.subr.bf16.mxu0 0
  %68 = vmatpush1.bf16.msra.mxu0 %v56
  %69 = vmatprep.subr.bf16.mxu0 0
  %70 = vmatpush1.bf16.msra.mxu0 %v65
  %71 = vmatprep.subr.bf16.mxu0 0
  %72 = vmatpush1.bf16.msra.mxu0 0
  %73 = vmatprep.subr.bf16.mxu0 0
  %74 = vmatpush1.bf16.msra.mxu0 0
  %75 = vmatprep.subr.bf16.mxu0 0
  %76 = vmatpush1.bf16.msra.mxu0 0
  %77 = vmatprep.subr.bf16.mxu0 0
  %78 = vmatpush1.bf16.msra.mxu0 0
  %79 = vmatprep.subr.bf16.mxu0 0
  %80 = vmatpush1.bf16.msra.mxu0 0
  %81 = vmatprep.subr.bf16.mxu0 0
  %82 = vmatpush1.bf16.msra.mxu0 0
  %83 = vmatprep.subr.bf16.mxu0 0
  %84 = vmatpush1.bf16.msra.mxu0 0
  %85 = vmatprep.subr.bf16.mxu0 0
  %86 = vmatpush1.bf16.msra.mxu0 0
  %87 = vmatprep.subr.bf16.mxu0 0
  %88 = vmatpush1.bf16.msra.mxu0 0
  %89 = vmatprep.subr.bf16.mxu0 0
  %90 = vmatpush1.bf16.msra.mxu0 0
  %91 = vmatprep.subr.bf16.mxu0 0
  %92 = vmatpush1.bf16.msra.mxu0 0
  %93 = vmatprep.subr.bf16.mxu0 0
  %94 = vmatpush1.bf16.msra.mxu0 0
  %95 = vmatprep.subr.bf16.mxu0 0
  %96 = vmatpush1.bf16.msra.mxu0 0
  %97 = vmatprep.subr.bf16.mxu0 0
  %98 = vmatpush1.bf16.msra.mxu0 0
  %99 = vmatprep.mubr.bf16.mxu0 0
  %100 = vmatmul.mubr.bf16.gmra.mrb[0].mxu0 %v61
  %v101 = vpop.f32.mrb[0].mxu0
  %v102 = vadd.f32 %v48, %v101
  %v103 = vpop.f32.mrb[0].mxu0
  %v104 = vpop.f32.mrb[0].mxu0
  %v105 = vpop.f32.mrb[0].mxu0
  %106 = vdwg.mxu0
  %v107 = vmax.f32 %v102, 0.0
  %v108 = vpack.c.bf16 %v107, %v107
  %vm109 = vcmask 122880
  %110 = vst.msk [vmem:[%s5] sm:$0x1] %vm109, %v108
  // Predicated region
  $region22: #{densenet_se_forward.47} parent=0 // pred_check
    _
  $region23: #{densenet_se_forward.47} parent=0 // pred_check_branch
    %112 = sbr.rel (0) target = $region25
  $region24: #{densenet_se_forward.47} parent=0 // pred_region
    _
  $region25: #{densenet_se_forward.47} parent=0 // pred_fallthru
    _
  // Predicated region
  $region26: #{densenet_se_forward.47} parent=0 // pred_check
    _
  $region27: #{densenet_se_forward.47} parent=0 // pred_check_branch
    %114 = sbr.rel (0) target = $region29
  $region28: #{densenet_se_forward.47} parent=0 // pred_region
    _
  $region29: #{densenet_se_forward.47} parent=0 // pred_fallthru
    _

// kernel: densenet_se_forward.44
$region0: #{densenet_se_forward.44}
  #allocation0 [shape = 'u32[]', space=smem, size = 0x4, offset = 0x4, fixed_abs, tag = 'smem constant byte address 0x4 - core index']
  #allocation1 [shape = 'u32[144,128]{1,0:T(1,128)}', space=vmem, size = 0x12000, scoped, tag = 'internal scratch']
  #allocation2 [shape = 'f32[1,1]{1,0:T(1,128)S(1)}', space=vmem, size = 0x200, scoped, tag = 'scoped memory for densenet_se_forward.44']
  #allocation3 [shape = 'f32[1,1]{1,0:T(1,128)S(1)}', space=vmem, size = 0x200, scoped, tag = 'scoped memory for densenet_se_forward.44']
  %s0 = inlined_call_operand.vmem [shape: f32[4,2,1,16], index: 0, kind: input, shape index: {}]
  %s1 = inlined_call_operand.vmem [shape: f32[2,4,32], index: 1, kind: input, shape index: {}]
  %s2 = inlined_call_operand.vmem [shape: f32[16,8], index: 2, kind: input, shape index: {}]
  %s3 = inlined_call_operand.vmem [shape: f32[1,8], index: 3, kind: input, shape index: {}]
  %s4 = inlined_call_operand.vmem [shape: f32[8,16], index: 4, kind: input, shape index: {}]
  %s5 = inlined_call_operand.vmem [shape: f32[1,16], index: 5, kind: input, shape index: {}]
  %s6 = inlined_call_operand.vmem [shape: f32[1,16], index: 6, kind: input, shape index: {}]
  %s7 = inlined_call_operand.<no memory space> [shape: f32[1,1], index: 7, kind: input, shape index: {}]
  %s8 = inlined_call_operand.vmem [shape: f32[32,16], index: 8, kind: input, shape index: {}]
  %s9 = inlined_call_operand.vmem [shape: f32[1,16], index: 9, kind: input, shape index: {}]
  %s10 = inlined_call_operand.vmem [shape: f32[16,32], index: 10, kind: input, shape index: {}]
  %s11 = inlined_call_operand.vmem [shape: f32[1,32], index: 11, kind: input, shape index: {}]
  %s12 = inlined_call_operand.vmem [shape: f32[1,32], index: 12, kind: input, shape index: {}]
  %s13 = inlined_call_operand.<no memory space> [shape: f32[1,1], index: 13, kind: input, shape index: {}]
  %s14 = inlined_call_operand.vmem [shape: f32[2,1,16], index: 14, kind: output, shape index: {0}]
  %s15 = inlined_call_operand.hbm [shape: f32[2,4,32], index: 15, kind: output, shape index: {1}]
  %16 = xla_tuple %s14, %s15
  %s17 = sld [smem:[#allocation0]]
  $region74: #{densenet_se_forward.44} parent=0
    _
  %s19 = ssub.s32 1, %s17
  %s20 = scalar_select 0, %s19, %s17
  %v21 = vstv %s7
  %22 = vst [vmem:[#allocation2] sm:$0x1] %v21
  %v23 = vstv %s13
  %24 = vst [vmem:[#allocation3] sm:$0x1] %v23
  $region1: #{densenet_se_forward.44} parent=0
    #allocation4 [shape = 'u8[4096]{0}', space=vmem, size = 0x1000, scoped, tag = 'output window, operand 1, single buffered']
    #allocation5 [shape = 's32[1]{0}', space=sflag, size = 0x4, scoped, tag = 'scoped memory for densenet_se_forward.44']
    %25 = vsyncpa [#allocation5], 0
    // Predicated region
    $region2: #{densenet_se_forward.44} parent=1 // pred_check
      _
    $region3: #{densenet_se_forward.44} parent=1 // pred_check_branch
      %27 = sbr.rel (0) target = $region5
    $region4: #{densenet_se_forward.44} parent=1 // pred_region
      _
    $region5: #{densenet_se_forward.44} parent=1 // pred_fallthru
      _
    // Predicated region
    $region6: #{densenet_se_forward.44} parent=1 // pred_check
      _
    $region7: #{densenet_se_forward.44} parent=1 // pred_check_branch
      %29 = sbr.rel (0) target = $region9
    $region8: #{densenet_se_forward.44} parent=1 // pred_region
      _
    $region9: #{densenet_se_forward.44} parent=1 // pred_fallthru
      _
    // Predicated region
    $region10: #{densenet_se_forward.44} parent=1 // pred_check
      _
    $region11: #{densenet_se_forward.44} parent=1 // pred_check_branch
      %31 = sbr.rel (0) target = $region13
    $region12: #{densenet_se_forward.44} parent=1 // pred_region
      _
    $region13: #{densenet_se_forward.44} parent=1 // pred_fallthru
      _
    // Predicated region
    $region14: #{densenet_se_forward.44} parent=1 // pred_check
      _
    $region15: #{densenet_se_forward.44} parent=1 // pred_check_branch
      %33 = sbr.rel (0) target = $region17
    $region16: #{densenet_se_forward.44} parent=1 // pred_region
      _
    $region17: #{densenet_se_forward.44} parent=1 // pred_fallthru
      _
    // Predicated region
    $region18: #{densenet_se_forward.44} parent=1 // pred_check
      _
    $region19: #{densenet_se_forward.44} parent=1 // pred_check_branch
      %35 = sbr.rel (0) target = $region21
    $region20: #{densenet_se_forward.44} parent=1 // pred_region
      _
    $region21: #{densenet_se_forward.44} parent=1 // pred_fallthru
      _
    // Predicated region
    $region22: #{densenet_se_forward.44} parent=1 // pred_check
      _
    $region23: #{densenet_se_forward.44} parent=1 // pred_check_branch
      %37 = sbr.rel (0) target = $region25
    $region24: #{densenet_se_forward.44} parent=1 // pred_region
      _
    $region25: #{densenet_se_forward.44} parent=1 // pred_fallthru
      _
    // Predicated region
    $region26: #{densenet_se_forward.44} parent=1 // pred_check
      _
    $region27: #{densenet_se_forward.44} parent=1 // pred_check_branch
      %39 = sbr.rel (0) target = $region29
    $region28: #{densenet_se_forward.44} parent=1 // pred_region
      _
    $region29: #{densenet_se_forward.44} parent=1 // pred_fallthru
      _
    // Predicated region
    $region30: #{densenet_se_forward.44} parent=1 // pred_check
      _
    $region31: #{densenet_se_forward.44} parent=1 // pred_check_branch
      %41 = sbr.rel (0) target = $region33
    $region32: #{densenet_se_forward.44} parent=1 // pred_region
      _
    $region33: #{densenet_se_forward.44} parent=1 // pred_fallthru
      _
    // Predicated region
    $region34: #{densenet_se_forward.44} parent=1 // pred_check
      _
    $region35: #{densenet_se_forward.44} parent=1 // pred_check_branch
      %43 = sbr.rel (0) target = $region37
    $region36: #{densenet_se_forward.44} parent=1 // pred_region
      _
    $region37: #{densenet_se_forward.44} parent=1 // pred_fallthru
      _
    // Predicated region
    $region38: #{densenet_se_forward.44} parent=1 // pred_check
      _
    $region39: #{densenet_se_forward.44} parent=1 // pred_check_branch
      %45 = sbr.rel (0) target = $region41
    $region40: #{densenet_se_forward.44} parent=1 // pred_region
      _
    $region41: #{densenet_se_forward.44} parent=1 // pred_fallthru
      _
    // Predicated region
    $region42: #{densenet_se_forward.44} parent=1 // pred_check
      _
    $region43: #{densenet_se_forward.44} parent=1 // pred_check_branch
      %47 = sbr.rel (0) target = $region45
    $region44: #{densenet_se_forward.44} parent=1 // pred_region
      _
    $region45: #{densenet_se_forward.44} parent=1 // pred_fallthru
      _
    // Predicated region
    $region46: #{densenet_se_forward.44} parent=1 // pred_check
      _
    $region47: #{densenet_se_forward.44} parent=1 // pred_check_branch
      %49 = sbr.rel (0) target = $region49
    $region48: #{densenet_se_forward.44} parent=1 // pred_region
      _
    $region49: #{densenet_se_forward.44} parent=1 // pred_fallthru
      _
    // Predicated region
    $region50: #{densenet_se_forward.44} parent=1 // pred_check
      _
    $region51: #{densenet_se_forward.44} parent=1 // pred_check_branch
      %51 = sbr.rel (0) target = $region53
    $region52: #{densenet_se_forward.44} parent=1 // pred_region
      _
    $region53: #{densenet_se_forward.44} parent=1 // pred_fallthru
      _
    // Predicated region
    $region54: #{densenet_se_forward.44} parent=1 // pred_check
      _
    $region55: #{densenet_se_forward.44} parent=1 // pred_check_branch
      %53 = sbr.rel (0) target = $region57
    $region56: #{densenet_se_forward.44} parent=1 // pred_region
      _
    $region57: #{densenet_se_forward.44} parent=1 // pred_fallthru
      _
    %v54 = vld [vmem:[%s0] sm:$0x1]
    %v55 = vld [vmem:[%s0 + $0x1] sm:$0x1]
    %s56 = scalar_lea.vmem %s0, 2
    %v57 = vld [vmem:[%s56] sm:$0x1]
    %v58 = vld [vmem:[%s56 + $0x1] sm:$0x1]
    %v59 = vadd.f32 %v54, %v57
    %v60 = vadd.f32 %v55, %v58
    %s61 = scalar_lea.vmem %s0, 4
    %v62 = vld [vmem:[%s61] sm:$0x1]
    %v63 = vld [vmem:[%s61 + $0x1] sm:$0x1]
    %v64 = vadd.f32 %v59, %v62
    %v65 = vadd.f32 %v60, %v63
    %s66 = scalar_lea.vmem %s0, 6
    %v67 = vld [vmem:[%s66] sm:$0x1]
    %v68 = vld [vmem:[%s66 + $0x1] sm:$0x1]
    %v69 = vadd.f32 %v64, %v67
    %v70 = vadd.f32 %v65, %v68
    %v71 = vmul.f32 %v69, 0.25
    %v72 = vmul.f32 %v70, 0.25
    %v73 = vld [vmem:[%s2] sm:$0xff]
    %v74 = vld [vmem:[%s2 + $0x8] sm:$0xff]
    %v75 = vld [vmem:[%s3] sm:$0x1]
    %v76 = vld [vmem:[%s4] sm:$0xff]
    %v77 = vld [vmem:[%s5] sm:$0x1]
    %v78 = vld [vmem:[%s6] sm:$0x1]
    %v79 = vld [vmem:[#allocation2] sm:$0x1]
    %v80 = vadd.f32 %v71, 0.0
    %vm81 = vcmask 130048
    %v83 = vsel %vm81, %v80, 0
    %85 = vmatprep.subr.mxu0 0.0
    %86 = vmatpush1.msra.mxu0 %v73
    %87 = vmatprep.subr.mxu0 0.0
    %88 = vmatpush1.msra.mxu0 %v74
    %89 = vmatprep.subr.mxu0 0.0
    %90 = vmatpush1.msra.mxu0 0.0
    %91 = vmatprep.subr.mxu0 0.0
    %92 = vmatpush1.msra.mxu0 0.0
    %93 = vmatprep.subr.mxu0 0.0
    %94 = vmatpush1.msra.mxu0 0.0
    %95 = vmatprep.subr.mxu0 0.0
    %96 = vmatpush1.msra.mxu0 0.0
    %97 = vmatprep.subr.mxu0 0.0
    %98 = vmatpush1.msra.mxu0 0.0
    %99 = vmatprep.subr.mxu0 0.0
    %100 = vmatpush1.msra.mxu0 0.0
    %101 = vmatprep.subr.mxu0 0.0
    %102 = vmatpush1.msra.mxu0 0.0
    %103 = vmatprep.subr.mxu0 0.0
    %104 = vmatpush1.msra.mxu0 0.0
    %105 = vmatprep.subr.mxu0 0.0
    %106 = vmatpush1.msra.mxu0 0.0
    %107 = vmatprep.subr.mxu0 0.0
    %108 = vmatpush1.msra.mxu0 0.0
    %109 = vmatprep.subr.mxu0 0.0
    %110 = vmatpush1.msra.mxu0 0.0
    %111 = vmatprep.subr.mxu0 0.0
    %112 = vmatpush1.msra.mxu0 0.0
    %113 = vmatprep.subr.mxu0 0.0
    %114 = vmatpush1.msra.mxu0 0.0
    %115 = vmatprep.subr.mxu0 0.0
    %116 = vmatpush1.msra.mxu0 0.0
    %117 = vmatprep.subr.mxu0 0.0
    %118 = vmatpush1.msra.mxu0 0.0
    %119 = vmatprep.subr.mxu0 0.0
    %120 = vmatpush1.msra.mxu0 0.0
    %121 = vmatprep.subr.mxu0 0.0
    %122 = vmatpush1.msra.mxu0 0.0
    %123 = vmatprep.subr.mxu0 0.0
    %124 = vmatpush1.msra.mxu0 0.0
    %125 = vmatprep.subr.mxu0 0.0
    %126 = vmatpush1.msra.mxu0 0.0
    %127 = vmatprep.subr.mxu0 0.0
    %128 = vmatpush1.msra.mxu0 0.0
    %129 = vmatprep.subr.mxu0 0.0
    %130 = vmatpush1.msra.mxu0 0.0
    %131 = vmatprep.subr.mxu0 0.0
    %132 = vmatpush1.msra.mxu0 0.0
    %133 = vmatprep.subr.mxu0 0.0
    %134 = vmatpush1.msra.mxu0 0.0
    %135 = vmatprep.subr.mxu0 0.0
    %136 = vmatpush1.msra.mxu0 0.0
    %137 = vmatprep.subr.mxu0 0.0
    %138 = vmatpush1.msra.mxu0 0.0
    %139 = vmatprep.subr.mxu0 0.0
    %140 = vmatpush1.msra.mxu0 0.0
    %141 = vmatprep.subr.mxu0 0.0
    %142 = vmatpush1.msra.mxu0 0.0
    %143 = vmatprep.subr.mxu0 0.0
    %144 = vmatpush1.msra.mxu0 0.0
    %145 = vmatprep.subr.mxu0 0.0
    %146 = vmatpush1.msra.mxu0 0.0
    %147 = vmatprep.subr.mxu0 0.0
    %148 = vmatpush1.msra.mxu0 0.0
    %149 = vmatprep.mubr.f32.mxu0 0.0
    %150 = vmatmul.mubr.f32.gmra.mrb[0].mxu0 %v83
    %v151 = vpop.f32.mrb[0].mxu0
    %v152 = vadd.f32 %v75, %v151
    %v153 = vpop.f32.mrb[0].mxu0
    %154 = vdwg.mxu0
    %v155 = vmax.f32 %v152, 0.0
    %vm156 = vcmask 64512
    %v158 = vsel %vm156, %v155, 0
    %160 = vmatprep.subr.mxu0 0.0
    %161 = vmatpush1.msra.mxu0 %v76
    %162 = vmatprep.subr.mxu0 0.0
    %163 = vmatpush1.msra.mxu0 0.0
    %164 = vmatprep.subr.mxu0 0.0
    %165 = vmatpush1.msra.mxu0 0.0
    %166 = vmatprep.subr.mxu0 0.0
    %167 = vmatpush1.msra.mxu0 0.0
    %168 = vmatprep.subr.mxu0 0.0
    %169 = vmatpush1.msra.mxu0 0.0
    %170 = vmatprep.subr.mxu0 0.0
    %171 = vmatpush1.msra.mxu0 0.0
    %172 = vmatprep.subr.mxu0 0.0
    %173 = vmatpush1.msra.mxu0 0.0
    %174 = vmatprep.subr.mxu0 0.0
    %175 = vmatpush1.msra.mxu0 0.0
    %176 = vmatprep.subr.mxu0 0.0
    %177 = vmatpush1.msra.mxu0 0.0
    %178 = vmatprep.subr.mxu0 0.0
    %179 = vmatpush1.msra.mxu0 0.0
    %180 = vmatprep.subr.mxu0 0.0
    %181 = vmatpush1.msra.mxu0 0.0
    %182 = vmatprep.subr.mxu0 0.0
    %183 = vmatpush1.msra.mxu0 0.0
    %184 = vmatprep.subr.mxu0 0.0
    %185 = vmatpush1.msra.mxu0 0.0
    %186 = vmatprep.subr.mxu0 0.0
    %187 = vmatpush1.msra.mxu0 0.0
    %188 = vmatprep.subr.mxu0 0.0
    %189 = vmatpush1.msra.mxu0 0.0
    %190 = vmatprep.subr.mxu0 0.0
    %191 = vmatpush1.msra.mxu0 0.0
    %192 = vmatprep.subr.mxu0 0.0
    %193 = vmatpush1.msra.mxu0 0.0
    %194 = vmatprep.subr.mxu0 0.0
    %195 = vmatpush1.msra.mxu0 0.0
    %196 = vmatprep.subr.mxu0 0.0
    %197 = vmatpush1.msra.mxu0 0.0
    %198 = vmatprep.subr.mxu0 0.0
    %199 = vmatpush1.msra.mxu0 0.0
    %200 = vmatprep.subr.mxu0 0.0
    %201 = vmatpush1.msra.mxu0 0.0
    %202 = vmatprep.subr.mxu0 0.0
    %203 = vmatpush1.msra.mxu0 0.0
    %204 = vmatprep.subr.mxu0 0.0
    %205 = vmatpush1.msra.mxu0 0.0
    %206 = vmatprep.subr.mxu0 0.0
    %207 = vmatpush1.msra.mxu0 0.0
    %208 = vmatprep.subr.mxu0 0.0
    %209 = vmatpush1.msra.mxu0 0.0
    %210 = vmatprep.subr.mxu0 0.0
    %211 = vmatpush1.msra.mxu0 0.0
    %212 = vmatprep.subr.mxu0 0.0
    %213 = vmatpush1.msra.mxu0 0.0
    %214 = vmatprep.subr.mxu0 0.0
    %215 = vmatpush1.msra.mxu0 0.0
    %216 = vmatprep.subr.mxu0 0.0
    %217 = vmatpush1.msra.mxu0 0.0
    %218 = vmatprep.subr.mxu0 0.0
    %219 = vmatpush1.msra.mxu0 0.0
    %220 = vmatprep.subr.mxu0 0.0
    %221 = vmatpush1.msra.mxu0 0.0
    %222 = vmatprep.subr.mxu0 0.0
    %223 = vmatpush1.msra.mxu0 0.0
    %224 = vmatprep.mubr.f32.mxu0 0.0
    %225 = vmatmul.mubr.f32.gmra.mrb[0].mxu0 %v158
    %v226 = vpop.f32.mrb[0].mxu0
    %v227 = vadd.f32 %v77, %v226
    %v228 = vpop.f32.mrb[0].mxu0
    %229 = vdwg.mxu0
    %v230 = vmul.f32 %v227, 0.5
    %v231 = vtanh.pop %v230
    %v232 = vadd.f32 %v231, 1.0
    %v233 = vmul.f32 %v232, 0.5
    %v234 = vmul.f32 %v71, %v78
    %vm235 = vcmask 122880
    %v236 = vsel %vm235, %v234, 0.0
    %237 = vadd.xlane.f32.xlu0 %v236
    %v238 = vpop.xlane.xlu0 %237
    %v239 = vadd.f32 %v238, %v79
    %v240 = vmul.f32 %v239, 0.5
    %v241 = vtanh.pop %v240
    %v242 = vadd.f32 %v241, 1.0
    %v243 = vmul.f32 %v242, 0.5
    %245 = vset.pattern.permute.xlu0 0
    %246 = vperm.xlu0 %245, %v243
    %v247 = vpop.permute.xlu0 %246
    %v249 = vmul.f32 %v71, %v247
    %v250 = vmul.f32 %v71, %v233
    %v251 = vadd.f32 %v249, %v250
    %252 = vst.msk [vmem:[%s14] sm:$0x1] %vm235, %v251
    %v253 = vld [vmem:[%s1] sm:$0xf]
    %v254 = vld [vmem:[%s8] sm:$0xff]
    %v255 = vld [vmem:[%s8 + $0x8] sm:$0xff]
    %v256 = vld [vmem:[%s8 + $0x10] sm:$0xff]
    %v257 = vld [vmem:[%s8 + $0x18] sm:$0xff]
    %v258 = vld [vmem:[%s9] sm:$0x1]
    %v259 = vld [vmem:[%s10] sm:$0xff]
    %v260 = vld [vmem:[%s10 + $0x8] sm:$0xff]
    %v261 = vld [vmem:[%s11] sm:$0x1]
    %v262 = vld [vmem:[%s12] sm:$0x1]
    %v263 = vld [vmem:[#allocation3] sm:$0x1]
    %vm264 = vcmask 257024
    %v265 = vsel %vm264, %v253, 0.0
    %v266 = vrot.slane %v265, 4
    %v267 = vadd.f32 %v265, %v266
    %v268 = vrot.slane %v267, 2
    %v269 = vadd.f32 %v267, %v268
    %v270 = vrot.slane %v269, 1
    %v271 = vadd.f32 %v269, %v270
    %v272 = vmul.f32 %v271, 0.25
    %vm273 = vcmask 261120
    %v275 = vsel %vm273, %v272, 0
    %277 = vmatprep.subr.mxu0 0.0
    %278 = vmatpush1.msra.mxu0 %v254
    %279 = vmatprep.subr.mxu0 0.0
    %280 = vmatpush1.msra.mxu0 %v255
    %281 = vmatprep.subr.mxu0 0.0
    %282 = vmatpush1.msra.mxu0 %v256
    %283 = vmatprep.subr.mxu0 0.0
    %284 = vmatpush1.msra.mxu0 %v257
    %285 = vmatprep.subr.mxu0 0.0
    %286 = vmatpush1.msra.mxu0 0.0
    %287 = vmatprep.subr.mxu0 0.0
    %288 = vmatpush1.msra.mxu0 0.0
    %289 = vmatprep.subr.mxu0 0.0
    %290 = vmatpush1.msra.mxu0 0.0
    %291 = vmatprep.subr.mxu0 0.0
    %292 = vmatpush1.msra.mxu0 0.0
    %293 = vmatprep.subr.mxu0 0.0
    %294 = vmatpush1.msra.mxu0 0.0
    %295 = vmatprep.subr.mxu0 0.0
    %296 = vmatpush1.msra.mxu0 0.0
    %297 = vmatprep.subr.mxu0 0.0
    %298 = vmatpush1.msra.mxu0 0.0
    %299 = vmatprep.subr.mxu0 0.0
    %300 = vmatpush1.msra.mxu0 0.0
    %301 = vmatprep.subr.mxu0 0.0
    %302 = vmatpush1.msra.mxu0 0.0
    %303 = vmatprep.subr.mxu0 0.0
    %304 = vmatpush1.msra.mxu0 0.0
    %305 = vmatprep.subr.mxu0 0.0
    %306 = vmatpush1.msra.mxu0 0.0
    %307 = vmatprep.subr.mxu0 0.0
    %308 = vmatpush1.msra.mxu0 0.0
    %309 = vmatprep.subr.mxu0 0.0
    %310 = vmatpush1.msra.mxu0 0.0
    %311 = vmatprep.subr.mxu0 0.0
    %312 = vmatpush1.msra.mxu0 0.0
    %313 = vmatprep.subr.mxu0 0.0
    %314 = vmatpush1.msra.mxu0 0.0
    %315 = vmatprep.subr.mxu0 0.0
    %316 = vmatpush1.msra.mxu0 0.0
    %317 = vmatprep.subr.mxu0 0.0
    %318 = vmatpush1.msra.mxu0 0.0
    %319 = vmatprep.subr.mxu0 0.0
    %320 = vmatpush1.msra.mxu0 0.0
    %321 = vmatprep.subr.mxu0 0.0
    %322 = vmatpush1.msra.mxu0 0.0
    %323 = vmatprep.subr.mxu0 0.0
    %324 = vmatpush1.msra.mxu0 0.0
    %325 = vmatprep.subr.mxu0 0.0
    %326 = vmatpush1.msra.mxu0 0.0
    %327 = vmatprep.subr.mxu0 0.0
    %328 = vmatpush1.msra.mxu0 0.0
    %329 = vmatprep.subr.mxu0 0.0
    %330 = vmatpush1.msra.mxu0 0.0
    %331 = vmatprep.subr.mxu0 0.0
    %332 = vmatpush1.msra.mxu0 0.0
    %333 = vmatprep.subr.mxu0 0.0
    %334 = vmatpush1.msra.mxu0 0.0
    %335 = vmatprep.subr.mxu0 0.0
    %336 = vmatpush1.msra.mxu0 0.0
    %337 = vmatprep.subr.mxu0 0.0
    %338 = vmatpush1.msra.mxu0 0.0
    %339 = vmatprep.subr.mxu0 0.0
    %340 = vmatpush1.msra.mxu0 0.0
    %341 = vmatprep.mubr.f32.mxu0 0.0
    %342 = vmatmul.mubr.f32.gmra.mrb[0].mxu0 %v275
    %v343 = vpop.f32.mrb[0].mxu0
    %v344 = vadd.f32 %v258, %v343
    %v345 = vpop.f32.mrb[0].mxu0
    %346 = vdwg.mxu0
    %v347 = vmax.f32 %v344, 0.0
    %v349 = vsel %vm81, %v347, 0
    %351 = vmatprep.subr.mxu0 0.0
    %352 = vmatpush1.msra.mxu0 %v259
    %353 = vmatprep.subr.mxu0 0.0
    %354 = vmatpush1.msra.mxu0 %v260
    %355 = vmatprep.subr.mxu0 0.0
    %356 = vmatpush1.msra.mxu0 0.0
    %357 = vmatprep.subr.mxu0 0.0
    %358 = vmatpush1.msra.mxu0 0.0
    %359 = vmatprep.subr.mxu0 0.0
    %360 = vmatpush1.msra.mxu0 0.0
    %361 = vmatprep.subr.mxu0 0.0
    %362 = vmatpush1.msra.mxu0 0.0
    %363 = vmatprep.subr.mxu0 0.0
    %364 = vmatpush1.msra.mxu0 0.0
    %365 = vmatprep.subr.mxu0 0.0
    %366 = vmatpush1.msra.mxu0 0.0
    %367 = vmatprep.subr.mxu0 0.0
    %368 = vmatpush1.msra.mxu0 0.0
    %369 = vmatprep.subr.mxu0 0.0
    %370 = vmatpush1.msra.mxu0 0.0
    %371 = vmatprep.subr.mxu0 0.0
    %372 = vmatpush1.msra.mxu0 0.0
    %373 = vmatprep.subr.mxu0 0.0
    %374 = vmatpush1.msra.mxu0 0.0
    %375 = vmatprep.subr.mxu0 0.0
    %376 = vmatpush1.msra.mxu0 0.0
    %377 = vmatprep.subr.mxu0 0.0
    %378 = vmatpush1.msra.mxu0 0.0
    %379 = vmatprep.subr.mxu0 0.0
    %380 = vmatpush1.msra.mxu0 0.0
    %381 = vmatprep.subr.mxu0 0.0
    %382 = vmatpush1.msra.mxu0 0.0
    %383 = vmatprep.subr.mxu0 0.0
    %384 = vmatpush1.msra.mxu0 0.0
    %385 = vmatprep.subr.mxu0 0.0
    %386 = vmatpush1.msra.mxu0 0.0
    %387 = vmatprep.subr.mxu0 0.0
    %388 = vmatpush1.msra.mxu0 0.0
    %389 = vmatprep.subr.mxu0 0.0
    %390 = vmatpush1.msra.mxu0 0.0
    %391 = vmatprep.subr.mxu0 0.0
    %392 = vmatpush1.msra.mxu0 0.0
    %393 = vmatprep.subr.mxu0 0.0
    %394 = vmatpush1.msra.mxu0 0.0
    %395 = vmatprep.subr.mxu0 0.0
    %396 = vmatpush1.msra.mxu0 0.0
    %397 = vmatprep.subr.mxu0 0.0
    %398 = vmatpush1.msra.mxu0 0.0
    %399 = vmatprep.subr.mxu0 0.0
    %400 = vmatpush1.msra.mxu0 0.0
    %401 = vmatprep.subr.mxu0 0.0
    %402 = vmatpush1.msra.mxu0 0.0
    %403 = vmatprep.subr.mxu0 0.0
    %404 = vmatpush1.msra.mxu0 0.0
    %405 = vmatprep.subr.mxu0 0.0
    %406 = vmatpush1.msra.mxu0 0.0
    %407 = vmatprep.subr.mxu0 0.0
    %408 = vmatpush1.msra.mxu0 0.0
    %409 = vmatprep.subr.mxu0 0.0
    %410 = vmatpush1.msra.mxu0 0.0
    %411 = vmatprep.subr.mxu0 0.0
    %412 = vmatpush1.msra.mxu0 0.0
    %413 = vmatprep.subr.mxu0 0.0
    %414 = vmatpush1.msra.mxu0 0.0
    %415 = vmatprep.mubr.f32.mxu0 0.0
    %416 = vmatmul.mubr.f32.gmra.mrb[0].mxu0 %v349
    %v417 = vpop.f32.mrb[0].mxu0
    %v418 = vadd.f32 %v261, %v417
    %v419 = vpop.f32.mrb[0].mxu0
    %420 = vdwg.mxu0
    %v421 = vmul.f32 %v418, 0.5
    %v422 = vtanh.pop %v421
    %v423 = vadd.f32 %v422, 1.0
    %v424 = vmul.f32 %v423, 0.5
    %v426 = vlaneseq
    %v427 = vshrl.u32 %v426, 7
    %v428 = vsub.s32 0, %v427
    %v429 = vrot.slane %v262, %v428
    %v431 = vmul.f32 %v253, %v429
    %v432 = vsel %vm264, %v431, 0.0
    %433 = vadd.xlane.f32.xlu0 %v432
    %v434 = vpop.xlane.xlu0 %433
    %v436 = vlaneseq
    %v437 = vshrl.u32 %v436, 7
    %v438 = vsub.s32 0, %v437
    %v439 = vrot.slane %v263, %v438
    %v441 = vadd.f32 %v434, %v439
    %v442 = vmul.f32 %v441, 0.5
    %v443 = vtanh.pop %v442
    %v444 = vadd.f32 %v443, 1.0
    %v445 = vmul.f32 %v444, 0.5
    %447 = vset.pattern.permute.xlu0 0
    %448 = vperm.xlu0 %447, %v445
    %v449 = vpop.permute.xlu0 %448
    %v451 = vmul.f32 %v253, %v449
    %v452 = vlaneseq
    %v453 = vshrl.u32 %v452, 7
    %v454 = vsub.s32 0, %v453
    %v455 = vrot.slane %v424, %v454
    %v456 = vmul.f32 %v253, %v455
    %v457 = vadd.f32 %v451, %v456
    %458 = vst.msk [vmem:[#allocation4] sm:$0xf] %vm264, %v457
    %v459 = vld [vmem:[%s2] sm:$0xff]
    %v460 = vld [vmem:[%s2 + $0x8] sm:$0xff]
    %v461 = vld [vmem:[%s3] sm:$0x1]
    %v462 = vld [vmem:[%s4] sm:$0xff]
    %v463 = vld [vmem:[%s5] sm:$0x1]
    %v464 = vld [vmem:[%s6] sm:$0x1]
    %v465 = vld [vmem:[#allocation2] sm:$0x1]
    %v466 = vadd.f32 %v72, 0.0
    %v468 = vsel %vm81, %v466, 0
    %470 = vmatprep.subr.mxu0 0.0
    %471 = vmatpush1.msra.mxu0 %v459
    %472 = vmatprep.subr.mxu0 0.0
    %473 = vmatpush1.msra.mxu0 %v460
    %474 = vmatprep.subr.mxu0 0.0
    %475 = vmatpush1.msra.mxu0 0.0
    %476 = vmatprep.subr.mxu0 0.0
    %477 = vmatpush1.msra.mxu0 0.0
    %478 = vmatprep.subr.mxu0 0.0
    %479 = vmatpush1.msra.mxu0 0.0
    %480 = vmatprep.subr.mxu0 0.0
    %481 = vmatpush1.msra.mxu0 0.0
    %482 = vmatprep.subr.mxu0 0.0
    %483 = vmatpush1.msra.mxu0 0.0
    %484 = vmatprep.subr.mxu0 0.0
    %485 = vmatpush1.msra.mxu0 0.0
    %486 = vmatprep.subr.mxu0 0.0
    %487 = vmatpush1.msra.mxu0 0.0
    %488 = vmatprep.subr.mxu0 0.0
    %489 = vmatpush1.msra.mxu0 0.0
    %490 = vmatprep.subr.mxu0 0.0
    %491 = vmatpush1.msra.mxu0 0.0
    %492 = vmatprep.subr.mxu0 0.0
    %493 = vmatpush1.msra.mxu0 0.0
    %494 = vmatprep.subr.mxu0 0.0
    %495 = vmatpush1.msra.mxu0 0.0
    %496 = vmatprep.subr.mxu0 0.0
    %497 = vmatpush1.msra.mxu0 0.0
    %498 = vmatprep.subr.mxu0 0.0
    %499 = vmatpush1.msra.mxu0 0.0
    %500 = vmatprep.subr.mxu0 0.0
    %501 = vmatpush1.msra.mxu0 0.0
    %502 = vmatprep.subr.mxu0 0.0
    %503 = vmatpush1.msra.mxu0 0.0
    %504 = vmatprep.subr.mxu0 0.0
    %505 = vmatpush1.msra.mxu0 0.0
    %506 = vmatprep.subr.mxu0 0.0
    %507 = vmatpush1.msra.mxu0 0.0
    %508 = vmatprep.subr.mxu0 0.0
    %509 = vmatpush1.msra.mxu0 0.0
    %510 = vmatprep.subr.mxu0 0.0
    %511 = vmatpush1.msra.mxu0 0.0
    %512 = vmatprep.subr.mxu0 0.0
    %513 = vmatpush1.msra.mxu0 0.0
    %514 = vmatprep.subr.mxu0 0.0
    %515 = vmatpush1.msra.mxu0 0.0
    %516 = vmatprep.subr.mxu0 0.0
    %517 = vmatpush1.msra.mxu0 0.0
    %518 = vmatprep.subr.mxu0 0.0
    %519 = vmatpush1.msra.mxu0 0.0
    %520 = vmatprep.subr.mxu0 0.0
    %521 = vmatpush1.msra.mxu0 0.0
    %522 = vmatprep.subr.mxu0 0.0
    %523 = vmatpush1.msra.mxu0 0.0
    %524 = vmatprep.subr.mxu0 0.0
    %525 = vmatpush1.msra.mxu0 0.0
    %526 = vmatprep.subr.mxu0 0.0
    %527 = vmatpush1.msra.mxu0 0.0
    %528 = vmatprep.subr.mxu0 0.0
    %529 = vmatpush1.msra.mxu0 0.0
    %530 = vmatprep.subr.mxu0 0.0
    %531 = vmatpush1.msra.mxu0 0.0
    %532 = vmatprep.subr.mxu0 0.0
    %533 = vmatpush1.msra.mxu0 0.0
    %534 = vmatprep.mubr.f32.mxu0 0.0
    %535 = vmatmul.mubr.f32.gmra.mrb[0].mxu0 %v468
    %v536 = vpop.f32.mrb[0].mxu0
    %v537 = vadd.f32 %v461, %v536
    %v538 = vpop.f32.mrb[0].mxu0
    %539 = vdwg.mxu0
    %v540 = vmax.f32 %v537, 0.0
    %v542 = vsel %vm156, %v540, 0
    %544 = vmatprep.subr.mxu0 0.0
    %545 = vmatpush1.msra.mxu0 %v462
    %546 = vmatprep.subr.mxu0 0.0
    %547 = vmatpush1.msra.mxu0 0.0
    %548 = vmatprep.subr.mxu0 0.0
    %549 = vmatpush1.msra.mxu0 0.0
    %550 = vmatprep.subr.mxu0 0.0
    %551 = vmatpush1.msra.mxu0 0.0
    %552 = vmatprep.subr.mxu0 0.0
    %553 = vmatpush1.msra.mxu0 0.0
    %554 = vmatprep.subr.mxu0 0.0
    %555 = vmatpush1.msra.mxu0 0.0
    %556 = vmatprep.subr.mxu0 0.0
    %557 = vmatpush1.msra.mxu0 0.0
    %558 = vmatprep.subr.mxu0 0.0
    %559 = vmatpush1.msra.mxu0 0.0
    %560 = vmatprep.subr.mxu0 0.0
    %561 = vmatpush1.msra.mxu0 0.0
    %562 = vmatprep.subr.mxu0 0.0
    %563 = vmatpush1.msra.mxu0 0.0
    %564 = vmatprep.subr.mxu0 0.0
    %565 = vmatpush1.msra.mxu0 0.0
    %566 = vmatprep.subr.mxu0 0.0
    %567 = vmatpush1.msra.mxu0 0.0
    %568 = vmatprep.subr.mxu0 0.0
    %569 = vmatpush1.msra.mxu0 0.0
    %570 = vmatprep.subr.mxu0 0.0
    %571 = vmatpush1.msra.mxu0 0.0
    %572 = vmatprep.subr.mxu0 0.0
    %573 = vmatpush1.msra.mxu0 0.0
    %574 = vmatprep.subr.mxu0 0.0
    %575 = vmatpush1.msra.mxu0 0.0
    %576 = vmatprep.subr.mxu0 0.0
    %577 = vmatpush1.msra.mxu0 0.0
    %578 = vmatprep.subr.mxu0 0.0
    %579 = vmatpush1.msra.mxu0 0.0
    %580 = vmatprep.subr.mxu0 0.0
    %581 = vmatpush1.msra.mxu0 0.0
    %582 = vmatprep.subr.mxu0 0.0
    %583 = vmatpush1.msra.mxu0 0.0
    %584 = vmatprep.subr.mxu0 0.0
    %585 = vmatpush1.msra.mxu0 0.0
    %586 = vmatprep.subr.mxu0 0.0
    %587 = vmatpush1.msra.mxu0 0.0
    %588 = vmatprep.subr.mxu0 0.0
    %589 = vmatpush1.msra.mxu0 0.0
    %590 = vmatprep.subr.mxu0 0.0
    %591 = vmatpush1.msra.mxu0 0.0
    %592 = vmatprep.subr.mxu0 0.0
    %593 = vmatpush1.msra.mxu0 0.0
    %594 = vmatprep.subr.mxu0 0.0
    %595 = vmatpush1.msra.mxu0 0.0
    %596 = vmatprep.subr.mxu0 0.0
    %597 = vmatpush1.msra.mxu0 0.0
    %598 = vmatprep.subr.mxu0 0.0
    %599 = vmatpush1.msra.mxu0 0.0
    %600 = vmatprep.subr.mxu0 0.0
    %601 = vmatpush1.msra.mxu0 0.0
    %602 = vmatprep.subr.mxu0 0.0
    %603 = vmatpush1.msra.mxu0 0.0
    %604 = vmatprep.subr.mxu0 0.0
    %605 = vmatpush1.msra.mxu0 0.0
    %606 = vmatprep.subr.mxu0 0.0
    %607 = vmatpush1.msra.mxu0 0.0
    %608 = vmatprep.mubr.f32.mxu0 0.0
    %609 = vmatmul.mubr.f32.gmra.mrb[0].mxu0 %v542
    %v610 = vpop.f32.mrb[0].mxu0
    %v611 = vadd.f32 %v463, %v610
    %v612 = vpop.f32.mrb[0].mxu0
    %613 = vdwg.mxu0
    %v614 = vmul.f32 %v611, 0.5
    %v615 = vtanh.pop %v614
    %v616 = vadd.f32 %v615, 1.0
    %v617 = vmul.f32 %v616, 0.5
    %v618 = vmul.f32 %v72, %v464
    %v619 = vsel %vm235, %v618, 0.0
    %620 = vadd.xlane.f32.xlu0 %v619
    %v621 = vpop.xlane.xlu0 %620
    %v622 = vadd.f32 %v621, %v465
    %v623 = vmul.f32 %v622, 0.5
    %v624 = vtanh.pop %v623
    %v625 = vadd.f32 %v624, 1.0
    %v626 = vmul.f32 %v625, 0.5
    %628 = vset.pattern.permute.xlu0 0
    %629 = vperm.xlu0 %628, %v626
    %v630 = vpop.permute.xlu0 %629
    %v632 = vmul.f32 %v72, %v630
    %v633 = vmul.f32 %v72, %v617
    %v634 = vadd.f32 %v632, %v633
    %s635 = scalar_lea.vmem %s14, 1
    %636 = vst.msk [vmem:[%s635] sm:$0x1] %vm235, %v634
    %s637 = scalar_lea.vmem %s1, 4
    %v638 = vld [vmem:[%s637] sm:$0xf]
    %v639 = vld [vmem:[%s8] sm:$0xff]
    %v640 = vld [vmem:[%s8 + $0x8] sm:$0xff]
    %v641 = vld [vmem:[%s8 + $0x10] sm:$0xff]
    %v642 = vld [vmem:[%s8 + $0x18] sm:$0xff]
    %v643 = vld [vmem:[%s9] sm:$0x1]
    %v644 = vld [vmem:[%s10] sm:$0xff]
    %v645 = vld [vmem:[%s10 + $0x8] sm:$0xff]
    %v646 = vld [vmem:[%s11] sm:$0x1]
    %v647 = vld [vmem:[%s12] sm:$0x1]
    %v648 = vld [vmem:[#allocation3] sm:$0x1]
    %v649 = vsel %vm264, %v638, 0.0
    %v650 = vrot.slane %v649, 4
    %v651 = vadd.f32 %v649, %v650
    %v652 = vrot.slane %v651, 2
    %v653 = vadd.f32 %v651, %v652
    %v654 = vrot.slane %v653, 1
    %v655 = vadd.f32 %v653, %v654
    %v656 = vmul.f32 %v655, 0.25
    %v658 = vsel %vm273, %v656, 0
    %660 = vmatprep.subr.mxu0 0.0
    %661 = vmatpush1.msra.mxu0 %v639
    %662 = vmatprep.subr.mxu0 0.0
    %663 = vmatpush1.msra.mxu0 %v640
    %664 = vmatprep.subr.mxu0 0.0
    %665 = vmatpush1.msra.mxu0 %v641
    %666 = vmatprep.subr.mxu0 0.0
    %667 = vmatpush1.msra.mxu0 %v642
    %668 = vmatprep.subr.mxu0 0.0
    %669 = vmatpush1.msra.mxu0 0.0
    %670 = vmatprep.subr.mxu0 0.0
    %671 = vmatpush1.msra.mxu0 0.0
    %672 = vmatprep.subr.mxu0 0.0
    %673 = vmatpush1.msra.mxu0 0.0
    %674 = vmatprep.subr.mxu0 0.0
    %675 = vmatpush1.msra.mxu0 0.0
    %676 = vmatprep.subr.mxu0 0.0
    %677 = vmatpush1.msra.mxu0 0.0
    %678 = vmatprep.subr.mxu0 0.0
    %679 = vmatpush1.msra.mxu0 0.0
    %680 = vmatprep.subr.mxu0 0.0
    %681 = vmatpush1.msra.mxu0 0.0
    %682 = vmatprep.subr.mxu0 0.0
    %683 = vmatpush1.msra.mxu0 0.0
    %684 = vmatprep.subr.mxu0 0.0
    %685 = vmatpush1.msra.mxu0 0.0
    %686 = vmatprep.subr.mxu0 0.0
    %687 = vmatpush1.msra.mxu0 0.0
    %688 = vmatprep.subr.mxu0 0.0
    %689 = vmatpush1.msra.mxu0 0.0
    %690 = vmatprep.subr.mxu0 0.0
    %691 = vmatpush1.msra.mxu0 0.0
    %692 = vmatprep.subr.mxu0 0.0
    %693 = vmatpush1.msra.mxu0 0.0
    %694 = vmatprep.subr.mxu0 0.0
    %695 = vmatpush1.msra.mxu0 0.0
    %696 = vmatprep.subr.mxu0 0.0
    %697 = vmatpush1.msra.mxu0 0.0
    %698 = vmatprep.subr.mxu0 0.0
    %699 = vmatpush1.msra.mxu0 0.0
    %700 = vmatprep.subr.mxu0 0.0
    %701 = vmatpush1.msra.mxu0 0.0
    %702 = vmatprep.subr.mxu0 0.0
    %703 = vmatpush1.msra.mxu0 0.0
    %704 = vmatprep.subr.mxu0 0.0
    %705 = vmatpush1.msra.mxu0 0.0
    %706 = vmatprep.subr.mxu0 0.0
    %707 = vmatpush1.msra.mxu0 0.0
    %708 = vmatprep.subr.mxu0 0.0
    %709 = vmatpush1.msra.mxu0 0.0
    %710 = vmatprep.subr.mxu0 0.0
    %711 = vmatpush1.msra.mxu0 0.0
    %712 = vmatprep.subr.mxu0 0.0
    %713 = vmatpush1.msra.mxu0 0.0
    %714 = vmatprep.subr.mxu0 0.0
    %715 = vmatpush1.msra.mxu0 0.0
    %716 = vmatprep.subr.mxu0 0.0
    %717 = vmatpush1.msra.mxu0 0.0
    %718 = vmatprep.subr.mxu0 0.0
    %719 = vmatpush1.msra.mxu0 0.0
    %720 = vmatprep.subr.mxu0 0.0
    %721 = vmatpush1.msra.mxu0 0.0
    %722 = vmatprep.subr.mxu0 0.0
    %723 = vmatpush1.msra.mxu0 0.0
    %724 = vmatprep.mubr.f32.mxu0 0.0
    %725 = vmatmul.mubr.f32.gmra.mrb[0].mxu0 %v658
    %v726 = vpop.f32.mrb[0].mxu0
    %v727 = vadd.f32 %v643, %v726
    %v728 = vpop.f32.mrb[0].mxu0
    %729 = vdwg.mxu0
    %v730 = vmax.f32 %v727, 0.0
    %v732 = vsel %vm81, %v730, 0
    %734 = vmatprep.subr.mxu0 0.0
    %735 = vmatpush1.msra.mxu0 %v644
    %736 = vmatprep.subr.mxu0 0.0
    %737 = vmatpush1.msra.mxu0 %v645
    %738 = vmatprep.subr.mxu0 0.0
    %739 = vmatpush1.msra.mxu0 0.0
    %740 = vmatprep.subr.mxu0 0.0
    %741 = vmatpush1.msra.mxu0 0.0
    %742 = vmatprep.subr.mxu0 0.0
    %743 = vmatpush1.msra.mxu0 0.0
    %744 = vmatprep.subr.mxu0 0.0
    %745 = vmatpush1.msra.mxu0 0.0
    %746 = vmatprep.subr.mxu0 0.0
    %747 = vmatpush1.msra.mxu0 0.0
    %748 = vmatprep.subr.mxu0 0.0
    %749 = vmatpush1.msra.mxu0 0.0
    %750 = vmatprep.subr.mxu0 0.0
    %751 = vmatpush1.msra.mxu0 0.0
    %752 = vmatprep.subr.mxu0 0.0
    %753 = vmatpush1.msra.mxu0 0.0
    %754 = vmatprep.subr.mxu0 0.0
    %755 = vmatpush1.msra.mxu0 0.0
    %756 = vmatprep.subr.mxu0 0.0
    %757 = vmatpush1.msra.mxu0 0.0
    %758 = vmatprep.subr.mxu0 0.0
    %759 = vmatpush1.msra.mxu0 0.0
    %760 = vmatprep.subr.mxu0 0.0
    %761 = vmatpush1.msra.mxu0 0.0
    %762 = vmatprep.subr.mxu0 0.0
    %763 = vmatpush1.msra.mxu0 0.0
    %764 = vmatprep.subr.mxu0 0.0
    %765 = vmatpush1.msra.mxu0 0.0
    %766 = vmatprep.subr.mxu0 0.0
    %767 = vmatpush1.msra.mxu0 0.0
    %768 = vmatprep.subr.mxu0 0.0
    %769 = vmatpush1.msra.mxu0 0.0
    %770 = vmatprep.subr.mxu0 0.0
    %771 = vmatpush1.msra.mxu0 0.0
    %772 = vmatprep.subr.mxu0 0.0
    %773 = vmatpush1.msra.mxu0 0.0
    %774 = vmatprep.subr.mxu0 0.0
    %775 = vmatpush1.msra.mxu0 0.0
    %776 = vmatprep.subr.mxu0 0.0
    %777 = vmatpush1.msra.mxu0 0.0
    %778 = vmatprep.subr.mxu0 0.0
    %779 = vmatpush1.msra.mxu0 0.0
    %780 = vmatprep.subr.mxu0 0.0
    %781 = vmatpush1.msra.mxu0 0.0
    %782 = vmatprep.subr.mxu0 0.0
    %783 = vmatpush1.msra.mxu0 0.0
    %784 = vmatprep.subr.mxu0 0.0
    %785 = vmatpush1.msra.mxu0 0.0
    %786 = vmatprep.subr.mxu0 0.0
    %787 = vmatpush1.msra.mxu0 0.0
    %788 = vmatprep.subr.mxu0 0.0
    %789 = vmatpush1.msra.mxu0 0.0
    %790 = vmatprep.subr.mxu0 0.0
    %791 = vmatpush1.msra.mxu0 0.0
    %792 = vmatprep.subr.mxu0 0.0
    %793 = vmatpush1.msra.mxu0 0.0
    %794 = vmatprep.subr.mxu0 0.0
    %795 = vmatpush1.msra.mxu0 0.0
    %796 = vmatprep.subr.mxu0 0.0
    %797 = vmatpush1.msra.mxu0 0.0
    %798 = vmatprep.mubr.f32.mxu0 0.0
    %799 = vmatmul.mubr.f32.gmra.mrb[0].mxu0 %v732
    %v800 = vpop.f32.mrb[0].mxu0
    %v801 = vadd.f32 %v646, %v800
    %v802 = vpop.f32.mrb[0].mxu0
    %803 = vdwg.mxu0
    %v804 = vmul.f32 %v801, 0.5
    %v805 = vtanh.pop %v804
    %v806 = vadd.f32 %v805, 1.0
    %v807 = vmul.f32 %v806, 0.5
    %v809 = vlaneseq
    %v810 = vshrl.u32 %v809, 7
    %v811 = vsub.s32 0, %v810
    %v812 = vrot.slane %v647, %v811
    %v814 = vmul.f32 %v638, %v812
    %v815 = vsel %vm264, %v814, 0.0
    %816 = vadd.xlane.f32.xlu0 %v815
    %v817 = vpop.xlane.xlu0 %816
    %v819 = vlaneseq
    %v820 = vshrl.u32 %v819, 7
    %v821 = vsub.s32 0, %v820
    %v822 = vrot.slane %v648, %v821
    %v824 = vadd.f32 %v817, %v822
    %v825 = vmul.f32 %v824, 0.5
    %v826 = vtanh.pop %v825
    %v827 = vadd.f32 %v826, 1.0
    %v828 = vmul.f32 %v827, 0.5
    %830 = vset.pattern.permute.xlu0 0
    %831 = vperm.xlu0 %830, %v828
    %v832 = vpop.permute.xlu0 %831
    %v834 = vmul.f32 %v638, %v832
    %v835 = vlaneseq
    %v836 = vshrl.u32 %v835, 7
    %v837 = vsub.s32 0, %v836
    %v838 = vrot.slane %v807, %v837
    %v839 = vmul.f32 %v638, %v838
    %v840 = vadd.f32 %v834, %v839
    %s841 = scalar_lea.vmem [#allocation4], 4
    %842 = vst.msk [vmem:[%s841] sm:$0xf] %vm264, %v840
    // Predicated region
    $region58: #{densenet_se_forward.44} parent=1 // pred_check
      _
    $region59: #{densenet_se_forward.44} parent=1 // pred_check_branch
      %844 = sbr.rel (0) target = $region61
    $region60: #{densenet_se_forward.44} parent=1 // pred_region
      _
    $region61: #{densenet_se_forward.44} parent=1 // pred_fallthru
      _
    // Predicated region
    $region62: #{densenet_se_forward.44} parent=1 // pred_check
      _
    $region63: #{densenet_se_forward.44} parent=1 // pred_check_branch
      %846 = sbr.rel (0) target = $region65
    $region64: #{densenet_se_forward.44} parent=1 // pred_region
      %s848 = ssub.s32 128, 128
      %849 = vsyncadd [#allocation5], %s848
      %s850 = sshll.u32 [#allocation4], 4
      %s851 = int_to_ptr.vmem [resolvable:$true] %s850
      %856 = dma.vmem_to_hbm [thread:$0]  %s851, 128, %s15, [#allocation5], 64, 64, 4
    $region65: #{densenet_se_forward.44} parent=1 // pred_fallthru
      _
    // Predicated region
    $region66: #{densenet_se_forward.44} parent=1 // pred_check
      _
    $region67: #{densenet_se_forward.44} parent=1 // pred_check_branch
      %858 = sbr.rel (0) target = $region69
    $region68: #{densenet_se_forward.44} parent=1 // pred_region
      _
    $region69: #{densenet_se_forward.44} parent=1 // pred_fallthru
      _
    // Predicated region
    $region70: #{densenet_se_forward.44} parent=1 // pred_check
      _
    $region71: #{densenet_se_forward.44} parent=1 // pred_check_branch
      %860 = sbr.rel (0) target = $region73
    $region72: #{densenet_se_forward.44} parent=1 // pred_region
      %861 = dma.done [#allocation5], 128
    $region73: #{densenet_se_forward.44} parent=1 // pred_fallthru
      _
    %862 = vsyncpa [#allocation5], 1

// kernel: densenet_se_forward.49
$region0: #{densenet_se_forward.49}
  #allocation0 [shape = 'u32[]', space=smem, size = 0x4, offset = 0x4, fixed_abs, tag = 'smem constant byte address 0x4 - core index']
  #allocation1 [shape = 'u32[144,128]{1,0:T(1,128)}', space=vmem, size = 0x12000, scoped, tag = 'internal scratch']
  #allocation2 [shape = 'f32[1,1]{1,0:T(1,128)S(1)}', space=vmem, size = 0x200, scoped, tag = 'scoped memory for densenet_se_forward.49']
  %s0 = inlined_call_operand.vmem [shape: f32[2,1,32], index: 0, kind: input, shape index: {}]
  %s1 = inlined_call_operand.vmem [shape: f32[1,1,32], index: 1, kind: input, shape index: {}]
  %s2 = inlined_call_operand.vmem [shape: f32[1,1,32], index: 2, kind: input, shape index: {}]
  %s3 = inlined_call_operand.vmem [shape: f32[32,16], index: 3, kind: input, shape index: {}]
  %s4 = inlined_call_operand.vmem [shape: f32[1,16], index: 4, kind: input, shape index: {}]
  %s5 = inlined_call_operand.vmem [shape: f32[16,32], index: 5, kind: input, shape index: {}]
  %s6 = inlined_call_operand.vmem [shape: f32[1,32], index: 6, kind: input, shape index: {}]
  %s7 = inlined_call_operand.vmem [shape: f32[1,32], index: 7, kind: input, shape index: {}]
  %s8 = inlined_call_operand.<no memory space> [shape: f32[1,1], index: 8, kind: input, shape index: {}]
  %s9 = inlined_call_operand.hbm [shape: f32[2,1,32], index: 9, kind: output, shape index: {}]
  %s10 = sld [smem:[#allocation0]]
  $region46: #{densenet_se_forward.49} parent=0
    _
  %s12 = ssub.s32 1, %s10
  %s13 = scalar_select 0, %s12, %s10
  %v14 = vstv %s8
  %15 = vst [vmem:[#allocation2] sm:$0x1] %v14
  $region1: #{densenet_se_forward.49} parent=0
    #allocation3 [shape = 'u8[1024]{0}', space=vmem, size = 0x400, scoped, tag = 'output window, operand 0, single buffered']
    #allocation4 [shape = 's32[1]{0}', space=sflag, size = 0x4, scoped, tag = 'scoped memory for densenet_se_forward.49']
    %16 = vsyncpa [#allocation4], 0
    // Predicated region
    $region2: #{densenet_se_forward.49} parent=1 // pred_check
      _
    $region3: #{densenet_se_forward.49} parent=1 // pred_check_branch
      %18 = sbr.rel (0) target = $region5
    $region4: #{densenet_se_forward.49} parent=1 // pred_region
      _
    $region5: #{densenet_se_forward.49} parent=1 // pred_fallthru
      _
    // Predicated region
    $region6: #{densenet_se_forward.49} parent=1 // pred_check
      _
    $region7: #{densenet_se_forward.49} parent=1 // pred_check_branch
      %20 = sbr.rel (0) target = $region9
    $region8: #{densenet_se_forward.49} parent=1 // pred_region
      _
    $region9: #{densenet_se_forward.49} parent=1 // pred_fallthru
      _
    // Predicated region
    $region10: #{densenet_se_forward.49} parent=1 // pred_check
      _
    $region11: #{densenet_se_forward.49} parent=1 // pred_check_branch
      %22 = sbr.rel (0) target = $region13
    $region12: #{densenet_se_forward.49} parent=1 // pred_region
      _
    $region13: #{densenet_se_forward.49} parent=1 // pred_fallthru
      _
    // Predicated region
    $region14: #{densenet_se_forward.49} parent=1 // pred_check
      _
    $region15: #{densenet_se_forward.49} parent=1 // pred_check_branch
      %24 = sbr.rel (0) target = $region17
    $region16: #{densenet_se_forward.49} parent=1 // pred_region
      _
    $region17: #{densenet_se_forward.49} parent=1 // pred_fallthru
      _
    // Predicated region
    $region18: #{densenet_se_forward.49} parent=1 // pred_check
      _
    $region19: #{densenet_se_forward.49} parent=1 // pred_check_branch
      %26 = sbr.rel (0) target = $region21
    $region20: #{densenet_se_forward.49} parent=1 // pred_region
      _
    $region21: #{densenet_se_forward.49} parent=1 // pred_fallthru
      _
    // Predicated region
    $region22: #{densenet_se_forward.49} parent=1 // pred_check
      _
    $region23: #{densenet_se_forward.49} parent=1 // pred_check_branch
      %28 = sbr.rel (0) target = $region25
    $region24: #{densenet_se_forward.49} parent=1 // pred_region
      _
    $region25: #{densenet_se_forward.49} parent=1 // pred_fallthru
      _
    // Predicated region
    $region26: #{densenet_se_forward.49} parent=1 // pred_check
      _
    $region27: #{densenet_se_forward.49} parent=1 // pred_check_branch
      %30 = sbr.rel (0) target = $region29
    $region28: #{densenet_se_forward.49} parent=1 // pred_region
      _
    $region29: #{densenet_se_forward.49} parent=1 // pred_fallthru
      _
    // Predicated region
    $region30: #{densenet_se_forward.49} parent=1 // pred_check
      _
    $region31: #{densenet_se_forward.49} parent=1 // pred_check_branch
      %32 = sbr.rel (0) target = $region33
    $region32: #{densenet_se_forward.49} parent=1 // pred_region
      _
    $region33: #{densenet_se_forward.49} parent=1 // pred_fallthru
      _
    // Predicated region
    $region34: #{densenet_se_forward.49} parent=1 // pred_check
      _
    $region35: #{densenet_se_forward.49} parent=1 // pred_check_branch
      %34 = sbr.rel (0) target = $region37
    $region36: #{densenet_se_forward.49} parent=1 // pred_region
      _
    $region37: #{densenet_se_forward.49} parent=1 // pred_fallthru
      _
    %v35 = vld [vmem:[%s0] sm:$0x1]
    %v36 = vld [vmem:[%s0 + $0x1] sm:$0x1]
    %v37 = vld [vmem:[%s1] sm:$0x1]
    %v38 = vmul.f32 %v35, %v37
    %v39 = vmul.f32 %v36, %v37
    %v40 = vld [vmem:[%s2] sm:$0x1]
    %v41 = vadd.f32 %v38, %v40
    %v42 = vadd.f32 %v39, %v40
    %v43 = vld [vmem:[%s3] sm:$0xff]
    %v44 = vld [vmem:[%s3 + $0x8] sm:$0xff]
    %v45 = vld [vmem:[%s3 + $0x10] sm:$0xff]
    %v46 = vld [vmem:[%s3 + $0x18] sm:$0xff]
    %v47 = vld [vmem:[%s4] sm:$0x1]
    %v48 = vld [vmem:[%s5] sm:$0xff]
    %v49 = vld [vmem:[%s5 + $0x8] sm:$0xff]
    %v50 = vld [vmem:[%s6] sm:$0x1]
    %v51 = vld [vmem:[%s7] sm:$0x1]
    %v52 = vld [vmem:[#allocation2] sm:$0x1]
    %v53 = vadd.f32 %v41, 0.0
    %vm54 = vcmask 261120
    %v56 = vsel %vm54, %v53, 0
    %58 = vmatprep.subr.mxu0 0.0
    %59 = vmatpush1.msra.mxu0 %v43
    %60 = vmatprep.subr.mxu0 0.0
    %61 = vmatpush1.msra.mxu0 %v44
    %62 = vmatprep.subr.mxu0 0.0
    %63 = vmatpush1.msra.mxu0 %v45
    %64 = vmatprep.subr.mxu0 0.0
    %65 = vmatpush1.msra.mxu0 %v46
    %66 = vmatprep.subr.mxu0 0.0
    %67 = vmatpush1.msra.mxu0 0.0
    %68 = vmatprep.subr.mxu0 0.0
    %69 = vmatpush1.msra.mxu0 0.0
    %70 = vmatprep.subr.mxu0 0.0
    %71 = vmatpush1.msra.mxu0 0.0
    %72 = vmatprep.subr.mxu0 0.0
    %73 = vmatpush1.msra.mxu0 0.0
    %74 = vmatprep.subr.mxu0 0.0
    %75 = vmatpush1.msra.mxu0 0.0
    %76 = vmatprep.subr.mxu0 0.0
    %77 = vmatpush1.msra.mxu0 0.0
    %78 = vmatprep.subr.mxu0 0.0
    %79 = vmatpush1.msra.mxu0 0.0
    %80 = vmatprep.subr.mxu0 0.0
    %81 = vmatpush1.msra.mxu0 0.0
    %82 = vmatprep.subr.mxu0 0.0
    %83 = vmatpush1.msra.mxu0 0.0
    %84 = vmatprep.subr.mxu0 0.0
    %85 = vmatpush1.msra.mxu0 0.0
    %86 = vmatprep.subr.mxu0 0.0
    %87 = vmatpush1.msra.mxu0 0.0
    %88 = vmatprep.subr.mxu0 0.0
    %89 = vmatpush1.msra.mxu0 0.0
    %90 = vmatprep.subr.mxu0 0.0
    %91 = vmatpush1.msra.mxu0 0.0
    %92 = vmatprep.subr.mxu0 0.0
    %93 = vmatpush1.msra.mxu0 0.0
    %94 = vmatprep.subr.mxu0 0.0
    %95 = vmatpush1.msra.mxu0 0.0
    %96 = vmatprep.subr.mxu0 0.0
    %97 = vmatpush1.msra.mxu0 0.0
    %98 = vmatprep.subr.mxu0 0.0
    %99 = vmatpush1.msra.mxu0 0.0
    %100 = vmatprep.subr.mxu0 0.0
    %101 = vmatpush1.msra.mxu0 0.0
    %102 = vmatprep.subr.mxu0 0.0
    %103 = vmatpush1.msra.mxu0 0.0
    %104 = vmatprep.subr.mxu0 0.0
    %105 = vmatpush1.msra.mxu0 0.0
    %106 = vmatprep.subr.mxu0 0.0
    %107 = vmatpush1.msra.mxu0 0.0
    %108 = vmatprep.subr.mxu0 0.0
    %109 = vmatpush1.msra.mxu0 0.0
    %110 = vmatprep.subr.mxu0 0.0
    %111 = vmatpush1.msra.mxu0 0.0
    %112 = vmatprep.subr.mxu0 0.0
    %113 = vmatpush1.msra.mxu0 0.0
    %114 = vmatprep.subr.mxu0 0.0
    %115 = vmatpush1.msra.mxu0 0.0
    %116 = vmatprep.subr.mxu0 0.0
    %117 = vmatpush1.msra.mxu0 0.0
    %118 = vmatprep.subr.mxu0 0.0
    %119 = vmatpush1.msra.mxu0 0.0
    %120 = vmatprep.subr.mxu0 0.0
    %121 = vmatpush1.msra.mxu0 0.0
    %122 = vmatprep.mubr.f32.mxu0 0.0
    %123 = vmatmul.mubr.f32.gmra.mrb[0].mxu0 %v56
    %v124 = vpop.f32.mrb[0].mxu0
    %v125 = vadd.f32 %v47, %v124
    %v126 = vpop.f32.mrb[0].mxu0
    %127 = vdwg.mxu0
    %v128 = vmax.f32 %v125, 0.0
    %vm129 = vcmask 130048
    %v131 = vsel %vm129, %v128, 0
    %133 = vmatprep.subr.mxu0 0.0
    %134 = vmatpush1.msra.mxu0 %v48
    %135 = vmatprep.subr.mxu0 0.0
    %136 = vmatpush1.msra.mxu0 %v49
    %137 = vmatprep.subr.mxu0 0.0
    %138 = vmatpush1.msra.mxu0 0.0
    %139 = vmatprep.subr.mxu0 0.0
    %140 = vmatpush1.msra.mxu0 0.0
    %141 = vmatprep.subr.mxu0 0.0
    %142 = vmatpush1.msra.mxu0 0.0
    %143 = vmatprep.subr.mxu0 0.0
    %144 = vmatpush1.msra.mxu0 0.0
    %145 = vmatprep.subr.mxu0 0.0
    %146 = vmatpush1.msra.mxu0 0.0
    %147 = vmatprep.subr.mxu0 0.0
    %148 = vmatpush1.msra.mxu0 0.0
    %149 = vmatprep.subr.mxu0 0.0
    %150 = vmatpush1.msra.mxu0 0.0
    %151 = vmatprep.subr.mxu0 0.0
    %152 = vmatpush1.msra.mxu0 0.0
    %153 = vmatprep.subr.mxu0 0.0
    %154 = vmatpush1.msra.mxu0 0.0
    %155 = vmatprep.subr.mxu0 0.0
    %156 = vmatpush1.msra.mxu0 0.0
    %157 = vmatprep.subr.mxu0 0.0
    %158 = vmatpush1.msra.mxu0 0.0
    %159 = vmatprep.subr.mxu0 0.0
    %160 = vmatpush1.msra.mxu0 0.0
    %161 = vmatprep.subr.mxu0 0.0
    %162 = vmatpush1.msra.mxu0 0.0
    %163 = vmatprep.subr.mxu0 0.0
    %164 = vmatpush1.msra.mxu0 0.0
    %165 = vmatprep.subr.mxu0 0.0
    %166 = vmatpush1.msra.mxu0 0.0
    %167 = vmatprep.subr.mxu0 0.0
    %168 = vmatpush1.msra.mxu0 0.0
    %169 = vmatprep.subr.mxu0 0.0
    %170 = vmatpush1.msra.mxu0 0.0
    %171 = vmatprep.subr.mxu0 0.0
    %172 = vmatpush1.msra.mxu0 0.0
    %173 = vmatprep.subr.mxu0 0.0
    %174 = vmatpush1.msra.mxu0 0.0
    %175 = vmatprep.subr.mxu0 0.0
    %176 = vmatpush1.msra.mxu0 0.0
    %177 = vmatprep.subr.mxu0 0.0
    %178 = vmatpush1.msra.mxu0 0.0
    %179 = vmatprep.subr.mxu0 0.0
    %180 = vmatpush1.msra.mxu0 0.0
    %181 = vmatprep.subr.mxu0 0.0
    %182 = vmatpush1.msra.mxu0 0.0
    %183 = vmatprep.subr.mxu0 0.0
    %184 = vmatpush1.msra.mxu0 0.0
    %185 = vmatprep.subr.mxu0 0.0
    %186 = vmatpush1.msra.mxu0 0.0
    %187 = vmatprep.subr.mxu0 0.0
    %188 = vmatpush1.msra.mxu0 0.0
    %189 = vmatprep.subr.mxu0 0.0
    %190 = vmatpush1.msra.mxu0 0.0
    %191 = vmatprep.subr.mxu0 0.0
    %192 = vmatpush1.msra.mxu0 0.0
    %193 = vmatprep.subr.mxu0 0.0
    %194 = vmatpush1.msra.mxu0 0.0
    %195 = vmatprep.subr.mxu0 0.0
    %196 = vmatpush1.msra.mxu0 0.0
    %197 = vmatprep.mubr.f32.mxu0 0.0
    %198 = vmatmul.mubr.f32.gmra.mrb[0].mxu0 %v131
    %v199 = vpop.f32.mrb[0].mxu0
    %v200 = vadd.f32 %v50, %v199
    %v201 = vpop.f32.mrb[0].mxu0
    %202 = vdwg.mxu0
    %v203 = vmul.f32 %v200, 0.5
    %v204 = vtanh.pop %v203
    %v205 = vadd.f32 %v204, 1.0
    %v206 = vmul.f32 %v205, 0.5
    %v207 = vmul.f32 %v41, %v51
    %vm208 = vcmask 253952
    %v209 = vsel %vm208, %v207, 0.0
    %210 = vadd.xlane.f32.xlu0 %v209
    %v211 = vpop.xlane.xlu0 %210
    %v212 = vadd.f32 %v211, %v52
    %v213 = vmul.f32 %v212, 0.5
    %v214 = vtanh.pop %v213
    %v215 = vadd.f32 %v214, 1.0
    %v216 = vmul.f32 %v215, 0.5
    %218 = vset.pattern.permute.xlu0 0
    %219 = vperm.xlu0 %218, %v216
    %v220 = vpop.permute.xlu0 %219
    %v222 = vmul.f32 %v41, %v220
    %v223 = vmul.f32 %v41, %v206
    %v224 = vadd.f32 %v222, %v223
    %225 = vst.msk [vmem:[#allocation3] sm:$0x1] %vm208, %v224
    %v226 = vld [vmem:[%s3] sm:$0xff]
    %v227 = vld [vmem:[%s3 + $0x8] sm:$0xff]
    %v228 = vld [vmem:[%s3 + $0x10] sm:$0xff]
    %v229 = vld [vmem:[%s3 + $0x18] sm:$0xff]
    %v230 = vld [vmem:[%s4] sm:$0x1]
    %v231 = vld [vmem:[%s5] sm:$0xff]
    %v232 = vld [vmem:[%s5 + $0x8] sm:$0xff]
    %v233 = vld [vmem:[%s6] sm:$0x1]
    %v234 = vld [vmem:[%s7] sm:$0x1]
    %v235 = vld [vmem:[#allocation2] sm:$0x1]
    %v236 = vadd.f32 %v42, 0.0
    %v238 = vsel %vm54, %v236, 0
    %240 = vmatprep.subr.mxu0 0.0
    %241 = vmatpush1.msra.mxu0 %v226
    %242 = vmatprep.subr.mxu0 0.0
    %243 = vmatpush1.msra.mxu0 %v227
    %244 = vmatprep.subr.mxu0 0.0
    %245 = vmatpush1.msra.mxu0 %v228
    %246 = vmatprep.subr.mxu0 0.0
    %247 = vmatpush1.msra.mxu0 %v229
    %248 = vmatprep.subr.mxu0 0.0
    %249 = vmatpush1.msra.mxu0 0.0
    %250 = vmatprep.subr.mxu0 0.0
    %251 = vmatpush1.msra.mxu0 0.0
    %252 = vmatprep.subr.mxu0 0.0
    %253 = vmatpush1.msra.mxu0 0.0
    %254 = vmatprep.subr.mxu0 0.0
    %255 = vmatpush1.msra.mxu0 0.0
    %256 = vmatprep.subr.mxu0 0.0
    %257 = vmatpush1.msra.mxu0 0.0
    %258 = vmatprep.subr.mxu0 0.0
    %259 = vmatpush1.msra.mxu0 0.0
    %260 = vmatprep.subr.mxu0 0.0
    %261 = vmatpush1.msra.mxu0 0.0
    %262 = vmatprep.subr.mxu0 0.0
    %263 = vmatpush1.msra.mxu0 0.0
    %264 = vmatprep.subr.mxu0 0.0
    %265 = vmatpush1.msra.mxu0 0.0
    %266 = vmatprep.subr.mxu0 0.0
    %267 = vmatpush1.msra.mxu0 0.0
    %268 = vmatprep.subr.mxu0 0.0
    %269 = vmatpush1.msra.mxu0 0.0
    %270 = vmatprep.subr.mxu0 0.0
    %271 = vmatpush1.msra.mxu0 0.0
    %272 = vmatprep.subr.mxu0 0.0
    %273 = vmatpush1.msra.mxu0 0.0
    %274 = vmatprep.subr.mxu0 0.0
    %275 = vmatpush1.msra.mxu0 0.0
    %276 = vmatprep.subr.mxu0 0.0
    %277 = vmatpush1.msra.mxu0 0.0
    %278 = vmatprep.subr.mxu0 0.0
    %279 = vmatpush1.msra.mxu0 0.0
    %280 = vmatprep.subr.mxu0 0.0
    %281 = vmatpush1.msra.mxu0 0.0
    %282 = vmatprep.subr.mxu0 0.0
    %283 = vmatpush1.msra.mxu0 0.0
    %284 = vmatprep.subr.mxu0 0.0
    %285 = vmatpush1.msra.mxu0 0.0
    %286 = vmatprep.subr.mxu0 0.0
    %287 = vmatpush1.msra.mxu0 0.0
    %288 = vmatprep.subr.mxu0 0.0
    %289 = vmatpush1.msra.mxu0 0.0
    %290 = vmatprep.subr.mxu0 0.0
    %291 = vmatpush1.msra.mxu0 0.0
    %292 = vmatprep.subr.mxu0 0.0
    %293 = vmatpush1.msra.mxu0 0.0
    %294 = vmatprep.subr.mxu0 0.0
    %295 = vmatpush1.msra.mxu0 0.0
    %296 = vmatprep.subr.mxu0 0.0
    %297 = vmatpush1.msra.mxu0 0.0
    %298 = vmatprep.subr.mxu0 0.0
    %299 = vmatpush1.msra.mxu0 0.0
    %300 = vmatprep.subr.mxu0 0.0
    %301 = vmatpush1.msra.mxu0 0.0
    %302 = vmatprep.subr.mxu0 0.0
    %303 = vmatpush1.msra.mxu0 0.0
    %304 = vmatprep.mubr.f32.mxu0 0.0
    %305 = vmatmul.mubr.f32.gmra.mrb[0].mxu0 %v238
    %v306 = vpop.f32.mrb[0].mxu0
    %v307 = vadd.f32 %v230, %v306
    %v308 = vpop.f32.mrb[0].mxu0
    %309 = vdwg.mxu0
    %v310 = vmax.f32 %v307, 0.0
    %v312 = vsel %vm129, %v310, 0
    %314 = vmatprep.subr.mxu0 0.0
    %315 = vmatpush1.msra.mxu0 %v231
    %316 = vmatprep.subr.mxu0 0.0
    %317 = vmatpush1.msra.mxu0 %v232
    %318 = vmatprep.subr.mxu0 0.0
    %319 = vmatpush1.msra.mxu0 0.0
    %320 = vmatprep.subr.mxu0 0.0
    %321 = vmatpush1.msra.mxu0 0.0
    %322 = vmatprep.subr.mxu0 0.0
    %323 = vmatpush1.msra.mxu0 0.0
    %324 = vmatprep.subr.mxu0 0.0
    %325 = vmatpush1.msra.mxu0 0.0
    %326 = vmatprep.subr.mxu0 0.0
    %327 = vmatpush1.msra.mxu0 0.0
    %328 = vmatprep.subr.mxu0 0.0
    %329 = vmatpush1.msra.mxu0 0.0
    %330 = vmatprep.subr.mxu0 0.0
    %331 = vmatpush1.msra.mxu0 0.0
    %332 = vmatprep.subr.mxu0 0.0
    %333 = vmatpush1.msra.mxu0 0.0
    %334 = vmatprep.subr.mxu0 0.0
    %335 = vmatpush1.msra.mxu0 0.0
    %336 = vmatprep.subr.mxu0 0.0
    %337 = vmatpush1.msra.mxu0 0.0
    %338 = vmatprep.subr.mxu0 0.0
    %339 = vmatpush1.msra.mxu0 0.0
    %340 = vmatprep.subr.mxu0 0.0
    %341 = vmatpush1.msra.mxu0 0.0
    %342 = vmatprep.subr.mxu0 0.0
    %343 = vmatpush1.msra.mxu0 0.0
    %344 = vmatprep.subr.mxu0 0.0
    %345 = vmatpush1.msra.mxu0 0.0
    %346 = vmatprep.subr.mxu0 0.0
    %347 = vmatpush1.msra.mxu0 0.0
    %348 = vmatprep.subr.mxu0 0.0
    %349 = vmatpush1.msra.mxu0 0.0
    %350 = vmatprep.subr.mxu0 0.0
    %351 = vmatpush1.msra.mxu0 0.0
    %352 = vmatprep.subr.mxu0 0.0
    %353 = vmatpush1.msra.mxu0 0.0
    %354 = vmatprep.subr.mxu0 0.0
    %355 = vmatpush1.msra.mxu0 0.0
    %356 = vmatprep.subr.mxu0 0.0
    %357 = vmatpush1.msra.mxu0 0.0
    %358 = vmatprep.subr.mxu0 0.0
    %359 = vmatpush1.msra.mxu0 0.0
    %360 = vmatprep.subr.mxu0 0.0
    %361 = vmatpush1.msra.mxu0 0.0
    %362 = vmatprep.subr.mxu0 0.0
    %363 = vmatpush1.msra.mxu0 0.0
    %364 = vmatprep.subr.mxu0 0.0
    %365 = vmatpush1.msra.mxu0 0.0
    %366 = vmatprep.subr.mxu0 0.0
    %367 = vmatpush1.msra.mxu0 0.0
    %368 = vmatprep.subr.mxu0 0.0
    %369 = vmatpush1.msra.mxu0 0.0
    %370 = vmatprep.subr.mxu0 0.0
    %371 = vmatpush1.msra.mxu0 0.0
    %372 = vmatprep.subr.mxu0 0.0
    %373 = vmatpush1.msra.mxu0 0.0
    %374 = vmatprep.subr.mxu0 0.0
    %375 = vmatpush1.msra.mxu0 0.0
    %376 = vmatprep.subr.mxu0 0.0
    %377 = vmatpush1.msra.mxu0 0.0
    %378 = vmatprep.mubr.f32.mxu0 0.0
    %379 = vmatmul.mubr.f32.gmra.mrb[0].mxu0 %v312
    %v380 = vpop.f32.mrb[0].mxu0
    %v381 = vadd.f32 %v233, %v380
    %v382 = vpop.f32.mrb[0].mxu0
    %383 = vdwg.mxu0
    %v384 = vmul.f32 %v381, 0.5
    %v385 = vtanh.pop %v384
    %v386 = vadd.f32 %v385, 1.0
    %v387 = vmul.f32 %v386, 0.5
    %v388 = vmul.f32 %v42, %v234
    %v389 = vsel %vm208, %v388, 0.0
    %390 = vadd.xlane.f32.xlu0 %v389
    %v391 = vpop.xlane.xlu0 %390
    %v392 = vadd.f32 %v391, %v235
    %v393 = vmul.f32 %v392, 0.5
    %v394 = vtanh.pop %v393
    %v395 = vadd.f32 %v394, 1.0
    %v396 = vmul.f32 %v395, 0.5
    %398 = vset.pattern.permute.xlu0 0
    %399 = vperm.xlu0 %398, %v396
    %v400 = vpop.permute.xlu0 %399
    %v402 = vmul.f32 %v42, %v400
    %v403 = vmul.f32 %v42, %v387
    %v404 = vadd.f32 %v402, %v403
    %s405 = scalar_lea.vmem [#allocation3], 1
    %406 = vst.msk [vmem:[%s405] sm:$0x1] %vm208, %v404
    // Predicated region
    $region38: #{densenet_se_forward.49} parent=1 // pred_check
      _
    $region39: #{densenet_se_forward.49} parent=1 // pred_check_branch
      %408 = sbr.rel (0) target = $region41
    $region40: #{densenet_se_forward.49} parent=1 // pred_region
      %s410 = ssub.s32 32, 32
      %411 = vsyncadd [#allocation4], %s410
      %s412 = sshll.u32 [#allocation3], 4
      %s413 = int_to_ptr.vmem [resolvable:$true] %s412
      %418 = dma.vmem_to_hbm [thread:$0]  %s413, 32, %s9, [#allocation4], 16, 16, 1
    $region41: #{densenet_se_forward.49} parent=1 // pred_fallthru
      _
    // Predicated region
    $region42: #{densenet_se_forward.49} parent=1 // pred_check
      _
    $region43: #{densenet_se_forward.49} parent=1 // pred_check_branch
      %420 = sbr.rel (0) target = $region45
    $region44: #{densenet_se_forward.49} parent=1 // pred_region
      %421 = dma.done [#allocation4], 32
    $region45: #{densenet_se_forward.49} parent=1 // pred_fallthru
      _
    %422 = vsyncpa [#allocation4], 1

</llo_original>
